<compile_context>
chip_gen: v5e
topology: v5e:2x2
jax: 0.10.0
libtpu: 0.0.40
codegen_flags: <defaults>
</compile_context>

<pallas_src>
import math
import jax
import jax.numpy as jnp
from jax.experimental import pallas as pl
from jax.experimental.pallas import tpu as pltpu

# ----------------------------- config (small, synthetic) -----------------------------
CFG = dict(
    num_tokens=50,
    dim_model=32,
    num_heads=4,
    num_layers=2,
    d_ff=64,
    batch_size=2,
    max_seq_len=8,      # target length is max_seq_len - 1 = 7 (per nopeak mask)
    max_mem_len=16,
    pad_idx=0,
)

VPAD = 128   # lane-dense padded vocab dim (embedding rows / logits lanes)
NEG = -1e9


# ----------------------------- Pallas kernel -----------------------------

def _full_spec(shape):
    nd = len(shape)
    return pl.BlockSpec(tuple(shape), lambda i, _nd=nd: (0,) * _nd)


def _make_kernel(*, B, Lin, Lt, D, H, dk, L, Mtot, train, pad_idx):
    """One fused kernel: embeddings -> encoder stack -> decoder stack -> vocab head."""
    NX, NY = B * Lin, B * Lt
    f32, bf16 = jnp.float32, jnp.bfloat16

    def _mm(a, w):
        # bf16 x bf16 MXU matmul with f32 accumulation (weights are pre-cast to bf16).
        return jnp.dot(a.astype(bf16), w, preferred_element_type=f32)

    def _layer_norm(x, g, b, eps=1e-5):
        mu = jnp.mean(x, axis=-1, keepdims=True)
        var = jnp.mean(jnp.square(x - mu), axis=-1, keepdims=True)
        return (x - mu) * jax.lax.rsqrt(var + eps) * g + b

    def body(ids_x_flat, ids_x_row, ids_y_flat, ids_y_row, mem_ref, mem_bias_ref,
             emb_ref,
             e_wqkv, e_bqkv, e_wo, e_bo, e_w1, e_b1, e_w2, e_b2, e_ln,
             s_wqkv, s_bqkv, s_wo, s_bo,
             c_wq, c_bq, c_wkv, c_bkv, c_wo, c_bo,
             d_w1, d_b1, d_w2, d_b2, d_ln,
             ow_ref, ob_ref,
             logits_ref, encpre_ref):

        # Per-head lane masks (disjoint dk-wide blocks of D) built from iota — replaces
        # dk=8 lane slices and the head concatenate (no XLU relayouts).
        lane = jax.lax.broadcasted_iota(jnp.int32, (1, D), 1)
        head_masks = [jnp.where((lane >= h * dk) & (lane < (h + 1) * dk), 1.0, 0.0)
                      for h in range(H)]

        def _mha(q, k, v, bias):
            # q carries the 1/sqrt(dk) scale (folded into W_q / b_q at pack time).
            kb = k.astype(bf16)
            vb = v.astype(bf16)
            out = jnp.zeros((q.shape[0], D), f32)
            for h in range(H):
                qh = (q * head_masks[h]).astype(bf16)          # zero outside head h
                s = jax.lax.dot_general(qh, kb, (((1,), (1,)), ((), ())),
                                        preferred_element_type=f32) + bias
                s = s - jnp.max(s, axis=-1, keepdims=True)
                p = jnp.exp(s)
                p = p * pl.reciprocal(jnp.sum(p, axis=-1, keepdims=True), approx=True)
                out = out + jnp.dot(p.astype(bf16), vb,
                                    preferred_element_type=f32) * head_masks[h]
            return out

        # ------------- fused embedding gather (one-hot matmul vs VMEM table) -------------
        emb = emb_ref[...]                                      # (VPAD, D) bf16, *sqrt(D)
        iota_x = jax.lax.broadcasted_iota(jnp.int32, (NX, VPAD), 1)
        onehot_x = jnp.where(ids_x_flat[...] == iota_x, 1.0, 0.0).astype(bf16)
        x_all = jnp.dot(onehot_x, emb, preferred_element_type=f32)     # (NX, D)
        iota_y = jax.lax.broadcasted_iota(jnp.int32, (NY, VPAD), 1)
        onehot_y = jnp.where(ids_y_flat[...] == iota_y, 1.0, 0.0).astype(bf16)
        y_all = jnp.dot(onehot_y, emb, preferred_element_type=f32)     # (NY, D)
        # TODO(synk): nn.Dropout is stochastic/stateful; identity here.
        # TODO(synk): relative positional encoding R (Transformer-XL style) lives inside
        #             the undefined EncoderLayer; standard scaled-dot MHA is used.

        # ------------- in-kernel additive mask biases -------------
        x_keybias = jnp.where(ids_x_row[...] != pad_idx, 0.0, NEG)     # (B, Lin)
        y_keybias = jnp.where(ids_y_row[...] != pad_idx, 0.0, NEG)     # (B, Lt)
        if train:
            r = jax.lax.broadcasted_iota(jnp.int32, (Lt, Lt), 0)
            c = jax.lax.broadcasted_iota(jnp.int32, (Lt, Lt), 1)
            causal = jnp.where(c <= r, 0.0, NEG)                       # (Lt, Lt)

        # ---------------- encoder stack ----------------
        for i in range(L):
            encpre_ref[i] = x_all                           # layer-i input -> memory update
            wqkv, bqkv = e_wqkv[i], e_bqkv[i]
            qkv = _mm(x_all, wqkv) + bqkv                   # one fused QKV matmul (NX, 3D)
            if Mtot:
                kvm = _mm(mem_ref[i], wqkv[:, D:]) + bqkv[:, D:]    # memory K|V (B*Mtot, 2D)
            rows = []
            for b in range(B):
                sl = slice(b * Lin, (b + 1) * Lin)
                q, kx, vx = qkv[sl, :D], qkv[sl, D:2 * D], qkv[sl, 2 * D:]
                kb_row = x_keybias[b:b + 1, :]
                if Mtot:
                    slm = slice(b * Mtot, (b + 1) * Mtot)
                    k = jnp.concatenate([kvm[slm, :D], kx], axis=0)
                    v = jnp.concatenate([kvm[slm, D:], vx], axis=0)
                    bias = jnp.concatenate([mem_bias_ref[b:b + 1, :], kb_row], axis=1)
                else:
                    k, v, bias = kx, vx, kb_row
                rows.append(_mha(q, k, v, bias))
            attn = jnp.concatenate(rows, axis=0)            # (NX, D)
            ln = e_ln[i]
            h1 = _layer_norm(x_all + _mm(attn, e_wo[i]) + e_bo[i], ln[0:1], ln[1:2])
            ff = jnp.maximum(_mm(h1, e_w1[i]) + e_b1[i], 0.0)
            x_all = _layer_norm(h1 + _mm(ff, e_w2[i]) + e_b2[i], ln[2:3], ln[3:4])

        # ---------------- decoder stack ----------------
        for i in range(L):
            wqkv, bqkv = s_wqkv[i], s_bqkv[i]
            qkv = _mm(y_all, wqkv) + bqkv                   # masked self-attn QKV (NY, 3D)
            rows = []
            for b in range(B):
                sl = slice(b * Lt, (b + 1) * Lt)
                yb = y_keybias[b:b + 1, :]
                bias = (causal + yb) if train else yb
                rows.append(_mha(qkv[sl, :D], qkv[sl, D:2 * D], qkv[sl, 2 * D:], bias))
            attn = jnp.concatenate(rows, axis=0)
            ln = d_ln[i]
            h1 = _layer_norm(y_all + _mm(attn, s_wo[i]) + s_bo[i], ln[0:1], ln[1:2])

            qc = _mm(h1, c_wq[i]) + c_bq[i]                 # cross-attention (NY, D)
            kvc = _mm(x_all, c_wkv[i]) + c_bkv[i]           # (NX, 2D)
            rows = []
            for b in range(B):
                slq = slice(b * Lt, (b + 1) * Lt)
                slk = slice(b * Lin, (b + 1) * Lin)
                rows.append(_mha(qc[slq], kvc[slk, :D], kvc[slk, D:],
                                 x_keybias[b:b + 1, :]))
            attn = jnp.concatenate(rows, axis=0)
            h2 = _layer_norm(h1 + _mm(attn, c_wo[i]) + c_bo[i], ln[2:3], ln[3:4])
            ff = jnp.maximum(_mm(h2, d_w1[i]) + d_b1[i], 0.0)
            y_all = _layer_norm(h2 + _mm(ff, d_w2[i]) + d_b2[i], ln[4:5], ln[5:6])

        # ---------------- lane-dense (128-wide) vocab projection ----------------
        logits_ref[...] = _mm(y_all, ow_ref[...]) + ob_ref[...]

    if Mtot:
        def kern(ids_x_flat, ids_x_row, ids_y_flat, ids_y_row, mem_ref, mem_bias_ref,
                 *rest):
            body(ids_x_flat, ids_x_row, ids_y_flat, ids_y_row, mem_ref, mem_bias_ref,
                 *rest)
    else:
        def kern(ids_x_flat, ids_x_row, ids_y_flat, ids_y_row, *rest):
            body(ids_x_flat, ids_x_row, ids_y_flat, ids_y_row, None, None, *rest)
    return kern


def fused_transformer(input_ids, target_ids, mem_flat, mem_bias, packed, *, train):
    cfg = CFG
    D, H, L = cfg["dim_model"], cfg["num_heads"], cfg["num_layers"]
    dk = D // H
    B, Lin = input_ids.shape
    Lt = target_ids.shape[1]
    Mtot = 0 if mem_flat is None else mem_flat.shape[1] // B

    kern = _make_kernel(B=B, Lin=Lin, Lt=Lt, D=D, H=H, dk=dk, L=L, Mtot=Mtot,
                        train=train, pad_idx=cfg["pad_idx"])

    ids_x = input_ids.astype(jnp.int32)
    ids_y = target_ids.astype(jnp.int32)
    inputs = [ids_x.reshape(B * Lin, 1), ids_x,
              ids_y.reshape(B * Lt, 1), ids_y]
    if Mtot:
        inputs += [mem_flat, mem_bias]
    inputs += [packed["emb"],
               packed["e_wqkv"], packed["e_bqkv"], packed["e_wo"], packed["e_bo"],
               packed["e_w1"], packed["e_b1"], packed["e_w2"], packed["e_b2"],
               packed["e_ln"],
               packed["s_wqkv"], packed["s_bqkv"], packed["s_wo"], packed["s_bo"],
               packed["c_wq"], packed["c_bq"], packed["c_wkv"], packed["c_bkv"],
               packed["c_wo"], packed["c_bo"],
               packed["d_w1"], packed["d_b1"], packed["d_w2"], packed["d_b2"],
               packed["d_ln"],
               packed["out_w"], packed["out_b"]]

    out_shape = (jax.ShapeDtypeStruct((B * Lt, VPAD), jnp.float32),
                 jax.ShapeDtypeStruct((L, B * Lin, D), jnp.float32))
    logits, encpre = pl.pallas_call(
        kern,
        out_shape=out_shape,
        grid=(1,),
        in_specs=[_full_spec(a.shape) for a in inputs],
        out_specs=(_full_spec((B * Lt, VPAD)), _full_spec((L, B * Lin, D))),
        compiler_params=pltpu.CompilerParams(dimension_semantics=("arbitrary",)),
    )(*inputs)
    return logits, encpre


# -------------------- weight packing (bf16 weights, fused QKV, scale folding) ----------

def pack_params(params):
    cfg = CFG
    D, L, V = cfg["dim_model"], cfg["num_layers"], cfg["num_tokens"]
    H = cfg["num_heads"]
    dk = D // H
    scale = 1.0 / math.sqrt(dk)
    bf = lambda w: w.astype(jnp.bfloat16)

    def qkv(p):
        w = jnp.concatenate([p["wq"] * scale, p["wk"], p["wv"]], axis=1)
        b = jnp.concatenate([p["bq"] * scale, p["bk"], p["bv"]])[None, :]
        return bf(w), b.astype(jnp.float32)

    enc, dec = params["enc"], params["dec"]
    e_qkv = [qkv(p["attn"]) for p in enc]
    s_qkv = [qkv(p["self"]) for p in dec]

    emb = jnp.zeros((VPAD, D), jnp.float32).at[:V].set(params["embedding"] * math.sqrt(D))

    return dict(
        emb=bf(emb),
        e_wqkv=jnp.stack([w for w, _ in e_qkv]),
        e_bqkv=jnp.stack([b for _, b in e_qkv]),
        e_wo=bf(jnp.stack([p["attn"]["wo"] for p in enc])),
        e_bo=jnp.stack([p["attn"]["bo"][None, :] for p in enc]),
        e_w1=bf(jnp.stack([p["ffn"]["w1"] for p in enc])),
        e_b1=jnp.stack([p["ffn"]["b1"][None, :] for p in enc]),
        e_w2=bf(jnp.stack([p["ffn"]["w2"] for p in enc])),
        e_b2=jnp.stack([p["ffn"]["b2"][None, :] for p in enc]),
        e_ln=jnp.stack([jnp.stack([p["ln1_g"], p["ln1_b"], p["ln2_g"], p["ln2_b"]])
                        for p in enc]),
        s_wqkv=jnp.stack([w for w, _ in s_qkv]),
        s_bqkv=jnp.stack([b for _, b in s_qkv]),
        s_wo=bf(jnp.stack([p["self"]["wo"] for p in dec])),
        s_bo=jnp.stack([p["self"]["bo"][None, :] for p in dec]),
        c_wq=bf(jnp.stack([p["cross"]["wq"] * scale for p in dec])),
        c_bq=jnp.stack([(p["cross"]["bq"] * scale)[None, :] for p in dec]),
        c_wkv=bf(jnp.stack([jnp.concatenate([p["cross"]["wk"], p["cross"]["wv"]], axis=1)
                            for p in dec])),
        c_bkv=jnp.stack([jnp.concatenate([p["cross"]["bk"], p["cross"]["bv"]])[None, :]
                         for p in dec]),
        c_wo=bf(jnp.stack([p["cross"]["wo"] for p in dec])),
        c_bo=jnp.stack([p["cross"]["bo"][None, :] for p in dec]),
        d_w1=bf(jnp.stack([p["ffn"]["w1"] for p in dec])),
        d_b1=jnp.stack([p["ffn"]["b1"][None, :] for p in dec]),
        d_w2=bf(jnp.stack([p["ffn"]["w2"] for p in dec])),
        d_b2=jnp.stack([p["ffn"]["b2"][None, :] for p in dec]),
        d_ln=jnp.stack([jnp.stack([p["ln1_g"], p["ln1_b"], p["ln2_g"], p["ln2_b"],
                                   p["ln3_g"], p["ln3_b"]]) for p in dec]),
        out_w=bf(jnp.zeros((D, VPAD), jnp.float32).at[:, :V].set(params["out_w"])),
        out_b=jnp.zeros((1, VPAD), jnp.float32).at[:, :V].set(params["out_b"]),
    )


# ----------------------------- forward (glue around ONE pallas_call) --------------------

def seq2seq_forward(params, input_ids, target_ids, mem, c_mem, mem_mask,
                    train=True, save=True):
    cfg = CFG
    D, L, V = cfg["dim_model"], cfg["num_layers"], cfg["num_tokens"]
    Mmax = cfg["max_mem_len"]
    B, Lin = input_ids.shape
    _, Lt = target_ids.shape

    # Bucket the [c_mem | mem] block to a multiple of 8 rows (0 when empty): no dead
    # matmuls / dead key columns on early calls. Recompiles per bucket.
    c_len, m_len = c_mem[0].shape[1], mem[0].shape[1]
    tot = c_len + m_len
    Mtot = (-(-tot // 8)) * 8 if tot else 0
    if Mtot:
        mem_cat = jnp.zeros((L, B, Mtot, D), jnp.float32)
        valid = jnp.zeros((B, Mtot), jnp.float32)
        if c_len:
            mem_cat = mem_cat.at[:, :, :c_len].set(jnp.stack(c_mem))
            valid = valid.at[:, :c_len].set(1.0)
        if m_len:
            mem_cat = mem_cat.at[:, :, c_len:tot].set(jnp.stack(mem))
            valid = valid.at[:, c_len:tot].set(mem_mask[:, 0, :])
        mem_flat = mem_cat.reshape(L, B * Mtot, D).astype(jnp.bfloat16)
        mem_bias = jnp.where(valid > 0, 0.0, NEG).astype(jnp.float32)
    else:
        mem_flat, mem_bias = None, None

    packed = pack_params(params)
    logits, encpre = fused_transformer(input_ids, target_ids, mem_flat, mem_bias,
                                       packed, train=train)
    out = logits.reshape(B, Lt, VPAD)[:, :, :V]
    enc_pre = encpre.reshape(L, B, Lin, D)

    # Functional memory update (add_to_memory / add_to_memory_mask).
    new_mem, new_c_mem = list(mem), list(c_mem)
    new_mem_mask = mem_mask
    if save:
        input_mask = (input_ids != cfg["pad_idx"]).astype(jnp.float32)[:, None, :]
        for i in range(L):
            m = jnp.concatenate([mem[i], enc_pre[i]], axis=1)
            # TODO(synk): Compression() conv only triggers once mem exceeds max_mem_len;
            #             never hit at these sizes.
            new_mem[i] = m[:, -Mmax:]
        new_mem_mask = jnp.concatenate([mem_mask, input_mask], axis=-1)[:, :, -Mmax:]

    # TODO(synk): compression aux_loss needs non-empty c_mem + undefined full_attn /
    #             Compression helpers; not computed here.
    return out, (new_mem, new_c_mem, new_mem_mask)


# ----------------------------- deterministic params -----------------------------

def _lin_init(key, din, dout):
    w = jax.random.normal(key, (din, dout), jnp.float32) / math.sqrt(din)
    return w, jnp.zeros((dout,), jnp.float32)


def _attn_params(key, D):
    ks = jax.random.split(key, 4)
    wq, bq = _lin_init(ks[0], D, D)
    wk, bk = _lin_init(ks[1], D, D)
    wv, bv = _lin_init(ks[2], D, D)
    wo, bo = _lin_init(ks[3], D, D)
    return dict(wq=wq, bq=bq, wk=wk, bk=bk, wv=wv, bv=bv, wo=wo, bo=bo)


def _ffn_params(key, D, F):
    k1, k2 = jax.random.split(key)
    w1, b1 = _lin_init(k1, D, F)
    w2, b2 = _lin_init(k2, F, D)
    return dict(w1=w1, b1=b1, w2=w2, b2=b2)


def init_params(key):
    cfg = CFG
    D, F, L, V = cfg["dim_model"], cfg["d_ff"], cfg["num_layers"], cfg["num_tokens"]
    keys = jax.random.split(key, 3 + 2 * L)
    params = dict(
        embedding=jax.random.normal(keys[0], (V, D), jnp.float32) * 0.02,
        out_w=_lin_init(keys[1], D, V)[0],
        out_b=jnp.zeros((V,), jnp.float32),
        enc=[], dec=[],
    )
    for i in range(L):
        ke = jax.random.split(keys[2 + i], 2)
        params["enc"].append(dict(
            attn=_attn_params(ke[0], D), ffn=_ffn_params(ke[1], D, F),
            ln1_g=jnp.ones((D,), jnp.float32), ln1_b=jnp.zeros((D,), jnp.float32),
            ln2_g=jnp.ones((D,), jnp.float32), ln2_b=jnp.zeros((D,), jnp.float32),
        ))
    for i in range(L):
        kd = jax.random.split(keys[2 + L + i], 3)
        params["dec"].append(dict(
            self=_attn_params(kd[0], D), cross=_attn_params(kd[1], D),
            ffn=_ffn_params(kd[2], D, F),
            ln1_g=jnp.ones((D,), jnp.float32), ln1_b=jnp.zeros((D,), jnp.float32),
            ln2_g=jnp.ones((D,), jnp.float32), ln2_b=jnp.zeros((D,), jnp.float32),
            ln3_g=jnp.ones((D,), jnp.float32), ln3_b=jnp.zeros((D,), jnp.float32),
        ))
    return params


# ----------------------------- main -----------------------------

if __name__ == "__main__":
    cfg = CFG
    key = jax.random.PRNGKey(0)
    kp, ki, kt, ki2, kt2 = jax.random.split(key, 5)
    params = init_params(kp)

    B = cfg["batch_size"]
    Lin = cfg["max_seq_len"]          # 8
    Lt = cfg["max_seq_len"] - 1       # 7
    D, L = cfg["dim_model"], cfg["num_layers"]
    input_ids = jax.random.randint(ki, (B, Lin), 0, cfg["num_tokens"], jnp.int32)
    target_ids = jax.random.randint(kt, (B, Lt), 0, cfg["num_tokens"], jnp.int32)

    # set_up_mem(): empty memories on first call
    mem = [jnp.zeros((B, 0, D), jnp.float32) for _ in range(L)]
    c_mem = [jnp.zeros((B, 0, D), jnp.float32) for _ in range(L)]
    mem_mask = jnp.zeros((B, 1, 0), jnp.float32)

    fwd = jax.jit(seq2seq_forward, static_argnames=("train", "save"))

    # call 1: empty memory bucket (Mtot = 0)
    out, (mem, c_mem, mem_mask) = fwd(params, input_ids, target_ids, mem, c_mem,
                                      mem_mask, train=True, save=True)
    out = jax.block_until_ready(out)
    assert out.shape == (B, Lt, cfg["num_tokens"]), out.shape
    assert bool(jnp.all(jnp.isfinite(out)))
    assert mem[0].shape == (B, Lin, D)
    assert mem_mask.shape == (B, 1, min(cfg["max_mem_len"], Lin))

    # call 2: exercises the non-empty-memory bucket (Mtot = 8)
    input_ids2 = jax.random.randint(ki2, (B, Lin), 0, cfg["num_tokens"], jnp.int32)
    target_ids2 = jax.random.randint(kt2, (B, Lt), 0, cfg["num_tokens"], jnp.int32)
    out2, (mem, c_mem, mem_mask) = fwd(params, input_ids2, target_ids2, mem, c_mem,
                                       mem_mask, train=True, save=True)
    out2 = jax.block_until_ready(out2)
    assert out2.shape == (B, Lt, cfg["num_tokens"]), out2.shape
    assert bool(jnp.all(jnp.isfinite(out2)))
    assert mem[0].shape == (B, 2 * Lin, D)

    print("KERNEL_OK")
</pallas_src>

<mosaic_0001>
module attributes {stable_mosaic.version = 11 : i64} {
  func.func @kern(%arg0: i32, %arg1: memref<16x1xi32, #tpu.memory_space<vmem>>, %arg2: memref<2x8xi32, #tpu.memory_space<vmem>>, %arg3: memref<14x1xi32, #tpu.memory_space<vmem>>, %arg4: memref<2x7xi32, #tpu.memory_space<vmem>>, %arg5: memref<128x32xbf16, #tpu.memory_space<vmem>>, %arg6: memref<2x32x96xbf16, #tpu.memory_space<vmem>>, %arg7: memref<2x1x96xf32, #tpu.memory_space<vmem>>, %arg8: memref<2x32x32xbf16, #tpu.memory_space<vmem>>, %arg9: memref<2x1x32xf32, #tpu.memory_space<vmem>>, %arg10: memref<2x32x64xbf16, #tpu.memory_space<vmem>>, %arg11: memref<2x1x64xf32, #tpu.memory_space<vmem>>, %arg12: memref<2x64x32xbf16, #tpu.memory_space<vmem>>, %arg13: memref<2x1x32xf32, #tpu.memory_space<vmem>>, %arg14: memref<2x4x32xf32, #tpu.memory_space<vmem>>, %arg15: memref<2x32x96xbf16, #tpu.memory_space<vmem>>, %arg16: memref<2x1x96xf32, #tpu.memory_space<vmem>>, %arg17: memref<2x32x32xbf16, #tpu.memory_space<vmem>>, %arg18: memref<2x1x32xf32, #tpu.memory_space<vmem>>, %arg19: memref<2x32x32xbf16, #tpu.memory_space<vmem>>, %arg20: memref<2x1x32xf32, #tpu.memory_space<vmem>>, %arg21: memref<2x32x64xbf16, #tpu.memory_space<vmem>>, %arg22: memref<2x1x64xf32, #tpu.memory_space<vmem>>, %arg23: memref<2x32x32xbf16, #tpu.memory_space<vmem>>, %arg24: memref<2x1x32xf32, #tpu.memory_space<vmem>>, %arg25: memref<2x32x64xbf16, #tpu.memory_space<vmem>>, %arg26: memref<2x1x64xf32, #tpu.memory_space<vmem>>, %arg27: memref<2x64x32xbf16, #tpu.memory_space<vmem>>, %arg28: memref<2x1x32xf32, #tpu.memory_space<vmem>>, %arg29: memref<2x6x32xf32, #tpu.memory_space<vmem>>, %arg30: memref<32x128xbf16, #tpu.memory_space<vmem>>, %arg31: memref<1x128xf32, #tpu.memory_space<vmem>>, %arg32: memref<14x128xf32, #tpu.memory_space<vmem>>, %arg33: memref<2x16x32xf32, #tpu.memory_space<vmem>>) attributes {dimension_semantics = [#tpu.dimension_semantics<arbitrary>], iteration_bounds = array<i64: 1>, scalar_prefetch = 0 : i64, scratch_operands = 0 : i64, tpu.core_type = #tpu.core_type<tc>, window_params = [{pipeline_mode = #tpu.pipeline_mode<synchronous>, transform_indices = @transform_0, window_bounds = array<i64: 16, 1>}, {pipeline_mode = #tpu.pipeline_mode<synchronous>, transform_indices = @transform_1, window_bounds = array<i64: 2, 8>}, {pipeline_mode = #tpu.pipeline_mode<synchronous>, transform_indices = @transform_2, window_bounds = array<i64: 14, 1>}, {pipeline_mode = #tpu.pipeline_mode<synchronous>, transform_indices = @transform_3, window_bounds = array<i64: 2, 7>}, {pipeline_mode = #tpu.pipeline_mode<synchronous>, transform_indices = @transform_4, window_bounds = array<i64: 128, 32>}, {pipeline_mode = #tpu.pipeline_mode<synchronous>, transform_indices = @transform_5, window_bounds = array<i64: 2, 32, 96>}, {pipeline_mode = #tpu.pipeline_mode<synchronous>, transform_indices = @transform_6, window_bounds = array<i64: 2, 1, 96>}, {pipeline_mode = #tpu.pipeline_mode<synchronous>, transform_indices = @transform_7, window_bounds = array<i64: 2, 32, 32>}, {pipeline_mode = #tpu.pipeline_mode<synchronous>, transform_indices = @transform_8, window_bounds = array<i64: 2, 1, 32>}, {pipeline_mode = #tpu.pipeline_mode<synchronous>, transform_indices = @transform_9, window_bounds = array<i64: 2, 32, 64>}, {pipeline_mode = #tpu.pipeline_mode<synchronous>, transform_indices = @transform_10, window_bounds = array<i64: 2, 1, 64>}, {pipeline_mode = #tpu.pipeline_mode<synchronous>, transform_indices = @transform_11, window_bounds = array<i64: 2, 64, 32>}, {pipeline_mode = #tpu.pipeline_mode<synchronous>, transform_indices = @transform_12, window_bounds = array<i64: 2, 1, 32>}, {pipeline_mode = #tpu.pipeline_mode<synchronous>, transform_indices = @transform_13, window_bounds = array<i64: 2, 4, 32>}, {pipeline_mode = #tpu.pipeline_mode<synchronous>, transform_indices = @transform_14, window_bounds = array<i64: 2, 32, 96>}, {pipeline_mode = #tpu.pipeline_mode<synchronous>, transform_indices = @transform_15, window_bounds = array<i64: 2, 1, 96>}, {pipeline_mode = #tpu.pipeline_mode<synchronous>, transform_indices = @transform_16, window_bounds = array<i64: 2, 32, 32>}, {pipeline_mode = #tpu.pipeline_mode<synchronous>, transform_indices = @transform_17, window_bounds = array<i64: 2, 1, 32>}, {pipeline_mode = #tpu.pipeline_mode<synchronous>, transform_indices = @transform_18, window_bounds = array<i64: 2, 32, 32>}, {pipeline_mode = #tpu.pipeline_mode<synchronous>, transform_indices = @transform_19, window_bounds = array<i64: 2, 1, 32>}, {pipeline_mode = #tpu.pipeline_mode<synchronous>, transform_indices = @transform_20, window_bounds = array<i64: 2, 32, 64>}, {pipeline_mode = #tpu.pipeline_mode<synchronous>, transform_indices = @transform_21, window_bounds = array<i64: 2, 1, 64>}, {pipeline_mode = #tpu.pipeline_mode<synchronous>, transform_indices = @transform_22, window_bounds = array<i64: 2, 32, 32>}, {pipeline_mode = #tpu.pipeline_mode<synchronous>, transform_indices = @transform_23, window_bounds = array<i64: 2, 1, 32>}, {pipeline_mode = #tpu.pipeline_mode<synchronous>, transform_indices = @transform_24, window_bounds = array<i64: 2, 32, 64>}, {pipeline_mode = #tpu.pipeline_mode<synchronous>, transform_indices = @transform_25, window_bounds = array<i64: 2, 1, 64>}, {pipeline_mode = #tpu.pipeline_mode<synchronous>, transform_indices = @transform_26, window_bounds = array<i64: 2, 64, 32>}, {pipeline_mode = #tpu.pipeline_mode<synchronous>, transform_indices = @transform_27, window_bounds = array<i64: 2, 1, 32>}, {pipeline_mode = #tpu.pipeline_mode<synchronous>, transform_indices = @transform_28, window_bounds = array<i64: 2, 6, 32>}, {pipeline_mode = #tpu.pipeline_mode<synchronous>, transform_indices = @transform_29, window_bounds = array<i64: 32, 128>}, {pipeline_mode = #tpu.pipeline_mode<synchronous>, transform_indices = @transform_30, window_bounds = array<i64: 1, 128>}, {pipeline_mode = #tpu.pipeline_mode<synchronous>, transform_indices = @transform_31, window_bounds = array<i64: 14, 128>}, {pipeline_mode = #tpu.pipeline_mode<synchronous>, transform_indices = @transform_32, window_bounds = array<i64: 2, 16, 32>}]} {
    %0 = tpu.iota {dimensions = array<i32: 1>} : vector<1x32xi32>
    %c0_i32 = arith.constant 0 : i32
    %1 = vector.broadcast %c0_i32 : i32 to vector<1x32xi32>
    %2 = arith.cmpi sge, %0, %1 : vector<1x32xi32>
    %c8_i32 = arith.constant 8 : i32
    %3 = vector.broadcast %c8_i32 : i32 to vector<1x32xi32>
    %4 = arith.cmpi slt, %0, %3 : vector<1x32xi32>
    %5 = arith.andi %2, %4 : vector<1x32xi1>
    %cst = arith.constant 1.000000e+00 : f32
    %cst_0 = arith.constant 0.000000e+00 : f32
    %6 = vector.broadcast %cst : f32 to vector<1x32xf32>
    %7 = vector.broadcast %cst_0 : f32 to vector<1x32xf32>
    %8 = arith.select %5, %6, %7 : vector<1x32xi1>, vector<1x32xf32>
    %c8_i32_1 = arith.constant 8 : i32
    %9 = vector.broadcast %c8_i32_1 : i32 to vector<1x32xi32>
    %10 = arith.cmpi sge, %0, %9 : vector<1x32xi32>
    %c16_i32 = arith.constant 16 : i32
    %11 = vector.broadcast %c16_i32 : i32 to vector<1x32xi32>
    %12 = arith.cmpi slt, %0, %11 : vector<1x32xi32>
    %13 = arith.andi %10, %12 : vector<1x32xi1>
    %cst_2 = arith.constant 1.000000e+00 : f32
    %cst_3 = arith.constant 0.000000e+00 : f32
    %14 = vector.broadcast %cst_2 : f32 to vector<1x32xf32>
    %15 = vector.broadcast %cst_3 : f32 to vector<1x32xf32>
    %16 = arith.select %13, %14, %15 : vector<1x32xi1>, vector<1x32xf32>
    %c16_i32_4 = arith.constant 16 : i32
    %17 = vector.broadcast %c16_i32_4 : i32 to vector<1x32xi32>
    %18 = arith.cmpi sge, %0, %17 : vector<1x32xi32>
    %c24_i32 = arith.constant 24 : i32
    %19 = vector.broadcast %c24_i32 : i32 to vector<1x32xi32>
    %20 = arith.cmpi slt, %0, %19 : vector<1x32xi32>
    %21 = arith.andi %18, %20 : vector<1x32xi1>
    %cst_5 = arith.constant 1.000000e+00 : f32
    %cst_6 = arith.constant 0.000000e+00 : f32
    %22 = vector.broadcast %cst_5 : f32 to vector<1x32xf32>
    %23 = vector.broadcast %cst_6 : f32 to vector<1x32xf32>
    %24 = arith.select %21, %22, %23 : vector<1x32xi1>, vector<1x32xf32>
    %c24_i32_7 = arith.constant 24 : i32
    %25 = vector.broadcast %c24_i32_7 : i32 to vector<1x32xi32>
    %26 = arith.cmpi sge, %0, %25 : vector<1x32xi32>
    %c32_i32 = arith.constant 32 : i32
    %27 = vector.broadcast %c32_i32 : i32 to vector<1x32xi32>
    %28 = arith.cmpi slt, %0, %27 : vector<1x32xi32>
    %29 = arith.andi %26, %28 : vector<1x32xi1>
    %cst_8 = arith.constant 1.000000e+00 : f32
    %cst_9 = arith.constant 0.000000e+00 : f32
    %30 = vector.broadcast %cst_8 : f32 to vector<1x32xf32>
    %31 = vector.broadcast %cst_9 : f32 to vector<1x32xf32>
    %32 = arith.select %29, %30, %31 : vector<1x32xi1>, vector<1x32xf32>
    %c0 = arith.constant 0 : index
    %c0_10 = arith.constant 0 : index
    %33 = vector.load %arg5[%c0, %c0_10] : memref<128x32xbf16, #tpu.memory_space<vmem>>, vector<128x32xbf16>
    %34 = tpu.iota {dimensions = array<i32: 1>} : vector<16x128xi32>
    %c0_11 = arith.constant 0 : index
    %c0_12 = arith.constant 0 : index
    %35 = vector.load %arg1[%c0_11, %c0_12] : memref<16x1xi32, #tpu.memory_space<vmem>>, vector<16x1xi32>
    %36 = vector.broadcast %35 : vector<16x1xi32> to vector<16x128xi32>
    %37 = arith.cmpi eq, %36, %34 : vector<16x128xi32>
    %cst_13 = arith.constant 1.000000e+00 : f32
    %cst_14 = arith.constant 0.000000e+00 : f32
    %38 = vector.broadcast %cst_13 : f32 to vector<16x128xf32>
    %39 = vector.broadcast %cst_14 : f32 to vector<16x128xf32>
    %40 = arith.select %37, %38, %39 : vector<16x128xi1>, vector<16x128xf32>
    %41 = arith.truncf %40 : vector<16x128xf32> to vector<16x128xbf16>
    %cst_15 = arith.constant dense<0.000000e+00> : vector<16x32xf32>
    %42 = tpu.matmul %41, %33, %cst_15 {dimension_numbers = #tpu.dot_dimension_numbers<[1], [0], [0], [1], [0, 0, 1, 1], [], []>} : vector<16x128xbf16>, vector<128x32xbf16>, vector<16x32xf32> -> vector<16x32xf32>
    %43 = tpu.iota {dimensions = array<i32: 1>} : vector<14x128xi32>
    %c0_16 = arith.constant 0 : index
    %c0_17 = arith.constant 0 : index
    %44 = vector.load %arg3[%c0_16, %c0_17] : memref<14x1xi32, #tpu.memory_space<vmem>>, vector<14x1xi32>
    %45 = vector.broadcast %44 : vector<14x1xi32> to vector<14x128xi32>
    %46 = arith.cmpi eq, %45, %43 : vector<14x128xi32>
    %cst_18 = arith.constant 1.000000e+00 : f32
    %cst_19 = arith.constant 0.000000e+00 : f32
    %47 = vector.broadcast %cst_18 : f32 to vector<14x128xf32>
    %48 = vector.broadcast %cst_19 : f32 to vector<14x128xf32>
    %49 = arith.select %46, %47, %48 : vector<14x128xi1>, vector<14x128xf32>
    %50 = arith.truncf %49 : vector<14x128xf32> to vector<14x128xbf16>
    %cst_20 = arith.constant dense<0.000000e+00> : vector<14x32xf32>
    %51 = tpu.matmul %50, %33, %cst_20 {dimension_numbers = #tpu.dot_dimension_numbers<[1], [0], [0], [1], [0, 0, 1, 1], [], []>} : vector<14x128xbf16>, vector<128x32xbf16>, vector<14x32xf32> -> vector<14x32xf32>
    %c0_21 = arith.constant 0 : index
    %c0_22 = arith.constant 0 : index
    %52 = vector.load %arg2[%c0_21, %c0_22] : memref<2x8xi32, #tpu.memory_space<vmem>>, vector<2x8xi32>
    %c0_i32_23 = arith.constant 0 : i32
    %53 = vector.broadcast %c0_i32_23 : i32 to vector<2x8xi32>
    %54 = arith.cmpi ne, %52, %53 : vector<2x8xi32>
    %cst_24 = arith.constant 0.000000e+00 : f32
    %cst_25 = arith.constant -1.000000e+09 : f32
    %55 = vector.broadcast %cst_24 : f32 to vector<2x8xf32>
    %56 = vector.broadcast %cst_25 : f32 to vector<2x8xf32>
    %57 = arith.select %54, %55, %56 : vector<2x8xi1>, vector<2x8xf32>
    %c0_26 = arith.constant 0 : index
    %c0_27 = arith.constant 0 : index
    %58 = vector.load %arg4[%c0_26, %c0_27] : memref<2x7xi32, #tpu.memory_space<vmem>>, vector<2x7xi32>
    %c0_i32_28 = arith.constant 0 : i32
    %59 = vector.broadcast %c0_i32_28 : i32 to vector<2x7xi32>
    %60 = arith.cmpi ne, %58, %59 : vector<2x7xi32>
    %cst_29 = arith.constant 0.000000e+00 : f32
    %cst_30 = arith.constant -1.000000e+09 : f32
    %61 = vector.broadcast %cst_29 : f32 to vector<2x7xf32>
    %62 = vector.broadcast %cst_30 : f32 to vector<2x7xf32>
    %63 = arith.select %60, %61, %62 : vector<2x7xi1>, vector<2x7xf32>
    %64 = tpu.iota {dimensions = array<i32: 0>} : vector<7x7xi32>
    %65 = tpu.iota {dimensions = array<i32: 1>} : vector<7x7xi32>
    %66 = arith.cmpi sle, %65, %64 : vector<7x7xi32>
    %cst_31 = arith.constant 0.000000e+00 : f32
    %cst_32 = arith.constant -1.000000e+09 : f32
    %67 = vector.broadcast %cst_31 : f32 to vector<7x7xf32>
    %68 = vector.broadcast %cst_32 : f32 to vector<7x7xf32>
    %69 = arith.select %66, %67, %68 : vector<7x7xi1>, vector<7x7xf32>
    %c0_33 = arith.constant 0 : index
    %c0_34 = arith.constant 0 : index
    %c0_35 = arith.constant 0 : index
    %70 = vector.load %arg33[%c0_33, %c0_34, %c0_35] : memref<2x16x32xf32, #tpu.memory_space<vmem>>, vector<1x16x32xf32>
    %71 = vector.shape_cast %70 : vector<1x16x32xf32> to vector<16x32xf32>
    %72 = vector.shape_cast %42 : vector<16x32xf32> to vector<1x16x32xf32>
    tpu.vector_store %arg33[%c0_33, %c0_34, %c0_35], %72 {strides = array<i32>} : memref<2x16x32xf32, #tpu.memory_space<vmem>>, vector<1x16x32xf32>,
    %c0_36 = arith.constant 0 : index
    %c0_37 = arith.constant 0 : index
    %c0_38 = arith.constant 0 : index
    %73 = vector.load %arg6[%c0_36, %c0_37, %c0_38] : memref<2x32x96xbf16, #tpu.memory_space<vmem>>, vector<1x32x96xbf16>
    %74 = vector.shape_cast %73 : vector<1x32x96xbf16> to vector<32x96xbf16>
    %c0_39 = arith.constant 0 : index
    %c0_40 = arith.constant 0 : index
    %c0_41 = arith.constant 0 : index
    %75 = vector.load %arg7[%c0_39, %c0_40, %c0_41] : memref<2x1x96xf32, #tpu.memory_space<vmem>>, vector<1x1x96xf32>
    %76 = vector.shape_cast %75 : vector<1x1x96xf32> to vector<1x96xf32>
    %77 = arith.truncf %42 : vector<16x32xf32> to vector<16x32xbf16>
    %cst_42 = arith.constant dense<0.000000e+00> : vector<16x96xf32>
    %78 = tpu.matmul %77, %74, %cst_42 {dimension_numbers = #tpu.dot_dimension_numbers<[1], [0], [0], [1], [0, 0, 1, 1], [], []>} : vector<16x32xbf16>, vector<32x96xbf16>, vector<16x96xf32> -> vector<16x96xf32>
    %79 = vector.broadcast %76 : vector<1x96xf32> to vector<16x96xf32>
    %80 = arith.addf %78, %79 : vector<16x96xf32>
    %81 = vector.extract_strided_slice %80 {offsets = [0, 0], sizes = [8, 32], strides = [1, 1]} : vector<16x96xf32> to vector<8x32xf32>
    %82 = vector.extract_strided_slice %80 {offsets = [0, 32], sizes = [8, 32], strides = [1, 1]} : vector<16x96xf32> to vector<8x32xf32>
    %83 = vector.extract_strided_slice %80 {offsets = [0, 64], sizes = [8, 32], strides = [1, 1]} : vector<16x96xf32> to vector<8x32xf32>
    %84 = vector.extract_strided_slice %57 {offsets = [0, 0], sizes = [1, 8], strides = [1, 1]} : vector<2x8xf32> to vector<1x8xf32>
    %85 = arith.truncf %82 : vector<8x32xf32> to vector<8x32xbf16>
    %86 = arith.truncf %83 : vector<8x32xf32> to vector<8x32xbf16>
    %cst_43 = arith.constant 0.000000e+00 : f32
    %87 = vector.broadcast %cst_43 : f32 to vector<8x32xf32>
    %88 = vector.broadcast %8 : vector<1x32xf32> to vector<8x32xf32>
    %89 = arith.mulf %81, %88 : vector<8x32xf32>
    %90 = arith.truncf %89 : vector<8x32xf32> to vector<8x32xbf16>
    %cst_44 = arith.constant dense<0.000000e+00> : vector<8x8xf32>
    %91 = tpu.matmul %90, %85, %cst_44 {dimension_numbers = #tpu.dot_dimension_numbers<[1], [1], [0], [0], [0, 0, 1, 0], [], []>} : vector<8x32xbf16>, vector<8x32xbf16>, vector<8x8xf32> -> vector<8x8xf32>
    %92 = vector.broadcast %84 : vector<1x8xf32> to vector<8x8xf32>
    %93 = arith.addf %91, %92 : vector<8x8xf32>
    %cst_45 = arith.constant dense<0xFF800000> : vector<8xf32>
    %94 = vector.multi_reduction <maximumf>, %93, %cst_45 [1] : vector<8x8xf32> to vector<8xf32>
    %95 = vector.shape_cast %94 : vector<8xf32> to vector<8x1xf32>
    %96 = vector.broadcast %95 : vector<8x1xf32> to vector<8x8xf32>
    %97 = arith.subf %93, %96 : vector<8x8xf32>
    %98 = math.exp %97 : vector<8x8xf32>
    %cst_46 = arith.constant dense<0.000000e+00> : vector<8xf32>
    %99 = vector.multi_reduction <add>, %98, %cst_46 [1] : vector<8x8xf32> to vector<8xf32>
    %100 = vector.shape_cast %99 : vector<8xf32> to vector<8x1xf32>
    %101 = tpu.reciprocal %100 {approx = true} : vector<8x1xf32> -> vector<8x1xf32>
    %102 = vector.broadcast %101 : vector<8x1xf32> to vector<8x8xf32>
    %103 = arith.mulf %98, %102 : vector<8x8xf32>
    %104 = arith.truncf %103 : vector<8x8xf32> to vector<8x8xbf16>
    %cst_47 = arith.constant dense<0.000000e+00> : vector<8x32xf32>
    %105 = tpu.matmul %104, %86, %cst_47 {dimension_numbers = #tpu.dot_dimension_numbers<[1], [0], [0], [1], [0, 0, 1, 1], [], []>} : vector<8x8xbf16>, vector<8x32xbf16>, vector<8x32xf32> -> vector<8x32xf32>
    %106 = vector.broadcast %8 : vector<1x32xf32> to vector<8x32xf32>
    %107 = arith.mulf %105, %106 : vector<8x32xf32>
    %108 = arith.addf %87, %107 : vector<8x32xf32>
    %109 = vector.broadcast %16 : vector<1x32xf32> to vector<8x32xf32>
    %110 = arith.mulf %81, %109 : vector<8x32xf32>
    %111 = arith.truncf %110 : vector<8x32xf32> to vector<8x32xbf16>
    %cst_48 = arith.constant dense<0.000000e+00> : vector<8x8xf32>
    %112 = tpu.matmul %111, %85, %cst_48 {dimension_numbers = #tpu.dot_dimension_numbers<[1], [1], [0], [0], [0, 0, 1, 0], [], []>} : vector<8x32xbf16>, vector<8x32xbf16>, vector<8x8xf32> -> vector<8x8xf32>
    %113 = vector.broadcast %84 : vector<1x8xf32> to vector<8x8xf32>
    %114 = arith.addf %112, %113 : vector<8x8xf32>
    %cst_49 = arith.constant dense<0xFF800000> : vector<8xf32>
    %115 = vector.multi_reduction <maximumf>, %114, %cst_49 [1] : vector<8x8xf32> to vector<8xf32>
    %116 = vector.shape_cast %115 : vector<8xf32> to vector<8x1xf32>
    %117 = vector.broadcast %116 : vector<8x1xf32> to vector<8x8xf32>
    %118 = arith.subf %114, %117 : vector<8x8xf32>
    %119 = math.exp %118 : vector<8x8xf32>
    %cst_50 = arith.constant dense<0.000000e+00> : vector<8xf32>
    %120 = vector.multi_reduction <add>, %119, %cst_50 [1] : vector<8x8xf32> to vector<8xf32>
    %121 = vector.shape_cast %120 : vector<8xf32> to vector<8x1xf32>
    %122 = tpu.reciprocal %121 {approx = true} : vector<8x1xf32> -> vector<8x1xf32>
    %123 = vector.broadcast %122 : vector<8x1xf32> to vector<8x8xf32>
    %124 = arith.mulf %119, %123 : vector<8x8xf32>
    %125 = arith.truncf %124 : vector<8x8xf32> to vector<8x8xbf16>
    %cst_51 = arith.constant dense<0.000000e+00> : vector<8x32xf32>
    %126 = tpu.matmul %125, %86, %cst_51 {dimension_numbers = #tpu.dot_dimension_numbers<[1], [0], [0], [1], [0, 0, 1, 1], [], []>} : vector<8x8xbf16>, vector<8x32xbf16>, vector<8x32xf32> -> vector<8x32xf32>
    %127 = vector.broadcast %16 : vector<1x32xf32> to vector<8x32xf32>
    %128 = arith.mulf %126, %127 : vector<8x32xf32>
    %129 = arith.addf %108, %128 : vector<8x32xf32>
    %130 = vector.broadcast %24 : vector<1x32xf32> to vector<8x32xf32>
    %131 = arith.mulf %81, %130 : vector<8x32xf32>
    %132 = arith.truncf %131 : vector<8x32xf32> to vector<8x32xbf16>
    %cst_52 = arith.constant dense<0.000000e+00> : vector<8x8xf32>
    %133 = tpu.matmul %132, %85, %cst_52 {dimension_numbers = #tpu.dot_dimension_numbers<[1], [1], [0], [0], [0, 0, 1, 0], [], []>} : vector<8x32xbf16>, vector<8x32xbf16>, vector<8x8xf32> -> vector<8x8xf32>
    %134 = vector.broadcast %84 : vector<1x8xf32> to vector<8x8xf32>
    %135 = arith.addf %133, %134 : vector<8x8xf32>
    %cst_53 = arith.constant dense<0xFF800000> : vector<8xf32>
    %136 = vector.multi_reduction <maximumf>, %135, %cst_53 [1] : vector<8x8xf32> to vector<8xf32>
    %137 = vector.shape_cast %136 : vector<8xf32> to vector<8x1xf32>
    %138 = vector.broadcast %137 : vector<8x1xf32> to vector<8x8xf32>
    %139 = arith.subf %135, %138 : vector<8x8xf32>
    %140 = math.exp %139 : vector<8x8xf32>
    %cst_54 = arith.constant dense<0.000000e+00> : vector<8xf32>
    %141 = vector.multi_reduction <add>, %140, %cst_54 [1] : vector<8x8xf32> to vector<8xf32>
    %142 = vector.shape_cast %141 : vector<8xf32> to vector<8x1xf32>
    %143 = tpu.reciprocal %142 {approx = true} : vector<8x1xf32> -> vector<8x1xf32>
    %144 = vector.broadcast %143 : vector<8x1xf32> to vector<8x8xf32>
    %145 = arith.mulf %140, %144 : vector<8x8xf32>
    %146 = arith.truncf %145 : vector<8x8xf32> to vector<8x8xbf16>
    %cst_55 = arith.constant dense<0.000000e+00> : vector<8x32xf32>
    %147 = tpu.matmul %146, %86, %cst_55 {dimension_numbers = #tpu.dot_dimension_numbers<[1], [0], [0], [1], [0, 0, 1, 1], [], []>} : vector<8x8xbf16>, vector<8x32xbf16>, vector<8x32xf32> -> vector<8x32xf32>
    %148 = vector.broadcast %24 : vector<1x32xf32> to vector<8x32xf32>
    %149 = arith.mulf %147, %148 : vector<8x32xf32>
    %150 = arith.addf %129, %149 : vector<8x32xf32>
    %151 = vector.broadcast %32 : vector<1x32xf32> to vector<8x32xf32>
    %152 = arith.mulf %81, %151 : vector<8x32xf32>
    %153 = arith.truncf %152 : vector<8x32xf32> to vector<8x32xbf16>
    %cst_56 = arith.constant dense<0.000000e+00> : vector<8x8xf32>
    %154 = tpu.matmul %153, %85, %cst_56 {dimension_numbers = #tpu.dot_dimension_numbers<[1], [1], [0], [0], [0, 0, 1, 0], [], []>} : vector<8x32xbf16>, vector<8x32xbf16>, vector<8x8xf32> -> vector<8x8xf32>
    %155 = vector.broadcast %84 : vector<1x8xf32> to vector<8x8xf32>
    %156 = arith.addf %154, %155 : vector<8x8xf32>
    %cst_57 = arith.constant dense<0xFF800000> : vector<8xf32>
    %157 = vector.multi_reduction <maximumf>, %156, %cst_57 [1] : vector<8x8xf32> to vector<8xf32>
    %158 = vector.shape_cast %157 : vector<8xf32> to vector<8x1xf32>
    %159 = vector.broadcast %158 : vector<8x1xf32> to vector<8x8xf32>
    %160 = arith.subf %156, %159 : vector<8x8xf32>
    %161 = math.exp %160 : vector<8x8xf32>
    %cst_58 = arith.constant dense<0.000000e+00> : vector<8xf32>
    %162 = vector.multi_reduction <add>, %161, %cst_58 [1] : vector<8x8xf32> to vector<8xf32>
    %163 = vector.shape_cast %162 : vector<8xf32> to vector<8x1xf32>
    %164 = tpu.reciprocal %163 {approx = true} : vector<8x1xf32> -> vector<8x1xf32>
    %165 = vector.broadcast %164 : vector<8x1xf32> to vector<8x8xf32>
    %166 = arith.mulf %161, %165 : vector<8x8xf32>
    %167 = arith.truncf %166 : vector<8x8xf32> to vector<8x8xbf16>
    %cst_59 = arith.constant dense<0.000000e+00> : vector<8x32xf32>
    %168 = tpu.matmul %167, %86, %cst_59 {dimension_numbers = #tpu.dot_dimension_numbers<[1], [0], [0], [1], [0, 0, 1, 1], [], []>} : vector<8x8xbf16>, vector<8x32xbf16>, vector<8x32xf32> -> vector<8x32xf32>
    %169 = vector.broadcast %32 : vector<1x32xf32> to vector<8x32xf32>
    %170 = arith.mulf %168, %169 : vector<8x32xf32>
    %171 = arith.addf %150, %170 : vector<8x32xf32>
    %172 = vector.extract_strided_slice %80 {offsets = [8, 0], sizes = [8, 32], strides = [1, 1]} : vector<16x96xf32> to vector<8x32xf32>
    %173 = vector.extract_strided_slice %80 {offsets = [8, 32], sizes = [8, 32], strides = [1, 1]} : vector<16x96xf32> to vector<8x32xf32>
    %174 = vector.extract_strided_slice %80 {offsets = [8, 64], sizes = [8, 32], strides = [1, 1]} : vector<16x96xf32> to vector<8x32xf32>
    %175 = vector.extract_strided_slice %57 {offsets = [1, 0], sizes = [1, 8], strides = [1, 1]} : vector<2x8xf32> to vector<1x8xf32>
    %176 = arith.truncf %173 : vector<8x32xf32> to vector<8x32xbf16>
    %177 = arith.truncf %174 : vector<8x32xf32> to vector<8x32xbf16>
    %cst_60 = arith.constant 0.000000e+00 : f32
    %178 = vector.broadcast %cst_60 : f32 to vector<8x32xf32>
    %179 = vector.broadcast %8 : vector<1x32xf32> to vector<8x32xf32>
    %180 = arith.mulf %172, %179 : vector<8x32xf32>
    %181 = arith.truncf %180 : vector<8x32xf32> to vector<8x32xbf16>
    %cst_61 = arith.constant dense<0.000000e+00> : vector<8x8xf32>
    %182 = tpu.matmul %181, %176, %cst_61 {dimension_numbers = #tpu.dot_dimension_numbers<[1], [1], [0], [0], [0, 0, 1, 0], [], []>} : vector<8x32xbf16>, vector<8x32xbf16>, vector<8x8xf32> -> vector<8x8xf32>
    %183 = vector.broadcast %175 : vector<1x8xf32> to vector<8x8xf32>
    %184 = arith.addf %182, %183 : vector<8x8xf32>
    %cst_62 = arith.constant dense<0xFF800000> : vector<8xf32>
    %185 = vector.multi_reduction <maximumf>, %184, %cst_62 [1] : vector<8x8xf32> to vector<8xf32>
    %186 = vector.shape_cast %185 : vector<8xf32> to vector<8x1xf32>
    %187 = vector.broadcast %186 : vector<8x1xf32> to vector<8x8xf32>
    %188 = arith.subf %184, %187 : vector<8x8xf32>
    %189 = math.exp %188 : vector<8x8xf32>
    %cst_63 = arith.constant dense<0.000000e+00> : vector<8xf32>
    %190 = vector.multi_reduction <add>, %189, %cst_63 [1] : vector<8x8xf32> to vector<8xf32>
    %191 = vector.shape_cast %190 : vector<8xf32> to vector<8x1xf32>
    %192 = tpu.reciprocal %191 {approx = true} : vector<8x1xf32> -> vector<8x1xf32>
    %193 = vector.broadcast %192 : vector<8x1xf32> to vector<8x8xf32>
    %194 = arith.mulf %189, %193 : vector<8x8xf32>
    %195 = arith.truncf %194 : vector<8x8xf32> to vector<8x8xbf16>
    %cst_64 = arith.constant dense<0.000000e+00> : vector<8x32xf32>
    %196 = tpu.matmul %195, %177, %cst_64 {dimension_numbers = #tpu.dot_dimension_numbers<[1], [0], [0], [1], [0, 0, 1, 1], [], []>} : vector<8x8xbf16>, vector<8x32xbf16>, vector<8x32xf32> -> vector<8x32xf32>
    %197 = vector.broadcast %8 : vector<1x32xf32> to vector<8x32xf32>
    %198 = arith.mulf %196, %197 : vector<8x32xf32>
    %199 = arith.addf %178, %198 : vector<8x32xf32>
    %200 = vector.broadcast %16 : vector<1x32xf32> to vector<8x32xf32>
    %201 = arith.mulf %172, %200 : vector<8x32xf32>
    %202 = arith.truncf %201 : vector<8x32xf32> to vector<8x32xbf16>
    %cst_65 = arith.constant dense<0.000000e+00> : vector<8x8xf32>
    %203 = tpu.matmul %202, %176, %cst_65 {dimension_numbers = #tpu.dot_dimension_numbers<[1], [1], [0], [0], [0, 0, 1, 0], [], []>} : vector<8x32xbf16>, vector<8x32xbf16>, vector<8x8xf32> -> vector<8x8xf32>
    %204 = vector.broadcast %175 : vector<1x8xf32> to vector<8x8xf32>
    %205 = arith.addf %203, %204 : vector<8x8xf32>
    %cst_66 = arith.constant dense<0xFF800000> : vector<8xf32>
    %206 = vector.multi_reduction <maximumf>, %205, %cst_66 [1] : vector<8x8xf32> to vector<8xf32>
    %207 = vector.shape_cast %206 : vector<8xf32> to vector<8x1xf32>
    %208 = vector.broadcast %207 : vector<8x1xf32> to vector<8x8xf32>
    %209 = arith.subf %205, %208 : vector<8x8xf32>
    %210 = math.exp %209 : vector<8x8xf32>
    %cst_67 = arith.constant dense<0.000000e+00> : vector<8xf32>
    %211 = vector.multi_reduction <add>, %210, %cst_67 [1] : vector<8x8xf32> to vector<8xf32>
    %212 = vector.shape_cast %211 : vector<8xf32> to vector<8x1xf32>
    %213 = tpu.reciprocal %212 {approx = true} : vector<8x1xf32> -> vector<8x1xf32>
    %214 = vector.broadcast %213 : vector<8x1xf32> to vector<8x8xf32>
    %215 = arith.mulf %210, %214 : vector<8x8xf32>
    %216 = arith.truncf %215 : vector<8x8xf32> to vector<8x8xbf16>
    %cst_68 = arith.constant dense<0.000000e+00> : vector<8x32xf32>
    %217 = tpu.matmul %216, %177, %cst_68 {dimension_numbers = #tpu.dot_dimension_numbers<[1], [0], [0], [1], [0, 0, 1, 1], [], []>} : vector<8x8xbf16>, vector<8x32xbf16>, vector<8x32xf32> -> vector<8x32xf32>
    %218 = vector.broadcast %16 : vector<1x32xf32> to vector<8x32xf32>
    %219 = arith.mulf %217, %218 : vector<8x32xf32>
    %220 = arith.addf %199, %219 : vector<8x32xf32>
    %221 = vector.broadcast %24 : vector<1x32xf32> to vector<8x32xf32>
    %222 = arith.mulf %172, %221 : vector<8x32xf32>
    %223 = arith.truncf %222 : vector<8x32xf32> to vector<8x32xbf16>
    %cst_69 = arith.constant dense<0.000000e+00> : vector<8x8xf32>
    %224 = tpu.matmul %223, %176, %cst_69 {dimension_numbers = #tpu.dot_dimension_numbers<[1], [1], [0], [0], [0, 0, 1, 0], [], []>} : vector<8x32xbf16>, vector<8x32xbf16>, vector<8x8xf32> -> vector<8x8xf32>
    %225 = vector.broadcast %175 : vector<1x8xf32> to vector<8x8xf32>
    %226 = arith.addf %224, %225 : vector<8x8xf32>
    %cst_70 = arith.constant dense<0xFF800000> : vector<8xf32>
    %227 = vector.multi_reduction <maximumf>, %226, %cst_70 [1] : vector<8x8xf32> to vector<8xf32>
    %228 = vector.shape_cast %227 : vector<8xf32> to vector<8x1xf32>
    %229 = vector.broadcast %228 : vector<8x1xf32> to vector<8x8xf32>
    %230 = arith.subf %226, %229 : vector<8x8xf32>
    %231 = math.exp %230 : vector<8x8xf32>
    %cst_71 = arith.constant dense<0.000000e+00> : vector<8xf32>
    %232 = vector.multi_reduction <add>, %231, %cst_71 [1] : vector<8x8xf32> to vector<8xf32>
    %233 = vector.shape_cast %232 : vector<8xf32> to vector<8x1xf32>
    %234 = tpu.reciprocal %233 {approx = true} : vector<8x1xf32> -> vector<8x1xf32>
    %235 = vector.broadcast %234 : vector<8x1xf32> to vector<8x8xf32>
    %236 = arith.mulf %231, %235 : vector<8x8xf32>
    %237 = arith.truncf %236 : vector<8x8xf32> to vector<8x8xbf16>
    %cst_72 = arith.constant dense<0.000000e+00> : vector<8x32xf32>
    %238 = tpu.matmul %237, %177, %cst_72 {dimension_numbers = #tpu.dot_dimension_numbers<[1], [0], [0], [1], [0, 0, 1, 1], [], []>} : vector<8x8xbf16>, vector<8x32xbf16>, vector<8x32xf32> -> vector<8x32xf32>
    %239 = vector.broadcast %24 : vector<1x32xf32> to vector<8x32xf32>
    %240 = arith.mulf %238, %239 : vector<8x32xf32>
    %241 = arith.addf %220, %240 : vector<8x32xf32>
    %242 = vector.broadcast %32 : vector<1x32xf32> to vector<8x32xf32>
    %243 = arith.mulf %172, %242 : vector<8x32xf32>
    %244 = arith.truncf %243 : vector<8x32xf32> to vector<8x32xbf16>
    %cst_73 = arith.constant dense<0.000000e+00> : vector<8x8xf32>
    %245 = tpu.matmul %244, %176, %cst_73 {dimension_numbers = #tpu.dot_dimension_numbers<[1], [1], [0], [0], [0, 0, 1, 0], [], []>} : vector<8x32xbf16>, vector<8x32xbf16>, vector<8x8xf32> -> vector<8x8xf32>
    %246 = vector.broadcast %175 : vector<1x8xf32> to vector<8x8xf32>
    %247 = arith.addf %245, %246 : vector<8x8xf32>
    %cst_74 = arith.constant dense<0xFF800000> : vector<8xf32>
    %248 = vector.multi_reduction <maximumf>, %247, %cst_74 [1] : vector<8x8xf32> to vector<8xf32>
    %249 = vector.shape_cast %248 : vector<8xf32> to vector<8x1xf32>
    %250 = vector.broadcast %249 : vector<8x1xf32> to vector<8x8xf32>
    %251 = arith.subf %247, %250 : vector<8x8xf32>
    %252 = math.exp %251 : vector<8x8xf32>
    %cst_75 = arith.constant dense<0.000000e+00> : vector<8xf32>
    %253 = vector.multi_reduction <add>, %252, %cst_75 [1] : vector<8x8xf32> to vector<8xf32>
    %254 = vector.shape_cast %253 : vector<8xf32> to vector<8x1xf32>
    %255 = tpu.reciprocal %254 {approx = true} : vector<8x1xf32> -> vector<8x1xf32>
    %256 = vector.broadcast %255 : vector<8x1xf32> to vector<8x8xf32>
    %257 = arith.mulf %252, %256 : vector<8x8xf32>
    %258 = arith.truncf %257 : vector<8x8xf32> to vector<8x8xbf16>
    %cst_76 = arith.constant dense<0.000000e+00> : vector<8x32xf32>
    %259 = tpu.matmul %258, %177, %cst_76 {dimension_numbers = #tpu.dot_dimension_numbers<[1], [0], [0], [1], [0, 0, 1, 1], [], []>} : vector<8x8xbf16>, vector<8x32xbf16>, vector<8x32xf32> -> vector<8x32xf32>
    %260 = vector.broadcast %32 : vector<1x32xf32> to vector<8x32xf32>
    %261 = arith.mulf %259, %260 : vector<8x32xf32>
    %262 = arith.addf %241, %261 : vector<8x32xf32>
    %263 = tpu.concatenate %171, %262 in 0 : vector<8x32xf32>, vector<8x32xf32> -> vector<16x32xf32>
    %c0_77 = arith.constant 0 : index
    %c0_78 = arith.constant 0 : index
    %c0_79 = arith.constant 0 : index
    %264 = vector.load %arg14[%c0_77, %c0_78, %c0_79] : memref<2x4x32xf32, #tpu.memory_space<vmem>>, vector<1x4x32xf32>
    %265 = vector.shape_cast %264 : vector<1x4x32xf32> to vector<4x32xf32>
    %c0_80 = arith.constant 0 : index
    %c0_81 = arith.constant 0 : index
    %c0_82 = arith.constant 0 : index
    %266 = vector.load %arg8[%c0_80, %c0_81, %c0_82] : memref<2x32x32xbf16, #tpu.memory_space<vmem>>, vector<1x32x32xbf16>
    %267 = vector.shape_cast %266 : vector<1x32x32xbf16> to vector<32x32xbf16>
    %268 = arith.truncf %263 : vector<16x32xf32> to vector<16x32xbf16>
    %cst_83 = arith.constant dense<0.000000e+00> : vector<16x32xf32>
    %269 = tpu.matmul %268, %267, %cst_83 {dimension_numbers = #tpu.dot_dimension_numbers<[1], [0], [0], [1], [0, 0, 1, 1], [], []>} : vector<16x32xbf16>, vector<32x32xbf16>, vector<16x32xf32> -> vector<16x32xf32>
    %270 = arith.addf %42, %269 : vector<16x32xf32>
    %c0_84 = arith.constant 0 : index
    %c0_85 = arith.constant 0 : index
    %c0_86 = arith.constant 0 : index
    %271 = vector.load %arg9[%c0_84, %c0_85, %c0_86] : memref<2x1x32xf32, #tpu.memory_space<vmem>>, vector<1x1x32xf32>
    %272 = vector.shape_cast %271 : vector<1x1x32xf32> to vector<1x32xf32>
    %273 = vector.broadcast %272 : vector<1x32xf32> to vector<16x32xf32>
    %274 = arith.addf %270, %273 : vector<16x32xf32>
    %275 = vector.extract_strided_slice %265 {offsets = [0, 0], sizes = [1, 32], strides = [1, 1]} : vector<4x32xf32> to vector<1x32xf32>
    %276 = vector.extract_strided_slice %265 {offsets = [1, 0], sizes = [1, 32], strides = [1, 1]} : vector<4x32xf32> to vector<1x32xf32>
    %cst_87 = arith.constant dense<0.000000e+00> : vector<16xf32>
    %277 = vector.multi_reduction <add>, %274, %cst_87 [1] : vector<16x32xf32> to vector<16xf32>
    %278 = vector.shape_cast %277 : vector<16xf32> to vector<16x1xf32>
    %cst_88 = arith.constant 3.200000e+01 : f32
    %279 = vector.broadcast %cst_88 : f32 to vector<16x1xf32>
    %280 = arith.divf %278, %279 : vector<16x1xf32>
    %281 = vector.broadcast %280 : vector<16x1xf32> to vector<16x32xf32>
    %282 = arith.subf %274, %281 : vector<16x32xf32>
    %283 = arith.mulf %282, %282 : vector<16x32xf32>
    %cst_89 = arith.constant dense<0.000000e+00> : vector<16xf32>
    %284 = vector.multi_reduction <add>, %283, %cst_89 [1] : vector<16x32xf32> to vector<16xf32>
    %285 = vector.shape_cast %284 : vector<16xf32> to vector<16x1xf32>
    %cst_90 = arith.constant 3.200000e+01 : f32
    %286 = vector.broadcast %cst_90 : f32 to vector<16x1xf32>
    %287 = arith.divf %285, %286 : vector<16x1xf32>
    %288 = vector.broadcast %280 : vector<16x1xf32> to vector<16x32xf32>
    %289 = arith.subf %274, %288 : vector<16x32xf32>
    %cst_91 = arith.constant 9.99999974E-6 : f32
    %290 = vector.broadcast %cst_91 : f32 to vector<16x1xf32>
    %291 = arith.addf %287, %290 : vector<16x1xf32>
    %292 = math.rsqrt %291 : vector<16x1xf32>
    %293 = vector.broadcast %292 : vector<16x1xf32> to vector<16x32xf32>
    %294 = arith.mulf %289, %293 : vector<16x32xf32>
    %295 = vector.broadcast %275 : vector<1x32xf32> to vector<16x32xf32>
    %296 = arith.mulf %294, %295 : vector<16x32xf32>
    %297 = vector.broadcast %276 : vector<1x32xf32> to vector<16x32xf32>
    %298 = arith.addf %296, %297 : vector<16x32xf32>
    %c0_92 = arith.constant 0 : index
    %c0_93 = arith.constant 0 : index
    %c0_94 = arith.constant 0 : index
    %299 = vector.load %arg10[%c0_92, %c0_93, %c0_94] : memref<2x32x64xbf16, #tpu.memory_space<vmem>>, vector<1x32x64xbf16>
    %300 = vector.shape_cast %299 : vector<1x32x64xbf16> to vector<32x64xbf16>
    %301 = arith.truncf %298 : vector<16x32xf32> to vector<16x32xbf16>
    %cst_95 = arith.constant dense<0.000000e+00> : vector<16x64xf32>
    %302 = tpu.matmul %301, %300, %cst_95 {dimension_numbers = #tpu.dot_dimension_numbers<[1], [0], [0], [1], [0, 0, 1, 1], [], []>} : vector<16x32xbf16>, vector<32x64xbf16>, vector<16x64xf32> -> vector<16x64xf32>
    %c0_96 = arith.constant 0 : index
    %c0_97 = arith.constant 0 : index
    %c0_98 = arith.constant 0 : index
    %303 = vector.load %arg11[%c0_96, %c0_97, %c0_98] : memref<2x1x64xf32, #tpu.memory_space<vmem>>, vector<1x1x64xf32>
    %304 = vector.shape_cast %303 : vector<1x1x64xf32> to vector<1x64xf32>
    %305 = vector.broadcast %304 : vector<1x64xf32> to vector<16x64xf32>
    %306 = arith.addf %302, %305 : vector<16x64xf32>
    %cst_99 = arith.constant 0.000000e+00 : f32
    %307 = vector.broadcast %cst_99 : f32 to vector<16x64xf32>
    %308 = arith.maximumf %306, %307 : vector<16x64xf32>
    %c0_100 = arith.constant 0 : index
    %c0_101 = arith.constant 0 : index
    %c0_102 = arith.constant 0 : index
    %309 = vector.load %arg12[%c0_100, %c0_101, %c0_102] : memref<2x64x32xbf16, #tpu.memory_space<vmem>>, vector<1x64x32xbf16>
    %310 = vector.shape_cast %309 : vector<1x64x32xbf16> to vector<64x32xbf16>
    %311 = arith.truncf %308 : vector<16x64xf32> to vector<16x64xbf16>
    %cst_103 = arith.constant dense<0.000000e+00> : vector<16x32xf32>
    %312 = tpu.matmul %311, %310, %cst_103 {dimension_numbers = #tpu.dot_dimension_numbers<[1], [0], [0], [1], [0, 0, 1, 1], [], []>} : vector<16x64xbf16>, vector<64x32xbf16>, vector<16x32xf32> -> vector<16x32xf32>
    %313 = arith.addf %298, %312 : vector<16x32xf32>
    %c0_104 = arith.constant 0 : index
    %c0_105 = arith.constant 0 : index
    %c0_106 = arith.constant 0 : index
    %314 = vector.load %arg13[%c0_104, %c0_105, %c0_106] : memref<2x1x32xf32, #tpu.memory_space<vmem>>, vector<1x1x32xf32>
    %315 = vector.shape_cast %314 : vector<1x1x32xf32> to vector<1x32xf32>
    %316 = vector.broadcast %315 : vector<1x32xf32> to vector<16x32xf32>
    %317 = arith.addf %313, %316 : vector<16x32xf32>
    %318 = vector.extract_strided_slice %265 {offsets = [2, 0], sizes = [1, 32], strides = [1, 1]} : vector<4x32xf32> to vector<1x32xf32>
    %319 = vector.extract_strided_slice %265 {offsets = [3, 0], sizes = [1, 32], strides = [1, 1]} : vector<4x32xf32> to vector<1x32xf32>
    %cst_107 = arith.constant dense<0.000000e+00> : vector<16xf32>
    %320 = vector.multi_reduction <add>, %317, %cst_107 [1] : vector<16x32xf32> to vector<16xf32>
    %321 = vector.shape_cast %320 : vector<16xf32> to vector<16x1xf32>
    %cst_108 = arith.constant 3.200000e+01 : f32
    %322 = vector.broadcast %cst_108 : f32 to vector<16x1xf32>
    %323 = arith.divf %321, %322 : vector<16x1xf32>
    %324 = vector.broadcast %323 : vector<16x1xf32> to vector<16x32xf32>
    %325 = arith.subf %317, %324 : vector<16x32xf32>
    %326 = arith.mulf %325, %325 : vector<16x32xf32>
    %cst_109 = arith.constant dense<0.000000e+00> : vector<16xf32>
    %327 = vector.multi_reduction <add>, %326, %cst_109 [1] : vector<16x32xf32> to vector<16xf32>
    %328 = vector.shape_cast %327 : vector<16xf32> to vector<16x1xf32>
    %cst_110 = arith.constant 3.200000e+01 : f32
    %329 = vector.broadcast %cst_110 : f32 to vector<16x1xf32>
    %330 = arith.divf %328, %329 : vector<16x1xf32>
    %331 = vector.broadcast %323 : vector<16x1xf32> to vector<16x32xf32>
    %332 = arith.subf %317, %331 : vector<16x32xf32>
    %cst_111 = arith.constant 9.99999974E-6 : f32
    %333 = vector.broadcast %cst_111 : f32 to vector<16x1xf32>
    %334 = arith.addf %330, %333 : vector<16x1xf32>
    %335 = math.rsqrt %334 : vector<16x1xf32>
    %336 = vector.broadcast %335 : vector<16x1xf32> to vector<16x32xf32>
    %337 = arith.mulf %332, %336 : vector<16x32xf32>
    %338 = vector.broadcast %318 : vector<1x32xf32> to vector<16x32xf32>
    %339 = arith.mulf %337, %338 : vector<16x32xf32>
    %340 = vector.broadcast %319 : vector<1x32xf32> to vector<16x32xf32>
    %341 = arith.addf %339, %340 : vector<16x32xf32>
    %c1 = arith.constant 1 : index
    %c0_112 = arith.constant 0 : index
    %c0_113 = arith.constant 0 : index
    %342 = vector.load %arg33[%c1, %c0_112, %c0_113] : memref<2x16x32xf32, #tpu.memory_space<vmem>>, vector<1x16x32xf32>
    %343 = vector.shape_cast %342 : vector<1x16x32xf32> to vector<16x32xf32>
    %344 = vector.shape_cast %341 : vector<16x32xf32> to vector<1x16x32xf32>
    tpu.vector_store %arg33[%c1, %c0_112, %c0_113], %344 {strides = array<i32>} : memref<2x16x32xf32, #tpu.memory_space<vmem>>, vector<1x16x32xf32>,
    %c1_114 = arith.constant 1 : index
    %c0_115 = arith.constant 0 : index
    %c0_116 = arith.constant 0 : index
    %345 = vector.load %arg6[%c1_114, %c0_115, %c0_116] : memref<2x32x96xbf16, #tpu.memory_space<vmem>>, vector<1x32x96xbf16>
    %346 = vector.shape_cast %345 : vector<1x32x96xbf16> to vector<32x96xbf16>
    %c1_117 = arith.constant 1 : index
    %c0_118 = arith.constant 0 : index
    %c0_119 = arith.constant 0 : index
    %347 = vector.load %arg7[%c1_117, %c0_118, %c0_119] : memref<2x1x96xf32, #tpu.memory_space<vmem>>, vector<1x1x96xf32>
    %348 = vector.shape_cast %347 : vector<1x1x96xf32> to vector<1x96xf32>
    %349 = arith.truncf %341 : vector<16x32xf32> to vector<16x32xbf16>
    %cst_120 = arith.constant dense<0.000000e+00> : vector<16x96xf32>
    %350 = tpu.matmul %349, %346, %cst_120 {dimension_numbers = #tpu.dot_dimension_numbers<[1], [0], [0], [1], [0, 0, 1, 1], [], []>} : vector<16x32xbf16>, vector<32x96xbf16>, vector<16x96xf32> -> vector<16x96xf32>
    %351 = vector.broadcast %348 : vector<1x96xf32> to vector<16x96xf32>
    %352 = arith.addf %350, %351 : vector<16x96xf32>
    %353 = vector.extract_strided_slice %352 {offsets = [0, 0], sizes = [8, 32], strides = [1, 1]} : vector<16x96xf32> to vector<8x32xf32>
    %354 = vector.extract_strided_slice %352 {offsets = [0, 32], sizes = [8, 32], strides = [1, 1]} : vector<16x96xf32> to vector<8x32xf32>
    %355 = vector.extract_strided_slice %352 {offsets = [0, 64], sizes = [8, 32], strides = [1, 1]} : vector<16x96xf32> to vector<8x32xf32>
    %356 = vector.extract_strided_slice %57 {offsets = [0, 0], sizes = [1, 8], strides = [1, 1]} : vector<2x8xf32> to vector<1x8xf32>
    %357 = arith.truncf %354 : vector<8x32xf32> to vector<8x32xbf16>
    %358 = arith.truncf %355 : vector<8x32xf32> to vector<8x32xbf16>
    %cst_121 = arith.constant 0.000000e+00 : f32
    %359 = vector.broadcast %cst_121 : f32 to vector<8x32xf32>
    %360 = vector.broadcast %8 : vector<1x32xf32> to vector<8x32xf32>
    %361 = arith.mulf %353, %360 : vector<8x32xf32>
    %362 = arith.truncf %361 : vector<8x32xf32> to vector<8x32xbf16>
    %cst_122 = arith.constant dense<0.000000e+00> : vector<8x8xf32>
    %363 = tpu.matmul %362, %357, %cst_122 {dimension_numbers = #tpu.dot_dimension_numbers<[1], [1], [0], [0], [0, 0, 1, 0], [], []>} : vector<8x32xbf16>, vector<8x32xbf16>, vector<8x8xf32> -> vector<8x8xf32>
    %364 = vector.broadcast %356 : vector<1x8xf32> to vector<8x8xf32>
    %365 = arith.addf %363, %364 : vector<8x8xf32>
    %cst_123 = arith.constant dense<0xFF800000> : vector<8xf32>
    %366 = vector.multi_reduction <maximumf>, %365, %cst_123 [1] : vector<8x8xf32> to vector<8xf32>
    %367 = vector.shape_cast %366 : vector<8xf32> to vector<8x1xf32>
    %368 = vector.broadcast %367 : vector<8x1xf32> to vector<8x8xf32>
    %369 = arith.subf %365, %368 : vector<8x8xf32>
    %370 = math.exp %369 : vector<8x8xf32>
    %cst_124 = arith.constant dense<0.000000e+00> : vector<8xf32>
    %371 = vector.multi_reduction <add>, %370, %cst_124 [1] : vector<8x8xf32> to vector<8xf32>
    %372 = vector.shape_cast %371 : vector<8xf32> to vector<8x1xf32>
    %373 = tpu.reciprocal %372 {approx = true} : vector<8x1xf32> -> vector<8x1xf32>
    %374 = vector.broadcast %373 : vector<8x1xf32> to vector<8x8xf32>
    %375 = arith.mulf %370, %374 : vector<8x8xf32>
    %376 = arith.truncf %375 : vector<8x8xf32> to vector<8x8xbf16>
    %cst_125 = arith.constant dense<0.000000e+00> : vector<8x32xf32>
    %377 = tpu.matmul %376, %358, %cst_125 {dimension_numbers = #tpu.dot_dimension_numbers<[1], [0], [0], [1], [0, 0, 1, 1], [], []>} : vector<8x8xbf16>, vector<8x32xbf16>, vector<8x32xf32> -> vector<8x32xf32>
    %378 = vector.broadcast %8 : vector<1x32xf32> to vector<8x32xf32>
    %379 = arith.mulf %377, %378 : vector<8x32xf32>
    %380 = arith.addf %359, %379 : vector<8x32xf32>
    %381 = vector.broadcast %16 : vector<1x32xf32> to vector<8x32xf32>
    %382 = arith.mulf %353, %381 : vector<8x32xf32>
    %383 = arith.truncf %382 : vector<8x32xf32> to vector<8x32xbf16>
    %cst_126 = arith.constant dense<0.000000e+00> : vector<8x8xf32>
    %384 = tpu.matmul %383, %357, %cst_126 {dimension_numbers = #tpu.dot_dimension_numbers<[1], [1], [0], [0], [0, 0, 1, 0], [], []>} : vector<8x32xbf16>, vector<8x32xbf16>, vector<8x8xf32> -> vector<8x8xf32>
    %385 = vector.broadcast %356 : vector<1x8xf32> to vector<8x8xf32>
    %386 = arith.addf %384, %385 : vector<8x8xf32>
    %cst_127 = arith.constant dense<0xFF800000> : vector<8xf32>
    %387 = vector.multi_reduction <maximumf>, %386, %cst_127 [1] : vector<8x8xf32> to vector<8xf32>
    %388 = vector.shape_cast %387 : vector<8xf32> to vector<8x1xf32>
    %389 = vector.broadcast %388 : vector<8x1xf32> to vector<8x8xf32>
    %390 = arith.subf %386, %389 : vector<8x8xf32>
    %391 = math.exp %390 : vector<8x8xf32>
    %cst_128 = arith.constant dense<0.000000e+00> : vector<8xf32>
    %392 = vector.multi_reduction <add>, %391, %cst_128 [1] : vector<8x8xf32> to vector<8xf32>
    %393 = vector.shape_cast %392 : vector<8xf32> to vector<8x1xf32>
    %394 = tpu.reciprocal %393 {approx = true} : vector<8x1xf32> -> vector<8x1xf32>
    %395 = vector.broadcast %394 : vector<8x1xf32> to vector<8x8xf32>
    %396 = arith.mulf %391, %395 : vector<8x8xf32>
    %397 = arith.truncf %396 : vector<8x8xf32> to vector<8x8xbf16>
    %cst_129 = arith.constant dense<0.000000e+00> : vector<8x32xf32>
    %398 = tpu.matmul %397, %358, %cst_129 {dimension_numbers = #tpu.dot_dimension_numbers<[1], [0], [0], [1], [0, 0, 1, 1], [], []>} : vector<8x8xbf16>, vector<8x32xbf16>, vector<8x32xf32> -> vector<8x32xf32>
    %399 = vector.broadcast %16 : vector<1x32xf32> to vector<8x32xf32>
    %400 = arith.mulf %398, %399 : vector<8x32xf32>
    %401 = arith.addf %380, %400 : vector<8x32xf32>
    %402 = vector.broadcast %24 : vector<1x32xf32> to vector<8x32xf32>
    %403 = arith.mulf %353, %402 : vector<8x32xf32>
    %404 = arith.truncf %403 : vector<8x32xf32> to vector<8x32xbf16>
    %cst_130 = arith.constant dense<0.000000e+00> : vector<8x8xf32>
    %405 = tpu.matmul %404, %357, %cst_130 {dimension_numbers = #tpu.dot_dimension_numbers<[1], [1], [0], [0], [0, 0, 1, 0], [], []>} : vector<8x32xbf16>, vector<8x32xbf16>, vector<8x8xf32> -> vector<8x8xf32>
    %406 = vector.broadcast %356 : vector<1x8xf32> to vector<8x8xf32>
    %407 = arith.addf %405, %406 : vector<8x8xf32>
    %cst_131 = arith.constant dense<0xFF800000> : vector<8xf32>
    %408 = vector.multi_reduction <maximumf>, %407, %cst_131 [1] : vector<8x8xf32> to vector<8xf32>
    %409 = vector.shape_cast %408 : vector<8xf32> to vector<8x1xf32>
    %410 = vector.broadcast %409 : vector<8x1xf32> to vector<8x8xf32>
    %411 = arith.subf %407, %410 : vector<8x8xf32>
    %412 = math.exp %411 : vector<8x8xf32>
    %cst_132 = arith.constant dense<0.000000e+00> : vector<8xf32>
    %413 = vector.multi_reduction <add>, %412, %cst_132 [1] : vector<8x8xf32> to vector<8xf32>
    %414 = vector.shape_cast %413 : vector<8xf32> to vector<8x1xf32>
    %415 = tpu.reciprocal %414 {approx = true} : vector<8x1xf32> -> vector<8x1xf32>
    %416 = vector.broadcast %415 : vector<8x1xf32> to vector<8x8xf32>
    %417 = arith.mulf %412, %416 : vector<8x8xf32>
    %418 = arith.truncf %417 : vector<8x8xf32> to vector<8x8xbf16>
    %cst_133 = arith.constant dense<0.000000e+00> : vector<8x32xf32>
    %419 = tpu.matmul %418, %358, %cst_133 {dimension_numbers = #tpu.dot_dimension_numbers<[1], [0], [0], [1], [0, 0, 1, 1], [], []>} : vector<8x8xbf16>, vector<8x32xbf16>, vector<8x32xf32> -> vector<8x32xf32>
    %420 = vector.broadcast %24 : vector<1x32xf32> to vector<8x32xf32>
    %421 = arith.mulf %419, %420 : vector<8x32xf32>
    %422 = arith.addf %401, %421 : vector<8x32xf32>
    %423 = vector.broadcast %32 : vector<1x32xf32> to vector<8x32xf32>
    %424 = arith.mulf %353, %423 : vector<8x32xf32>
    %425 = arith.truncf %424 : vector<8x32xf32> to vector<8x32xbf16>
    %cst_134 = arith.constant dense<0.000000e+00> : vector<8x8xf32>
    %426 = tpu.matmul %425, %357, %cst_134 {dimension_numbers = #tpu.dot_dimension_numbers<[1], [1], [0], [0], [0, 0, 1, 0], [], []>} : vector<8x32xbf16>, vector<8x32xbf16>, vector<8x8xf32> -> vector<8x8xf32>
    %427 = vector.broadcast %356 : vector<1x8xf32> to vector<8x8xf32>
    %428 = arith.addf %426, %427 : vector<8x8xf32>
    %cst_135 = arith.constant dense<0xFF800000> : vector<8xf32>
    %429 = vector.multi_reduction <maximumf>, %428, %cst_135 [1] : vector<8x8xf32> to vector<8xf32>
    %430 = vector.shape_cast %429 : vector<8xf32> to vector<8x1xf32>
    %431 = vector.broadcast %430 : vector<8x1xf32> to vector<8x8xf32>
    %432 = arith.subf %428, %431 : vector<8x8xf32>
    %433 = math.exp %432 : vector<8x8xf32>
    %cst_136 = arith.constant dense<0.000000e+00> : vector<8xf32>
    %434 = vector.multi_reduction <add>, %433, %cst_136 [1] : vector<8x8xf32> to vector<8xf32>
    %435 = vector.shape_cast %434 : vector<8xf32> to vector<8x1xf32>
    %436 = tpu.reciprocal %435 {approx = true} : vector<8x1xf32> -> vector<8x1xf32>
    %437 = vector.broadcast %436 : vector<8x1xf32> to vector<8x8xf32>
    %438 = arith.mulf %433, %437 : vector<8x8xf32>
    %439 = arith.truncf %438 : vector<8x8xf32> to vector<8x8xbf16>
    %cst_137 = arith.constant dense<0.000000e+00> : vector<8x32xf32>
    %440 = tpu.matmul %439, %358, %cst_137 {dimension_numbers = #tpu.dot_dimension_numbers<[1], [0], [0], [1], [0, 0, 1, 1], [], []>} : vector<8x8xbf16>, vector<8x32xbf16>, vector<8x32xf32> -> vector<8x32xf32>
    %441 = vector.broadcast %32 : vector<1x32xf32> to vector<8x32xf32>
    %442 = arith.mulf %440, %441 : vector<8x32xf32>
    %443 = arith.addf %422, %442 : vector<8x32xf32>
    %444 = vector.extract_strided_slice %352 {offsets = [8, 0], sizes = [8, 32], strides = [1, 1]} : vector<16x96xf32> to vector<8x32xf32>
    %445 = vector.extract_strided_slice %352 {offsets = [8, 32], sizes = [8, 32], strides = [1, 1]} : vector<16x96xf32> to vector<8x32xf32>
    %446 = vector.extract_strided_slice %352 {offsets = [8, 64], sizes = [8, 32], strides = [1, 1]} : vector<16x96xf32> to vector<8x32xf32>
    %447 = vector.extract_strided_slice %57 {offsets = [1, 0], sizes = [1, 8], strides = [1, 1]} : vector<2x8xf32> to vector<1x8xf32>
    %448 = arith.truncf %445 : vector<8x32xf32> to vector<8x32xbf16>
    %449 = arith.truncf %446 : vector<8x32xf32> to vector<8x32xbf16>
    %cst_138 = arith.constant 0.000000e+00 : f32
    %450 = vector.broadcast %cst_138 : f32 to vector<8x32xf32>
    %451 = vector.broadcast %8 : vector<1x32xf32> to vector<8x32xf32>
    %452 = arith.mulf %444, %451 : vector<8x32xf32>
    %453 = arith.truncf %452 : vector<8x32xf32> to vector<8x32xbf16>
    %cst_139 = arith.constant dense<0.000000e+00> : vector<8x8xf32>
    %454 = tpu.matmul %453, %448, %cst_139 {dimension_numbers = #tpu.dot_dimension_numbers<[1], [1], [0], [0], [0, 0, 1, 0], [], []>} : vector<8x32xbf16>, vector<8x32xbf16>, vector<8x8xf32> -> vector<8x8xf32>
    %455 = vector.broadcast %447 : vector<1x8xf32> to vector<8x8xf32>
    %456 = arith.addf %454, %455 : vector<8x8xf32>
    %cst_140 = arith.constant dense<0xFF800000> : vector<8xf32>
    %457 = vector.multi_reduction <maximumf>, %456, %cst_140 [1] : vector<8x8xf32> to vector<8xf32>
    %458 = vector.shape_cast %457 : vector<8xf32> to vector<8x1xf32>
    %459 = vector.broadcast %458 : vector<8x1xf32> to vector<8x8xf32>
    %460 = arith.subf %456, %459 : vector<8x8xf32>
    %461 = math.exp %460 : vector<8x8xf32>
    %cst_141 = arith.constant dense<0.000000e+00> : vector<8xf32>
    %462 = vector.multi_reduction <add>, %461, %cst_141 [1] : vector<8x8xf32> to vector<8xf32>
    %463 = vector.shape_cast %462 : vector<8xf32> to vector<8x1xf32>
    %464 = tpu.reciprocal %463 {approx = true} : vector<8x1xf32> -> vector<8x1xf32>
    %465 = vector.broadcast %464 : vector<8x1xf32> to vector<8x8xf32>
    %466 = arith.mulf %461, %465 : vector<8x8xf32>
    %467 = arith.truncf %466 : vector<8x8xf32> to vector<8x8xbf16>
    %cst_142 = arith.constant dense<0.000000e+00> : vector<8x32xf32>
    %468 = tpu.matmul %467, %449, %cst_142 {dimension_numbers = #tpu.dot_dimension_numbers<[1], [0], [0], [1], [0, 0, 1, 1], [], []>} : vector<8x8xbf16>, vector<8x32xbf16>, vector<8x32xf32> -> vector<8x32xf32>
    %469 = vector.broadcast %8 : vector<1x32xf32> to vector<8x32xf32>
    %470 = arith.mulf %468, %469 : vector<8x32xf32>
    %471 = arith.addf %450, %470 : vector<8x32xf32>
    %472 = vector.broadcast %16 : vector<1x32xf32> to vector<8x32xf32>
    %473 = arith.mulf %444, %472 : vector<8x32xf32>
    %474 = arith.truncf %473 : vector<8x32xf32> to vector<8x32xbf16>
    %cst_143 = arith.constant dense<0.000000e+00> : vector<8x8xf32>
    %475 = tpu.matmul %474, %448, %cst_143 {dimension_numbers = #tpu.dot_dimension_numbers<[1], [1], [0], [0], [0, 0, 1, 0], [], []>} : vector<8x32xbf16>, vector<8x32xbf16>, vector<8x8xf32> -> vector<8x8xf32>
    %476 = vector.broadcast %447 : vector<1x8xf32> to vector<8x8xf32>
    %477 = arith.addf %475, %476 : vector<8x8xf32>
    %cst_144 = arith.constant dense<0xFF800000> : vector<8xf32>
    %478 = vector.multi_reduction <maximumf>, %477, %cst_144 [1] : vector<8x8xf32> to vector<8xf32>
    %479 = vector.shape_cast %478 : vector<8xf32> to vector<8x1xf32>
    %480 = vector.broadcast %479 : vector<8x1xf32> to vector<8x8xf32>
    %481 = arith.subf %477, %480 : vector<8x8xf32>
    %482 = math.exp %481 : vector<8x8xf32>
    %cst_145 = arith.constant dense<0.000000e+00> : vector<8xf32>
    %483 = vector.multi_reduction <add>, %482, %cst_145 [1] : vector<8x8xf32> to vector<8xf32>
    %484 = vector.shape_cast %483 : vector<8xf32> to vector<8x1xf32>
    %485 = tpu.reciprocal %484 {approx = true} : vector<8x1xf32> -> vector<8x1xf32>
    %486 = vector.broadcast %485 : vector<8x1xf32> to vector<8x8xf32>
    %487 = arith.mulf %482, %486 : vector<8x8xf32>
    %488 = arith.truncf %487 : vector<8x8xf32> to vector<8x8xbf16>
    %cst_146 = arith.constant dense<0.000000e+00> : vector<8x32xf32>
    %489 = tpu.matmul %488, %449, %cst_146 {dimension_numbers = #tpu.dot_dimension_numbers<[1], [0], [0], [1], [0, 0, 1, 1], [], []>} : vector<8x8xbf16>, vector<8x32xbf16>, vector<8x32xf32> -> vector<8x32xf32>
    %490 = vector.broadcast %16 : vector<1x32xf32> to vector<8x32xf32>
    %491 = arith.mulf %489, %490 : vector<8x32xf32>
    %492 = arith.addf %471, %491 : vector<8x32xf32>
    %493 = vector.broadcast %24 : vector<1x32xf32> to vector<8x32xf32>
    %494 = arith.mulf %444, %493 : vector<8x32xf32>
    %495 = arith.truncf %494 : vector<8x32xf32> to vector<8x32xbf16>
    %cst_147 = arith.constant dense<0.000000e+00> : vector<8x8xf32>
    %496 = tpu.matmul %495, %448, %cst_147 {dimension_numbers = #tpu.dot_dimension_numbers<[1], [1], [0], [0], [0, 0, 1, 0], [], []>} : vector<8x32xbf16>, vector<8x32xbf16>, vector<8x8xf32> -> vector<8x8xf32>
    %497 = vector.broadcast %447 : vector<1x8xf32> to vector<8x8xf32>
    %498 = arith.addf %496, %497 : vector<8x8xf32>
    %cst_148 = arith.constant dense<0xFF800000> : vector<8xf32>
    %499 = vector.multi_reduction <maximumf>, %498, %cst_148 [1] : vector<8x8xf32> to vector<8xf32>
    %500 = vector.shape_cast %499 : vector<8xf32> to vector<8x1xf32>
    %501 = vector.broadcast %500 : vector<8x1xf32> to vector<8x8xf32>
    %502 = arith.subf %498, %501 : vector<8x8xf32>
    %503 = math.exp %502 : vector<8x8xf32>
    %cst_149 = arith.constant dense<0.000000e+00> : vector<8xf32>
    %504 = vector.multi_reduction <add>, %503, %cst_149 [1] : vector<8x8xf32> to vector<8xf32>
    %505 = vector.shape_cast %504 : vector<8xf32> to vector<8x1xf32>
    %506 = tpu.reciprocal %505 {approx = true} : vector<8x1xf32> -> vector<8x1xf32>
    %507 = vector.broadcast %506 : vector<8x1xf32> to vector<8x8xf32>
    %508 = arith.mulf %503, %507 : vector<8x8xf32>
    %509 = arith.truncf %508 : vector<8x8xf32> to vector<8x8xbf16>
    %cst_150 = arith.constant dense<0.000000e+00> : vector<8x32xf32>
    %510 = tpu.matmul %509, %449, %cst_150 {dimension_numbers = #tpu.dot_dimension_numbers<[1], [0], [0], [1], [0, 0, 1, 1], [], []>} : vector<8x8xbf16>, vector<8x32xbf16>, vector<8x32xf32> -> vector<8x32xf32>
    %511 = vector.broadcast %24 : vector<1x32xf32> to vector<8x32xf32>
    %512 = arith.mulf %510, %511 : vector<8x32xf32>
    %513 = arith.addf %492, %512 : vector<8x32xf32>
    %514 = vector.broadcast %32 : vector<1x32xf32> to vector<8x32xf32>
    %515 = arith.mulf %444, %514 : vector<8x32xf32>
    %516 = arith.truncf %515 : vector<8x32xf32> to vector<8x32xbf16>
    %cst_151 = arith.constant dense<0.000000e+00> : vector<8x8xf32>
    %517 = tpu.matmul %516, %448, %cst_151 {dimension_numbers = #tpu.dot_dimension_numbers<[1], [1], [0], [0], [0, 0, 1, 0], [], []>} : vector<8x32xbf16>, vector<8x32xbf16>, vector<8x8xf32> -> vector<8x8xf32>
    %518 = vector.broadcast %447 : vector<1x8xf32> to vector<8x8xf32>
    %519 = arith.addf %517, %518 : vector<8x8xf32>
    %cst_152 = arith.constant dense<0xFF800000> : vector<8xf32>
    %520 = vector.multi_reduction <maximumf>, %519, %cst_152 [1] : vector<8x8xf32> to vector<8xf32>
    %521 = vector.shape_cast %520 : vector<8xf32> to vector<8x1xf32>
    %522 = vector.broadcast %521 : vector<8x1xf32> to vector<8x8xf32>
    %523 = arith.subf %519, %522 : vector<8x8xf32>
    %524 = math.exp %523 : vector<8x8xf32>
    %cst_153 = arith.constant dense<0.000000e+00> : vector<8xf32>
    %525 = vector.multi_reduction <add>, %524, %cst_153 [1] : vector<8x8xf32> to vector<8xf32>
    %526 = vector.shape_cast %525 : vector<8xf32> to vector<8x1xf32>
    %527 = tpu.reciprocal %526 {approx = true} : vector<8x1xf32> -> vector<8x1xf32>
    %528 = vector.broadcast %527 : vector<8x1xf32> to vector<8x8xf32>
    %529 = arith.mulf %524, %528 : vector<8x8xf32>
    %530 = arith.truncf %529 : vector<8x8xf32> to vector<8x8xbf16>
    %cst_154 = arith.constant dense<0.000000e+00> : vector<8x32xf32>
    %531 = tpu.matmul %530, %449, %cst_154 {dimension_numbers = #tpu.dot_dimension_numbers<[1], [0], [0], [1], [0, 0, 1, 1], [], []>} : vector<8x8xbf16>, vector<8x32xbf16>, vector<8x32xf32> -> vector<8x32xf32>
    %532 = vector.broadcast %32 : vector<1x32xf32> to vector<8x32xf32>
    %533 = arith.mulf %531, %532 : vector<8x32xf32>
    %534 = arith.addf %513, %533 : vector<8x32xf32>
    %535 = tpu.concatenate %443, %534 in 0 : vector<8x32xf32>, vector<8x32xf32> -> vector<16x32xf32>
    %c1_155 = arith.constant 1 : index
    %c0_156 = arith.constant 0 : index
    %c0_157 = arith.constant 0 : index
    %536 = vector.load %arg14[%c1_155, %c0_156, %c0_157] : memref<2x4x32xf32, #tpu.memory_space<vmem>>, vector<1x4x32xf32>
    %537 = vector.shape_cast %536 : vector<1x4x32xf32> to vector<4x32xf32>
    %c1_158 = arith.constant 1 : index
    %c0_159 = arith.constant 0 : index
    %c0_160 = arith.constant 0 : index
    %538 = vector.load %arg8[%c1_158, %c0_159, %c0_160] : memref<2x32x32xbf16, #tpu.memory_space<vmem>>, vector<1x32x32xbf16>
    %539 = vector.shape_cast %538 : vector<1x32x32xbf16> to vector<32x32xbf16>
    %540 = arith.truncf %535 : vector<16x32xf32> to vector<16x32xbf16>
    %cst_161 = arith.constant dense<0.000000e+00> : vector<16x32xf32>
    %541 = tpu.matmul %540, %539, %cst_161 {dimension_numbers = #tpu.dot_dimension_numbers<[1], [0], [0], [1], [0, 0, 1, 1], [], []>} : vector<16x32xbf16>, vector<32x32xbf16>, vector<16x32xf32> -> vector<16x32xf32>
    %542 = arith.addf %341, %541 : vector<16x32xf32>
    %c1_162 = arith.constant 1 : index
    %c0_163 = arith.constant 0 : index
    %c0_164 = arith.constant 0 : index
    %543 = vector.load %arg9[%c1_162, %c0_163, %c0_164] : memref<2x1x32xf32, #tpu.memory_space<vmem>>, vector<1x1x32xf32>
    %544 = vector.shape_cast %543 : vector<1x1x32xf32> to vector<1x32xf32>
    %545 = vector.broadcast %544 : vector<1x32xf32> to vector<16x32xf32>
    %546 = arith.addf %542, %545 : vector<16x32xf32>
    %547 = vector.extract_strided_slice %537 {offsets = [0, 0], sizes = [1, 32], strides = [1, 1]} : vector<4x32xf32> to vector<1x32xf32>
    %548 = vector.extract_strided_slice %537 {offsets = [1, 0], sizes = [1, 32], strides = [1, 1]} : vector<4x32xf32> to vector<1x32xf32>
    %cst_165 = arith.constant dense<0.000000e+00> : vector<16xf32>
    %549 = vector.multi_reduction <add>, %546, %cst_165 [1] : vector<16x32xf32> to vector<16xf32>
    %550 = vector.shape_cast %549 : vector<16xf32> to vector<16x1xf32>
    %cst_166 = arith.constant 3.200000e+01 : f32
    %551 = vector.broadcast %cst_166 : f32 to vector<16x1xf32>
    %552 = arith.divf %550, %551 : vector<16x1xf32>
    %553 = vector.broadcast %552 : vector<16x1xf32> to vector<16x32xf32>
    %554 = arith.subf %546, %553 : vector<16x32xf32>
    %555 = arith.mulf %554, %554 : vector<16x32xf32>
    %cst_167 = arith.constant dense<0.000000e+00> : vector<16xf32>
    %556 = vector.multi_reduction <add>, %555, %cst_167 [1] : vector<16x32xf32> to vector<16xf32>
    %557 = vector.shape_cast %556 : vector<16xf32> to vector<16x1xf32>
    %cst_168 = arith.constant 3.200000e+01 : f32
    %558 = vector.broadcast %cst_168 : f32 to vector<16x1xf32>
    %559 = arith.divf %557, %558 : vector<16x1xf32>
    %560 = vector.broadcast %552 : vector<16x1xf32> to vector<16x32xf32>
    %561 = arith.subf %546, %560 : vector<16x32xf32>
    %cst_169 = arith.constant 9.99999974E-6 : f32
    %562 = vector.broadcast %cst_169 : f32 to vector<16x1xf32>
    %563 = arith.addf %559, %562 : vector<16x1xf32>
    %564 = math.rsqrt %563 : vector<16x1xf32>
    %565 = vector.broadcast %564 : vector<16x1xf32> to vector<16x32xf32>
    %566 = arith.mulf %561, %565 : vector<16x32xf32>
    %567 = vector.broadcast %547 : vector<1x32xf32> to vector<16x32xf32>
    %568 = arith.mulf %566, %567 : vector<16x32xf32>
    %569 = vector.broadcast %548 : vector<1x32xf32> to vector<16x32xf32>
    %570 = arith.addf %568, %569 : vector<16x32xf32>
    %c1_170 = arith.constant 1 : index
    %c0_171 = arith.constant 0 : index
    %c0_172 = arith.constant 0 : index
    %571 = vector.load %arg10[%c1_170, %c0_171, %c0_172] : memref<2x32x64xbf16, #tpu.memory_space<vmem>>, vector<1x32x64xbf16>
    %572 = vector.shape_cast %571 : vector<1x32x64xbf16> to vector<32x64xbf16>
    %573 = arith.truncf %570 : vector<16x32xf32> to vector<16x32xbf16>
    %cst_173 = arith.constant dense<0.000000e+00> : vector<16x64xf32>
    %574 = tpu.matmul %573, %572, %cst_173 {dimension_numbers = #tpu.dot_dimension_numbers<[1], [0], [0], [1], [0, 0, 1, 1], [], []>} : vector<16x32xbf16>, vector<32x64xbf16>, vector<16x64xf32> -> vector<16x64xf32>
    %c1_174 = arith.constant 1 : index
    %c0_175 = arith.constant 0 : index
    %c0_176 = arith.constant 0 : index
    %575 = vector.load %arg11[%c1_174, %c0_175, %c0_176] : memref<2x1x64xf32, #tpu.memory_space<vmem>>, vector<1x1x64xf32>
    %576 = vector.shape_cast %575 : vector<1x1x64xf32> to vector<1x64xf32>
    %577 = vector.broadcast %576 : vector<1x64xf32> to vector<16x64xf32>
    %578 = arith.addf %574, %577 : vector<16x64xf32>
    %cst_177 = arith.constant 0.000000e+00 : f32
    %579 = vector.broadcast %cst_177 : f32 to vector<16x64xf32>
    %580 = arith.maximumf %578, %579 : vector<16x64xf32>
    %c1_178 = arith.constant 1 : index
    %c0_179 = arith.constant 0 : index
    %c0_180 = arith.constant 0 : index
    %581 = vector.load %arg12[%c1_178, %c0_179, %c0_180] : memref<2x64x32xbf16, #tpu.memory_space<vmem>>, vector<1x64x32xbf16>
    %582 = vector.shape_cast %581 : vector<1x64x32xbf16> to vector<64x32xbf16>
    %583 = arith.truncf %580 : vector<16x64xf32> to vector<16x64xbf16>
    %cst_181 = arith.constant dense<0.000000e+00> : vector<16x32xf32>
    %584 = tpu.matmul %583, %582, %cst_181 {dimension_numbers = #tpu.dot_dimension_numbers<[1], [0], [0], [1], [0, 0, 1, 1], [], []>} : vector<16x64xbf16>, vector<64x32xbf16>, vector<16x32xf32> -> vector<16x32xf32>
    %585 = arith.addf %570, %584 : vector<16x32xf32>
    %c1_182 = arith.constant 1 : index
    %c0_183 = arith.constant 0 : index
    %c0_184 = arith.constant 0 : index
    %586 = vector.load %arg13[%c1_182, %c0_183, %c0_184] : memref<2x1x32xf32, #tpu.memory_space<vmem>>, vector<1x1x32xf32>
    %587 = vector.shape_cast %586 : vector<1x1x32xf32> to vector<1x32xf32>
    %588 = vector.broadcast %587 : vector<1x32xf32> to vector<16x32xf32>
    %589 = arith.addf %585, %588 : vector<16x32xf32>
    %590 = vector.extract_strided_slice %537 {offsets = [2, 0], sizes = [1, 32], strides = [1, 1]} : vector<4x32xf32> to vector<1x32xf32>
    %591 = vector.extract_strided_slice %537 {offsets = [3, 0], sizes = [1, 32], strides = [1, 1]} : vector<4x32xf32> to vector<1x32xf32>
    %cst_185 = arith.constant dense<0.000000e+00> : vector<16xf32>
    %592 = vector.multi_reduction <add>, %589, %cst_185 [1] : vector<16x32xf32> to vector<16xf32>
    %593 = vector.shape_cast %592 : vector<16xf32> to vector<16x1xf32>
    %cst_186 = arith.constant 3.200000e+01 : f32
    %594 = vector.broadcast %cst_186 : f32 to vector<16x1xf32>
    %595 = arith.divf %593, %594 : vector<16x1xf32>
    %596 = vector.broadcast %595 : vector<16x1xf32> to vector<16x32xf32>
    %597 = arith.subf %589, %596 : vector<16x32xf32>
    %598 = arith.mulf %597, %597 : vector<16x32xf32>
    %cst_187 = arith.constant dense<0.000000e+00> : vector<16xf32>
    %599 = vector.multi_reduction <add>, %598, %cst_187 [1] : vector<16x32xf32> to vector<16xf32>
    %600 = vector.shape_cast %599 : vector<16xf32> to vector<16x1xf32>
    %cst_188 = arith.constant 3.200000e+01 : f32
    %601 = vector.broadcast %cst_188 : f32 to vector<16x1xf32>
    %602 = arith.divf %600, %601 : vector<16x1xf32>
    %603 = vector.broadcast %595 : vector<16x1xf32> to vector<16x32xf32>
    %604 = arith.subf %589, %603 : vector<16x32xf32>
    %cst_189 = arith.constant 9.99999974E-6 : f32
    %605 = vector.broadcast %cst_189 : f32 to vector<16x1xf32>
    %606 = arith.addf %602, %605 : vector<16x1xf32>
    %607 = math.rsqrt %606 : vector<16x1xf32>
    %608 = vector.broadcast %607 : vector<16x1xf32> to vector<16x32xf32>
    %609 = arith.mulf %604, %608 : vector<16x32xf32>
    %610 = vector.broadcast %590 : vector<1x32xf32> to vector<16x32xf32>
    %611 = arith.mulf %609, %610 : vector<16x32xf32>
    %612 = vector.broadcast %591 : vector<1x32xf32> to vector<16x32xf32>
    %613 = arith.addf %611, %612 : vector<16x32xf32>
    %c0_190 = arith.constant 0 : index
    %c0_191 = arith.constant 0 : index
    %c0_192 = arith.constant 0 : index
    %614 = vector.load %arg15[%c0_190, %c0_191, %c0_192] : memref<2x32x96xbf16, #tpu.memory_space<vmem>>, vector<1x32x96xbf16>
    %615 = vector.shape_cast %614 : vector<1x32x96xbf16> to vector<32x96xbf16>
    %c0_193 = arith.constant 0 : index
    %c0_194 = arith.constant 0 : index
    %c0_195 = arith.constant 0 : index
    %616 = vector.load %arg16[%c0_193, %c0_194, %c0_195] : memref<2x1x96xf32, #tpu.memory_space<vmem>>, vector<1x1x96xf32>
    %617 = vector.shape_cast %616 : vector<1x1x96xf32> to vector<1x96xf32>
    %618 = arith.truncf %51 : vector<14x32xf32> to vector<14x32xbf16>
    %cst_196 = arith.constant dense<0.000000e+00> : vector<14x96xf32>
    %619 = tpu.matmul %618, %615, %cst_196 {dimension_numbers = #tpu.dot_dimension_numbers<[1], [0], [0], [1], [0, 0, 1, 1], [], []>} : vector<14x32xbf16>, vector<32x96xbf16>, vector<14x96xf32> -> vector<14x96xf32>
    %620 = vector.broadcast %617 : vector<1x96xf32> to vector<14x96xf32>
    %621 = arith.addf %619, %620 : vector<14x96xf32>
    %622 = vector.extract_strided_slice %63 {offsets = [0, 0], sizes = [1, 7], strides = [1, 1]} : vector<2x7xf32> to vector<1x7xf32>
    %623 = vector.broadcast %622 : vector<1x7xf32> to vector<7x7xf32>
    %624 = arith.addf %69, %623 : vector<7x7xf32>
    %625 = vector.extract_strided_slice %621 {offsets = [0, 0], sizes = [7, 32], strides = [1, 1]} : vector<14x96xf32> to vector<7x32xf32>
    %626 = vector.extract_strided_slice %621 {offsets = [0, 32], sizes = [7, 32], strides = [1, 1]} : vector<14x96xf32> to vector<7x32xf32>
    %627 = vector.extract_strided_slice %621 {offsets = [0, 64], sizes = [7, 32], strides = [1, 1]} : vector<14x96xf32> to vector<7x32xf32>
    %628 = arith.truncf %626 : vector<7x32xf32> to vector<7x32xbf16>
    %629 = arith.truncf %627 : vector<7x32xf32> to vector<7x32xbf16>
    %cst_197 = arith.constant 0.000000e+00 : f32
    %630 = vector.broadcast %cst_197 : f32 to vector<7x32xf32>
    %631 = vector.broadcast %8 : vector<1x32xf32> to vector<7x32xf32>
    %632 = arith.mulf %625, %631 : vector<7x32xf32>
    %633 = arith.truncf %632 : vector<7x32xf32> to vector<7x32xbf16>
    %cst_198 = arith.constant dense<0.000000e+00> : vector<7x7xf32>
    %634 = tpu.matmul %633, %628, %cst_198 {dimension_numbers = #tpu.dot_dimension_numbers<[1], [1], [0], [0], [0, 0, 1, 0], [], []>} : vector<7x32xbf16>, vector<7x32xbf16>, vector<7x7xf32> -> vector<7x7xf32>
    %635 = arith.addf %634, %624 : vector<7x7xf32>
    %cst_199 = arith.constant dense<0xFF800000> : vector<7xf32>
    %636 = vector.multi_reduction <maximumf>, %635, %cst_199 [1] : vector<7x7xf32> to vector<7xf32>
    %637 = vector.shape_cast %636 : vector<7xf32> to vector<7x1xf32>
    %638 = vector.broadcast %637 : vector<7x1xf32> to vector<7x7xf32>
    %639 = arith.subf %635, %638 : vector<7x7xf32>
    %640 = math.exp %639 : vector<7x7xf32>
    %cst_200 = arith.constant dense<0.000000e+00> : vector<7xf32>
    %641 = vector.multi_reduction <add>, %640, %cst_200 [1] : vector<7x7xf32> to vector<7xf32>
    %642 = vector.shape_cast %641 : vector<7xf32> to vector<7x1xf32>
    %643 = tpu.reciprocal %642 {approx = true} : vector<7x1xf32> -> vector<7x1xf32>
    %644 = vector.broadcast %643 : vector<7x1xf32> to vector<7x7xf32>
    %645 = arith.mulf %640, %644 : vector<7x7xf32>
    %646 = arith.truncf %645 : vector<7x7xf32> to vector<7x7xbf16>
    %cst_201 = arith.constant dense<0.000000e+00> : vector<7x32xf32>
    %647 = tpu.matmul %646, %629, %cst_201 {dimension_numbers = #tpu.dot_dimension_numbers<[1], [0], [0], [1], [0, 0, 1, 1], [], []>} : vector<7x7xbf16>, vector<7x32xbf16>, vector<7x32xf32> -> vector<7x32xf32>
    %648 = vector.broadcast %8 : vector<1x32xf32> to vector<7x32xf32>
    %649 = arith.mulf %647, %648 : vector<7x32xf32>
    %650 = arith.addf %630, %649 : vector<7x32xf32>
    %651 = vector.broadcast %16 : vector<1x32xf32> to vector<7x32xf32>
    %652 = arith.mulf %625, %651 : vector<7x32xf32>
    %653 = arith.truncf %652 : vector<7x32xf32> to vector<7x32xbf16>
    %cst_202 = arith.constant dense<0.000000e+00> : vector<7x7xf32>
    %654 = tpu.matmul %653, %628, %cst_202 {dimension_numbers = #tpu.dot_dimension_numbers<[1], [1], [0], [0], [0, 0, 1, 0], [], []>} : vector<7x32xbf16>, vector<7x32xbf16>, vector<7x7xf32> -> vector<7x7xf32>
    %655 = arith.addf %654, %624 : vector<7x7xf32>
    %cst_203 = arith.constant dense<0xFF800000> : vector<7xf32>
    %656 = vector.multi_reduction <maximumf>, %655, %cst_203 [1] : vector<7x7xf32> to vector<7xf32>
    %657 = vector.shape_cast %656 : vector<7xf32> to vector<7x1xf32>
    %658 = vector.broadcast %657 : vector<7x1xf32> to vector<7x7xf32>
    %659 = arith.subf %655, %658 : vector<7x7xf32>
    %660 = math.exp %659 : vector<7x7xf32>
    %cst_204 = arith.constant dense<0.000000e+00> : vector<7xf32>
    %661 = vector.multi_reduction <add>, %660, %cst_204 [1] : vector<7x7xf32> to vector<7xf32>
    %662 = vector.shape_cast %661 : vector<7xf32> to vector<7x1xf32>
    %663 = tpu.reciprocal %662 {approx = true} : vector<7x1xf32> -> vector<7x1xf32>
    %664 = vector.broadcast %663 : vector<7x1xf32> to vector<7x7xf32>
    %665 = arith.mulf %660, %664 : vector<7x7xf32>
    %666 = arith.truncf %665 : vector<7x7xf32> to vector<7x7xbf16>
    %cst_205 = arith.constant dense<0.000000e+00> : vector<7x32xf32>
    %667 = tpu.matmul %666, %629, %cst_205 {dimension_numbers = #tpu.dot_dimension_numbers<[1], [0], [0], [1], [0, 0, 1, 1], [], []>} : vector<7x7xbf16>, vector<7x32xbf16>, vector<7x32xf32> -> vector<7x32xf32>
    %668 = vector.broadcast %16 : vector<1x32xf32> to vector<7x32xf32>
    %669 = arith.mulf %667, %668 : vector<7x32xf32>
    %670 = arith.addf %650, %669 : vector<7x32xf32>
    %671 = vector.broadcast %24 : vector<1x32xf32> to vector<7x32xf32>
    %672 = arith.mulf %625, %671 : vector<7x32xf32>
    %673 = arith.truncf %672 : vector<7x32xf32> to vector<7x32xbf16>
    %cst_206 = arith.constant dense<0.000000e+00> : vector<7x7xf32>
    %674 = tpu.matmul %673, %628, %cst_206 {dimension_numbers = #tpu.dot_dimension_numbers<[1], [1], [0], [0], [0, 0, 1, 0], [], []>} : vector<7x32xbf16>, vector<7x32xbf16>, vector<7x7xf32> -> vector<7x7xf32>
    %675 = arith.addf %674, %624 : vector<7x7xf32>
    %cst_207 = arith.constant dense<0xFF800000> : vector<7xf32>
    %676 = vector.multi_reduction <maximumf>, %675, %cst_207 [1] : vector<7x7xf32> to vector<7xf32>
    %677 = vector.shape_cast %676 : vector<7xf32> to vector<7x1xf32>
    %678 = vector.broadcast %677 : vector<7x1xf32> to vector<7x7xf32>
    %679 = arith.subf %675, %678 : vector<7x7xf32>
    %680 = math.exp %679 : vector<7x7xf32>
    %cst_208 = arith.constant dense<0.000000e+00> : vector<7xf32>
    %681 = vector.multi_reduction <add>, %680, %cst_208 [1] : vector<7x7xf32> to vector<7xf32>
    %682 = vector.shape_cast %681 : vector<7xf32> to vector<7x1xf32>
    %683 = tpu.reciprocal %682 {approx = true} : vector<7x1xf32> -> vector<7x1xf32>
    %684 = vector.broadcast %683 : vector<7x1xf32> to vector<7x7xf32>
    %685 = arith.mulf %680, %684 : vector<7x7xf32>
    %686 = arith.truncf %685 : vector<7x7xf32> to vector<7x7xbf16>
    %cst_209 = arith.constant dense<0.000000e+00> : vector<7x32xf32>
    %687 = tpu.matmul %686, %629, %cst_209 {dimension_numbers = #tpu.dot_dimension_numbers<[1], [0], [0], [1], [0, 0, 1, 1], [], []>} : vector<7x7xbf16>, vector<7x32xbf16>, vector<7x32xf32> -> vector<7x32xf32>
    %688 = vector.broadcast %24 : vector<1x32xf32> to vector<7x32xf32>
    %689 = arith.mulf %687, %688 : vector<7x32xf32>
    %690 = arith.addf %670, %689 : vector<7x32xf32>
    %691 = vector.broadcast %32 : vector<1x32xf32> to vector<7x32xf32>
    %692 = arith.mulf %625, %691 : vector<7x32xf32>
    %693 = arith.truncf %692 : vector<7x32xf32> to vector<7x32xbf16>
    %cst_210 = arith.constant dense<0.000000e+00> : vector<7x7xf32>
    %694 = tpu.matmul %693, %628, %cst_210 {dimension_numbers = #tpu.dot_dimension_numbers<[1], [1], [0], [0], [0, 0, 1, 0], [], []>} : vector<7x32xbf16>, vector<7x32xbf16>, vector<7x7xf32> -> vector<7x7xf32>
    %695 = arith.addf %694, %624 : vector<7x7xf32>
    %cst_211 = arith.constant dense<0xFF800000> : vector<7xf32>
    %696 = vector.multi_reduction <maximumf>, %695, %cst_211 [1] : vector<7x7xf32> to vector<7xf32>
    %697 = vector.shape_cast %696 : vector<7xf32> to vector<7x1xf32>
    %698 = vector.broadcast %697 : vector<7x1xf32> to vector<7x7xf32>
    %699 = arith.subf %695, %698 : vector<7x7xf32>
    %700 = math.exp %699 : vector<7x7xf32>
    %cst_212 = arith.constant dense<0.000000e+00> : vector<7xf32>
    %701 = vector.multi_reduction <add>, %700, %cst_212 [1] : vector<7x7xf32> to vector<7xf32>
    %702 = vector.shape_cast %701 : vector<7xf32> to vector<7x1xf32>
    %703 = tpu.reciprocal %702 {approx = true} : vector<7x1xf32> -> vector<7x1xf32>
    %704 = vector.broadcast %703 : vector<7x1xf32> to vector<7x7xf32>
    %705 = arith.mulf %700, %704 : vector<7x7xf32>
    %706 = arith.truncf %705 : vector<7x7xf32> to vector<7x7xbf16>
    %cst_213 = arith.constant dense<0.000000e+00> : vector<7x32xf32>
    %707 = tpu.matmul %706, %629, %cst_213 {dimension_numbers = #tpu.dot_dimension_numbers<[1], [0], [0], [1], [0, 0, 1, 1], [], []>} : vector<7x7xbf16>, vector<7x32xbf16>, vector<7x32xf32> -> vector<7x32xf32>
    %708 = vector.broadcast %32 : vector<1x32xf32> to vector<7x32xf32>
    %709 = arith.mulf %707, %708 : vector<7x32xf32>
    %710 = arith.addf %690, %709 : vector<7x32xf32>
    %711 = vector.extract_strided_slice %63 {offsets = [1, 0], sizes = [1, 7], strides = [1, 1]} : vector<2x7xf32> to vector<1x7xf32>
    %712 = vector.broadcast %711 : vector<1x7xf32> to vector<7x7xf32>
    %713 = arith.addf %69, %712 : vector<7x7xf32>
    %714 = vector.extract_strided_slice %621 {offsets = [7, 0], sizes = [7, 32], strides = [1, 1]} : vector<14x96xf32> to vector<7x32xf32>
    %715 = vector.extract_strided_slice %621 {offsets = [7, 32], sizes = [7, 32], strides = [1, 1]} : vector<14x96xf32> to vector<7x32xf32>
    %716 = vector.extract_strided_slice %621 {offsets = [7, 64], sizes = [7, 32], strides = [1, 1]} : vector<14x96xf32> to vector<7x32xf32>
    %717 = arith.truncf %715 : vector<7x32xf32> to vector<7x32xbf16>
    %718 = arith.truncf %716 : vector<7x32xf32> to vector<7x32xbf16>
    %cst_214 = arith.constant 0.000000e+00 : f32
    %719 = vector.broadcast %cst_214 : f32 to vector<7x32xf32>
    %720 = vector.broadcast %8 : vector<1x32xf32> to vector<7x32xf32>
    %721 = arith.mulf %714, %720 : vector<7x32xf32>
    %722 = arith.truncf %721 : vector<7x32xf32> to vector<7x32xbf16>
    %cst_215 = arith.constant dense<0.000000e+00> : vector<7x7xf32>
    %723 = tpu.matmul %722, %717, %cst_215 {dimension_numbers = #tpu.dot_dimension_numbers<[1], [1], [0], [0], [0, 0, 1, 0], [], []>} : vector<7x32xbf16>, vector<7x32xbf16>, vector<7x7xf32> -> vector<7x7xf32>
    %724 = arith.addf %723, %713 : vector<7x7xf32>
    %cst_216 = arith.constant dense<0xFF800000> : vector<7xf32>
    %725 = vector.multi_reduction <maximumf>, %724, %cst_216 [1] : vector<7x7xf32> to vector<7xf32>
    %726 = vector.shape_cast %725 : vector<7xf32> to vector<7x1xf32>
    %727 = vector.broadcast %726 : vector<7x1xf32> to vector<7x7xf32>
    %728 = arith.subf %724, %727 : vector<7x7xf32>
    %729 = math.exp %728 : vector<7x7xf32>
    %cst_217 = arith.constant dense<0.000000e+00> : vector<7xf32>
    %730 = vector.multi_reduction <add>, %729, %cst_217 [1] : vector<7x7xf32> to vector<7xf32>
    %731 = vector.shape_cast %730 : vector<7xf32> to vector<7x1xf32>
    %732 = tpu.reciprocal %731 {approx = true} : vector<7x1xf32> -> vector<7x1xf32>
    %733 = vector.broadcast %732 : vector<7x1xf32> to vector<7x7xf32>
    %734 = arith.mulf %729, %733 : vector<7x7xf32>
    %735 = arith.truncf %734 : vector<7x7xf32> to vector<7x7xbf16>
    %cst_218 = arith.constant dense<0.000000e+00> : vector<7x32xf32>
    %736 = tpu.matmul %735, %718, %cst_218 {dimension_numbers = #tpu.dot_dimension_numbers<[1], [0], [0], [1], [0, 0, 1, 1], [], []>} : vector<7x7xbf16>, vector<7x32xbf16>, vector<7x32xf32> -> vector<7x32xf32>
    %737 = vector.broadcast %8 : vector<1x32xf32> to vector<7x32xf32>
    %738 = arith.mulf %736, %737 : vector<7x32xf32>
    %739 = arith.addf %719, %738 : vector<7x32xf32>
    %740 = vector.broadcast %16 : vector<1x32xf32> to vector<7x32xf32>
    %741 = arith.mulf %714, %740 : vector<7x32xf32>
    %742 = arith.truncf %741 : vector<7x32xf32> to vector<7x32xbf16>
    %cst_219 = arith.constant dense<0.000000e+00> : vector<7x7xf32>
    %743 = tpu.matmul %742, %717, %cst_219 {dimension_numbers = #tpu.dot_dimension_numbers<[1], [1], [0], [0], [0, 0, 1, 0], [], []>} : vector<7x32xbf16>, vector<7x32xbf16>, vector<7x7xf32> -> vector<7x7xf32>
    %744 = arith.addf %743, %713 : vector<7x7xf32>
    %cst_220 = arith.constant dense<0xFF800000> : vector<7xf32>
    %745 = vector.multi_reduction <maximumf>, %744, %cst_220 [1] : vector<7x7xf32> to vector<7xf32>
    %746 = vector.shape_cast %745 : vector<7xf32> to vector<7x1xf32>
    %747 = vector.broadcast %746 : vector<7x1xf32> to vector<7x7xf32>
    %748 = arith.subf %744, %747 : vector<7x7xf32>
    %749 = math.exp %748 : vector<7x7xf32>
    %cst_221 = arith.constant dense<0.000000e+00> : vector<7xf32>
    %750 = vector.multi_reduction <add>, %749, %cst_221 [1] : vector<7x7xf32> to vector<7xf32>
    %751 = vector.shape_cast %750 : vector<7xf32> to vector<7x1xf32>
    %752 = tpu.reciprocal %751 {approx = true} : vector<7x1xf32> -> vector<7x1xf32>
    %753 = vector.broadcast %752 : vector<7x1xf32> to vector<7x7xf32>
    %754 = arith.mulf %749, %753 : vector<7x7xf32>
    %755 = arith.truncf %754 : vector<7x7xf32> to vector<7x7xbf16>
    %cst_222 = arith.constant dense<0.000000e+00> : vector<7x32xf32>
    %756 = tpu.matmul %755, %718, %cst_222 {dimension_numbers = #tpu.dot_dimension_numbers<[1], [0], [0], [1], [0, 0, 1, 1], [], []>} : vector<7x7xbf16>, vector<7x32xbf16>, vector<7x32xf32> -> vector<7x32xf32>
    %757 = vector.broadcast %16 : vector<1x32xf32> to vector<7x32xf32>
    %758 = arith.mulf %756, %757 : vector<7x32xf32>
    %759 = arith.addf %739, %758 : vector<7x32xf32>
    %760 = vector.broadcast %24 : vector<1x32xf32> to vector<7x32xf32>
    %761 = arith.mulf %714, %760 : vector<7x32xf32>
    %762 = arith.truncf %761 : vector<7x32xf32> to vector<7x32xbf16>
    %cst_223 = arith.constant dense<0.000000e+00> : vector<7x7xf32>
    %763 = tpu.matmul %762, %717, %cst_223 {dimension_numbers = #tpu.dot_dimension_numbers<[1], [1], [0], [0], [0, 0, 1, 0], [], []>} : vector<7x32xbf16>, vector<7x32xbf16>, vector<7x7xf32> -> vector<7x7xf32>
    %764 = arith.addf %763, %713 : vector<7x7xf32>
    %cst_224 = arith.constant dense<0xFF800000> : vector<7xf32>
    %765 = vector.multi_reduction <maximumf>, %764, %cst_224 [1] : vector<7x7xf32> to vector<7xf32>
    %766 = vector.shape_cast %765 : vector<7xf32> to vector<7x1xf32>
    %767 = vector.broadcast %766 : vector<7x1xf32> to vector<7x7xf32>
    %768 = arith.subf %764, %767 : vector<7x7xf32>
    %769 = math.exp %768 : vector<7x7xf32>
    %cst_225 = arith.constant dense<0.000000e+00> : vector<7xf32>
    %770 = vector.multi_reduction <add>, %769, %cst_225 [1] : vector<7x7xf32> to vector<7xf32>
    %771 = vector.shape_cast %770 : vector<7xf32> to vector<7x1xf32>
    %772 = tpu.reciprocal %771 {approx = true} : vector<7x1xf32> -> vector<7x1xf32>
    %773 = vector.broadcast %772 : vector<7x1xf32> to vector<7x7xf32>
    %774 = arith.mulf %769, %773 : vector<7x7xf32>
    %775 = arith.truncf %774 : vector<7x7xf32> to vector<7x7xbf16>
    %cst_226 = arith.constant dense<0.000000e+00> : vector<7x32xf32>
    %776 = tpu.matmul %775, %718, %cst_226 {dimension_numbers = #tpu.dot_dimension_numbers<[1], [0], [0], [1], [0, 0, 1, 1], [], []>} : vector<7x7xbf16>, vector<7x32xbf16>, vector<7x32xf32> -> vector<7x32xf32>
    %777 = vector.broadcast %24 : vector<1x32xf32> to vector<7x32xf32>
    %778 = arith.mulf %776, %777 : vector<7x32xf32>
    %779 = arith.addf %759, %778 : vector<7x32xf32>
    %780 = vector.broadcast %32 : vector<1x32xf32> to vector<7x32xf32>
    %781 = arith.mulf %714, %780 : vector<7x32xf32>
    %782 = arith.truncf %781 : vector<7x32xf32> to vector<7x32xbf16>
    %cst_227 = arith.constant dense<0.000000e+00> : vector<7x7xf32>
    %783 = tpu.matmul %782, %717, %cst_227 {dimension_numbers = #tpu.dot_dimension_numbers<[1], [1], [0], [0], [0, 0, 1, 0], [], []>} : vector<7x32xbf16>, vector<7x32xbf16>, vector<7x7xf32> -> vector<7x7xf32>
    %784 = arith.addf %783, %713 : vector<7x7xf32>
    %cst_228 = arith.constant dense<0xFF800000> : vector<7xf32>
    %785 = vector.multi_reduction <maximumf>, %784, %cst_228 [1] : vector<7x7xf32> to vector<7xf32>
    %786 = vector.shape_cast %785 : vector<7xf32> to vector<7x1xf32>
    %787 = vector.broadcast %786 : vector<7x1xf32> to vector<7x7xf32>
    %788 = arith.subf %784, %787 : vector<7x7xf32>
    %789 = math.exp %788 : vector<7x7xf32>
    %cst_229 = arith.constant dense<0.000000e+00> : vector<7xf32>
    %790 = vector.multi_reduction <add>, %789, %cst_229 [1] : vector<7x7xf32> to vector<7xf32>
    %791 = vector.shape_cast %790 : vector<7xf32> to vector<7x1xf32>
    %792 = tpu.reciprocal %791 {approx = true} : vector<7x1xf32> -> vector<7x1xf32>
    %793 = vector.broadcast %792 : vector<7x1xf32> to vector<7x7xf32>
    %794 = arith.mulf %789, %793 : vector<7x7xf32>
    %795 = arith.truncf %794 : vector<7x7xf32> to vector<7x7xbf16>
    %cst_230 = arith.constant dense<0.000000e+00> : vector<7x32xf32>
    %796 = tpu.matmul %795, %718, %cst_230 {dimension_numbers = #tpu.dot_dimension_numbers<[1], [0], [0], [1], [0, 0, 1, 1], [], []>} : vector<7x7xbf16>, vector<7x32xbf16>, vector<7x32xf32> -> vector<7x32xf32>
    %797 = vector.broadcast %32 : vector<1x32xf32> to vector<7x32xf32>
    %798 = arith.mulf %796, %797 : vector<7x32xf32>
    %799 = arith.addf %779, %798 : vector<7x32xf32>
    %800 = tpu.concatenate %710, %799 in 0 : vector<7x32xf32>, vector<7x32xf32> -> vector<14x32xf32>
    %c0_231 = arith.constant 0 : index
    %c0_232 = arith.constant 0 : index
    %c0_233 = arith.constant 0 : index
    %801 = vector.load %arg29[%c0_231, %c0_232, %c0_233] : memref<2x6x32xf32, #tpu.memory_space<vmem>>, vector<1x6x32xf32>
    %802 = vector.shape_cast %801 : vector<1x6x32xf32> to vector<6x32xf32>
    %c0_234 = arith.constant 0 : index
    %c0_235 = arith.constant 0 : index
    %c0_236 = arith.constant 0 : index
    %803 = vector.load %arg17[%c0_234, %c0_235, %c0_236] : memref<2x32x32xbf16, #tpu.memory_space<vmem>>, vector<1x32x32xbf16>
    %804 = vector.shape_cast %803 : vector<1x32x32xbf16> to vector<32x32xbf16>
    %805 = arith.truncf %800 : vector<14x32xf32> to vector<14x32xbf16>
    %cst_237 = arith.constant dense<0.000000e+00> : vector<14x32xf32>
    %806 = tpu.matmul %805, %804, %cst_237 {dimension_numbers = #tpu.dot_dimension_numbers<[1], [0], [0], [1], [0, 0, 1, 1], [], []>} : vector<14x32xbf16>, vector<32x32xbf16>, vector<14x32xf32> -> vector<14x32xf32>
    %807 = arith.addf %51, %806 : vector<14x32xf32>
    %c0_238 = arith.constant 0 : index
    %c0_239 = arith.constant 0 : index
    %c0_240 = arith.constant 0 : index
    %808 = vector.load %arg18[%c0_238, %c0_239, %c0_240] : memref<2x1x32xf32, #tpu.memory_space<vmem>>, vector<1x1x32xf32>
    %809 = vector.shape_cast %808 : vector<1x1x32xf32> to vector<1x32xf32>
    %810 = vector.broadcast %809 : vector<1x32xf32> to vector<14x32xf32>
    %811 = arith.addf %807, %810 : vector<14x32xf32>
    %812 = vector.extract_strided_slice %802 {offsets = [0, 0], sizes = [1, 32], strides = [1, 1]} : vector<6x32xf32> to vector<1x32xf32>
    %813 = vector.extract_strided_slice %802 {offsets = [1, 0], sizes = [1, 32], strides = [1, 1]} : vector<6x32xf32> to vector<1x32xf32>
    %cst_241 = arith.constant dense<0.000000e+00> : vector<14xf32>
    %814 = vector.multi_reduction <add>, %811, %cst_241 [1] : vector<14x32xf32> to vector<14xf32>
    %815 = vector.shape_cast %814 : vector<14xf32> to vector<14x1xf32>
    %cst_242 = arith.constant 3.200000e+01 : f32
    %816 = vector.broadcast %cst_242 : f32 to vector<14x1xf32>
    %817 = arith.divf %815, %816 : vector<14x1xf32>
    %818 = vector.broadcast %817 : vector<14x1xf32> to vector<14x32xf32>
    %819 = arith.subf %811, %818 : vector<14x32xf32>
    %820 = arith.mulf %819, %819 : vector<14x32xf32>
    %cst_243 = arith.constant dense<0.000000e+00> : vector<14xf32>
    %821 = vector.multi_reduction <add>, %820, %cst_243 [1] : vector<14x32xf32> to vector<14xf32>
    %822 = vector.shape_cast %821 : vector<14xf32> to vector<14x1xf32>
    %cst_244 = arith.constant 3.200000e+01 : f32
    %823 = vector.broadcast %cst_244 : f32 to vector<14x1xf32>
    %824 = arith.divf %822, %823 : vector<14x1xf32>
    %825 = vector.broadcast %817 : vector<14x1xf32> to vector<14x32xf32>
    %826 = arith.subf %811, %825 : vector<14x32xf32>
    %cst_245 = arith.constant 9.99999974E-6 : f32
    %827 = vector.broadcast %cst_245 : f32 to vector<14x1xf32>
    %828 = arith.addf %824, %827 : vector<14x1xf32>
    %829 = math.rsqrt %828 : vector<14x1xf32>
    %830 = vector.broadcast %829 : vector<14x1xf32> to vector<14x32xf32>
    %831 = arith.mulf %826, %830 : vector<14x32xf32>
    %832 = vector.broadcast %812 : vector<1x32xf32> to vector<14x32xf32>
    %833 = arith.mulf %831, %832 : vector<14x32xf32>
    %834 = vector.broadcast %813 : vector<1x32xf32> to vector<14x32xf32>
    %835 = arith.addf %833, %834 : vector<14x32xf32>
    %c0_246 = arith.constant 0 : index
    %c0_247 = arith.constant 0 : index
    %c0_248 = arith.constant 0 : index
    %836 = vector.load %arg19[%c0_246, %c0_247, %c0_248] : memref<2x32x32xbf16, #tpu.memory_space<vmem>>, vector<1x32x32xbf16>
    %837 = vector.shape_cast %836 : vector<1x32x32xbf16> to vector<32x32xbf16>
    %838 = arith.truncf %835 : vector<14x32xf32> to vector<14x32xbf16>
    %cst_249 = arith.constant dense<0.000000e+00> : vector<14x32xf32>
    %839 = tpu.matmul %838, %837, %cst_249 {dimension_numbers = #tpu.dot_dimension_numbers<[1], [0], [0], [1], [0, 0, 1, 1], [], []>} : vector<14x32xbf16>, vector<32x32xbf16>, vector<14x32xf32> -> vector<14x32xf32>
    %c0_250 = arith.constant 0 : index
    %c0_251 = arith.constant 0 : index
    %c0_252 = arith.constant 0 : index
    %840 = vector.load %arg20[%c0_250, %c0_251, %c0_252] : memref<2x1x32xf32, #tpu.memory_space<vmem>>, vector<1x1x32xf32>
    %841 = vector.shape_cast %840 : vector<1x1x32xf32> to vector<1x32xf32>
    %842 = vector.broadcast %841 : vector<1x32xf32> to vector<14x32xf32>
    %843 = arith.addf %839, %842 : vector<14x32xf32>
    %c0_253 = arith.constant 0 : index
    %c0_254 = arith.constant 0 : index
    %c0_255 = arith.constant 0 : index
    %844 = vector.load %arg21[%c0_253, %c0_254, %c0_255] : memref<2x32x64xbf16, #tpu.memory_space<vmem>>, vector<1x32x64xbf16>
    %845 = vector.shape_cast %844 : vector<1x32x64xbf16> to vector<32x64xbf16>
    %846 = arith.truncf %613 : vector<16x32xf32> to vector<16x32xbf16>
    %cst_256 = arith.constant dense<0.000000e+00> : vector<16x64xf32>
    %847 = tpu.matmul %846, %845, %cst_256 {dimension_numbers = #tpu.dot_dimension_numbers<[1], [0], [0], [1], [0, 0, 1, 1], [], []>} : vector<16x32xbf16>, vector<32x64xbf16>, vector<16x64xf32> -> vector<16x64xf32>
    %c0_257 = arith.constant 0 : index
    %c0_258 = arith.constant 0 : index
    %c0_259 = arith.constant 0 : index
    %848 = vector.load %arg22[%c0_257, %c0_258, %c0_259] : memref<2x1x64xf32, #tpu.memory_space<vmem>>, vector<1x1x64xf32>
    %849 = vector.shape_cast %848 : vector<1x1x64xf32> to vector<1x64xf32>
    %850 = vector.broadcast %849 : vector<1x64xf32> to vector<16x64xf32>
    %851 = arith.addf %847, %850 : vector<16x64xf32>
    %852 = vector.extract_strided_slice %843 {offsets = [0, 0], sizes = [7, 32], strides = [1, 1]} : vector<14x32xf32> to vector<7x32xf32>
    %853 = vector.extract_strided_slice %851 {offsets = [0, 0], sizes = [8, 32], strides = [1, 1]} : vector<16x64xf32> to vector<8x32xf32>
    %854 = vector.extract_strided_slice %851 {offsets = [0, 32], sizes = [8, 32], strides = [1, 1]} : vector<16x64xf32> to vector<8x32xf32>
    %855 = vector.extract_strided_slice %57 {offsets = [0, 0], sizes = [1, 8], strides = [1, 1]} : vector<2x8xf32> to vector<1x8xf32>
    %856 = arith.truncf %853 : vector<8x32xf32> to vector<8x32xbf16>
    %857 = arith.truncf %854 : vector<8x32xf32> to vector<8x32xbf16>
    %cst_260 = arith.constant 0.000000e+00 : f32
    %858 = vector.broadcast %cst_260 : f32 to vector<7x32xf32>
    %859 = vector.broadcast %8 : vector<1x32xf32> to vector<7x32xf32>
    %860 = arith.mulf %852, %859 : vector<7x32xf32>
    %861 = arith.truncf %860 : vector<7x32xf32> to vector<7x32xbf16>
    %cst_261 = arith.constant dense<0.000000e+00> : vector<7x8xf32>
    %862 = tpu.matmul %861, %856, %cst_261 {dimension_numbers = #tpu.dot_dimension_numbers<[1], [1], [0], [0], [0, 0, 1, 0], [], []>} : vector<7x32xbf16>, vector<8x32xbf16>, vector<7x8xf32> -> vector<7x8xf32>
    %863 = vector.broadcast %855 : vector<1x8xf32> to vector<7x8xf32>
    %864 = arith.addf %862, %863 : vector<7x8xf32>
    %cst_262 = arith.constant dense<0xFF800000> : vector<7xf32>
    %865 = vector.multi_reduction <maximumf>, %864, %cst_262 [1] : vector<7x8xf32> to vector<7xf32>
    %866 = vector.shape_cast %865 : vector<7xf32> to vector<7x1xf32>
    %867 = vector.broadcast %866 : vector<7x1xf32> to vector<7x8xf32>
    %868 = arith.subf %864, %867 : vector<7x8xf32>
    %869 = math.exp %868 : vector<7x8xf32>
    %cst_263 = arith.constant dense<0.000000e+00> : vector<7xf32>
    %870 = vector.multi_reduction <add>, %869, %cst_263 [1] : vector<7x8xf32> to vector<7xf32>
    %871 = vector.shape_cast %870 : vector<7xf32> to vector<7x1xf32>
    %872 = tpu.reciprocal %871 {approx = true} : vector<7x1xf32> -> vector<7x1xf32>
    %873 = vector.broadcast %872 : vector<7x1xf32> to vector<7x8xf32>
    %874 = arith.mulf %869, %873 : vector<7x8xf32>
    %875 = arith.truncf %874 : vector<7x8xf32> to vector<7x8xbf16>
    %cst_264 = arith.constant dense<0.000000e+00> : vector<7x32xf32>
    %876 = tpu.matmul %875, %857, %cst_264 {dimension_numbers = #tpu.dot_dimension_numbers<[1], [0], [0], [1], [0, 0, 1, 1], [], []>} : vector<7x8xbf16>, vector<8x32xbf16>, vector<7x32xf32> -> vector<7x32xf32>
    %877 = vector.broadcast %8 : vector<1x32xf32> to vector<7x32xf32>
    %878 = arith.mulf %876, %877 : vector<7x32xf32>
    %879 = arith.addf %858, %878 : vector<7x32xf32>
    %880 = vector.broadcast %16 : vector<1x32xf32> to vector<7x32xf32>
    %881 = arith.mulf %852, %880 : vector<7x32xf32>
    %882 = arith.truncf %881 : vector<7x32xf32> to vector<7x32xbf16>
    %cst_265 = arith.constant dense<0.000000e+00> : vector<7x8xf32>
    %883 = tpu.matmul %882, %856, %cst_265 {dimension_numbers = #tpu.dot_dimension_numbers<[1], [1], [0], [0], [0, 0, 1, 0], [], []>} : vector<7x32xbf16>, vector<8x32xbf16>, vector<7x8xf32> -> vector<7x8xf32>
    %884 = vector.broadcast %855 : vector<1x8xf32> to vector<7x8xf32>
    %885 = arith.addf %883, %884 : vector<7x8xf32>
    %cst_266 = arith.constant dense<0xFF800000> : vector<7xf32>
    %886 = vector.multi_reduction <maximumf>, %885, %cst_266 [1] : vector<7x8xf32> to vector<7xf32>
    %887 = vector.shape_cast %886 : vector<7xf32> to vector<7x1xf32>
    %888 = vector.broadcast %887 : vector<7x1xf32> to vector<7x8xf32>
    %889 = arith.subf %885, %888 : vector<7x8xf32>
    %890 = math.exp %889 : vector<7x8xf32>
    %cst_267 = arith.constant dense<0.000000e+00> : vector<7xf32>
    %891 = vector.multi_reduction <add>, %890, %cst_267 [1] : vector<7x8xf32> to vector<7xf32>
    %892 = vector.shape_cast %891 : vector<7xf32> to vector<7x1xf32>
    %893 = tpu.reciprocal %892 {approx = true} : vector<7x1xf32> -> vector<7x1xf32>
    %894 = vector.broadcast %893 : vector<7x1xf32> to vector<7x8xf32>
    %895 = arith.mulf %890, %894 : vector<7x8xf32>
    %896 = arith.truncf %895 : vector<7x8xf32> to vector<7x8xbf16>
    %cst_268 = arith.constant dense<0.000000e+00> : vector<7x32xf32>
    %897 = tpu.matmul %896, %857, %cst_268 {dimension_numbers = #tpu.dot_dimension_numbers<[1], [0], [0], [1], [0, 0, 1, 1], [], []>} : vector<7x8xbf16>, vector<8x32xbf16>, vector<7x32xf32> -> vector<7x32xf32>
    %898 = vector.broadcast %16 : vector<1x32xf32> to vector<7x32xf32>
    %899 = arith.mulf %897, %898 : vector<7x32xf32>
    %900 = arith.addf %879, %899 : vector<7x32xf32>
    %901 = vector.broadcast %24 : vector<1x32xf32> to vector<7x32xf32>
    %902 = arith.mulf %852, %901 : vector<7x32xf32>
    %903 = arith.truncf %902 : vector<7x32xf32> to vector<7x32xbf16>
    %cst_269 = arith.constant dense<0.000000e+00> : vector<7x8xf32>
    %904 = tpu.matmul %903, %856, %cst_269 {dimension_numbers = #tpu.dot_dimension_numbers<[1], [1], [0], [0], [0, 0, 1, 0], [], []>} : vector<7x32xbf16>, vector<8x32xbf16>, vector<7x8xf32> -> vector<7x8xf32>
    %905 = vector.broadcast %855 : vector<1x8xf32> to vector<7x8xf32>
    %906 = arith.addf %904, %905 : vector<7x8xf32>
    %cst_270 = arith.constant dense<0xFF800000> : vector<7xf32>
    %907 = vector.multi_reduction <maximumf>, %906, %cst_270 [1] : vector<7x8xf32> to vector<7xf32>
    %908 = vector.shape_cast %907 : vector<7xf32> to vector<7x1xf32>
    %909 = vector.broadcast %908 : vector<7x1xf32> to vector<7x8xf32>
    %910 = arith.subf %906, %909 : vector<7x8xf32>
    %911 = math.exp %910 : vector<7x8xf32>
    %cst_271 = arith.constant dense<0.000000e+00> : vector<7xf32>
    %912 = vector.multi_reduction <add>, %911, %cst_271 [1] : vector<7x8xf32> to vector<7xf32>
    %913 = vector.shape_cast %912 : vector<7xf32> to vector<7x1xf32>
    %914 = tpu.reciprocal %913 {approx = true} : vector<7x1xf32> -> vector<7x1xf32>
    %915 = vector.broadcast %914 : vector<7x1xf32> to vector<7x8xf32>
    %916 = arith.mulf %911, %915 : vector<7x8xf32>
    %917 = arith.truncf %916 : vector<7x8xf32> to vector<7x8xbf16>
    %cst_272 = arith.constant dense<0.000000e+00> : vector<7x32xf32>
    %918 = tpu.matmul %917, %857, %cst_272 {dimension_numbers = #tpu.dot_dimension_numbers<[1], [0], [0], [1], [0, 0, 1, 1], [], []>} : vector<7x8xbf16>, vector<8x32xbf16>, vector<7x32xf32> -> vector<7x32xf32>
    %919 = vector.broadcast %24 : vector<1x32xf32> to vector<7x32xf32>
    %920 = arith.mulf %918, %919 : vector<7x32xf32>
    %921 = arith.addf %900, %920 : vector<7x32xf32>
    %922 = vector.broadcast %32 : vector<1x32xf32> to vector<7x32xf32>
    %923 = arith.mulf %852, %922 : vector<7x32xf32>
    %924 = arith.truncf %923 : vector<7x32xf32> to vector<7x32xbf16>
    %cst_273 = arith.constant dense<0.000000e+00> : vector<7x8xf32>
    %925 = tpu.matmul %924, %856, %cst_273 {dimension_numbers = #tpu.dot_dimension_numbers<[1], [1], [0], [0], [0, 0, 1, 0], [], []>} : vector<7x32xbf16>, vector<8x32xbf16>, vector<7x8xf32> -> vector<7x8xf32>
    %926 = vector.broadcast %855 : vector<1x8xf32> to vector<7x8xf32>
    %927 = arith.addf %925, %926 : vector<7x8xf32>
    %cst_274 = arith.constant dense<0xFF800000> : vector<7xf32>
    %928 = vector.multi_reduction <maximumf>, %927, %cst_274 [1] : vector<7x8xf32> to vector<7xf32>
    %929 = vector.shape_cast %928 : vector<7xf32> to vector<7x1xf32>
    %930 = vector.broadcast %929 : vector<7x1xf32> to vector<7x8xf32>
    %931 = arith.subf %927, %930 : vector<7x8xf32>
    %932 = math.exp %931 : vector<7x8xf32>
    %cst_275 = arith.constant dense<0.000000e+00> : vector<7xf32>
    %933 = vector.multi_reduction <add>, %932, %cst_275 [1] : vector<7x8xf32> to vector<7xf32>
    %934 = vector.shape_cast %933 : vector<7xf32> to vector<7x1xf32>
    %935 = tpu.reciprocal %934 {approx = true} : vector<7x1xf32> -> vector<7x1xf32>
    %936 = vector.broadcast %935 : vector<7x1xf32> to vector<7x8xf32>
    %937 = arith.mulf %932, %936 : vector<7x8xf32>
    %938 = arith.truncf %937 : vector<7x8xf32> to vector<7x8xbf16>
    %cst_276 = arith.constant dense<0.000000e+00> : vector<7x32xf32>
    %939 = tpu.matmul %938, %857, %cst_276 {dimension_numbers = #tpu.dot_dimension_numbers<[1], [0], [0], [1], [0, 0, 1, 1], [], []>} : vector<7x8xbf16>, vector<8x32xbf16>, vector<7x32xf32> -> vector<7x32xf32>
    %940 = vector.broadcast %32 : vector<1x32xf32> to vector<7x32xf32>
    %941 = arith.mulf %939, %940 : vector<7x32xf32>
    %942 = arith.addf %921, %941 : vector<7x32xf32>
    %943 = vector.extract_strided_slice %843 {offsets = [7, 0], sizes = [7, 32], strides = [1, 1]} : vector<14x32xf32> to vector<7x32xf32>
    %944 = vector.extract_strided_slice %851 {offsets = [8, 0], sizes = [8, 32], strides = [1, 1]} : vector<16x64xf32> to vector<8x32xf32>
    %945 = vector.extract_strided_slice %851 {offsets = [8, 32], sizes = [8, 32], strides = [1, 1]} : vector<16x64xf32> to vector<8x32xf32>
    %946 = vector.extract_strided_slice %57 {offsets = [1, 0], sizes = [1, 8], strides = [1, 1]} : vector<2x8xf32> to vector<1x8xf32>
    %947 = arith.truncf %944 : vector<8x32xf32> to vector<8x32xbf16>
    %948 = arith.truncf %945 : vector<8x32xf32> to vector<8x32xbf16>
    %cst_277 = arith.constant 0.000000e+00 : f32
    %949 = vector.broadcast %cst_277 : f32 to vector<7x32xf32>
    %950 = vector.broadcast %8 : vector<1x32xf32> to vector<7x32xf32>
    %951 = arith.mulf %943, %950 : vector<7x32xf32>
    %952 = arith.truncf %951 : vector<7x32xf32> to vector<7x32xbf16>
    %cst_278 = arith.constant dense<0.000000e+00> : vector<7x8xf32>
    %953 = tpu.matmul %952, %947, %cst_278 {dimension_numbers = #tpu.dot_dimension_numbers<[1], [1], [0], [0], [0, 0, 1, 0], [], []>} : vector<7x32xbf16>, vector<8x32xbf16>, vector<7x8xf32> -> vector<7x8xf32>
    %954 = vector.broadcast %946 : vector<1x8xf32> to vector<7x8xf32>
    %955 = arith.addf %953, %954 : vector<7x8xf32>
    %cst_279 = arith.constant dense<0xFF800000> : vector<7xf32>
    %956 = vector.multi_reduction <maximumf>, %955, %cst_279 [1] : vector<7x8xf32> to vector<7xf32>
    %957 = vector.shape_cast %956 : vector<7xf32> to vector<7x1xf32>
    %958 = vector.broadcast %957 : vector<7x1xf32> to vector<7x8xf32>
    %959 = arith.subf %955, %958 : vector<7x8xf32>
    %960 = math.exp %959 : vector<7x8xf32>
    %cst_280 = arith.constant dense<0.000000e+00> : vector<7xf32>
    %961 = vector.multi_reduction <add>, %960, %cst_280 [1] : vector<7x8xf32> to vector<7xf32>
    %962 = vector.shape_cast %961 : vector<7xf32> to vector<7x1xf32>
    %963 = tpu.reciprocal %962 {approx = true} : vector<7x1xf32> -> vector<7x1xf32>
    %964 = vector.broadcast %963 : vector<7x1xf32> to vector<7x8xf32>
    %965 = arith.mulf %960, %964 : vector<7x8xf32>
    %966 = arith.truncf %965 : vector<7x8xf32> to vector<7x8xbf16>
    %cst_281 = arith.constant dense<0.000000e+00> : vector<7x32xf32>
    %967 = tpu.matmul %966, %948, %cst_281 {dimension_numbers = #tpu.dot_dimension_numbers<[1], [0], [0], [1], [0, 0, 1, 1], [], []>} : vector<7x8xbf16>, vector<8x32xbf16>, vector<7x32xf32> -> vector<7x32xf32>
    %968 = vector.broadcast %8 : vector<1x32xf32> to vector<7x32xf32>
    %969 = arith.mulf %967, %968 : vector<7x32xf32>
    %970 = arith.addf %949, %969 : vector<7x32xf32>
    %971 = vector.broadcast %16 : vector<1x32xf32> to vector<7x32xf32>
    %972 = arith.mulf %943, %971 : vector<7x32xf32>
    %973 = arith.truncf %972 : vector<7x32xf32> to vector<7x32xbf16>
    %cst_282 = arith.constant dense<0.000000e+00> : vector<7x8xf32>
    %974 = tpu.matmul %973, %947, %cst_282 {dimension_numbers = #tpu.dot_dimension_numbers<[1], [1], [0], [0], [0, 0, 1, 0], [], []>} : vector<7x32xbf16>, vector<8x32xbf16>, vector<7x8xf32> -> vector<7x8xf32>
    %975 = vector.broadcast %946 : vector<1x8xf32> to vector<7x8xf32>
    %976 = arith.addf %974, %975 : vector<7x8xf32>
    %cst_283 = arith.constant dense<0xFF800000> : vector<7xf32>
    %977 = vector.multi_reduction <maximumf>, %976, %cst_283 [1] : vector<7x8xf32> to vector<7xf32>
    %978 = vector.shape_cast %977 : vector<7xf32> to vector<7x1xf32>
    %979 = vector.broadcast %978 : vector<7x1xf32> to vector<7x8xf32>
    %980 = arith.subf %976, %979 : vector<7x8xf32>
    %981 = math.exp %980 : vector<7x8xf32>
    %cst_284 = arith.constant dense<0.000000e+00> : vector<7xf32>
    %982 = vector.multi_reduction <add>, %981, %cst_284 [1] : vector<7x8xf32> to vector<7xf32>
    %983 = vector.shape_cast %982 : vector<7xf32> to vector<7x1xf32>
    %984 = tpu.reciprocal %983 {approx = true} : vector<7x1xf32> -> vector<7x1xf32>
    %985 = vector.broadcast %984 : vector<7x1xf32> to vector<7x8xf32>
    %986 = arith.mulf %981, %985 : vector<7x8xf32>
    %987 = arith.truncf %986 : vector<7x8xf32> to vector<7x8xbf16>
    %cst_285 = arith.constant dense<0.000000e+00> : vector<7x32xf32>
    %988 = tpu.matmul %987, %948, %cst_285 {dimension_numbers = #tpu.dot_dimension_numbers<[1], [0], [0], [1], [0, 0, 1, 1], [], []>} : vector<7x8xbf16>, vector<8x32xbf16>, vector<7x32xf32> -> vector<7x32xf32>
    %989 = vector.broadcast %16 : vector<1x32xf32> to vector<7x32xf32>
    %990 = arith.mulf %988, %989 : vector<7x32xf32>
    %991 = arith.addf %970, %990 : vector<7x32xf32>
    %992 = vector.broadcast %24 : vector<1x32xf32> to vector<7x32xf32>
    %993 = arith.mulf %943, %992 : vector<7x32xf32>
    %994 = arith.truncf %993 : vector<7x32xf32> to vector<7x32xbf16>
    %cst_286 = arith.constant dense<0.000000e+00> : vector<7x8xf32>
    %995 = tpu.matmul %994, %947, %cst_286 {dimension_numbers = #tpu.dot_dimension_numbers<[1], [1], [0], [0], [0, 0, 1, 0], [], []>} : vector<7x32xbf16>, vector<8x32xbf16>, vector<7x8xf32> -> vector<7x8xf32>
    %996 = vector.broadcast %946 : vector<1x8xf32> to vector<7x8xf32>
    %997 = arith.addf %995, %996 : vector<7x8xf32>
    %cst_287 = arith.constant dense<0xFF800000> : vector<7xf32>
    %998 = vector.multi_reduction <maximumf>, %997, %cst_287 [1] : vector<7x8xf32> to vector<7xf32>
    %999 = vector.shape_cast %998 : vector<7xf32> to vector<7x1xf32>
    %1000 = vector.broadcast %999 : vector<7x1xf32> to vector<7x8xf32>
    %1001 = arith.subf %997, %1000 : vector<7x8xf32>
    %1002 = math.exp %1001 : vector<7x8xf32>
    %cst_288 = arith.constant dense<0.000000e+00> : vector<7xf32>
    %1003 = vector.multi_reduction <add>, %1002, %cst_288 [1] : vector<7x8xf32> to vector<7xf32>
    %1004 = vector.shape_cast %1003 : vector<7xf32> to vector<7x1xf32>
    %1005 = tpu.reciprocal %1004 {approx = true} : vector<7x1xf32> -> vector<7x1xf32>
    %1006 = vector.broadcast %1005 : vector<7x1xf32> to vector<7x8xf32>
    %1007 = arith.mulf %1002, %1006 : vector<7x8xf32>
    %1008 = arith.truncf %1007 : vector<7x8xf32> to vector<7x8xbf16>
    %cst_289 = arith.constant dense<0.000000e+00> : vector<7x32xf32>
    %1009 = tpu.matmul %1008, %948, %cst_289 {dimension_numbers = #tpu.dot_dimension_numbers<[1], [0], [0], [1], [0, 0, 1, 1], [], []>} : vector<7x8xbf16>, vector<8x32xbf16>, vector<7x32xf32> -> vector<7x32xf32>
    %1010 = vector.broadcast %24 : vector<1x32xf32> to vector<7x32xf32>
    %1011 = arith.mulf %1009, %1010 : vector<7x32xf32>
    %1012 = arith.addf %991, %1011 : vector<7x32xf32>
    %1013 = vector.broadcast %32 : vector<1x32xf32> to vector<7x32xf32>
    %1014 = arith.mulf %943, %1013 : vector<7x32xf32>
    %1015 = arith.truncf %1014 : vector<7x32xf32> to vector<7x32xbf16>
    %cst_290 = arith.constant dense<0.000000e+00> : vector<7x8xf32>
    %1016 = tpu.matmul %1015, %947, %cst_290 {dimension_numbers = #tpu.dot_dimension_numbers<[1], [1], [0], [0], [0, 0, 1, 0], [], []>} : vector<7x32xbf16>, vector<8x32xbf16>, vector<7x8xf32> -> vector<7x8xf32>
    %1017 = vector.broadcast %946 : vector<1x8xf32> to vector<7x8xf32>
    %1018 = arith.addf %1016, %1017 : vector<7x8xf32>
    %cst_291 = arith.constant dense<0xFF800000> : vector<7xf32>
    %1019 = vector.multi_reduction <maximumf>, %1018, %cst_291 [1] : vector<7x8xf32> to vector<7xf32>
    %1020 = vector.shape_cast %1019 : vector<7xf32> to vector<7x1xf32>
    %1021 = vector.broadcast %1020 : vector<7x1xf32> to vector<7x8xf32>
    %1022 = arith.subf %1018, %1021 : vector<7x8xf32>
    %1023 = math.exp %1022 : vector<7x8xf32>
    %cst_292 = arith.constant dense<0.000000e+00> : vector<7xf32>
    %1024 = vector.multi_reduction <add>, %1023, %cst_292 [1] : vector<7x8xf32> to vector<7xf32>
    %1025 = vector.shape_cast %1024 : vector<7xf32> to vector<7x1xf32>
    %1026 = tpu.reciprocal %1025 {approx = true} : vector<7x1xf32> -> vector<7x1xf32>
    %1027 = vector.broadcast %1026 : vector<7x1xf32> to vector<7x8xf32>
    %1028 = arith.mulf %1023, %1027 : vector<7x8xf32>
    %1029 = arith.truncf %1028 : vector<7x8xf32> to vector<7x8xbf16>
    %cst_293 = arith.constant dense<0.000000e+00> : vector<7x32xf32>
    %1030 = tpu.matmul %1029, %948, %cst_293 {dimension_numbers = #tpu.dot_dimension_numbers<[1], [0], [0], [1], [0, 0, 1, 1], [], []>} : vector<7x8xbf16>, vector<8x32xbf16>, vector<7x32xf32> -> vector<7x32xf32>
    %1031 = vector.broadcast %32 : vector<1x32xf32> to vector<7x32xf32>
    %1032 = arith.mulf %1030, %1031 : vector<7x32xf32>
    %1033 = arith.addf %1012, %1032 : vector<7x32xf32>
    %1034 = tpu.concatenate %942, %1033 in 0 : vector<7x32xf32>, vector<7x32xf32> -> vector<14x32xf32>
    %c0_294 = arith.constant 0 : index
    %c0_295 = arith.constant 0 : index
    %c0_296 = arith.constant 0 : index
    %1035 = vector.load %arg23[%c0_294, %c0_295, %c0_296] : memref<2x32x32xbf16, #tpu.memory_space<vmem>>, vector<1x32x32xbf16>
    %1036 = vector.shape_cast %1035 : vector<1x32x32xbf16> to vector<32x32xbf16>
    %1037 = arith.truncf %1034 : vector<14x32xf32> to vector<14x32xbf16>
    %cst_297 = arith.constant dense<0.000000e+00> : vector<14x32xf32>
    %1038 = tpu.matmul %1037, %1036, %cst_297 {dimension_numbers = #tpu.dot_dimension_numbers<[1], [0], [0], [1], [0, 0, 1, 1], [], []>} : vector<14x32xbf16>, vector<32x32xbf16>, vector<14x32xf32> -> vector<14x32xf32>
    %1039 = arith.addf %835, %1038 : vector<14x32xf32>
    %c0_298 = arith.constant 0 : index
    %c0_299 = arith.constant 0 : index
    %c0_300 = arith.constant 0 : index
    %1040 = vector.load %arg24[%c0_298, %c0_299, %c0_300] : memref<2x1x32xf32, #tpu.memory_space<vmem>>, vector<1x1x32xf32>
    %1041 = vector.shape_cast %1040 : vector<1x1x32xf32> to vector<1x32xf32>
    %1042 = vector.broadcast %1041 : vector<1x32xf32> to vector<14x32xf32>
    %1043 = arith.addf %1039, %1042 : vector<14x32xf32>
    %1044 = vector.extract_strided_slice %802 {offsets = [2, 0], sizes = [1, 32], strides = [1, 1]} : vector<6x32xf32> to vector<1x32xf32>
    %1045 = vector.extract_strided_slice %802 {offsets = [3, 0], sizes = [1, 32], strides = [1, 1]} : vector<6x32xf32> to vector<1x32xf32>
    %cst_301 = arith.constant dense<0.000000e+00> : vector<14xf32>
    %1046 = vector.multi_reduction <add>, %1043, %cst_301 [1] : vector<14x32xf32> to vector<14xf32>
    %1047 = vector.shape_cast %1046 : vector<14xf32> to vector<14x1xf32>
    %cst_302 = arith.constant 3.200000e+01 : f32
    %1048 = vector.broadcast %cst_302 : f32 to vector<14x1xf32>
    %1049 = arith.divf %1047, %1048 : vector<14x1xf32>
    %1050 = vector.broadcast %1049 : vector<14x1xf32> to vector<14x32xf32>
    %1051 = arith.subf %1043, %1050 : vector<14x32xf32>
    %1052 = arith.mulf %1051, %1051 : vector<14x32xf32>
    %cst_303 = arith.constant dense<0.000000e+00> : vector<14xf32>
    %1053 = vector.multi_reduction <add>, %1052, %cst_303 [1] : vector<14x32xf32> to vector<14xf32>
    %1054 = vector.shape_cast %1053 : vector<14xf32> to vector<14x1xf32>
    %cst_304 = arith.constant 3.200000e+01 : f32
    %1055 = vector.broadcast %cst_304 : f32 to vector<14x1xf32>
    %1056 = arith.divf %1054, %1055 : vector<14x1xf32>
    %1057 = vector.broadcast %1049 : vector<14x1xf32> to vector<14x32xf32>
    %1058 = arith.subf %1043, %1057 : vector<14x32xf32>
    %cst_305 = arith.constant 9.99999974E-6 : f32
    %1059 = vector.broadcast %cst_305 : f32 to vector<14x1xf32>
    %1060 = arith.addf %1056, %1059 : vector<14x1xf32>
    %1061 = math.rsqrt %1060 : vector<14x1xf32>
    %1062 = vector.broadcast %1061 : vector<14x1xf32> to vector<14x32xf32>
    %1063 = arith.mulf %1058, %1062 : vector<14x32xf32>
    %1064 = vector.broadcast %1044 : vector<1x32xf32> to vector<14x32xf32>
    %1065 = arith.mulf %1063, %1064 : vector<14x32xf32>
    %1066 = vector.broadcast %1045 : vector<1x32xf32> to vector<14x32xf32>
    %1067 = arith.addf %1065, %1066 : vector<14x32xf32>
    %c0_306 = arith.constant 0 : index
    %c0_307 = arith.constant 0 : index
    %c0_308 = arith.constant 0 : index
    %1068 = vector.load %arg25[%c0_306, %c0_307, %c0_308] : memref<2x32x64xbf16, #tpu.memory_space<vmem>>, vector<1x32x64xbf16>
    %1069 = vector.shape_cast %1068 : vector<1x32x64xbf16> to vector<32x64xbf16>
    %1070 = arith.truncf %1067 : vector<14x32xf32> to vector<14x32xbf16>
    %cst_309 = arith.constant dense<0.000000e+00> : vector<14x64xf32>
    %1071 = tpu.matmul %1070, %1069, %cst_309 {dimension_numbers = #tpu.dot_dimension_numbers<[1], [0], [0], [1], [0, 0, 1, 1], [], []>} : vector<14x32xbf16>, vector<32x64xbf16>, vector<14x64xf32> -> vector<14x64xf32>
    %c0_310 = arith.constant 0 : index
    %c0_311 = arith.constant 0 : index
    %c0_312 = arith.constant 0 : index
    %1072 = vector.load %arg26[%c0_310, %c0_311, %c0_312] : memref<2x1x64xf32, #tpu.memory_space<vmem>>, vector<1x1x64xf32>
    %1073 = vector.shape_cast %1072 : vector<1x1x64xf32> to vector<1x64xf32>
    %1074 = vector.broadcast %1073 : vector<1x64xf32> to vector<14x64xf32>
    %1075 = arith.addf %1071, %1074 : vector<14x64xf32>
    %cst_313 = arith.constant 0.000000e+00 : f32
    %1076 = vector.broadcast %cst_313 : f32 to vector<14x64xf32>
    %1077 = arith.maximumf %1075, %1076 : vector<14x64xf32>
    %c0_314 = arith.constant 0 : index
    %c0_315 = arith.constant 0 : index
    %c0_316 = arith.constant 0 : index
    %1078 = vector.load %arg27[%c0_314, %c0_315, %c0_316] : memref<2x64x32xbf16, #tpu.memory_space<vmem>>, vector<1x64x32xbf16>
    %1079 = vector.shape_cast %1078 : vector<1x64x32xbf16> to vector<64x32xbf16>
    %1080 = arith.truncf %1077 : vector<14x64xf32> to vector<14x64xbf16>
    %cst_317 = arith.constant dense<0.000000e+00> : vector<14x32xf32>
    %1081 = tpu.matmul %1080, %1079, %cst_317 {dimension_numbers = #tpu.dot_dimension_numbers<[1], [0], [0], [1], [0, 0, 1, 1], [], []>} : vector<14x64xbf16>, vector<64x32xbf16>, vector<14x32xf32> -> vector<14x32xf32>
    %1082 = arith.addf %1067, %1081 : vector<14x32xf32>
    %c0_318 = arith.constant 0 : index
    %c0_319 = arith.constant 0 : index
    %c0_320 = arith.constant 0 : index
    %1083 = vector.load %arg28[%c0_318, %c0_319, %c0_320] : memref<2x1x32xf32, #tpu.memory_space<vmem>>, vector<1x1x32xf32>
    %1084 = vector.shape_cast %1083 : vector<1x1x32xf32> to vector<1x32xf32>
    %1085 = vector.broadcast %1084 : vector<1x32xf32> to vector<14x32xf32>
    %1086 = arith.addf %1082, %1085 : vector<14x32xf32>
    %1087 = vector.extract_strided_slice %802 {offsets = [4, 0], sizes = [1, 32], strides = [1, 1]} : vector<6x32xf32> to vector<1x32xf32>
    %1088 = vector.extract_strided_slice %802 {offsets = [5, 0], sizes = [1, 32], strides = [1, 1]} : vector<6x32xf32> to vector<1x32xf32>
    %cst_321 = arith.constant dense<0.000000e+00> : vector<14xf32>
    %1089 = vector.multi_reduction <add>, %1086, %cst_321 [1] : vector<14x32xf32> to vector<14xf32>
    %1090 = vector.shape_cast %1089 : vector<14xf32> to vector<14x1xf32>
    %cst_322 = arith.constant 3.200000e+01 : f32
    %1091 = vector.broadcast %cst_322 : f32 to vector<14x1xf32>
    %1092 = arith.divf %1090, %1091 : vector<14x1xf32>
    %1093 = vector.broadcast %1092 : vector<14x1xf32> to vector<14x32xf32>
    %1094 = arith.subf %1086, %1093 : vector<14x32xf32>
    %1095 = arith.mulf %1094, %1094 : vector<14x32xf32>
    %cst_323 = arith.constant dense<0.000000e+00> : vector<14xf32>
    %1096 = vector.multi_reduction <add>, %1095, %cst_323 [1] : vector<14x32xf32> to vector<14xf32>
    %1097 = vector.shape_cast %1096 : vector<14xf32> to vector<14x1xf32>
    %cst_324 = arith.constant 3.200000e+01 : f32
    %1098 = vector.broadcast %cst_324 : f32 to vector<14x1xf32>
    %1099 = arith.divf %1097, %1098 : vector<14x1xf32>
    %1100 = vector.broadcast %1092 : vector<14x1xf32> to vector<14x32xf32>
    %1101 = arith.subf %1086, %1100 : vector<14x32xf32>
    %cst_325 = arith.constant 9.99999974E-6 : f32
    %1102 = vector.broadcast %cst_325 : f32 to vector<14x1xf32>
    %1103 = arith.addf %1099, %1102 : vector<14x1xf32>
    %1104 = math.rsqrt %1103 : vector<14x1xf32>
    %1105 = vector.broadcast %1104 : vector<14x1xf32> to vector<14x32xf32>
    %1106 = arith.mulf %1101, %1105 : vector<14x32xf32>
    %1107 = vector.broadcast %1087 : vector<1x32xf32> to vector<14x32xf32>
    %1108 = arith.mulf %1106, %1107 : vector<14x32xf32>
    %1109 = vector.broadcast %1088 : vector<1x32xf32> to vector<14x32xf32>
    %1110 = arith.addf %1108, %1109 : vector<14x32xf32>
    %c1_326 = arith.constant 1 : index
    %c0_327 = arith.constant 0 : index
    %c0_328 = arith.constant 0 : index
    %1111 = vector.load %arg15[%c1_326, %c0_327, %c0_328] : memref<2x32x96xbf16, #tpu.memory_space<vmem>>, vector<1x32x96xbf16>
    %1112 = vector.shape_cast %1111 : vector<1x32x96xbf16> to vector<32x96xbf16>
    %c1_329 = arith.constant 1 : index
    %c0_330 = arith.constant 0 : index
    %c0_331 = arith.constant 0 : index
    %1113 = vector.load %arg16[%c1_329, %c0_330, %c0_331] : memref<2x1x96xf32, #tpu.memory_space<vmem>>, vector<1x1x96xf32>
    %1114 = vector.shape_cast %1113 : vector<1x1x96xf32> to vector<1x96xf32>
    %1115 = arith.truncf %1110 : vector<14x32xf32> to vector<14x32xbf16>
    %cst_332 = arith.constant dense<0.000000e+00> : vector<14x96xf32>
    %1116 = tpu.matmul %1115, %1112, %cst_332 {dimension_numbers = #tpu.dot_dimension_numbers<[1], [0], [0], [1], [0, 0, 1, 1], [], []>} : vector<14x32xbf16>, vector<32x96xbf16>, vector<14x96xf32> -> vector<14x96xf32>
    %1117 = vector.broadcast %1114 : vector<1x96xf32> to vector<14x96xf32>
    %1118 = arith.addf %1116, %1117 : vector<14x96xf32>
    %1119 = vector.extract_strided_slice %63 {offsets = [0, 0], sizes = [1, 7], strides = [1, 1]} : vector<2x7xf32> to vector<1x7xf32>
    %1120 = vector.broadcast %1119 : vector<1x7xf32> to vector<7x7xf32>
    %1121 = arith.addf %69, %1120 : vector<7x7xf32>
    %1122 = vector.extract_strided_slice %1118 {offsets = [0, 0], sizes = [7, 32], strides = [1, 1]} : vector<14x96xf32> to vector<7x32xf32>
    %1123 = vector.extract_strided_slice %1118 {offsets = [0, 32], sizes = [7, 32], strides = [1, 1]} : vector<14x96xf32> to vector<7x32xf32>
    %1124 = vector.extract_strided_slice %1118 {offsets = [0, 64], sizes = [7, 32], strides = [1, 1]} : vector<14x96xf32> to vector<7x32xf32>
    %1125 = arith.truncf %1123 : vector<7x32xf32> to vector<7x32xbf16>
    %1126 = arith.truncf %1124 : vector<7x32xf32> to vector<7x32xbf16>
    %cst_333 = arith.constant 0.000000e+00 : f32
    %1127 = vector.broadcast %cst_333 : f32 to vector<7x32xf32>
    %1128 = vector.broadcast %8 : vector<1x32xf32> to vector<7x32xf32>
    %1129 = arith.mulf %1122, %1128 : vector<7x32xf32>
    %1130 = arith.truncf %1129 : vector<7x32xf32> to vector<7x32xbf16>
    %cst_334 = arith.constant dense<0.000000e+00> : vector<7x7xf32>
    %1131 = tpu.matmul %1130, %1125, %cst_334 {dimension_numbers = #tpu.dot_dimension_numbers<[1], [1], [0], [0], [0, 0, 1, 0], [], []>} : vector<7x32xbf16>, vector<7x32xbf16>, vector<7x7xf32> -> vector<7x7xf32>
    %1132 = arith.addf %1131, %1121 : vector<7x7xf32>
    %cst_335 = arith.constant dense<0xFF800000> : vector<7xf32>
    %1133 = vector.multi_reduction <maximumf>, %1132, %cst_335 [1] : vector<7x7xf32> to vector<7xf32>
    %1134 = vector.shape_cast %1133 : vector<7xf32> to vector<7x1xf32>
    %1135 = vector.broadcast %1134 : vector<7x1xf32> to vector<7x7xf32>
    %1136 = arith.subf %1132, %1135 : vector<7x7xf32>
    %1137 = math.exp %1136 : vector<7x7xf32>
    %cst_336 = arith.constant dense<0.000000e+00> : vector<7xf32>
    %1138 = vector.multi_reduction <add>, %1137, %cst_336 [1] : vector<7x7xf32> to vector<7xf32>
    %1139 = vector.shape_cast %1138 : vector<7xf32> to vector<7x1xf32>
    %1140 = tpu.reciprocal %1139 {approx = true} : vector<7x1xf32> -> vector<7x1xf32>
    %1141 = vector.broadcast %1140 : vector<7x1xf32> to vector<7x7xf32>
    %1142 = arith.mulf %1137, %1141 : vector<7x7xf32>
    %1143 = arith.truncf %1142 : vector<7x7xf32> to vector<7x7xbf16>
    %cst_337 = arith.constant dense<0.000000e+00> : vector<7x32xf32>
    %1144 = tpu.matmul %1143, %1126, %cst_337 {dimension_numbers = #tpu.dot_dimension_numbers<[1], [0], [0], [1], [0, 0, 1, 1], [], []>} : vector<7x7xbf16>, vector<7x32xbf16>, vector<7x32xf32> -> vector<7x32xf32>
    %1145 = vector.broadcast %8 : vector<1x32xf32> to vector<7x32xf32>
    %1146 = arith.mulf %1144, %1145 : vector<7x32xf32>
    %1147 = arith.addf %1127, %1146 : vector<7x32xf32>
    %1148 = vector.broadcast %16 : vector<1x32xf32> to vector<7x32xf32>
    %1149 = arith.mulf %1122, %1148 : vector<7x32xf32>
    %1150 = arith.truncf %1149 : vector<7x32xf32> to vector<7x32xbf16>
    %cst_338 = arith.constant dense<0.000000e+00> : vector<7x7xf32>
    %1151 = tpu.matmul %1150, %1125, %cst_338 {dimension_numbers = #tpu.dot_dimension_numbers<[1], [1], [0], [0], [0, 0, 1, 0], [], []>} : vector<7x32xbf16>, vector<7x32xbf16>, vector<7x7xf32> -> vector<7x7xf32>
    %1152 = arith.addf %1151, %1121 : vector<7x7xf32>
    %cst_339 = arith.constant dense<0xFF800000> : vector<7xf32>
    %1153 = vector.multi_reduction <maximumf>, %1152, %cst_339 [1] : vector<7x7xf32> to vector<7xf32>
    %1154 = vector.shape_cast %1153 : vector<7xf32> to vector<7x1xf32>
    %1155 = vector.broadcast %1154 : vector<7x1xf32> to vector<7x7xf32>
    %1156 = arith.subf %1152, %1155 : vector<7x7xf32>
    %1157 = math.exp %1156 : vector<7x7xf32>
    %cst_340 = arith.constant dense<0.000000e+00> : vector<7xf32>
    %1158 = vector.multi_reduction <add>, %1157, %cst_340 [1] : vector<7x7xf32> to vector<7xf32>
    %1159 = vector.shape_cast %1158 : vector<7xf32> to vector<7x1xf32>
    %1160 = tpu.reciprocal %1159 {approx = true} : vector<7x1xf32> -> vector<7x1xf32>
    %1161 = vector.broadcast %1160 : vector<7x1xf32> to vector<7x7xf32>
    %1162 = arith.mulf %1157, %1161 : vector<7x7xf32>
    %1163 = arith.truncf %1162 : vector<7x7xf32> to vector<7x7xbf16>
    %cst_341 = arith.constant dense<0.000000e+00> : vector<7x32xf32>
    %1164 = tpu.matmul %1163, %1126, %cst_341 {dimension_numbers = #tpu.dot_dimension_numbers<[1], [0], [0], [1], [0, 0, 1, 1], [], []>} : vector<7x7xbf16>, vector<7x32xbf16>, vector<7x32xf32> -> vector<7x32xf32>
    %1165 = vector.broadcast %16 : vector<1x32xf32> to vector<7x32xf32>
    %1166 = arith.mulf %1164, %1165 : vector<7x32xf32>
    %1167 = arith.addf %1147, %1166 : vector<7x32xf32>
    %1168 = vector.broadcast %24 : vector<1x32xf32> to vector<7x32xf32>
    %1169 = arith.mulf %1122, %1168 : vector<7x32xf32>
    %1170 = arith.truncf %1169 : vector<7x32xf32> to vector<7x32xbf16>
    %cst_342 = arith.constant dense<0.000000e+00> : vector<7x7xf32>
    %1171 = tpu.matmul %1170, %1125, %cst_342 {dimension_numbers = #tpu.dot_dimension_numbers<[1], [1], [0], [0], [0, 0, 1, 0], [], []>} : vector<7x32xbf16>, vector<7x32xbf16>, vector<7x7xf32> -> vector<7x7xf32>
    %1172 = arith.addf %1171, %1121 : vector<7x7xf32>
    %cst_343 = arith.constant dense<0xFF800000> : vector<7xf32>
    %1173 = vector.multi_reduction <maximumf>, %1172, %cst_343 [1] : vector<7x7xf32> to vector<7xf32>
    %1174 = vector.shape_cast %1173 : vector<7xf32> to vector<7x1xf32>
    %1175 = vector.broadcast %1174 : vector<7x1xf32> to vector<7x7xf32>
    %1176 = arith.subf %1172, %1175 : vector<7x7xf32>
    %1177 = math.exp %1176 : vector<7x7xf32>
    %cst_344 = arith.constant dense<0.000000e+00> : vector<7xf32>
    %1178 = vector.multi_reduction <add>, %1177, %cst_344 [1] : vector<7x7xf32> to vector<7xf32>
    %1179 = vector.shape_cast %1178 : vector<7xf32> to vector<7x1xf32>
    %1180 = tpu.reciprocal %1179 {approx = true} : vector<7x1xf32> -> vector<7x1xf32>
    %1181 = vector.broadcast %1180 : vector<7x1xf32> to vector<7x7xf32>
    %1182 = arith.mulf %1177, %1181 : vector<7x7xf32>
    %1183 = arith.truncf %1182 : vector<7x7xf32> to vector<7x7xbf16>
    %cst_345 = arith.constant dense<0.000000e+00> : vector<7x32xf32>
    %1184 = tpu.matmul %1183, %1126, %cst_345 {dimension_numbers = #tpu.dot_dimension_numbers<[1], [0], [0], [1], [0, 0, 1, 1], [], []>} : vector<7x7xbf16>, vector<7x32xbf16>, vector<7x32xf32> -> vector<7x32xf32>
    %1185 = vector.broadcast %24 : vector<1x32xf32> to vector<7x32xf32>
    %1186 = arith.mulf %1184, %1185 : vector<7x32xf32>
    %1187 = arith.addf %1167, %1186 : vector<7x32xf32>
    %1188 = vector.broadcast %32 : vector<1x32xf32> to vector<7x32xf32>
    %1189 = arith.mulf %1122, %1188 : vector<7x32xf32>
    %1190 = arith.truncf %1189 : vector<7x32xf32> to vector<7x32xbf16>
    %cst_346 = arith.constant dense<0.000000e+00> : vector<7x7xf32>
    %1191 = tpu.matmul %1190, %1125, %cst_346 {dimension_numbers = #tpu.dot_dimension_numbers<[1], [1], [0], [0], [0, 0, 1, 0], [], []>} : vector<7x32xbf16>, vector<7x32xbf16>, vector<7x7xf32> -> vector<7x7xf32>
    %1192 = arith.addf %1191, %1121 : vector<7x7xf32>
    %cst_347 = arith.constant dense<0xFF800000> : vector<7xf32>
    %1193 = vector.multi_reduction <maximumf>, %1192, %cst_347 [1] : vector<7x7xf32> to vector<7xf32>
    %1194 = vector.shape_cast %1193 : vector<7xf32> to vector<7x1xf32>
    %1195 = vector.broadcast %1194 : vector<7x1xf32> to vector<7x7xf32>
    %1196 = arith.subf %1192, %1195 : vector<7x7xf32>
    %1197 = math.exp %1196 : vector<7x7xf32>
    %cst_348 = arith.constant dense<0.000000e+00> : vector<7xf32>
    %1198 = vector.multi_reduction <add>, %1197, %cst_348 [1] : vector<7x7xf32> to vector<7xf32>
    %1199 = vector.shape_cast %1198 : vector<7xf32> to vector<7x1xf32>
    %1200 = tpu.reciprocal %1199 {approx = true} : vector<7x1xf32> -> vector<7x1xf32>
    %1201 = vector.broadcast %1200 : vector<7x1xf32> to vector<7x7xf32>
    %1202 = arith.mulf %1197, %1201 : vector<7x7xf32>
    %1203 = arith.truncf %1202 : vector<7x7xf32> to vector<7x7xbf16>
    %cst_349 = arith.constant dense<0.000000e+00> : vector<7x32xf32>
    %1204 = tpu.matmul %1203, %1126, %cst_349 {dimension_numbers = #tpu.dot_dimension_numbers<[1], [0], [0], [1], [0, 0, 1, 1], [], []>} : vector<7x7xbf16>, vector<7x32xbf16>, vector<7x32xf32> -> vector<7x32xf32>
    %1205 = vector.broadcast %32 : vector<1x32xf32> to vector<7x32xf32>
    %1206 = arith.mulf %1204, %1205 : vector<7x32xf32>
    %1207 = arith.addf %1187, %1206 : vector<7x32xf32>
    %1208 = vector.extract_strided_slice %63 {offsets = [1, 0], sizes = [1, 7], strides = [1, 1]} : vector<2x7xf32> to vector<1x7xf32>
    %1209 = vector.broadcast %1208 : vector<1x7xf32> to vector<7x7xf32>
    %1210 = arith.addf %69, %1209 : vector<7x7xf32>
    %1211 = vector.extract_strided_slice %1118 {offsets = [7, 0], sizes = [7, 32], strides = [1, 1]} : vector<14x96xf32> to vector<7x32xf32>
    %1212 = vector.extract_strided_slice %1118 {offsets = [7, 32], sizes = [7, 32], strides = [1, 1]} : vector<14x96xf32> to vector<7x32xf32>
    %1213 = vector.extract_strided_slice %1118 {offsets = [7, 64], sizes = [7, 32], strides = [1, 1]} : vector<14x96xf32> to vector<7x32xf32>
    %1214 = arith.truncf %1212 : vector<7x32xf32> to vector<7x32xbf16>
    %1215 = arith.truncf %1213 : vector<7x32xf32> to vector<7x32xbf16>
    %cst_350 = arith.constant 0.000000e+00 : f32
    %1216 = vector.broadcast %cst_350 : f32 to vector<7x32xf32>
    %1217 = vector.broadcast %8 : vector<1x32xf32> to vector<7x32xf32>
    %1218 = arith.mulf %1211, %1217 : vector<7x32xf32>
    %1219 = arith.truncf %1218 : vector<7x32xf32> to vector<7x32xbf16>
    %cst_351 = arith.constant dense<0.000000e+00> : vector<7x7xf32>
    %1220 = tpu.matmul %1219, %1214, %cst_351 {dimension_numbers = #tpu.dot_dimension_numbers<[1], [1], [0], [0], [0, 0, 1, 0], [], []>} : vector<7x32xbf16>, vector<7x32xbf16>, vector<7x7xf32> -> vector<7x7xf32>
    %1221 = arith.addf %1220, %1210 : vector<7x7xf32>
    %cst_352 = arith.constant dense<0xFF800000> : vector<7xf32>
    %1222 = vector.multi_reduction <maximumf>, %1221, %cst_352 [1] : vector<7x7xf32> to vector<7xf32>
    %1223 = vector.shape_cast %1222 : vector<7xf32> to vector<7x1xf32>
    %1224 = vector.broadcast %1223 : vector<7x1xf32> to vector<7x7xf32>
    %1225 = arith.subf %1221, %1224 : vector<7x7xf32>
    %1226 = math.exp %1225 : vector<7x7xf32>
    %cst_353 = arith.constant dense<0.000000e+00> : vector<7xf32>
    %1227 = vector.multi_reduction <add>, %1226, %cst_353 [1] : vector<7x7xf32> to vector<7xf32>
    %1228 = vector.shape_cast %1227 : vector<7xf32> to vector<7x1xf32>
    %1229 = tpu.reciprocal %1228 {approx = true} : vector<7x1xf32> -> vector<7x1xf32>
    %1230 = vector.broadcast %1229 : vector<7x1xf32> to vector<7x7xf32>
    %1231 = arith.mulf %1226, %1230 : vector<7x7xf32>
    %1232 = arith.truncf %1231 : vector<7x7xf32> to vector<7x7xbf16>
    %cst_354 = arith.constant dense<0.000000e+00> : vector<7x32xf32>
    %1233 = tpu.matmul %1232, %1215, %cst_354 {dimension_numbers = #tpu.dot_dimension_numbers<[1], [0], [0], [1], [0, 0, 1, 1], [], []>} : vector<7x7xbf16>, vector<7x32xbf16>, vector<7x32xf32> -> vector<7x32xf32>
    %1234 = vector.broadcast %8 : vector<1x32xf32> to vector<7x32xf32>
    %1235 = arith.mulf %1233, %1234 : vector<7x32xf32>
    %1236 = arith.addf %1216, %1235 : vector<7x32xf32>
    %1237 = vector.broadcast %16 : vector<1x32xf32> to vector<7x32xf32>
    %1238 = arith.mulf %1211, %1237 : vector<7x32xf32>
    %1239 = arith.truncf %1238 : vector<7x32xf32> to vector<7x32xbf16>
    %cst_355 = arith.constant dense<0.000000e+00> : vector<7x7xf32>
    %1240 = tpu.matmul %1239, %1214, %cst_355 {dimension_numbers = #tpu.dot_dimension_numbers<[1], [1], [0], [0], [0, 0, 1, 0], [], []>} : vector<7x32xbf16>, vector<7x32xbf16>, vector<7x7xf32> -> vector<7x7xf32>
    %1241 = arith.addf %1240, %1210 : vector<7x7xf32>
    %cst_356 = arith.constant dense<0xFF800000> : vector<7xf32>
    %1242 = vector.multi_reduction <maximumf>, %1241, %cst_356 [1] : vector<7x7xf32> to vector<7xf32>
    %1243 = vector.shape_cast %1242 : vector<7xf32> to vector<7x1xf32>
    %1244 = vector.broadcast %1243 : vector<7x1xf32> to vector<7x7xf32>
    %1245 = arith.subf %1241, %1244 : vector<7x7xf32>
    %1246 = math.exp %1245 : vector<7x7xf32>
    %cst_357 = arith.constant dense<0.000000e+00> : vector<7xf32>
    %1247 = vector.multi_reduction <add>, %1246, %cst_357 [1] : vector<7x7xf32> to vector<7xf32>
    %1248 = vector.shape_cast %1247 : vector<7xf32> to vector<7x1xf32>
    %1249 = tpu.reciprocal %1248 {approx = true} : vector<7x1xf32> -> vector<7x1xf32>
    %1250 = vector.broadcast %1249 : vector<7x1xf32> to vector<7x7xf32>
    %1251 = arith.mulf %1246, %1250 : vector<7x7xf32>
    %1252 = arith.truncf %1251 : vector<7x7xf32> to vector<7x7xbf16>
    %cst_358 = arith.constant dense<0.000000e+00> : vector<7x32xf32>
    %1253 = tpu.matmul %1252, %1215, %cst_358 {dimension_numbers = #tpu.dot_dimension_numbers<[1], [0], [0], [1], [0, 0, 1, 1], [], []>} : vector<7x7xbf16>, vector<7x32xbf16>, vector<7x32xf32> -> vector<7x32xf32>
    %1254 = vector.broadcast %16 : vector<1x32xf32> to vector<7x32xf32>
    %1255 = arith.mulf %1253, %1254 : vector<7x32xf32>
    %1256 = arith.addf %1236, %1255 : vector<7x32xf32>
    %1257 = vector.broadcast %24 : vector<1x32xf32> to vector<7x32xf32>
    %1258 = arith.mulf %1211, %1257 : vector<7x32xf32>
    %1259 = arith.truncf %1258 : vector<7x32xf32> to vector<7x32xbf16>
    %cst_359 = arith.constant dense<0.000000e+00> : vector<7x7xf32>
    %1260 = tpu.matmul %1259, %1214, %cst_359 {dimension_numbers = #tpu.dot_dimension_numbers<[1], [1], [0], [0], [0, 0, 1, 0], [], []>} : vector<7x32xbf16>, vector<7x32xbf16>, vector<7x7xf32> -> vector<7x7xf32>
    %1261 = arith.addf %1260, %1210 : vector<7x7xf32>
    %cst_360 = arith.constant dense<0xFF800000> : vector<7xf32>
    %1262 = vector.multi_reduction <maximumf>, %1261, %cst_360 [1] : vector<7x7xf32> to vector<7xf32>
    %1263 = vector.shape_cast %1262 : vector<7xf32> to vector<7x1xf32>
    %1264 = vector.broadcast %1263 : vector<7x1xf32> to vector<7x7xf32>
    %1265 = arith.subf %1261, %1264 : vector<7x7xf32>
    %1266 = math.exp %1265 : vector<7x7xf32>
    %cst_361 = arith.constant dense<0.000000e+00> : vector<7xf32>
    %1267 = vector.multi_reduction <add>, %1266, %cst_361 [1] : vector<7x7xf32> to vector<7xf32>
    %1268 = vector.shape_cast %1267 : vector<7xf32> to vector<7x1xf32>
    %1269 = tpu.reciprocal %1268 {approx = true} : vector<7x1xf32> -> vector<7x1xf32>
    %1270 = vector.broadcast %1269 : vector<7x1xf32> to vector<7x7xf32>
    %1271 = arith.mulf %1266, %1270 : vector<7x7xf32>
    %1272 = arith.truncf %1271 : vector<7x7xf32> to vector<7x7xbf16>
    %cst_362 = arith.constant dense<0.000000e+00> : vector<7x32xf32>
    %1273 = tpu.matmul %1272, %1215, %cst_362 {dimension_numbers = #tpu.dot_dimension_numbers<[1], [0], [0], [1], [0, 0, 1, 1], [], []>} : vector<7x7xbf16>, vector<7x32xbf16>, vector<7x32xf32> -> vector<7x32xf32>
    %1274 = vector.broadcast %24 : vector<1x32xf32> to vector<7x32xf32>
    %1275 = arith.mulf %1273, %1274 : vector<7x32xf32>
    %1276 = arith.addf %1256, %1275 : vector<7x32xf32>
    %1277 = vector.broadcast %32 : vector<1x32xf32> to vector<7x32xf32>
    %1278 = arith.mulf %1211, %1277 : vector<7x32xf32>
    %1279 = arith.truncf %1278 : vector<7x32xf32> to vector<7x32xbf16>
    %cst_363 = arith.constant dense<0.000000e+00> : vector<7x7xf32>
    %1280 = tpu.matmul %1279, %1214, %cst_363 {dimension_numbers = #tpu.dot_dimension_numbers<[1], [1], [0], [0], [0, 0, 1, 0], [], []>} : vector<7x32xbf16>, vector<7x32xbf16>, vector<7x7xf32> -> vector<7x7xf32>
    %1281 = arith.addf %1280, %1210 : vector<7x7xf32>
    %cst_364 = arith.constant dense<0xFF800000> : vector<7xf32>
    %1282 = vector.multi_reduction <maximumf>, %1281, %cst_364 [1] : vector<7x7xf32> to vector<7xf32>
    %1283 = vector.shape_cast %1282 : vector<7xf32> to vector<7x1xf32>
    %1284 = vector.broadcast %1283 : vector<7x1xf32> to vector<7x7xf32>
    %1285 = arith.subf %1281, %1284 : vector<7x7xf32>
    %1286 = math.exp %1285 : vector<7x7xf32>
    %cst_365 = arith.constant dense<0.000000e+00> : vector<7xf32>
    %1287 = vector.multi_reduction <add>, %1286, %cst_365 [1] : vector<7x7xf32> to vector<7xf32>
    %1288 = vector.shape_cast %1287 : vector<7xf32> to vector<7x1xf32>
    %1289 = tpu.reciprocal %1288 {approx = true} : vector<7x1xf32> -> vector<7x1xf32>
    %1290 = vector.broadcast %1289 : vector<7x1xf32> to vector<7x7xf32>
    %1291 = arith.mulf %1286, %1290 : vector<7x7xf32>
    %1292 = arith.truncf %1291 : vector<7x7xf32> to vector<7x7xbf16>
    %cst_366 = arith.constant dense<0.000000e+00> : vector<7x32xf32>
    %1293 = tpu.matmul %1292, %1215, %cst_366 {dimension_numbers = #tpu.dot_dimension_numbers<[1], [0], [0], [1], [0, 0, 1, 1], [], []>} : vector<7x7xbf16>, vector<7x32xbf16>, vector<7x32xf32> -> vector<7x32xf32>
    %1294 = vector.broadcast %32 : vector<1x32xf32> to vector<7x32xf32>
    %1295 = arith.mulf %1293, %1294 : vector<7x32xf32>
    %1296 = arith.addf %1276, %1295 : vector<7x32xf32>
    %1297 = tpu.concatenate %1207, %1296 in 0 : vector<7x32xf32>, vector<7x32xf32> -> vector<14x32xf32>
    %c1_367 = arith.constant 1 : index
    %c0_368 = arith.constant 0 : index
    %c0_369 = arith.constant 0 : index
    %1298 = vector.load %arg29[%c1_367, %c0_368, %c0_369] : memref<2x6x32xf32, #tpu.memory_space<vmem>>, vector<1x6x32xf32>
    %1299 = vector.shape_cast %1298 : vector<1x6x32xf32> to vector<6x32xf32>
    %c1_370 = arith.constant 1 : index
    %c0_371 = arith.constant 0 : index
    %c0_372 = arith.constant 0 : index
    %1300 = vector.load %arg17[%c1_370, %c0_371, %c0_372] : memref<2x32x32xbf16, #tpu.memory_space<vmem>>, vector<1x32x32xbf16>
    %1301 = vector.shape_cast %1300 : vector<1x32x32xbf16> to vector<32x32xbf16>
    %1302 = arith.truncf %1297 : vector<14x32xf32> to vector<14x32xbf16>
    %cst_373 = arith.constant dense<0.000000e+00> : vector<14x32xf32>
    %1303 = tpu.matmul %1302, %1301, %cst_373 {dimension_numbers = #tpu.dot_dimension_numbers<[1], [0], [0], [1], [0, 0, 1, 1], [], []>} : vector<14x32xbf16>, vector<32x32xbf16>, vector<14x32xf32> -> vector<14x32xf32>
    %1304 = arith.addf %1110, %1303 : vector<14x32xf32>
    %c1_374 = arith.constant 1 : index
    %c0_375 = arith.constant 0 : index
    %c0_376 = arith.constant 0 : index
    %1305 = vector.load %arg18[%c1_374, %c0_375, %c0_376] : memref<2x1x32xf32, #tpu.memory_space<vmem>>, vector<1x1x32xf32>
    %1306 = vector.shape_cast %1305 : vector<1x1x32xf32> to vector<1x32xf32>
    %1307 = vector.broadcast %1306 : vector<1x32xf32> to vector<14x32xf32>
    %1308 = arith.addf %1304, %1307 : vector<14x32xf32>
    %1309 = vector.extract_strided_slice %1299 {offsets = [0, 0], sizes = [1, 32], strides = [1, 1]} : vector<6x32xf32> to vector<1x32xf32>
    %1310 = vector.extract_strided_slice %1299 {offsets = [1, 0], sizes = [1, 32], strides = [1, 1]} : vector<6x32xf32> to vector<1x32xf32>
    %cst_377 = arith.constant dense<0.000000e+00> : vector<14xf32>
    %1311 = vector.multi_reduction <add>, %1308, %cst_377 [1] : vector<14x32xf32> to vector<14xf32>
    %1312 = vector.shape_cast %1311 : vector<14xf32> to vector<14x1xf32>
    %cst_378 = arith.constant 3.200000e+01 : f32
    %1313 = vector.broadcast %cst_378 : f32 to vector<14x1xf32>
    %1314 = arith.divf %1312, %1313 : vector<14x1xf32>
    %1315 = vector.broadcast %1314 : vector<14x1xf32> to vector<14x32xf32>
    %1316 = arith.subf %1308, %1315 : vector<14x32xf32>
    %1317 = arith.mulf %1316, %1316 : vector<14x32xf32>
    %cst_379 = arith.constant dense<0.000000e+00> : vector<14xf32>
    %1318 = vector.multi_reduction <add>, %1317, %cst_379 [1] : vector<14x32xf32> to vector<14xf32>
    %1319 = vector.shape_cast %1318 : vector<14xf32> to vector<14x1xf32>
    %cst_380 = arith.constant 3.200000e+01 : f32
    %1320 = vector.broadcast %cst_380 : f32 to vector<14x1xf32>
    %1321 = arith.divf %1319, %1320 : vector<14x1xf32>
    %1322 = vector.broadcast %1314 : vector<14x1xf32> to vector<14x32xf32>
    %1323 = arith.subf %1308, %1322 : vector<14x32xf32>
    %cst_381 = arith.constant 9.99999974E-6 : f32
    %1324 = vector.broadcast %cst_381 : f32 to vector<14x1xf32>
    %1325 = arith.addf %1321, %1324 : vector<14x1xf32>
    %1326 = math.rsqrt %1325 : vector<14x1xf32>
    %1327 = vector.broadcast %1326 : vector<14x1xf32> to vector<14x32xf32>
    %1328 = arith.mulf %1323, %1327 : vector<14x32xf32>
    %1329 = vector.broadcast %1309 : vector<1x32xf32> to vector<14x32xf32>
    %1330 = arith.mulf %1328, %1329 : vector<14x32xf32>
    %1331 = vector.broadcast %1310 : vector<1x32xf32> to vector<14x32xf32>
    %1332 = arith.addf %1330, %1331 : vector<14x32xf32>
    %c1_382 = arith.constant 1 : index
    %c0_383 = arith.constant 0 : index
    %c0_384 = arith.constant 0 : index
    %1333 = vector.load %arg19[%c1_382, %c0_383, %c0_384] : memref<2x32x32xbf16, #tpu.memory_space<vmem>>, vector<1x32x32xbf16>
    %1334 = vector.shape_cast %1333 : vector<1x32x32xbf16> to vector<32x32xbf16>
    %1335 = arith.truncf %1332 : vector<14x32xf32> to vector<14x32xbf16>
    %cst_385 = arith.constant dense<0.000000e+00> : vector<14x32xf32>
    %1336 = tpu.matmul %1335, %1334, %cst_385 {dimension_numbers = #tpu.dot_dimension_numbers<[1], [0], [0], [1], [0, 0, 1, 1], [], []>} : vector<14x32xbf16>, vector<32x32xbf16>, vector<14x32xf32> -> vector<14x32xf32>
    %c1_386 = arith.constant 1 : index
    %c0_387 = arith.constant 0 : index
    %c0_388 = arith.constant 0 : index
    %1337 = vector.load %arg20[%c1_386, %c0_387, %c0_388] : memref<2x1x32xf32, #tpu.memory_space<vmem>>, vector<1x1x32xf32>
    %1338 = vector.shape_cast %1337 : vector<1x1x32xf32> to vector<1x32xf32>
    %1339 = vector.broadcast %1338 : vector<1x32xf32> to vector<14x32xf32>
    %1340 = arith.addf %1336, %1339 : vector<14x32xf32>
    %c1_389 = arith.constant 1 : index
    %c0_390 = arith.constant 0 : index
    %c0_391 = arith.constant 0 : index
    %1341 = vector.load %arg21[%c1_389, %c0_390, %c0_391] : memref<2x32x64xbf16, #tpu.memory_space<vmem>>, vector<1x32x64xbf16>
    %1342 = vector.shape_cast %1341 : vector<1x32x64xbf16> to vector<32x64xbf16>
    %1343 = arith.truncf %613 : vector<16x32xf32> to vector<16x32xbf16>
    %cst_392 = arith.constant dense<0.000000e+00> : vector<16x64xf32>
    %1344 = tpu.matmul %1343, %1342, %cst_392 {dimension_numbers = #tpu.dot_dimension_numbers<[1], [0], [0], [1], [0, 0, 1, 1], [], []>} : vector<16x32xbf16>, vector<32x64xbf16>, vector<16x64xf32> -> vector<16x64xf32>
    %c1_393 = arith.constant 1 : index
    %c0_394 = arith.constant 0 : index
    %c0_395 = arith.constant 0 : index
    %1345 = vector.load %arg22[%c1_393, %c0_394, %c0_395] : memref<2x1x64xf32, #tpu.memory_space<vmem>>, vector<1x1x64xf32>
    %1346 = vector.shape_cast %1345 : vector<1x1x64xf32> to vector<1x64xf32>
    %1347 = vector.broadcast %1346 : vector<1x64xf32> to vector<16x64xf32>
    %1348 = arith.addf %1344, %1347 : vector<16x64xf32>
    %1349 = vector.extract_strided_slice %1340 {offsets = [0, 0], sizes = [7, 32], strides = [1, 1]} : vector<14x32xf32> to vector<7x32xf32>
    %1350 = vector.extract_strided_slice %1348 {offsets = [0, 0], sizes = [8, 32], strides = [1, 1]} : vector<16x64xf32> to vector<8x32xf32>
    %1351 = vector.extract_strided_slice %1348 {offsets = [0, 32], sizes = [8, 32], strides = [1, 1]} : vector<16x64xf32> to vector<8x32xf32>
    %1352 = vector.extract_strided_slice %57 {offsets = [0, 0], sizes = [1, 8], strides = [1, 1]} : vector<2x8xf32> to vector<1x8xf32>
    %1353 = arith.truncf %1350 : vector<8x32xf32> to vector<8x32xbf16>
    %1354 = arith.truncf %1351 : vector<8x32xf32> to vector<8x32xbf16>
    %cst_396 = arith.constant 0.000000e+00 : f32
    %1355 = vector.broadcast %cst_396 : f32 to vector<7x32xf32>
    %1356 = vector.broadcast %8 : vector<1x32xf32> to vector<7x32xf32>
    %1357 = arith.mulf %1349, %1356 : vector<7x32xf32>
    %1358 = arith.truncf %1357 : vector<7x32xf32> to vector<7x32xbf16>
    %cst_397 = arith.constant dense<0.000000e+00> : vector<7x8xf32>
    %1359 = tpu.matmul %1358, %1353, %cst_397 {dimension_numbers = #tpu.dot_dimension_numbers<[1], [1], [0], [0], [0, 0, 1, 0], [], []>} : vector<7x32xbf16>, vector<8x32xbf16>, vector<7x8xf32> -> vector<7x8xf32>
    %1360 = vector.broadcast %1352 : vector<1x8xf32> to vector<7x8xf32>
    %1361 = arith.addf %1359, %1360 : vector<7x8xf32>
    %cst_398 = arith.constant dense<0xFF800000> : vector<7xf32>
    %1362 = vector.multi_reduction <maximumf>, %1361, %cst_398 [1] : vector<7x8xf32> to vector<7xf32>
    %1363 = vector.shape_cast %1362 : vector<7xf32> to vector<7x1xf32>
    %1364 = vector.broadcast %1363 : vector<7x1xf32> to vector<7x8xf32>
    %1365 = arith.subf %1361, %1364 : vector<7x8xf32>
    %1366 = math.exp %1365 : vector<7x8xf32>
    %cst_399 = arith.constant dense<0.000000e+00> : vector<7xf32>
    %1367 = vector.multi_reduction <add>, %1366, %cst_399 [1] : vector<7x8xf32> to vector<7xf32>
    %1368 = vector.shape_cast %1367 : vector<7xf32> to vector<7x1xf32>
    %1369 = tpu.reciprocal %1368 {approx = true} : vector<7x1xf32> -> vector<7x1xf32>
    %1370 = vector.broadcast %1369 : vector<7x1xf32> to vector<7x8xf32>
    %1371 = arith.mulf %1366, %1370 : vector<7x8xf32>
    %1372 = arith.truncf %1371 : vector<7x8xf32> to vector<7x8xbf16>
    %cst_400 = arith.constant dense<0.000000e+00> : vector<7x32xf32>
    %1373 = tpu.matmul %1372, %1354, %cst_400 {dimension_numbers = #tpu.dot_dimension_numbers<[1], [0], [0], [1], [0, 0, 1, 1], [], []>} : vector<7x8xbf16>, vector<8x32xbf16>, vector<7x32xf32> -> vector<7x32xf32>
    %1374 = vector.broadcast %8 : vector<1x32xf32> to vector<7x32xf32>
    %1375 = arith.mulf %1373, %1374 : vector<7x32xf32>
    %1376 = arith.addf %1355, %1375 : vector<7x32xf32>
    %1377 = vector.broadcast %16 : vector<1x32xf32> to vector<7x32xf32>
    %1378 = arith.mulf %1349, %1377 : vector<7x32xf32>
    %1379 = arith.truncf %1378 : vector<7x32xf32> to vector<7x32xbf16>
    %cst_401 = arith.constant dense<0.000000e+00> : vector<7x8xf32>
    %1380 = tpu.matmul %1379, %1353, %cst_401 {dimension_numbers = #tpu.dot_dimension_numbers<[1], [1], [0], [0], [0, 0, 1, 0], [], []>} : vector<7x32xbf16>, vector<8x32xbf16>, vector<7x8xf32> -> vector<7x8xf32>
    %1381 = vector.broadcast %1352 : vector<1x8xf32> to vector<7x8xf32>
    %1382 = arith.addf %1380, %1381 : vector<7x8xf32>
    %cst_402 = arith.constant dense<0xFF800000> : vector<7xf32>
    %1383 = vector.multi_reduction <maximumf>, %1382, %cst_402 [1] : vector<7x8xf32> to vector<7xf32>
    %1384 = vector.shape_cast %1383 : vector<7xf32> to vector<7x1xf32>
    %1385 = vector.broadcast %1384 : vector<7x1xf32> to vector<7x8xf32>
    %1386 = arith.subf %1382, %1385 : vector<7x8xf32>
    %1387 = math.exp %1386 : vector<7x8xf32>
    %cst_403 = arith.constant dense<0.000000e+00> : vector<7xf32>
    %1388 = vector.multi_reduction <add>, %1387, %cst_403 [1] : vector<7x8xf32> to vector<7xf32>
    %1389 = vector.shape_cast %1388 : vector<7xf32> to vector<7x1xf32>
    %1390 = tpu.reciprocal %1389 {approx = true} : vector<7x1xf32> -> vector<7x1xf32>
    %1391 = vector.broadcast %1390 : vector<7x1xf32> to vector<7x8xf32>
    %1392 = arith.mulf %1387, %1391 : vector<7x8xf32>
    %1393 = arith.truncf %1392 : vector<7x8xf32> to vector<7x8xbf16>
    %cst_404 = arith.constant dense<0.000000e+00> : vector<7x32xf32>
    %1394 = tpu.matmul %1393, %1354, %cst_404 {dimension_numbers = #tpu.dot_dimension_numbers<[1], [0], [0], [1], [0, 0, 1, 1], [], []>} : vector<7x8xbf16>, vector<8x32xbf16>, vector<7x32xf32> -> vector<7x32xf32>
    %1395 = vector.broadcast %16 : vector<1x32xf32> to vector<7x32xf32>
    %1396 = arith.mulf %1394, %1395 : vector<7x32xf32>
    %1397 = arith.addf %1376, %1396 : vector<7x32xf32>
    %1398 = vector.broadcast %24 : vector<1x32xf32> to vector<7x32xf32>
    %1399 = arith.mulf %1349, %1398 : vector<7x32xf32>
    %1400 = arith.truncf %1399 : vector<7x32xf32> to vector<7x32xbf16>
    %cst_405 = arith.constant dense<0.000000e+00> : vector<7x8xf32>
    %1401 = tpu.matmul %1400, %1353, %cst_405 {dimension_numbers = #tpu.dot_dimension_numbers<[1], [1], [0], [0], [0, 0, 1, 0], [], []>} : vector<7x32xbf16>, vector<8x32xbf16>, vector<7x8xf32> -> vector<7x8xf32>
    %1402 = vector.broadcast %1352 : vector<1x8xf32> to vector<7x8xf32>
    %1403 = arith.addf %1401, %1402 : vector<7x8xf32>
    %cst_406 = arith.constant dense<0xFF800000> : vector<7xf32>
    %1404 = vector.multi_reduction <maximumf>, %1403, %cst_406 [1] : vector<7x8xf32> to vector<7xf32>
    %1405 = vector.shape_cast %1404 : vector<7xf32> to vector<7x1xf32>
    %1406 = vector.broadcast %1405 : vector<7x1xf32> to vector<7x8xf32>
    %1407 = arith.subf %1403, %1406 : vector<7x8xf32>
    %1408 = math.exp %1407 : vector<7x8xf32>
    %cst_407 = arith.constant dense<0.000000e+00> : vector<7xf32>
    %1409 = vector.multi_reduction <add>, %1408, %cst_407 [1] : vector<7x8xf32> to vector<7xf32>
    %1410 = vector.shape_cast %1409 : vector<7xf32> to vector<7x1xf32>
    %1411 = tpu.reciprocal %1410 {approx = true} : vector<7x1xf32> -> vector<7x1xf32>
    %1412 = vector.broadcast %1411 : vector<7x1xf32> to vector<7x8xf32>
    %1413 = arith.mulf %1408, %1412 : vector<7x8xf32>
    %1414 = arith.truncf %1413 : vector<7x8xf32> to vector<7x8xbf16>
    %cst_408 = arith.constant dense<0.000000e+00> : vector<7x32xf32>
    %1415 = tpu.matmul %1414, %1354, %cst_408 {dimension_numbers = #tpu.dot_dimension_numbers<[1], [0], [0], [1], [0, 0, 1, 1], [], []>} : vector<7x8xbf16>, vector<8x32xbf16>, vector<7x32xf32> -> vector<7x32xf32>
    %1416 = vector.broadcast %24 : vector<1x32xf32> to vector<7x32xf32>
    %1417 = arith.mulf %1415, %1416 : vector<7x32xf32>
    %1418 = arith.addf %1397, %1417 : vector<7x32xf32>
    %1419 = vector.broadcast %32 : vector<1x32xf32> to vector<7x32xf32>
    %1420 = arith.mulf %1349, %1419 : vector<7x32xf32>
    %1421 = arith.truncf %1420 : vector<7x32xf32> to vector<7x32xbf16>
    %cst_409 = arith.constant dense<0.000000e+00> : vector<7x8xf32>
    %1422 = tpu.matmul %1421, %1353, %cst_409 {dimension_numbers = #tpu.dot_dimension_numbers<[1], [1], [0], [0], [0, 0, 1, 0], [], []>} : vector<7x32xbf16>, vector<8x32xbf16>, vector<7x8xf32> -> vector<7x8xf32>
    %1423 = vector.broadcast %1352 : vector<1x8xf32> to vector<7x8xf32>
    %1424 = arith.addf %1422, %1423 : vector<7x8xf32>
    %cst_410 = arith.constant dense<0xFF800000> : vector<7xf32>
    %1425 = vector.multi_reduction <maximumf>, %1424, %cst_410 [1] : vector<7x8xf32> to vector<7xf32>
    %1426 = vector.shape_cast %1425 : vector<7xf32> to vector<7x1xf32>
    %1427 = vector.broadcast %1426 : vector<7x1xf32> to vector<7x8xf32>
    %1428 = arith.subf %1424, %1427 : vector<7x8xf32>
    %1429 = math.exp %1428 : vector<7x8xf32>
    %cst_411 = arith.constant dense<0.000000e+00> : vector<7xf32>
    %1430 = vector.multi_reduction <add>, %1429, %cst_411 [1] : vector<7x8xf32> to vector<7xf32>
    %1431 = vector.shape_cast %1430 : vector<7xf32> to vector<7x1xf32>
    %1432 = tpu.reciprocal %1431 {approx = true} : vector<7x1xf32> -> vector<7x1xf32>
    %1433 = vector.broadcast %1432 : vector<7x1xf32> to vector<7x8xf32>
    %1434 = arith.mulf %1429, %1433 : vector<7x8xf32>
    %1435 = arith.truncf %1434 : vector<7x8xf32> to vector<7x8xbf16>
    %cst_412 = arith.constant dense<0.000000e+00> : vector<7x32xf32>
    %1436 = tpu.matmul %1435, %1354, %cst_412 {dimension_numbers = #tpu.dot_dimension_numbers<[1], [0], [0], [1], [0, 0, 1, 1], [], []>} : vector<7x8xbf16>, vector<8x32xbf16>, vector<7x32xf32> -> vector<7x32xf32>
    %1437 = vector.broadcast %32 : vector<1x32xf32> to vector<7x32xf32>
    %1438 = arith.mulf %1436, %1437 : vector<7x32xf32>
    %1439 = arith.addf %1418, %1438 : vector<7x32xf32>
    %1440 = vector.extract_strided_slice %1340 {offsets = [7, 0], sizes = [7, 32], strides = [1, 1]} : vector<14x32xf32> to vector<7x32xf32>
    %1441 = vector.extract_strided_slice %1348 {offsets = [8, 0], sizes = [8, 32], strides = [1, 1]} : vector<16x64xf32> to vector<8x32xf32>
    %1442 = vector.extract_strided_slice %1348 {offsets = [8, 32], sizes = [8, 32], strides = [1, 1]} : vector<16x64xf32> to vector<8x32xf32>
    %1443 = vector.extract_strided_slice %57 {offsets = [1, 0], sizes = [1, 8], strides = [1, 1]} : vector<2x8xf32> to vector<1x8xf32>
    %1444 = arith.truncf %1441 : vector<8x32xf32> to vector<8x32xbf16>
    %1445 = arith.truncf %1442 : vector<8x32xf32> to vector<8x32xbf16>
    %cst_413 = arith.constant 0.000000e+00 : f32
    %1446 = vector.broadcast %cst_413 : f32 to vector<7x32xf32>
    %1447 = vector.broadcast %8 : vector<1x32xf32> to vector<7x32xf32>
    %1448 = arith.mulf %1440, %1447 : vector<7x32xf32>
    %1449 = arith.truncf %1448 : vector<7x32xf32> to vector<7x32xbf16>
    %cst_414 = arith.constant dense<0.000000e+00> : vector<7x8xf32>
    %1450 = tpu.matmul %1449, %1444, %cst_414 {dimension_numbers = #tpu.dot_dimension_numbers<[1], [1], [0], [0], [0, 0, 1, 0], [], []>} : vector<7x32xbf16>, vector<8x32xbf16>, vector<7x8xf32> -> vector<7x8xf32>
    %1451 = vector.broadcast %1443 : vector<1x8xf32> to vector<7x8xf32>
    %1452 = arith.addf %1450, %1451 : vector<7x8xf32>
    %cst_415 = arith.constant dense<0xFF800000> : vector<7xf32>
    %1453 = vector.multi_reduction <maximumf>, %1452, %cst_415 [1] : vector<7x8xf32> to vector<7xf32>
    %1454 = vector.shape_cast %1453 : vector<7xf32> to vector<7x1xf32>
    %1455 = vector.broadcast %1454 : vector<7x1xf32> to vector<7x8xf32>
    %1456 = arith.subf %1452, %1455 : vector<7x8xf32>
    %1457 = math.exp %1456 : vector<7x8xf32>
    %cst_416 = arith.constant dense<0.000000e+00> : vector<7xf32>
    %1458 = vector.multi_reduction <add>, %1457, %cst_416 [1] : vector<7x8xf32> to vector<7xf32>
    %1459 = vector.shape_cast %1458 : vector<7xf32> to vector<7x1xf32>
    %1460 = tpu.reciprocal %1459 {approx = true} : vector<7x1xf32> -> vector<7x1xf32>
    %1461 = vector.broadcast %1460 : vector<7x1xf32> to vector<7x8xf32>
    %1462 = arith.mulf %1457, %1461 : vector<7x8xf32>
    %1463 = arith.truncf %1462 : vector<7x8xf32> to vector<7x8xbf16>
    %cst_417 = arith.constant dense<0.000000e+00> : vector<7x32xf32>
    %1464 = tpu.matmul %1463, %1445, %cst_417 {dimension_numbers = #tpu.dot_dimension_numbers<[1], [0], [0], [1], [0, 0, 1, 1], [], []>} : vector<7x8xbf16>, vector<8x32xbf16>, vector<7x32xf32> -> vector<7x32xf32>
    %1465 = vector.broadcast %8 : vector<1x32xf32> to vector<7x32xf32>
    %1466 = arith.mulf %1464, %1465 : vector<7x32xf32>
    %1467 = arith.addf %1446, %1466 : vector<7x32xf32>
    %1468 = vector.broadcast %16 : vector<1x32xf32> to vector<7x32xf32>
    %1469 = arith.mulf %1440, %1468 : vector<7x32xf32>
    %1470 = arith.truncf %1469 : vector<7x32xf32> to vector<7x32xbf16>
    %cst_418 = arith.constant dense<0.000000e+00> : vector<7x8xf32>
    %1471 = tpu.matmul %1470, %1444, %cst_418 {dimension_numbers = #tpu.dot_dimension_numbers<[1], [1], [0], [0], [0, 0, 1, 0], [], []>} : vector<7x32xbf16>, vector<8x32xbf16>, vector<7x8xf32> -> vector<7x8xf32>
    %1472 = vector.broadcast %1443 : vector<1x8xf32> to vector<7x8xf32>
    %1473 = arith.addf %1471, %1472 : vector<7x8xf32>
    %cst_419 = arith.constant dense<0xFF800000> : vector<7xf32>
    %1474 = vector.multi_reduction <maximumf>, %1473, %cst_419 [1] : vector<7x8xf32> to vector<7xf32>
    %1475 = vector.shape_cast %1474 : vector<7xf32> to vector<7x1xf32>
    %1476 = vector.broadcast %1475 : vector<7x1xf32> to vector<7x8xf32>
    %1477 = arith.subf %1473, %1476 : vector<7x8xf32>
    %1478 = math.exp %1477 : vector<7x8xf32>
    %cst_420 = arith.constant dense<0.000000e+00> : vector<7xf32>
    %1479 = vector.multi_reduction <add>, %1478, %cst_420 [1] : vector<7x8xf32> to vector<7xf32>
    %1480 = vector.shape_cast %1479 : vector<7xf32> to vector<7x1xf32>
    %1481 = tpu.reciprocal %1480 {approx = true} : vector<7x1xf32> -> vector<7x1xf32>
    %1482 = vector.broadcast %1481 : vector<7x1xf32> to vector<7x8xf32>
    %1483 = arith.mulf %1478, %1482 : vector<7x8xf32>
    %1484 = arith.truncf %1483 : vector<7x8xf32> to vector<7x8xbf16>
    %cst_421 = arith.constant dense<0.000000e+00> : vector<7x32xf32>
    %1485 = tpu.matmul %1484, %1445, %cst_421 {dimension_numbers = #tpu.dot_dimension_numbers<[1], [0], [0], [1], [0, 0, 1, 1], [], []>} : vector<7x8xbf16>, vector<8x32xbf16>, vector<7x32xf32> -> vector<7x32xf32>
    %1486 = vector.broadcast %16 : vector<1x32xf32> to vector<7x32xf32>
    %1487 = arith.mulf %1485, %1486 : vector<7x32xf32>
    %1488 = arith.addf %1467, %1487 : vector<7x32xf32>
    %1489 = vector.broadcast %24 : vector<1x32xf32> to vector<7x32xf32>
    %1490 = arith.mulf %1440, %1489 : vector<7x32xf32>
    %1491 = arith.truncf %1490 : vector<7x32xf32> to vector<7x32xbf16>
    %cst_422 = arith.constant dense<0.000000e+00> : vector<7x8xf32>
    %1492 = tpu.matmul %1491, %1444, %cst_422 {dimension_numbers = #tpu.dot_dimension_numbers<[1], [1], [0], [0], [0, 0, 1, 0], [], []>} : vector<7x32xbf16>, vector<8x32xbf16>, vector<7x8xf32> -> vector<7x8xf32>
    %1493 = vector.broadcast %1443 : vector<1x8xf32> to vector<7x8xf32>
    %1494 = arith.addf %1492, %1493 : vector<7x8xf32>
    %cst_423 = arith.constant dense<0xFF800000> : vector<7xf32>
    %1495 = vector.multi_reduction <maximumf>, %1494, %cst_423 [1] : vector<7x8xf32> to vector<7xf32>
    %1496 = vector.shape_cast %1495 : vector<7xf32> to vector<7x1xf32>
    %1497 = vector.broadcast %1496 : vector<7x1xf32> to vector<7x8xf32>
    %1498 = arith.subf %1494, %1497 : vector<7x8xf32>
    %1499 = math.exp %1498 : vector<7x8xf32>
    %cst_424 = arith.constant dense<0.000000e+00> : vector<7xf32>
    %1500 = vector.multi_reduction <add>, %1499, %cst_424 [1] : vector<7x8xf32> to vector<7xf32>
    %1501 = vector.shape_cast %1500 : vector<7xf32> to vector<7x1xf32>
    %1502 = tpu.reciprocal %1501 {approx = true} : vector<7x1xf32> -> vector<7x1xf32>
    %1503 = vector.broadcast %1502 : vector<7x1xf32> to vector<7x8xf32>
    %1504 = arith.mulf %1499, %1503 : vector<7x8xf32>
    %1505 = arith.truncf %1504 : vector<7x8xf32> to vector<7x8xbf16>
    %cst_425 = arith.constant dense<0.000000e+00> : vector<7x32xf32>
    %1506 = tpu.matmul %1505, %1445, %cst_425 {dimension_numbers = #tpu.dot_dimension_numbers<[1], [0], [0], [1], [0, 0, 1, 1], [], []>} : vector<7x8xbf16>, vector<8x32xbf16>, vector<7x32xf32> -> vector<7x32xf32>
    %1507 = vector.broadcast %24 : vector<1x32xf32> to vector<7x32xf32>
    %1508 = arith.mulf %1506, %1507 : vector<7x32xf32>
    %1509 = arith.addf %1488, %1508 : vector<7x32xf32>
    %1510 = vector.broadcast %32 : vector<1x32xf32> to vector<7x32xf32>
    %1511 = arith.mulf %1440, %1510 : vector<7x32xf32>
    %1512 = arith.truncf %1511 : vector<7x32xf32> to vector<7x32xbf16>
    %cst_426 = arith.constant dense<0.000000e+00> : vector<7x8xf32>
    %1513 = tpu.matmul %1512, %1444, %cst_426 {dimension_numbers = #tpu.dot_dimension_numbers<[1], [1], [0], [0], [0, 0, 1, 0], [], []>} : vector<7x32xbf16>, vector<8x32xbf16>, vector<7x8xf32> -> vector<7x8xf32>
    %1514 = vector.broadcast %1443 : vector<1x8xf32> to vector<7x8xf32>
    %1515 = arith.addf %1513, %1514 : vector<7x8xf32>
    %cst_427 = arith.constant dense<0xFF800000> : vector<7xf32>
    %1516 = vector.multi_reduction <maximumf>, %1515, %cst_427 [1] : vector<7x8xf32> to vector<7xf32>
    %1517 = vector.shape_cast %1516 : vector<7xf32> to vector<7x1xf32>
    %1518 = vector.broadcast %1517 : vector<7x1xf32> to vector<7x8xf32>
    %1519 = arith.subf %1515, %1518 : vector<7x8xf32>
    %1520 = math.exp %1519 : vector<7x8xf32>
    %cst_428 = arith.constant dense<0.000000e+00> : vector<7xf32>
    %1521 = vector.multi_reduction <add>, %1520, %cst_428 [1] : vector<7x8xf32> to vector<7xf32>
    %1522 = vector.shape_cast %1521 : vector<7xf32> to vector<7x1xf32>
    %1523 = tpu.reciprocal %1522 {approx = true} : vector<7x1xf32> -> vector<7x1xf32>
    %1524 = vector.broadcast %1523 : vector<7x1xf32> to vector<7x8xf32>
    %1525 = arith.mulf %1520, %1524 : vector<7x8xf32>
    %1526 = arith.truncf %1525 : vector<7x8xf32> to vector<7x8xbf16>
    %cst_429 = arith.constant dense<0.000000e+00> : vector<7x32xf32>
    %1527 = tpu.matmul %1526, %1445, %cst_429 {dimension_numbers = #tpu.dot_dimension_numbers<[1], [0], [0], [1], [0, 0, 1, 1], [], []>} : vector<7x8xbf16>, vector<8x32xbf16>, vector<7x32xf32> -> vector<7x32xf32>
    %1528 = vector.broadcast %32 : vector<1x32xf32> to vector<7x32xf32>
    %1529 = arith.mulf %1527, %1528 : vector<7x32xf32>
    %1530 = arith.addf %1509, %1529 : vector<7x32xf32>
    %1531 = tpu.concatenate %1439, %1530 in 0 : vector<7x32xf32>, vector<7x32xf32> -> vector<14x32xf32>
    %c1_430 = arith.constant 1 : index
    %c0_431 = arith.constant 0 : index
    %c0_432 = arith.constant 0 : index
    %1532 = vector.load %arg23[%c1_430, %c0_431, %c0_432] : memref<2x32x32xbf16, #tpu.memory_space<vmem>>, vector<1x32x32xbf16>
    %1533 = vector.shape_cast %1532 : vector<1x32x32xbf16> to vector<32x32xbf16>
    %1534 = arith.truncf %1531 : vector<14x32xf32> to vector<14x32xbf16>
    %cst_433 = arith.constant dense<0.000000e+00> : vector<14x32xf32>
    %1535 = tpu.matmul %1534, %1533, %cst_433 {dimension_numbers = #tpu.dot_dimension_numbers<[1], [0], [0], [1], [0, 0, 1, 1], [], []>} : vector<14x32xbf16>, vector<32x32xbf16>, vector<14x32xf32> -> vector<14x32xf32>
    %1536 = arith.addf %1332, %1535 : vector<14x32xf32>
    %c1_434 = arith.constant 1 : index
    %c0_435 = arith.constant 0 : index
    %c0_436 = arith.constant 0 : index
    %1537 = vector.load %arg24[%c1_434, %c0_435, %c0_436] : memref<2x1x32xf32, #tpu.memory_space<vmem>>, vector<1x1x32xf32>
    %1538 = vector.shape_cast %1537 : vector<1x1x32xf32> to vector<1x32xf32>
    %1539 = vector.broadcast %1538 : vector<1x32xf32> to vector<14x32xf32>
    %1540 = arith.addf %1536, %1539 : vector<14x32xf32>
    %1541 = vector.extract_strided_slice %1299 {offsets = [2, 0], sizes = [1, 32], strides = [1, 1]} : vector<6x32xf32> to vector<1x32xf32>
    %1542 = vector.extract_strided_slice %1299 {offsets = [3, 0], sizes = [1, 32], strides = [1, 1]} : vector<6x32xf32> to vector<1x32xf32>
    %cst_437 = arith.constant dense<0.000000e+00> : vector<14xf32>
    %1543 = vector.multi_reduction <add>, %1540, %cst_437 [1] : vector<14x32xf32> to vector<14xf32>
    %1544 = vector.shape_cast %1543 : vector<14xf32> to vector<14x1xf32>
    %cst_438 = arith.constant 3.200000e+01 : f32
    %1545 = vector.broadcast %cst_438 : f32 to vector<14x1xf32>
    %1546 = arith.divf %1544, %1545 : vector<14x1xf32>
    %1547 = vector.broadcast %1546 : vector<14x1xf32> to vector<14x32xf32>
    %1548 = arith.subf %1540, %1547 : vector<14x32xf32>
    %1549 = arith.mulf %1548, %1548 : vector<14x32xf32>
    %cst_439 = arith.constant dense<0.000000e+00> : vector<14xf32>
    %1550 = vector.multi_reduction <add>, %1549, %cst_439 [1] : vector<14x32xf32> to vector<14xf32>
    %1551 = vector.shape_cast %1550 : vector<14xf32> to vector<14x1xf32>
    %cst_440 = arith.constant 3.200000e+01 : f32
    %1552 = vector.broadcast %cst_440 : f32 to vector<14x1xf32>
    %1553 = arith.divf %1551, %1552 : vector<14x1xf32>
    %1554 = vector.broadcast %1546 : vector<14x1xf32> to vector<14x32xf32>
    %1555 = arith.subf %1540, %1554 : vector<14x32xf32>
    %cst_441 = arith.constant 9.99999974E-6 : f32
    %1556 = vector.broadcast %cst_441 : f32 to vector<14x1xf32>
    %1557 = arith.addf %1553, %1556 : vector<14x1xf32>
    %1558 = math.rsqrt %1557 : vector<14x1xf32>
    %1559 = vector.broadcast %1558 : vector<14x1xf32> to vector<14x32xf32>
    %1560 = arith.mulf %1555, %1559 : vector<14x32xf32>
    %1561 = vector.broadcast %1541 : vector<1x32xf32> to vector<14x32xf32>
    %1562 = arith.mulf %1560, %1561 : vector<14x32xf32>
    %1563 = vector.broadcast %1542 : vector<1x32xf32> to vector<14x32xf32>
    %1564 = arith.addf %1562, %1563 : vector<14x32xf32>
    %c1_442 = arith.constant 1 : index
    %c0_443 = arith.constant 0 : index
    %c0_444 = arith.constant 0 : index
    %1565 = vector.load %arg25[%c1_442, %c0_443, %c0_444] : memref<2x32x64xbf16, #tpu.memory_space<vmem>>, vector<1x32x64xbf16>
    %1566 = vector.shape_cast %1565 : vector<1x32x64xbf16> to vector<32x64xbf16>
    %1567 = arith.truncf %1564 : vector<14x32xf32> to vector<14x32xbf16>
    %cst_445 = arith.constant dense<0.000000e+00> : vector<14x64xf32>
    %1568 = tpu.matmul %1567, %1566, %cst_445 {dimension_numbers = #tpu.dot_dimension_numbers<[1], [0], [0], [1], [0, 0, 1, 1], [], []>} : vector<14x32xbf16>, vector<32x64xbf16>, vector<14x64xf32> -> vector<14x64xf32>
    %c1_446 = arith.constant 1 : index
    %c0_447 = arith.constant 0 : index
    %c0_448 = arith.constant 0 : index
    %1569 = vector.load %arg26[%c1_446, %c0_447, %c0_448] : memref<2x1x64xf32, #tpu.memory_space<vmem>>, vector<1x1x64xf32>
    %1570 = vector.shape_cast %1569 : vector<1x1x64xf32> to vector<1x64xf32>
    %1571 = vector.broadcast %1570 : vector<1x64xf32> to vector<14x64xf32>
    %1572 = arith.addf %1568, %1571 : vector<14x64xf32>
    %cst_449 = arith.constant 0.000000e+00 : f32
    %1573 = vector.broadcast %cst_449 : f32 to vector<14x64xf32>
    %1574 = arith.maximumf %1572, %1573 : vector<14x64xf32>
    %c1_450 = arith.constant 1 : index
    %c0_451 = arith.constant 0 : index
    %c0_452 = arith.constant 0 : index
    %1575 = vector.load %arg27[%c1_450, %c0_451, %c0_452] : memref<2x64x32xbf16, #tpu.memory_space<vmem>>, vector<1x64x32xbf16>
    %1576 = vector.shape_cast %1575 : vector<1x64x32xbf16> to vector<64x32xbf16>
    %1577 = arith.truncf %1574 : vector<14x64xf32> to vector<14x64xbf16>
    %cst_453 = arith.constant dense<0.000000e+00> : vector<14x32xf32>
    %1578 = tpu.matmul %1577, %1576, %cst_453 {dimension_numbers = #tpu.dot_dimension_numbers<[1], [0], [0], [1], [0, 0, 1, 1], [], []>} : vector<14x64xbf16>, vector<64x32xbf16>, vector<14x32xf32> -> vector<14x32xf32>
    %1579 = arith.addf %1564, %1578 : vector<14x32xf32>
    %c1_454 = arith.constant 1 : index
    %c0_455 = arith.constant 0 : index
    %c0_456 = arith.constant 0 : index
    %1580 = vector.load %arg28[%c1_454, %c0_455, %c0_456] : memref<2x1x32xf32, #tpu.memory_space<vmem>>, vector<1x1x32xf32>
    %1581 = vector.shape_cast %1580 : vector<1x1x32xf32> to vector<1x32xf32>
    %1582 = vector.broadcast %1581 : vector<1x32xf32> to vector<14x32xf32>
    %1583 = arith.addf %1579, %1582 : vector<14x32xf32>
    %1584 = vector.extract_strided_slice %1299 {offsets = [4, 0], sizes = [1, 32], strides = [1, 1]} : vector<6x32xf32> to vector<1x32xf32>
    %1585 = vector.extract_strided_slice %1299 {offsets = [5, 0], sizes = [1, 32], strides = [1, 1]} : vector<6x32xf32> to vector<1x32xf32>
    %cst_457 = arith.constant dense<0.000000e+00> : vector<14xf32>
    %1586 = vector.multi_reduction <add>, %1583, %cst_457 [1] : vector<14x32xf32> to vector<14xf32>
    %1587 = vector.shape_cast %1586 : vector<14xf32> to vector<14x1xf32>
    %cst_458 = arith.constant 3.200000e+01 : f32
    %1588 = vector.broadcast %cst_458 : f32 to vector<14x1xf32>
    %1589 = arith.divf %1587, %1588 : vector<14x1xf32>
    %1590 = vector.broadcast %1589 : vector<14x1xf32> to vector<14x32xf32>
    %1591 = arith.subf %1583, %1590 : vector<14x32xf32>
    %1592 = arith.mulf %1591, %1591 : vector<14x32xf32>
    %cst_459 = arith.constant dense<0.000000e+00> : vector<14xf32>
    %1593 = vector.multi_reduction <add>, %1592, %cst_459 [1] : vector<14x32xf32> to vector<14xf32>
    %1594 = vector.shape_cast %1593 : vector<14xf32> to vector<14x1xf32>
    %cst_460 = arith.constant 3.200000e+01 : f32
    %1595 = vector.broadcast %cst_460 : f32 to vector<14x1xf32>
    %1596 = arith.divf %1594, %1595 : vector<14x1xf32>
    %1597 = vector.broadcast %1589 : vector<14x1xf32> to vector<14x32xf32>
    %1598 = arith.subf %1583, %1597 : vector<14x32xf32>
    %cst_461 = arith.constant 9.99999974E-6 : f32
    %1599 = vector.broadcast %cst_461 : f32 to vector<14x1xf32>
    %1600 = arith.addf %1596, %1599 : vector<14x1xf32>
    %1601 = math.rsqrt %1600 : vector<14x1xf32>
    %1602 = vector.broadcast %1601 : vector<14x1xf32> to vector<14x32xf32>
    %1603 = arith.mulf %1598, %1602 : vector<14x32xf32>
    %1604 = vector.broadcast %1584 : vector<1x32xf32> to vector<14x32xf32>
    %1605 = arith.mulf %1603, %1604 : vector<14x32xf32>
    %1606 = vector.broadcast %1585 : vector<1x32xf32> to vector<14x32xf32>
    %1607 = arith.addf %1605, %1606 : vector<14x32xf32>
    %c0_462 = arith.constant 0 : index
    %c0_463 = arith.constant 0 : index
    %1608 = vector.load %arg30[%c0_462, %c0_463] : memref<32x128xbf16, #tpu.memory_space<vmem>>, vector<32x128xbf16>
    %1609 = arith.truncf %1607 : vector<14x32xf32> to vector<14x32xbf16>
    %cst_464 = arith.constant dense<0.000000e+00> : vector<14x128xf32>
    %1610 = tpu.matmul %1609, %1608, %cst_464 {dimension_numbers = #tpu.dot_dimension_numbers<[1], [0], [0], [1], [0, 0, 1, 1], [], []>} : vector<14x32xbf16>, vector<32x128xbf16>, vector<14x128xf32> -> vector<14x128xf32>
    %c0_465 = arith.constant 0 : index
    %c0_466 = arith.constant 0 : index
    %1611 = vector.load %arg31[%c0_465, %c0_466] : memref<1x128xf32, #tpu.memory_space<vmem>>, vector<1x128xf32>
    %1612 = vector.broadcast %1611 : vector<1x128xf32> to vector<14x128xf32>
    %1613 = arith.addf %1610, %1612 : vector<14x128xf32>
    %c0_467 = arith.constant 0 : index
    %c0_468 = arith.constant 0 : index
    %1614 = vector.load %arg32[%c0_467, %c0_468] : memref<14x128xf32, #tpu.memory_space<vmem>>, vector<14x128xf32>
    tpu.vector_store %arg32[%c0_467, %c0_468], %1613 {strides = array<i32>} : memref<14x128xf32, #tpu.memory_space<vmem>>, vector<14x128xf32>,
    return
  }
  func.func @transform_0(%arg0: i32) -> (i32, i32) {
    %c0_i32 = arith.constant 0 : i32
    %c0_i32_0 = arith.constant 0 : i32
    %c0_i32_1 = arith.constant 0 : i32
    return %c0_i32, %c0_i32_0 : i32, i32
  }
  func.func @transform_1(%arg0: i32) -> (i32, i32) {
    %c0_i32 = arith.constant 0 : i32
    %c0_i32_0 = arith.constant 0 : i32
    %c0_i32_1 = arith.constant 0 : i32
    return %c0_i32, %c0_i32_0 : i32, i32
  }
  func.func @transform_2(%arg0: i32) -> (i32, i32) {
    %c0_i32 = arith.constant 0 : i32
    %c0_i32_0 = arith.constant 0 : i32
    %c0_i32_1 = arith.constant 0 : i32
    return %c0_i32, %c0_i32_0 : i32, i32
  }
  func.func @transform_3(%arg0: i32) -> (i32, i32) {
    %c0_i32 = arith.constant 0 : i32
    %c0_i32_0 = arith.constant 0 : i32
    %c0_i32_1 = arith.constant 0 : i32
    return %c0_i32, %c0_i32_0 : i32, i32
  }
  func.func @transform_4(%arg0: i32) -> (i32, i32) {
    %c0_i32 = arith.constant 0 : i32
    %c0_i32_0 = arith.constant 0 : i32
    %c0_i32_1 = arith.constant 0 : i32
    return %c0_i32, %c0_i32_0 : i32, i32
  }
  func.func @transform_5(%arg0: i32) -> (i32, i32, i32) {
    %c0_i32 = arith.constant 0 : i32
    %c0_i32_0 = arith.constant 0 : i32
    %c0_i32_1 = arith.constant 0 : i32
    %c0_i32_2 = arith.constant 0 : i32
    return %c0_i32, %c0_i32_0, %c0_i32_1 : i32, i32, i32
  }
  func.func @transform_6(%arg0: i32) -> (i32, i32, i32) {
    %c0_i32 = arith.constant 0 : i32
    %c0_i32_0 = arith.constant 0 : i32
    %c0_i32_1 = arith.constant 0 : i32
    %c0_i32_2 = arith.constant 0 : i32
    return %c0_i32, %c0_i32_0, %c0_i32_1 : i32, i32, i32
  }
  func.func @transform_7(%arg0: i32) -> (i32, i32, i32) {
    %c0_i32 = arith.constant 0 : i32
    %c0_i32_0 = arith.constant 0 : i32
    %c0_i32_1 = arith.constant 0 : i32
    %c0_i32_2 = arith.constant 0 : i32
    return %c0_i32, %c0_i32_0, %c0_i32_1 : i32, i32, i32
  }
  func.func @transform_8(%arg0: i32) -> (i32, i32, i32) {
    %c0_i32 = arith.constant 0 : i32
    %c0_i32_0 = arith.constant 0 : i32
    %c0_i32_1 = arith.constant 0 : i32
    %c0_i32_2 = arith.constant 0 : i32
    return %c0_i32, %c0_i32_0, %c0_i32_1 : i32, i32, i32
  }
  func.func @transform_9(%arg0: i32) -> (i32, i32, i32) {
    %c0_i32 = arith.constant 0 : i32
    %c0_i32_0 = arith.constant 0 : i32
    %c0_i32_1 = arith.constant 0 : i32
    %c0_i32_2 = arith.constant 0 : i32
    return %c0_i32, %c0_i32_0, %c0_i32_1 : i32, i32, i32
  }
  func.func @transform_10(%arg0: i32) -> (i32, i32, i32) {
    %c0_i32 = arith.constant 0 : i32
    %c0_i32_0 = arith.constant 0 : i32
    %c0_i32_1 = arith.constant 0 : i32
    %c0_i32_2 = arith.constant 0 : i32
    return %c0_i32, %c0_i32_0, %c0_i32_1 : i32, i32, i32
  }
  func.func @transform_11(%arg0: i32) -> (i32, i32, i32) {
    %c0_i32 = arith.constant 0 : i32
    %c0_i32_0 = arith.constant 0 : i32
    %c0_i32_1 = arith.constant 0 : i32
    %c0_i32_2 = arith.constant 0 : i32
    return %c0_i32, %c0_i32_0, %c0_i32_1 : i32, i32, i32
  }
  func.func @transform_12(%arg0: i32) -> (i32, i32, i32) {
    %c0_i32 = arith.constant 0 : i32
    %c0_i32_0 = arith.constant 0 : i32
    %c0_i32_1 = arith.constant 0 : i32
    %c0_i32_2 = arith.constant 0 : i32
    return %c0_i32, %c0_i32_0, %c0_i32_1 : i32, i32, i32
  }
  func.func @transform_13(%arg0: i32) -> (i32, i32, i32) {
    %c0_i32 = arith.constant 0 : i32
    %c0_i32_0 = arith.constant 0 : i32
    %c0_i32_1 = arith.constant 0 : i32
    %c0_i32_2 = arith.constant 0 : i32
    return %c0_i32, %c0_i32_0, %c0_i32_1 : i32, i32, i32
  }
  func.func @transform_14(%arg0: i32) -> (i32, i32, i32) {
    %c0_i32 = arith.constant 0 : i32
    %c0_i32_0 = arith.constant 0 : i32
    %c0_i32_1 = arith.constant 0 : i32
    %c0_i32_2 = arith.constant 0 : i32
    return %c0_i32, %c0_i32_0, %c0_i32_1 : i32, i32, i32
  }
  func.func @transform_15(%arg0: i32) -> (i32, i32, i32) {
    %c0_i32 = arith.constant 0 : i32
    %c0_i32_0 = arith.constant 0 : i32
    %c0_i32_1 = arith.constant 0 : i32
    %c0_i32_2 = arith.constant 0 : i32
    return %c0_i32, %c0_i32_0, %c0_i32_1 : i32, i32, i32
  }
  func.func @transform_16(%arg0: i32) -> (i32, i32, i32) {
    %c0_i32 = arith.constant 0 : i32
    %c0_i32_0 = arith.constant 0 : i32
    %c0_i32_1 = arith.constant 0 : i32
    %c0_i32_2 = arith.constant 0 : i32
    return %c0_i32, %c0_i32_0, %c0_i32_1 : i32, i32, i32
  }
  func.func @transform_17(%arg0: i32) -> (i32, i32, i32) {
    %c0_i32 = arith.constant 0 : i32
    %c0_i32_0 = arith.constant 0 : i32
    %c0_i32_1 = arith.constant 0 : i32
    %c0_i32_2 = arith.constant 0 : i32
    return %c0_i32, %c0_i32_0, %c0_i32_1 : i32, i32, i32
  }
  func.func @transform_18(%arg0: i32) -> (i32, i32, i32) {
    %c0_i32 = arith.constant 0 : i32
    %c0_i32_0 = arith.constant 0 : i32
    %c0_i32_1 = arith.constant 0 : i32
    %c0_i32_2 = arith.constant 0 : i32
    return %c0_i32, %c0_i32_0, %c0_i32_1 : i32, i32, i32
  }
  func.func @transform_19(%arg0: i32) -> (i32, i32, i32) {
    %c0_i32 = arith.constant 0 : i32
    %c0_i32_0 = arith.constant 0 : i32
    %c0_i32_1 = arith.constant 0 : i32
    %c0_i32_2 = arith.constant 0 : i32
    return %c0_i32, %c0_i32_0, %c0_i32_1 : i32, i32, i32
  }
  func.func @transform_20(%arg0: i32) -> (i32, i32, i32) {
    %c0_i32 = arith.constant 0 : i32
    %c0_i32_0 = arith.constant 0 : i32
    %c0_i32_1 = arith.constant 0 : i32
    %c0_i32_2 = arith.constant 0 : i32
    return %c0_i32, %c0_i32_0, %c0_i32_1 : i32, i32, i32
  }
  func.func @transform_21(%arg0: i32) -> (i32, i32, i32) {
    %c0_i32 = arith.constant 0 : i32
    %c0_i32_0 = arith.constant 0 : i32
    %c0_i32_1 = arith.constant 0 : i32
    %c0_i32_2 = arith.constant 0 : i32
    return %c0_i32, %c0_i32_0, %c0_i32_1 : i32, i32, i32
  }
  func.func @transform_22(%arg0: i32) -> (i32, i32, i32) {
    %c0_i32 = arith.constant 0 : i32
    %c0_i32_0 = arith.constant 0 : i32
    %c0_i32_1 = arith.constant 0 : i32
    %c0_i32_2 = arith.constant 0 : i32
    return %c0_i32, %c0_i32_0, %c0_i32_1 : i32, i32, i32
  }
  func.func @transform_23(%arg0: i32) -> (i32, i32, i32) {
    %c0_i32 = arith.constant 0 : i32
    %c0_i32_0 = arith.constant 0 : i32
    %c0_i32_1 = arith.constant 0 : i32
    %c0_i32_2 = arith.constant 0 : i32
    return %c0_i32, %c0_i32_0, %c0_i32_1 : i32, i32, i32
  }
  func.func @transform_24(%arg0: i32) -> (i32, i32, i32) {
    %c0_i32 = arith.constant 0 : i32
    %c0_i32_0 = arith.constant 0 : i32
    %c0_i32_1 = arith.constant 0 : i32
    %c0_i32_2 = arith.constant 0 : i32
    return %c0_i32, %c0_i32_0, %c0_i32_1 : i32, i32, i32
  }
  func.func @transform_25(%arg0: i32) -> (i32, i32, i32) {
    %c0_i32 = arith.constant 0 : i32
    %c0_i32_0 = arith.constant 0 : i32
    %c0_i32_1 = arith.constant 0 : i32
    %c0_i32_2 = arith.constant 0 : i32
    return %c0_i32, %c0_i32_0, %c0_i32_1 : i32, i32, i32
  }
  func.func @transform_26(%arg0: i32) -> (i32, i32, i32) {
    %c0_i32 = arith.constant 0 : i32
    %c0_i32_0 = arith.constant 0 : i32
    %c0_i32_1 = arith.constant 0 : i32
    %c0_i32_2 = arith.constant 0 : i32
    return %c0_i32, %c0_i32_0, %c0_i32_1 : i32, i32, i32
  }
  func.func @transform_27(%arg0: i32) -> (i32, i32, i32) {
    %c0_i32 = arith.constant 0 : i32
    %c0_i32_0 = arith.constant 0 : i32
    %c0_i32_1 = arith.constant 0 : i32
    %c0_i32_2 = arith.constant 0 : i32
    return %c0_i32, %c0_i32_0, %c0_i32_1 : i32, i32, i32
  }
  func.func @transform_28(%arg0: i32) -> (i32, i32, i32) {
    %c0_i32 = arith.constant 0 : i32
    %c0_i32_0 = arith.constant 0 : i32
    %c0_i32_1 = arith.constant 0 : i32
    %c0_i32_2 = arith.constant 0 : i32
    return %c0_i32, %c0_i32_0, %c0_i32_1 : i32, i32, i32
  }
  func.func @transform_29(%arg0: i32) -> (i32, i32) {
    %c0_i32 = arith.constant 0 : i32
    %c0_i32_0 = arith.constant 0 : i32
    %c0_i32_1 = arith.constant 0 : i32
    return %c0_i32, %c0_i32_0 : i32, i32
  }
  func.func @transform_30(%arg0: i32) -> (i32, i32) {
    %c0_i32 = arith.constant 0 : i32
    %c0_i32_0 = arith.constant 0 : i32
    %c0_i32_1 = arith.constant 0 : i32
    return %c0_i32, %c0_i32_0 : i32, i32
  }
  func.func @transform_31(%arg0: i32) -> (i32, i32) {
    %c0_i32 = arith.constant 0 : i32
    %c0_i32_0 = arith.constant 0 : i32
    %c0_i32_1 = arith.constant 0 : i32
    return %c0_i32, %c0_i32_0 : i32, i32
  }
  func.func @transform_32(%arg0: i32) -> (i32, i32, i32) {
    %c0_i32 = arith.constant 0 : i32
    %c0_i32_0 = arith.constant 0 : i32
    %c0_i32_1 = arith.constant 0 : i32
    %c0_i32_2 = arith.constant 0 : i32
    return %c0_i32, %c0_i32_0, %c0_i32_1 : i32, i32, i32
  }
}

</mosaic_0001>

<llo_original>
// kernel: seq2seq_forward.1
$region0: #{seq2seq_forward.1}
  #allocation0 [shape = 'u32[]', space=smem, size = 0x4, offset = 0x4, fixed_abs, tag = 'smem constant byte address 0x4 - core index']
  #allocation1 [shape = 'u32[72,128]{1,0:T(1,128)}', space=vmem, size = 0x9000, scoped, tag = 'internal scratch']
  %s0 = inlined_call_operand.smem [shape: u32[33], index: -1, kind: input, shape index: {}]
  %s1 = sld [smem:[%s0]]
  %s2 = scalar_lea.smem %s0, 1
  %s3 = sld [smem:[%s2]]
  %s4 = scalar_lea.smem %s0, 2
  %s5 = sld [smem:[%s4]]
  %s6 = scalar_lea.smem %s0, 3
  %s7 = sld [smem:[%s6]]
  %s8 = scalar_lea.smem %s0, 4
  %s9 = sld [smem:[%s8]]
  %s10 = scalar_lea.smem %s0, 5
  %s11 = sld [smem:[%s10]]
  %s12 = scalar_lea.smem %s0, 6
  %s13 = sld [smem:[%s12]]
  %s14 = scalar_lea.smem %s0, 7
  %s15 = sld [smem:[%s14]]
  %s16 = scalar_lea.smem %s0, 8
  %s17 = sld [smem:[%s16]]
  %s18 = scalar_lea.smem %s0, 9
  %s19 = sld [smem:[%s18]]
  %s20 = scalar_lea.smem %s0, 10
  %s21 = sld [smem:[%s20]]
  %s22 = scalar_lea.smem %s0, 11
  %s23 = sld [smem:[%s22]]
  %s24 = scalar_lea.smem %s0, 12
  %s25 = sld [smem:[%s24]]
  %s26 = scalar_lea.smem %s0, 13
  %s27 = sld [smem:[%s26]]
  %s28 = scalar_lea.smem %s0, 14
  %s29 = sld [smem:[%s28]]
  %s30 = scalar_lea.smem %s0, 15
  %s31 = sld [smem:[%s30]]
  %s32 = scalar_lea.smem %s0, 16
  %s33 = sld [smem:[%s32]]
  %s34 = scalar_lea.smem %s0, 17
  %s35 = sld [smem:[%s34]]
  %s36 = scalar_lea.smem %s0, 18
  %s37 = sld [smem:[%s36]]
  %s38 = scalar_lea.smem %s0, 19
  %s39 = sld [smem:[%s38]]
  %s40 = scalar_lea.smem %s0, 20
  %s41 = sld [smem:[%s40]]
  %s42 = scalar_lea.smem %s0, 21
  %s43 = sld [smem:[%s42]]
  %s44 = scalar_lea.smem %s0, 22
  %s45 = sld [smem:[%s44]]
  %s46 = scalar_lea.smem %s0, 23
  %s47 = sld [smem:[%s46]]
  %s48 = scalar_lea.smem %s0, 24
  %s49 = sld [smem:[%s48]]
  %s50 = scalar_lea.smem %s0, 25
  %s51 = sld [smem:[%s50]]
  %s52 = scalar_lea.smem %s0, 26
  %s53 = sld [smem:[%s52]]
  %s54 = scalar_lea.smem %s0, 27
  %s55 = sld [smem:[%s54]]
  %s56 = scalar_lea.smem %s0, 28
  %s57 = sld [smem:[%s56]]
  %s58 = scalar_lea.smem %s0, 29
  %s59 = sld [smem:[%s58]]
  %s60 = scalar_lea.smem %s0, 30
  %s61 = sld [smem:[%s60]]
  %s62 = scalar_lea.smem %s0, 31
  %s63 = sld [smem:[%s62]]
  %s64 = scalar_lea.smem %s0, 32
  %s65 = sld [smem:[%s64]]
  %66 = xla_tuple %s63, %s65
  %s67 = sld [smem:[#allocation0]]
  $region142: #{seq2seq_forward.1} parent=0
    _
  %s69 = ssub.s32 1, %s67
  %s70 = scalar_select 0, %s69, %s67
  // Predicated region
  $region2: #{seq2seq_forward.1} parent=0 // pred_check
    _
  $region3: #{seq2seq_forward.1} parent=0 // pred_check_branch
    %72 = sbr.rel (0) target = $region5
  $region4: #{seq2seq_forward.1} parent=0 // pred_region
    _
  $region5: #{seq2seq_forward.1} parent=0 // pred_fallthru
    _
  // Predicated region
  $region6: #{seq2seq_forward.1} parent=0 // pred_check
    _
  $region7: #{seq2seq_forward.1} parent=0 // pred_check_branch
    %74 = sbr.rel (0) target = $region9
  $region8: #{seq2seq_forward.1} parent=0 // pred_region
    _
  $region9: #{seq2seq_forward.1} parent=0 // pred_fallthru
    _
  // Predicated region
  $region10: #{seq2seq_forward.1} parent=0 // pred_check
    _
  $region11: #{seq2seq_forward.1} parent=0 // pred_check_branch
    %76 = sbr.rel (0) target = $region13
  $region12: #{seq2seq_forward.1} parent=0 // pred_region
    _
  $region13: #{seq2seq_forward.1} parent=0 // pred_fallthru
    _
  // Predicated region
  $region14: #{seq2seq_forward.1} parent=0 // pred_check
    _
  $region15: #{seq2seq_forward.1} parent=0 // pred_check_branch
    %78 = sbr.rel (0) target = $region17
  $region16: #{seq2seq_forward.1} parent=0 // pred_region
    _
  $region17: #{seq2seq_forward.1} parent=0 // pred_fallthru
    _
  // Predicated region
  $region18: #{seq2seq_forward.1} parent=0 // pred_check
    _
  $region19: #{seq2seq_forward.1} parent=0 // pred_check_branch
    %80 = sbr.rel (0) target = $region21
  $region20: #{seq2seq_forward.1} parent=0 // pred_region
    _
  $region21: #{seq2seq_forward.1} parent=0 // pred_fallthru
    _
  // Predicated region
  $region22: #{seq2seq_forward.1} parent=0 // pred_check
    _
  $region23: #{seq2seq_forward.1} parent=0 // pred_check_branch
    %82 = sbr.rel (0) target = $region25
  $region24: #{seq2seq_forward.1} parent=0 // pred_region
    _
  $region25: #{seq2seq_forward.1} parent=0 // pred_fallthru
    _
  // Predicated region
  $region26: #{seq2seq_forward.1} parent=0 // pred_check
    _
  $region27: #{seq2seq_forward.1} parent=0 // pred_check_branch
    %84 = sbr.rel (0) target = $region29
  $region28: #{seq2seq_forward.1} parent=0 // pred_region
    _
  $region29: #{seq2seq_forward.1} parent=0 // pred_fallthru
    _
  // Predicated region
  $region30: #{seq2seq_forward.1} parent=0 // pred_check
    _
  $region31: #{seq2seq_forward.1} parent=0 // pred_check_branch
    %86 = sbr.rel (0) target = $region33
  $region32: #{seq2seq_forward.1} parent=0 // pred_region
    _
  $region33: #{seq2seq_forward.1} parent=0 // pred_fallthru
    _
  // Predicated region
  $region34: #{seq2seq_forward.1} parent=0 // pred_check
    _
  $region35: #{seq2seq_forward.1} parent=0 // pred_check_branch
    %88 = sbr.rel (0) target = $region37
  $region36: #{seq2seq_forward.1} parent=0 // pred_region
    _
  $region37: #{seq2seq_forward.1} parent=0 // pred_fallthru
    _
  // Predicated region
  $region38: #{seq2seq_forward.1} parent=0 // pred_check
    _
  $region39: #{seq2seq_forward.1} parent=0 // pred_check_branch
    %90 = sbr.rel (0) target = $region41
  $region40: #{seq2seq_forward.1} parent=0 // pred_region
    _
  $region41: #{seq2seq_forward.1} parent=0 // pred_fallthru
    _
  // Predicated region
  $region42: #{seq2seq_forward.1} parent=0 // pred_check
    _
  $region43: #{seq2seq_forward.1} parent=0 // pred_check_branch
    %92 = sbr.rel (0) target = $region45
  $region44: #{seq2seq_forward.1} parent=0 // pred_region
    _
  $region45: #{seq2seq_forward.1} parent=0 // pred_fallthru
    _
  // Predicated region
  $region46: #{seq2seq_forward.1} parent=0 // pred_check
    _
  $region47: #{seq2seq_forward.1} parent=0 // pred_check_branch
    %94 = sbr.rel (0) target = $region49
  $region48: #{seq2seq_forward.1} parent=0 // pred_region
    _
  $region49: #{seq2seq_forward.1} parent=0 // pred_fallthru
    _
  // Predicated region
  $region50: #{seq2seq_forward.1} parent=0 // pred_check
    _
  $region51: #{seq2seq_forward.1} parent=0 // pred_check_branch
    %96 = sbr.rel (0) target = $region53
  $region52: #{seq2seq_forward.1} parent=0 // pred_region
    _
  $region53: #{seq2seq_forward.1} parent=0 // pred_fallthru
    _
  // Predicated region
  $region54: #{seq2seq_forward.1} parent=0 // pred_check
    _
  $region55: #{seq2seq_forward.1} parent=0 // pred_check_branch
    %98 = sbr.rel (0) target = $region57
  $region56: #{seq2seq_forward.1} parent=0 // pred_region
    _
  $region57: #{seq2seq_forward.1} parent=0 // pred_fallthru
    _
  // Predicated region
  $region58: #{seq2seq_forward.1} parent=0 // pred_check
    _
  $region59: #{seq2seq_forward.1} parent=0 // pred_check_branch
    %100 = sbr.rel (0) target = $region61
  $region60: #{seq2seq_forward.1} parent=0 // pred_region
    _
  $region61: #{seq2seq_forward.1} parent=0 // pred_fallthru
    _
  // Predicated region
  $region62: #{seq2seq_forward.1} parent=0 // pred_check
    _
  $region63: #{seq2seq_forward.1} parent=0 // pred_check_branch
    %102 = sbr.rel (0) target = $region65
  $region64: #{seq2seq_forward.1} parent=0 // pred_region
    _
  $region65: #{seq2seq_forward.1} parent=0 // pred_fallthru
    _
  // Predicated region
  $region66: #{seq2seq_forward.1} parent=0 // pred_check
    _
  $region67: #{seq2seq_forward.1} parent=0 // pred_check_branch
    %104 = sbr.rel (0) target = $region69
  $region68: #{seq2seq_forward.1} parent=0 // pred_region
    _
  $region69: #{seq2seq_forward.1} parent=0 // pred_fallthru
    _
  // Predicated region
  $region70: #{seq2seq_forward.1} parent=0 // pred_check
    _
  $region71: #{seq2seq_forward.1} parent=0 // pred_check_branch
    %106 = sbr.rel (0) target = $region73
  $region72: #{seq2seq_forward.1} parent=0 // pred_region
    _
  $region73: #{seq2seq_forward.1} parent=0 // pred_fallthru
    _
  // Predicated region
  $region74: #{seq2seq_forward.1} parent=0 // pred_check
    _
  $region75: #{seq2seq_forward.1} parent=0 // pred_check_branch
    %108 = sbr.rel (0) target = $region77
  $region76: #{seq2seq_forward.1} parent=0 // pred_region
    _
  $region77: #{seq2seq_forward.1} parent=0 // pred_fallthru
    _
  // Predicated region
  $region78: #{seq2seq_forward.1} parent=0 // pred_check
    _
  $region79: #{seq2seq_forward.1} parent=0 // pred_check_branch
    %110 = sbr.rel (0) target = $region81
  $region80: #{seq2seq_forward.1} parent=0 // pred_region
    _
  $region81: #{seq2seq_forward.1} parent=0 // pred_fallthru
    _
  // Predicated region
  $region82: #{seq2seq_forward.1} parent=0 // pred_check
    _
  $region83: #{seq2seq_forward.1} parent=0 // pred_check_branch
    %112 = sbr.rel (0) target = $region85
  $region84: #{seq2seq_forward.1} parent=0 // pred_region
    _
  $region85: #{seq2seq_forward.1} parent=0 // pred_fallthru
    _
  // Predicated region
  $region86: #{seq2seq_forward.1} parent=0 // pred_check
    _
  $region87: #{seq2seq_forward.1} parent=0 // pred_check_branch
    %114 = sbr.rel (0) target = $region89
  $region88: #{seq2seq_forward.1} parent=0 // pred_region
    _
  $region89: #{seq2seq_forward.1} parent=0 // pred_fallthru
    _
  // Predicated region
  $region90: #{seq2seq_forward.1} parent=0 // pred_check
    _
  $region91: #{seq2seq_forward.1} parent=0 // pred_check_branch
    %116 = sbr.rel (0) target = $region93
  $region92: #{seq2seq_forward.1} parent=0 // pred_region
    _
  $region93: #{seq2seq_forward.1} parent=0 // pred_fallthru
    _
  // Predicated region
  $region94: #{seq2seq_forward.1} parent=0 // pred_check
    _
  $region95: #{seq2seq_forward.1} parent=0 // pred_check_branch
    %118 = sbr.rel (0) target = $region97
  $region96: #{seq2seq_forward.1} parent=0 // pred_region
    _
  $region97: #{seq2seq_forward.1} parent=0 // pred_fallthru
    _
  // Predicated region
  $region98: #{seq2seq_forward.1} parent=0 // pred_check
    _
  $region99: #{seq2seq_forward.1} parent=0 // pred_check_branch
    %120 = sbr.rel (0) target = $region101
  $region100: #{seq2seq_forward.1} parent=0 // pred_region
    _
  $region101: #{seq2seq_forward.1} parent=0 // pred_fallthru
    _
  // Predicated region
  $region102: #{seq2seq_forward.1} parent=0 // pred_check
    _
  $region103: #{seq2seq_forward.1} parent=0 // pred_check_branch
    %122 = sbr.rel (0) target = $region105
  $region104: #{seq2seq_forward.1} parent=0 // pred_region
    _
  $region105: #{seq2seq_forward.1} parent=0 // pred_fallthru
    _
  // Predicated region
  $region106: #{seq2seq_forward.1} parent=0 // pred_check
    _
  $region107: #{seq2seq_forward.1} parent=0 // pred_check_branch
    %124 = sbr.rel (0) target = $region109
  $region108: #{seq2seq_forward.1} parent=0 // pred_region
    _
  $region109: #{seq2seq_forward.1} parent=0 // pred_fallthru
    _
  // Predicated region
  $region110: #{seq2seq_forward.1} parent=0 // pred_check
    _
  $region111: #{seq2seq_forward.1} parent=0 // pred_check_branch
    %126 = sbr.rel (0) target = $region113
  $region112: #{seq2seq_forward.1} parent=0 // pred_region
    _
  $region113: #{seq2seq_forward.1} parent=0 // pred_fallthru
    _
  // Predicated region
  $region114: #{seq2seq_forward.1} parent=0 // pred_check
    _
  $region115: #{seq2seq_forward.1} parent=0 // pred_check_branch
    %128 = sbr.rel (0) target = $region117
  $region116: #{seq2seq_forward.1} parent=0 // pred_region
    _
  $region117: #{seq2seq_forward.1} parent=0 // pred_fallthru
    _
  // Predicated region
  $region118: #{seq2seq_forward.1} parent=0 // pred_check
    _
  $region119: #{seq2seq_forward.1} parent=0 // pred_check_branch
    %130 = sbr.rel (0) target = $region121
  $region120: #{seq2seq_forward.1} parent=0 // pred_region
    _
  $region121: #{seq2seq_forward.1} parent=0 // pred_fallthru
    _
  // Predicated region
  $region122: #{seq2seq_forward.1} parent=0 // pred_check
    _
  $region123: #{seq2seq_forward.1} parent=0 // pred_check_branch
    %132 = sbr.rel (0) target = $region125
  $region124: #{seq2seq_forward.1} parent=0 // pred_region
    _
  $region125: #{seq2seq_forward.1} parent=0 // pred_fallthru
    _
  %v134 = vlaneseq
  %v135 = vand.u32 %v134, 127
  %vm136 = vcmp.ge.s32.totalorder %v135, 0
  %vm137 = vcmp.lt.s32.totalorder %v135, 8
  %vm138 = vmand %vm136, %vm137
  %v139 = vsel %vm138, 1.0, 0.0
  %vm140 = vcmp.ge.s32.totalorder %v135, 8
  %vm141 = vcmp.lt.s32.totalorder %v135, 16
  %vm142 = vmand %vm140, %vm141
  %v143 = vsel %vm142, 1.0, 0.0
  %vm144 = vcmp.ge.s32.totalorder %v135, 16
  %vm145 = vcmp.lt.s32.totalorder %v135, 24
  %vm146 = vmand %vm144, %vm145
  %v147 = vsel %vm146, 1.0, 0.0
  %vm148 = vcmp.ge.s32.totalorder %v135, 24
  %vm149 = vcmp.lt.s32.totalorder %v135, 32
  %vm150 = vmand %vm148, %vm149
  %v151 = vsel %vm150, 1.0, 0.0
  %v152 = vld [vmem:[%s9] sm:$0xf]
  %v153 = vld [vmem:[%s9 + $0x4] sm:$0xf]
  %v154 = vld [vmem:[%s9 + $0x8] sm:$0xf]
  %v155 = vld [vmem:[%s9 + $0xc] sm:$0xf]
  %v156 = vld [vmem:[%s9 + $0x10] sm:$0xf]
  %v157 = vld [vmem:[%s9 + $0x14] sm:$0xf]
  %v158 = vld [vmem:[%s9 + $0x18] sm:$0xf]
  %v159 = vld [vmem:[%s9 + $0x1c] sm:$0xf]
  %v160 = vld [vmem:[%s9 + $0x20] sm:$0xf]
  %v161 = vld [vmem:[%s9 + $0x24] sm:$0xf]
  %v162 = vld [vmem:[%s9 + $0x28] sm:$0xf]
  %v163 = vld [vmem:[%s9 + $0x2c] sm:$0xf]
  %v164 = vld [vmem:[%s9 + $0x30] sm:$0xf]
  %v165 = vld [vmem:[%s9 + $0x34] sm:$0xf]
  %v166 = vld [vmem:[%s9 + $0x38] sm:$0xf]
  %v167 = vld [vmem:[%s9 + $0x3c] sm:$0xf]
  %v168 = vld [vmem:[%s1] sm:$0xff]
  %v169 = vld [vmem:[%s1 + $0x8] sm:$0xff]
  %170 = vset.pattern.permute.xlu0 0
  %171 = vperm.xlu0 %170, %v168
  %v172 = vpop.permute.xlu0 %171
  %173 = vset.pattern.permute.xlu0 0
  %174 = vperm.xlu0 %173, %v169
  %v175 = vpop.permute.xlu0 %174
  %vm176 = vcmp.eq.s32.totalorder %v172, %v135
  %vm177 = vcmp.eq.s32.totalorder %v175, %v135
  %v178 = vsel %vm176, 1.0, 0.0
  %v179 = vsel %vm177, 1.0, 0.0
  %v180 = vpack.c.bf16 %v179, %v178
  %v197 = vunpack.c.l.b16 %v152
  %v198 = vunpack.c.l.b16 %v153
  %v199 = vunpack.c.l.b16 %v154
  %v200 = vunpack.c.l.b16 %v155
  %v201 = vunpack.c.l.b16 %v156
  %v202 = vunpack.c.l.b16 %v157
  %v203 = vunpack.c.l.b16 %v158
  %v204 = vunpack.c.l.b16 %v159
  %v205 = vunpack.c.l.b16 %v160
  %v206 = vunpack.c.l.b16 %v161
  %v207 = vunpack.c.l.b16 %v162
  %v208 = vunpack.c.l.b16 %v163
  %v209 = vunpack.c.l.b16 %v164
  %v210 = vunpack.c.l.b16 %v165
  %v211 = vunpack.c.l.b16 %v166
  %v212 = vunpack.c.l.b16 %v167
  %v213 = vpack.c.b16 %v198, %v197
  %v214 = vpack.c.b16 %v200, %v199
  %v215 = vpack.c.b16 %v202, %v201
  %v216 = vpack.c.b16 %v204, %v203
  %v217 = vpack.c.b16 %v206, %v205
  %v218 = vpack.c.b16 %v208, %v207
  %v219 = vpack.c.b16 %v210, %v209
  %v220 = vpack.c.b16 %v212, %v211
  %229 = vmatpush.bf16.msra.mxu0 %v220
  %230 = vmatpush.bf16.msra.mxu0 %v219
  %231 = vmatpush.bf16.msra.mxu0 %v218
  %232 = vmatpush.bf16.msra.mxu0 %v217
  %233 = vmatpush.bf16.msra.mxu0 %v216
  %234 = vmatpush.bf16.msra.mxu0 %v215
  %235 = vmatpush.bf16.msra.mxu0 %v214
  %236 = vmatpush.bf16.msra.mxu0 %v213
  %237 = vmatmul.bf16.gmra.mxu0 %v180
  %v238 = vpop.f32.mrf.mxu0
  %v239 = vadd.f32 0.0, %v238
  %v240 = vpop.f32.mrf.mxu0
  %v241 = vadd.f32 0.0, %v240
  %242 = vdwg.mxu0
  %v243 = vld [vmem:[%s5] sm:$0xff]
  %v244 = vld [vmem:[%s5 + $0x8] sm:$0x3f]
  %245 = vset.pattern.permute.xlu0 0
  %246 = vperm.xlu0 %245, %v243
  %v247 = vpop.permute.xlu0 %246
  %248 = vset.pattern.permute.xlu0 0
  %249 = vperm.xlu0 %248, %v244
  %v250 = vpop.permute.xlu0 %249
  %vm251 = vcmp.eq.s32.totalorder %v247, %v135
  %vm252 = vcmp.eq.s32.totalorder %v250, %v135
  %v253 = vsel %vm251, 1.0, 0.0
  %v254 = vsel %vm252, 1.0, 0.0
  %v255 = vpack.c.bf16 %v254, %v253
  %256 = vmatpush.bf16.msra.mxu0 %v220
  %257 = vmatpush.bf16.msra.mxu0 %v219
  %258 = vmatpush.bf16.msra.mxu0 %v218
  %259 = vmatpush.bf16.msra.mxu0 %v217
  %260 = vmatpush.bf16.msra.mxu0 %v216
  %261 = vmatpush.bf16.msra.mxu0 %v215
  %262 = vmatpush.bf16.msra.mxu0 %v214
  %263 = vmatpush.bf16.msra.mxu0 %v213
  %264 = vmatmul.bf16.gmra.mxu0 %v255
  %v265 = vpop.f32.mrf.mxu0
  %v266 = vadd.f32 0.0, %v265
  %v267 = vpop.f32.mrf.mxu0
  %v268 = vadd.f32 0.0, %v267
  %269 = vdwg.mxu0
  %v270 = vld [vmem:[%s3] sm:$0x3]
  %vm271 = vcmp.ne.s32.totalorder %v270, 0
  %v272 = vsel %vm271, 0.0, -1e+09
  %v273 = vld [vmem:[%s7] sm:$0x3]
  %vm274 = vcmp.ne.s32.totalorder %v273, 0
  %v275 = vsel %vm274, 0.0, -1e+09
  %v276 = vlaneseq
  %v277 = vshrl.u32 %v276, 7
  %vm278 = vcmp.le.s32.totalorder %v135, %v277
  %v279 = vsel %vm278, 0.0, -1e+09
  %vm280 = vcmask 261120
  %281 = vst.msk [vmem:[%s65] sm:$0xff] %vm280, %v239
  %282 = vst.msk [vmem:[%s65 + $0x8] sm:$0xff] %vm280, %v241
  %v283 = vld [vmem:[%s11] sm:$0xf]
  %v284 = vld [vmem:[%s11 + $0x4] sm:$0xf]
  %v285 = vld [vmem:[%s11 + $0x8] sm:$0xf]
  %v286 = vld [vmem:[%s11 + $0xc] sm:$0xf]
  %v287 = vld [vmem:[%s13] sm:$0x1]
  %v288 = vpack.c.bf16 %v241, %v239
  %v290 = vperm.slane %v287, 0
  %v296 = vunpack.c.l.b16 %v283
  %v297 = vunpack.c.l.b16 %v284
  %v298 = vunpack.c.l.b16 %v285
  %v299 = vunpack.c.l.b16 %v286
  %v300 = vpack.c.b16 %v297, %v296
  %v301 = vpack.c.b16 %v299, %v298
  %v305 = vsel %vm280, %v288, 0
  %307 = vmatpush.bf16.msra.mxu0 0
  %308 = vmatpush.bf16.msra.mxu0 0
  %309 = vmatpush.bf16.msra.mxu0 0
  %310 = vmatpush.bf16.msra.mxu0 0
  %311 = vmatpush.bf16.msra.mxu0 0
  %312 = vmatpush.bf16.msra.mxu0 0
  %313 = vmatpush.bf16.msra.mxu0 %v301
  %314 = vmatpush.bf16.msra.mxu0 %v300
  %315 = vmatmul.bf16.gmra.mxu0 %v305
  %v316 = vpop.f32.mrf.mxu0
  %v317 = vadd.f32 %v290, %v316
  %v318 = vpop.f32.mrf.mxu0
  %v319 = vadd.f32 %v290, %v318
  %320 = vdwg.mxu0
  %v321 = vpack.c.bf16 %v317, %v317
  %v322 = vmul.f32 %v317, %v139
  %v323 = vpack.c.bf16 %v322, %v322
  %v324 = vperm.slane %v272, 0
  %326 = vrot.lane.b32.xlu0 %v321, 96
  %v327 = vpop.permute.xlu0 %326
  %v329 = vsel %vm280, %v323, 0
  %v332 = vsel %vm280, %v327, 0
  %334 = vmatpush.bf16.xpose.msra.mxu0 0
  %335 = vmatpush.bf16.xpose.msra.mxu0 0
  %336 = vmatpush.bf16.xpose.msra.mxu0 0
  %337 = vmatpush.bf16.xpose.msra.mxu0 0
  %338 = vmatpush.bf16.xpose.msra.mxu0 0
  %339 = vmatpush.bf16.xpose.msra.mxu0 0
  %340 = vmatpush.bf16.xpose.msra.mxu0 0
  %341 = vmatpush.bf16.xpose.msra.mxu0 %v332
  %342 = vmatmul.bf16.gmra.mxu0 %v329
  %v343 = vpop.f32.mrf.mxu0
  %v344 = vadd.f32 %v324, %v343
  %v345 = vpop.f32.mrf.mxu0
  %346 = vdwg.mxu0
  %vm347 = vcmask 64512
  %v348 = vsel %vm347, %v344, -inf
  %349 = vmax.xlane.f32.xlu0 %v348
  %v350 = vpop.xlane.xlu0 %349
  %v351 = vsub.f32 %v344, %v350
  %v352 = vmul.f32 %v351, 1.442695
  %v353 = vpow.pop %v352
  %v354 = vsel %vm347, %v353, 0.0
  %355 = vadd.xlane.f32.xlu0 %v354
  %v356 = vpop.xlane.xlu0 %355
  %v357 = vrcp.pop %v356
  %v358 = vmul.f32 %v353, %v357
  %v359 = vpack.c.bf16 %v358, %v358
  %360 = vrot.lane.b32.xlu0 %v321, 64
  %v361 = vpop.permute.xlu0 %360
  %v363 = vsel %vm347, %v359, 0
  %vm365 = vcmask 1043456
  %v367 = vsel %vm365, %v361, 0
  %369 = vmatpush.bf16.msra.mxu0 0
  %370 = vmatpush.bf16.msra.mxu0 0
  %371 = vmatpush.bf16.msra.mxu0 0
  %372 = vmatpush.bf16.msra.mxu0 0
  %373 = vmatpush.bf16.msra.mxu0 0
  %374 = vmatpush.bf16.msra.mxu0 0
  %375 = vmatpush.bf16.msra.mxu0 0
  %376 = vmatpush.bf16.msra.mxu0 %v367
  %377 = vmatmul.bf16.gmra.mxu0 %v363
  %v378 = vpop.f32.mrf.mxu0
  %v379 = vadd.f32 0.0, %v378
  %v380 = vpop.f32.mrf.mxu0
  %381 = vdwg.mxu0
  %v382 = vmul.f32 %v379, %v139
  %v383 = vadd.f32 %v382, 0.0
  %v384 = vmul.f32 %v317, %v143
  %v385 = vpack.c.bf16 %v384, %v384
  %v387 = vsel %vm280, %v385, 0
  %389 = vmatpush.bf16.xpose.msra.mxu0 0
  %390 = vmatpush.bf16.xpose.msra.mxu0 0
  %391 = vmatpush.bf16.xpose.msra.mxu0 0
  %392 = vmatpush.bf16.xpose.msra.mxu0 0
  %393 = vmatpush.bf16.xpose.msra.mxu0 0
  %394 = vmatpush.bf16.xpose.msra.mxu0 0
  %395 = vmatpush.bf16.xpose.msra.mxu0 0
  %396 = vmatpush.bf16.xpose.msra.mxu0 %v332
  %397 = vmatmul.bf16.gmra.mxu0 %v387
  %v398 = vpop.f32.mrf.mxu0
  %v399 = vadd.f32 %v324, %v398
  %v400 = vpop.f32.mrf.mxu0
  %401 = vdwg.mxu0
  %v402 = vsel %vm347, %v399, -inf
  %403 = vmax.xlane.f32.xlu0 %v402
  %v404 = vpop.xlane.xlu0 %403
  %v405 = vsub.f32 %v399, %v404
  %v406 = vmul.f32 %v405, 1.442695
  %v407 = vpow.pop %v406
  %v408 = vsel %vm347, %v407, 0.0
  %409 = vadd.xlane.f32.xlu0 %v408
  %v410 = vpop.xlane.xlu0 %409
  %v411 = vrcp.pop %v410
  %v412 = vmul.f32 %v407, %v411
  %v413 = vpack.c.bf16 %v412, %v412
  %v415 = vsel %vm347, %v413, 0
  %417 = vmatpush.bf16.msra.mxu0 0
  %418 = vmatpush.bf16.msra.mxu0 0
  %419 = vmatpush.bf16.msra.mxu0 0
  %420 = vmatpush.bf16.msra.mxu0 0
  %421 = vmatpush.bf16.msra.mxu0 0
  %422 = vmatpush.bf16.msra.mxu0 0
  %423 = vmatpush.bf16.msra.mxu0 0
  %424 = vmatpush.bf16.msra.mxu0 %v367
  %425 = vmatmul.bf16.gmra.mxu0 %v415
  %v426 = vpop.f32.mrf.mxu0
  %v427 = vadd.f32 0.0, %v426
  %v428 = vpop.f32.mrf.mxu0
  %429 = vdwg.mxu0
  %v430 = vmul.f32 %v427, %v143
  %v431 = vadd.f32 %v383, %v430
  %v432 = vmul.f32 %v317, %v147
  %v433 = vpack.c.bf16 %v432, %v432
  %v435 = vsel %vm280, %v433, 0
  %437 = vmatpush.bf16.xpose.msra.mxu0 0
  %438 = vmatpush.bf16.xpose.msra.mxu0 0
  %439 = vmatpush.bf16.xpose.msra.mxu0 0
  %440 = vmatpush.bf16.xpose.msra.mxu0 0
  %441 = vmatpush.bf16.xpose.msra.mxu0 0
  %442 = vmatpush.bf16.xpose.msra.mxu0 0
  %443 = vmatpush.bf16.xpose.msra.mxu0 0
  %444 = vmatpush.bf16.xpose.msra.mxu0 %v332
  %445 = vmatmul.bf16.gmra.mxu0 %v435
  %v446 = vpop.f32.mrf.mxu0
  %v447 = vadd.f32 %v324, %v446
  %v448 = vpop.f32.mrf.mxu0
  %449 = vdwg.mxu0
  %v450 = vsel %vm347, %v447, -inf
  %451 = vmax.xlane.f32.xlu0 %v450
  %v452 = vpop.xlane.xlu0 %451
  %v453 = vsub.f32 %v447, %v452
  %v454 = vmul.f32 %v453, 1.442695
  %v455 = vpow.pop %v454
  %v456 = vsel %vm347, %v455, 0.0
  %457 = vadd.xlane.f32.xlu0 %v456
  %v458 = vpop.xlane.xlu0 %457
  %v459 = vrcp.pop %v458
  %v460 = vmul.f32 %v455, %v459
  %v461 = vpack.c.bf16 %v460, %v460
  %v463 = vsel %vm347, %v461, 0
  %465 = vmatpush.bf16.msra.mxu0 0
  %466 = vmatpush.bf16.msra.mxu0 0
  %467 = vmatpush.bf16.msra.mxu0 0
  %468 = vmatpush.bf16.msra.mxu0 0
  %469 = vmatpush.bf16.msra.mxu0 0
  %470 = vmatpush.bf16.msra.mxu0 0
  %471 = vmatpush.bf16.msra.mxu0 0
  %472 = vmatpush.bf16.msra.mxu0 %v367
  %473 = vmatmul.bf16.gmra.mxu0 %v463
  %v474 = vpop.f32.mrf.mxu0
  %v475 = vadd.f32 0.0, %v474
  %v476 = vpop.f32.mrf.mxu0
  %477 = vdwg.mxu0
  %v478 = vmul.f32 %v475, %v147
  %v479 = vadd.f32 %v431, %v478
  %v480 = vmul.f32 %v317, %v151
  %v481 = vpack.c.bf16 %v480, %v480
  %v483 = vsel %vm280, %v481, 0
  %485 = vmatpush.bf16.xpose.msra.mxu0 0
  %486 = vmatpush.bf16.xpose.msra.mxu0 0
  %487 = vmatpush.bf16.xpose.msra.mxu0 0
  %488 = vmatpush.bf16.xpose.msra.mxu0 0
  %489 = vmatpush.bf16.xpose.msra.mxu0 0
  %490 = vmatpush.bf16.xpose.msra.mxu0 0
  %491 = vmatpush.bf16.xpose.msra.mxu0 0
  %492 = vmatpush.bf16.xpose.msra.mxu0 %v332
  %493 = vmatmul.bf16.gmra.mxu0 %v483
  %v494 = vpop.f32.mrf.mxu0
  %v495 = vadd.f32 %v324, %v494
  %v496 = vpop.f32.mrf.mxu0
  %497 = vdwg.mxu0
  %v498 = vsel %vm347, %v495, -inf
  %499 = vmax.xlane.f32.xlu0 %v498
  %v500 = vpop.xlane.xlu0 %499
  %v501 = vsub.f32 %v495, %v500
  %v502 = vmul.f32 %v501, 1.442695
  %v503 = vpow.pop %v502
  %v504 = vsel %vm347, %v503, 0.0
  %505 = vadd.xlane.f32.xlu0 %v504
  %v506 = vpop.xlane.xlu0 %505
  %v507 = vrcp.pop %v506
  %v508 = vmul.f32 %v503, %v507
  %v509 = vpack.c.bf16 %v508, %v508
  %v511 = vsel %vm347, %v509, 0
  %513 = vmatpush.bf16.msra.mxu0 0
  %514 = vmatpush.bf16.msra.mxu0 0
  %515 = vmatpush.bf16.msra.mxu0 0
  %516 = vmatpush.bf16.msra.mxu0 0
  %517 = vmatpush.bf16.msra.mxu0 0
  %518 = vmatpush.bf16.msra.mxu0 0
  %519 = vmatpush.bf16.msra.mxu0 0
  %520 = vmatpush.bf16.msra.mxu0 %v367
  %521 = vmatmul.bf16.gmra.mxu0 %v511
  %v522 = vpop.f32.mrf.mxu0
  %v523 = vadd.f32 0.0, %v522
  %v524 = vpop.f32.mrf.mxu0
  %525 = vdwg.mxu0
  %v526 = vmul.f32 %v523, %v151
  %v527 = vadd.f32 %v479, %v526
  %v528 = vpack.c.bf16 %v319, %v319
  %v529 = vmul.f32 %v319, %v139
  %v530 = vpack.c.bf16 %v529, %v529
  %v531 = vperm.slane %v272, 1
  %533 = vrot.lane.b32.xlu0 %v528, 96
  %v534 = vpop.permute.xlu0 %533
  %v536 = vsel %vm280, %v530, 0
  %v539 = vsel %vm280, %v534, 0
  %541 = vmatpush.bf16.xpose.msra.mxu0 0
  %542 = vmatpush.bf16.xpose.msra.mxu0 0
  %543 = vmatpush.bf16.xpose.msra.mxu0 0
  %544 = vmatpush.bf16.xpose.msra.mxu0 0
  %545 = vmatpush.bf16.xpose.msra.mxu0 0
  %546 = vmatpush.bf16.xpose.msra.mxu0 0
  %547 = vmatpush.bf16.xpose.msra.mxu0 0
  %548 = vmatpush.bf16.xpose.msra.mxu0 %v539
  %549 = vmatmul.bf16.gmra.mxu0 %v536
  %v550 = vpop.f32.mrf.mxu0
  %v551 = vadd.f32 %v531, %v550
  %v552 = vpop.f32.mrf.mxu0
  %553 = vdwg.mxu0
  %v554 = vsel %vm347, %v551, -inf
  %555 = vmax.xlane.f32.xlu0 %v554
  %v556 = vpop.xlane.xlu0 %555
  %v557 = vsub.f32 %v551, %v556
  %v558 = vmul.f32 %v557, 1.442695
  %v559 = vpow.pop %v558
  %v560 = vsel %vm347, %v559, 0.0
  %561 = vadd.xlane.f32.xlu0 %v560
  %v562 = vpop.xlane.xlu0 %561
  %v563 = vrcp.pop %v562
  %v564 = vmul.f32 %v559, %v563
  %v565 = vpack.c.bf16 %v564, %v564
  %566 = vrot.lane.b32.xlu0 %v528, 64
  %v567 = vpop.permute.xlu0 %566
  %v569 = vsel %vm347, %v565, 0
  %v572 = vsel %vm365, %v567, 0
  %574 = vmatpush.bf16.msra.mxu0 0
  %575 = vmatpush.bf16.msra.mxu0 0
  %576 = vmatpush.bf16.msra.mxu0 0
  %577 = vmatpush.bf16.msra.mxu0 0
  %578 = vmatpush.bf16.msra.mxu0 0
  %579 = vmatpush.bf16.msra.mxu0 0
  %580 = vmatpush.bf16.msra.mxu0 0
  %581 = vmatpush.bf16.msra.mxu0 %v572
  %582 = vmatmul.bf16.gmra.mxu0 %v569
  %v583 = vpop.f32.mrf.mxu0
  %v584 = vadd.f32 0.0, %v583
  %v585 = vpop.f32.mrf.mxu0
  %586 = vdwg.mxu0
  %v587 = vmul.f32 %v584, %v139
  %v588 = vadd.f32 %v587, 0.0
  %v589 = vmul.f32 %v319, %v143
  %v590 = vpack.c.bf16 %v589, %v589
  %v592 = vsel %vm280, %v590, 0
  %594 = vmatpush.bf16.xpose.msra.mxu0 0
  %595 = vmatpush.bf16.xpose.msra.mxu0 0
  %596 = vmatpush.bf16.xpose.msra.mxu0 0
  %597 = vmatpush.bf16.xpose.msra.mxu0 0
  %598 = vmatpush.bf16.xpose.msra.mxu0 0
  %599 = vmatpush.bf16.xpose.msra.mxu0 0
  %600 = vmatpush.bf16.xpose.msra.mxu0 0
  %601 = vmatpush.bf16.xpose.msra.mxu0 %v539
  %602 = vmatmul.bf16.gmra.mxu0 %v592
  %v603 = vpop.f32.mrf.mxu0
  %v604 = vadd.f32 %v531, %v603
  %v605 = vpop.f32.mrf.mxu0
  %606 = vdwg.mxu0
  %v607 = vsel %vm347, %v604, -inf
  %608 = vmax.xlane.f32.xlu0 %v607
  %v609 = vpop.xlane.xlu0 %608
  %v610 = vsub.f32 %v604, %v609
  %v611 = vmul.f32 %v610, 1.442695
  %v612 = vpow.pop %v611
  %v613 = vsel %vm347, %v612, 0.0
  %614 = vadd.xlane.f32.xlu0 %v613
  %v615 = vpop.xlane.xlu0 %614
  %v616 = vrcp.pop %v615
  %v617 = vmul.f32 %v612, %v616
  %v618 = vpack.c.bf16 %v617, %v617
  %v620 = vsel %vm347, %v618, 0
  %622 = vmatpush.bf16.msra.mxu0 0
  %623 = vmatpush.bf16.msra.mxu0 0
  %624 = vmatpush.bf16.msra.mxu0 0
  %625 = vmatpush.bf16.msra.mxu0 0
  %626 = vmatpush.bf16.msra.mxu0 0
  %627 = vmatpush.bf16.msra.mxu0 0
  %628 = vmatpush.bf16.msra.mxu0 0
  %629 = vmatpush.bf16.msra.mxu0 %v572
  %630 = vmatmul.bf16.gmra.mxu0 %v620
  %v631 = vpop.f32.mrf.mxu0
  %v632 = vadd.f32 0.0, %v631
  %v633 = vpop.f32.mrf.mxu0
  %634 = vdwg.mxu0
  %v635 = vmul.f32 %v632, %v143
  %v636 = vadd.f32 %v588, %v635
  %v637 = vmul.f32 %v319, %v147
  %v638 = vpack.c.bf16 %v637, %v637
  %v640 = vsel %vm280, %v638, 0
  %642 = vmatpush.bf16.xpose.msra.mxu0 0
  %643 = vmatpush.bf16.xpose.msra.mxu0 0
  %644 = vmatpush.bf16.xpose.msra.mxu0 0
  %645 = vmatpush.bf16.xpose.msra.mxu0 0
  %646 = vmatpush.bf16.xpose.msra.mxu0 0
  %647 = vmatpush.bf16.xpose.msra.mxu0 0
  %648 = vmatpush.bf16.xpose.msra.mxu0 0
  %649 = vmatpush.bf16.xpose.msra.mxu0 %v539
  %650 = vmatmul.bf16.gmra.mxu0 %v640
  %v651 = vpop.f32.mrf.mxu0
  %v652 = vadd.f32 %v531, %v651
  %v653 = vpop.f32.mrf.mxu0
  %654 = vdwg.mxu0
  %v655 = vsel %vm347, %v652, -inf
  %656 = vmax.xlane.f32.xlu0 %v655
  %v657 = vpop.xlane.xlu0 %656
  %v658 = vsub.f32 %v652, %v657
  %v659 = vmul.f32 %v658, 1.442695
  %v660 = vpow.pop %v659
  %v661 = vsel %vm347, %v660, 0.0
  %662 = vadd.xlane.f32.xlu0 %v661
  %v663 = vpop.xlane.xlu0 %662
  %v664 = vrcp.pop %v663
  %v665 = vmul.f32 %v660, %v664
  %v666 = vpack.c.bf16 %v665, %v665
  %v668 = vsel %vm347, %v666, 0
  %670 = vmatpush.bf16.msra.mxu0 0
  %671 = vmatpush.bf16.msra.mxu0 0
  %672 = vmatpush.bf16.msra.mxu0 0
  %673 = vmatpush.bf16.msra.mxu0 0
  %674 = vmatpush.bf16.msra.mxu0 0
  %675 = vmatpush.bf16.msra.mxu0 0
  %676 = vmatpush.bf16.msra.mxu0 0
  %677 = vmatpush.bf16.msra.mxu0 %v572
  %678 = vmatmul.bf16.gmra.mxu0 %v668
  %v679 = vpop.f32.mrf.mxu0
  %v680 = vadd.f32 0.0, %v679
  %v681 = vpop.f32.mrf.mxu0
  %682 = vdwg.mxu0
  %v683 = vmul.f32 %v680, %v147
  %v684 = vadd.f32 %v636, %v683
  %v685 = vmul.f32 %v319, %v151
  %v686 = vpack.c.bf16 %v685, %v685
  %v688 = vsel %vm280, %v686, 0
  %690 = vmatpush.bf16.xpose.msra.mxu0 0
  %691 = vmatpush.bf16.xpose.msra.mxu0 0
  %692 = vmatpush.bf16.xpose.msra.mxu0 0
  %693 = vmatpush.bf16.xpose.msra.mxu0 0
  %694 = vmatpush.bf16.xpose.msra.mxu0 0
  %695 = vmatpush.bf16.xpose.msra.mxu0 0
  %696 = vmatpush.bf16.xpose.msra.mxu0 0
  %697 = vmatpush.bf16.xpose.msra.mxu0 %v539
  %698 = vmatmul.bf16.gmra.mxu0 %v688
  %v699 = vpop.f32.mrf.mxu0
  %v700 = vadd.f32 %v531, %v699
  %v701 = vpop.f32.mrf.mxu0
  %702 = vdwg.mxu0
  %v703 = vsel %vm347, %v700, -inf
  %704 = vmax.xlane.f32.xlu0 %v703
  %v705 = vpop.xlane.xlu0 %704
  %v706 = vsub.f32 %v700, %v705
  %v707 = vmul.f32 %v706, 1.442695
  %v708 = vpow.pop %v707
  %v709 = vsel %vm347, %v708, 0.0
  %710 = vadd.xlane.f32.xlu0 %v709
  %v711 = vpop.xlane.xlu0 %710
  %v712 = vrcp.pop %v711
  %v713 = vmul.f32 %v708, %v712
  %v714 = vpack.c.bf16 %v713, %v713
  %v716 = vsel %vm347, %v714, 0
  %718 = vmatpush.bf16.msra.mxu0 0
  %719 = vmatpush.bf16.msra.mxu0 0
  %720 = vmatpush.bf16.msra.mxu0 0
  %721 = vmatpush.bf16.msra.mxu0 0
  %722 = vmatpush.bf16.msra.mxu0 0
  %723 = vmatpush.bf16.msra.mxu0 0
  %724 = vmatpush.bf16.msra.mxu0 0
  %725 = vmatpush.bf16.msra.mxu0 %v572
  %726 = vmatmul.bf16.gmra.mxu0 %v716
  %v727 = vpop.f32.mrf.mxu0
  %v728 = vadd.f32 0.0, %v727
  %v729 = vpop.f32.mrf.mxu0
  %730 = vdwg.mxu0
  %v731 = vmul.f32 %v728, %v151
  %v732 = vadd.f32 %v684, %v731
  %v733 = vld [vmem:[%s27] sm:$0xf]
  %v734 = vld [vmem:[%s15] sm:$0xf]
  %v735 = vld [vmem:[%s15 + $0x4] sm:$0xf]
  %v736 = vld [vmem:[%s15 + $0x8] sm:$0xf]
  %v737 = vld [vmem:[%s15 + $0xc] sm:$0xf]
  %v738 = vpack.c.bf16 %v732, %v527
  %v743 = vunpack.c.l.b16 %v734
  %v744 = vunpack.c.l.b16 %v735
  %v745 = vunpack.c.l.b16 %v736
  %v746 = vunpack.c.l.b16 %v737
  %v747 = vpack.c.b16 %v744, %v743
  %v748 = vpack.c.b16 %v746, %v745
  %v752 = vsel %vm280, %v738, 0
  %754 = vmatpush.bf16.msra.mxu0 0
  %755 = vmatpush.bf16.msra.mxu0 0
  %756 = vmatpush.bf16.msra.mxu0 0
  %757 = vmatpush.bf16.msra.mxu0 0
  %758 = vmatpush.bf16.msra.mxu0 0
  %759 = vmatpush.bf16.msra.mxu0 0
  %760 = vmatpush.bf16.msra.mxu0 %v748
  %761 = vmatpush.bf16.msra.mxu0 %v747
  %762 = vmatmul.bf16.gmra.mxu0 %v752
  %v763 = vpop.f32.mrf.mxu0
  %v764 = vadd.f32 0.0, %v763
  %v765 = vpop.f32.mrf.mxu0
  %v766 = vadd.f32 0.0, %v765
  %767 = vdwg.mxu0
  %v768 = vadd.f32 %v239, %v764
  %v769 = vadd.f32 %v241, %v766
  %v770 = vld [vmem:[%s17] sm:$0x1]
  %v772 = vperm.slane %v770, 0
  %v774 = vadd.f32 %v768, %v772
  %v775 = vadd.f32 %v769, %v772
  %v776 = vsel %vm280, %v774, 0.0
  %777 = vadd.xlane.f32.xlu0 %v776
  %v778 = vpop.xlane.xlu0 %777
  %v779 = vsel %vm280, %v775, 0.0
  %780 = vadd.xlane.f32.xlu0 %v779
  %v781 = vpop.xlane.xlu0 %780
  %v782 = vrcp.pop 32.0
  %v783 = vmul.f32 32.0, %v782
  %v784 = vsub.f32 1.0, %v783
  %v785 = vmul.f32 %v782, %v784
  %v786 = vadd.f32 %v782, %v785
  %vm787 = vweird.f32 %v782
  %v788 = vsel %vm787, %v782, %v786
  %v789 = vmul.f32 %v778, %v788
  %v790 = vmul.f32 %v781, %v788
  %v791 = vsub.f32 %v774, %v789
  %v792 = vsub.f32 %v775, %v790
  %v793 = vmul.f32 %v791, %v791
  %v794 = vmul.f32 %v792, %v792
  %v795 = vsel %vm280, %v793, 0.0
  %796 = vadd.xlane.f32.xlu0 %v795
  %v797 = vpop.xlane.xlu0 %796
  %v798 = vsel %vm280, %v794, 0.0
  %799 = vadd.xlane.f32.xlu0 %v798
  %v800 = vpop.xlane.xlu0 %799
  %v801 = vmul.f32 %v797, %v788
  %v802 = vmul.f32 %v800, %v788
  %v803 = vadd.f32 %v801, 1e-05
  %v804 = vadd.f32 %v802, 1e-05
  %v805 = vrsqrt.pop %v803
  %v806 = vmul.f32 %v805, %v803
  %v807 = vmul.f32 %v806, %v805
  %v808 = vmul.f32 0.5, %v807
  %v809 = vsub.f32 1.5, %v808
  %v810 = vmul.f32 %v805, %v809
  %vm811 = vweird.f32 %v803
  %vm812 = vweird.f32 %v805
  %vm813 = vmor %vm811, %vm812
  %v814 = vsel %vm813, %v805, %v810
  %v815 = vrsqrt.pop %v804
  %v816 = vmul.f32 %v815, %v804
  %v817 = vmul.f32 %v816, %v815
  %v818 = vmul.f32 0.5, %v817
  %v819 = vsub.f32 1.5, %v818
  %v820 = vmul.f32 %v815, %v819
  %vm821 = vweird.f32 %v804
  %vm822 = vweird.f32 %v815
  %vm823 = vmor %vm821, %vm822
  %v824 = vsel %vm823, %v815, %v820
  %v825 = vmul.f32 %v791, %v814
  %v826 = vmul.f32 %v792, %v824
  %v827 = vperm.slane %v733, 0
  %v828 = vmul.f32 %v825, %v827
  %v829 = vmul.f32 %v826, %v827
  %v830 = vperm.slane %v733, 1
  %v831 = vadd.f32 %v828, %v830
  %v832 = vadd.f32 %v829, %v830
  %v833 = vld [vmem:[%s19] sm:$0xf]
  %v834 = vld [vmem:[%s19 + $0x4] sm:$0xf]
  %v835 = vld [vmem:[%s19 + $0x8] sm:$0xf]
  %v836 = vld [vmem:[%s19 + $0xc] sm:$0xf]
  %v837 = vpack.c.bf16 %v832, %v831
  %v838 = vld [vmem:[%s21] sm:$0x1]
  %v840 = vperm.slane %v838, 0
  %v846 = vunpack.c.l.b16 %v833
  %v847 = vunpack.c.l.b16 %v834
  %v848 = vunpack.c.l.b16 %v835
  %v849 = vunpack.c.l.b16 %v836
  %v850 = vpack.c.b16 %v847, %v846
  %v851 = vpack.c.b16 %v849, %v848
  %v855 = vsel %vm280, %v837, 0
  %857 = vmatpush.bf16.msra.mxu0 0
  %858 = vmatpush.bf16.msra.mxu0 0
  %859 = vmatpush.bf16.msra.mxu0 0
  %860 = vmatpush.bf16.msra.mxu0 0
  %861 = vmatpush.bf16.msra.mxu0 0
  %862 = vmatpush.bf16.msra.mxu0 0
  %863 = vmatpush.bf16.msra.mxu0 %v851
  %864 = vmatpush.bf16.msra.mxu0 %v850
  %865 = vmatmul.bf16.gmra.mxu0 %v855
  %v866 = vpop.f32.mrf.mxu0
  %v867 = vadd.f32 %v840, %v866
  %v868 = vpop.f32.mrf.mxu0
  %v869 = vadd.f32 %v840, %v868
  %870 = vdwg.mxu0
  %v871 = vmax.f32 %v867, 0.0
  %v872 = vmax.f32 %v869, 0.0
  %v873 = vld [vmem:[%s23] sm:$0xf]
  %v874 = vld [vmem:[%s23 + $0x4] sm:$0xf]
  %v875 = vld [vmem:[%s23 + $0x8] sm:$0xf]
  %v876 = vld [vmem:[%s23 + $0xc] sm:$0xf]
  %v877 = vld [vmem:[%s23 + $0x10] sm:$0xf]
  %v878 = vld [vmem:[%s23 + $0x14] sm:$0xf]
  %v879 = vld [vmem:[%s23 + $0x18] sm:$0xf]
  %v880 = vld [vmem:[%s23 + $0x1c] sm:$0xf]
  %v881 = vpack.c.bf16 %v872, %v871
  %v890 = vunpack.c.l.b16 %v873
  %v891 = vunpack.c.l.b16 %v874
  %v892 = vunpack.c.l.b16 %v875
  %v893 = vunpack.c.l.b16 %v876
  %v894 = vunpack.c.l.b16 %v877
  %v895 = vunpack.c.l.b16 %v878
  %v896 = vunpack.c.l.b16 %v879
  %v897 = vunpack.c.l.b16 %v880
  %v898 = vpack.c.b16 %v891, %v890
  %v899 = vpack.c.b16 %v893, %v892
  %v900 = vpack.c.b16 %v895, %v894
  %v901 = vpack.c.b16 %v897, %v896
  %vm906 = vcmask 523264
  %v908 = vsel %vm906, %v881, 0
  %910 = vmatpush.bf16.msra.mxu0 0
  %911 = vmatpush.bf16.msra.mxu0 0
  %912 = vmatpush.bf16.msra.mxu0 0
  %913 = vmatpush.bf16.msra.mxu0 0
  %914 = vmatpush.bf16.msra.mxu0 %v901
  %915 = vmatpush.bf16.msra.mxu0 %v900
  %916 = vmatpush.bf16.msra.mxu0 %v899
  %917 = vmatpush.bf16.msra.mxu0 %v898
  %918 = vmatmul.bf16.gmra.mxu0 %v908
  %v919 = vpop.f32.mrf.mxu0
  %v920 = vadd.f32 0.0, %v919
  %v921 = vpop.f32.mrf.mxu0
  %v922 = vadd.f32 0.0, %v921
  %923 = vdwg.mxu0
  %v924 = vadd.f32 %v831, %v920
  %v925 = vadd.f32 %v832, %v922
  %v926 = vld [vmem:[%s25] sm:$0x1]
  %v928 = vperm.slane %v926, 0
  %v930 = vadd.f32 %v924, %v928
  %v931 = vadd.f32 %v925, %v928
  %v932 = vsel %vm280, %v930, 0.0
  %933 = vadd.xlane.f32.xlu0 %v932
  %v934 = vpop.xlane.xlu0 %933
  %v935 = vsel %vm280, %v931, 0.0
  %936 = vadd.xlane.f32.xlu0 %v935
  %v937 = vpop.xlane.xlu0 %936
  %v938 = vmul.f32 %v934, %v788
  %v939 = vmul.f32 %v937, %v788
  %v940 = vsub.f32 %v930, %v938
  %v941 = vsub.f32 %v931, %v939
  %v942 = vmul.f32 %v940, %v940
  %v943 = vmul.f32 %v941, %v941
  %v944 = vsel %vm280, %v942, 0.0
  %945 = vadd.xlane.f32.xlu0 %v944
  %v946 = vpop.xlane.xlu0 %945
  %v947 = vsel %vm280, %v943, 0.0
  %948 = vadd.xlane.f32.xlu0 %v947
  %v949 = vpop.xlane.xlu0 %948
  %v950 = vmul.f32 %v946, %v788
  %v951 = vmul.f32 %v949, %v788
  %v952 = vadd.f32 %v950, 1e-05
  %v953 = vadd.f32 %v951, 1e-05
  %v954 = vrsqrt.pop %v952
  %v955 = vmul.f32 %v954, %v952
  %v956 = vmul.f32 %v955, %v954
  %v957 = vmul.f32 0.5, %v956
  %v958 = vsub.f32 1.5, %v957
  %v959 = vmul.f32 %v954, %v958
  %vm960 = vweird.f32 %v952
  %vm961 = vweird.f32 %v954
  %vm962 = vmor %vm960, %vm961
  %v963 = vsel %vm962, %v954, %v959
  %v964 = vrsqrt.pop %v953
  %v965 = vmul.f32 %v964, %v953
  %v966 = vmul.f32 %v965, %v964
  %v967 = vmul.f32 0.5, %v966
  %v968 = vsub.f32 1.5, %v967
  %v969 = vmul.f32 %v964, %v968
  %vm970 = vweird.f32 %v953
  %vm971 = vweird.f32 %v964
  %vm972 = vmor %vm970, %vm971
  %v973 = vsel %vm972, %v964, %v969
  %v974 = vmul.f32 %v940, %v963
  %v975 = vmul.f32 %v941, %v973
  %v976 = vperm.slane %v733, 2
  %v977 = vmul.f32 %v974, %v976
  %v978 = vmul.f32 %v975, %v976
  %v979 = vperm.slane %v733, 3
  %v980 = vadd.f32 %v977, %v979
  %v981 = vadd.f32 %v978, %v979
  %s982 = scalar_lea.vmem %s65, 16
  %983 = vst.msk [vmem:[%s982] sm:$0xff] %vm280, %v980
  %984 = vst.msk [vmem:[%s982 + $0x8] sm:$0xff] %vm280, %v981
  %s985 = scalar_lea.vmem %s11, 16
  %v986 = vld [vmem:[%s985] sm:$0xf]
  %v987 = vld [vmem:[%s985 + $0x4] sm:$0xf]
  %v988 = vld [vmem:[%s985 + $0x8] sm:$0xf]
  %v989 = vld [vmem:[%s985 + $0xc] sm:$0xf]
  %s990 = scalar_lea.vmem %s13, 1
  %v991 = vld [vmem:[%s990] sm:$0x1]
  %v992 = vpack.c.bf16 %v981, %v980
  %v994 = vperm.slane %v991, 0
  %v1000 = vunpack.c.l.b16 %v986
  %v1001 = vunpack.c.l.b16 %v987
  %v1002 = vunpack.c.l.b16 %v988
  %v1003 = vunpack.c.l.b16 %v989
  %v1004 = vpack.c.b16 %v1001, %v1000
  %v1005 = vpack.c.b16 %v1003, %v1002
  %v1009 = vsel %vm280, %v992, 0
  %1011 = vmatpush.bf16.msra.mxu0 0
  %1012 = vmatpush.bf16.msra.mxu0 0
  %1013 = vmatpush.bf16.msra.mxu0 0
  %1014 = vmatpush.bf16.msra.mxu0 0
  %1015 = vmatpush.bf16.msra.mxu0 0
  %1016 = vmatpush.bf16.msra.mxu0 0
  %1017 = vmatpush.bf16.msra.mxu0 %v1005
  %1018 = vmatpush.bf16.msra.mxu0 %v1004
  %1019 = vmatmul.bf16.gmra.mxu0 %v1009
  %v1020 = vpop.f32.mrf.mxu0
  %v1021 = vadd.f32 %v994, %v1020
  %v1022 = vpop.f32.mrf.mxu0
  %v1023 = vadd.f32 %v994, %v1022
  %1024 = vdwg.mxu0
  %v1025 = vpack.c.bf16 %v1021, %v1021
  %v1026 = vmul.f32 %v1021, %v139
  %v1027 = vpack.c.bf16 %v1026, %v1026
  %1029 = vrot.lane.b32.xlu0 %v1025, 96
  %v1030 = vpop.permute.xlu0 %1029
  %v1032 = vsel %vm280, %v1027, 0
  %v1035 = vsel %vm280, %v1030, 0
  %1037 = vmatpush.bf16.xpose.msra.mxu0 0
  %1038 = vmatpush.bf16.xpose.msra.mxu0 0
  %1039 = vmatpush.bf16.xpose.msra.mxu0 0
  %1040 = vmatpush.bf16.xpose.msra.mxu0 0
  %1041 = vmatpush.bf16.xpose.msra.mxu0 0
  %1042 = vmatpush.bf16.xpose.msra.mxu0 0
  %1043 = vmatpush.bf16.xpose.msra.mxu0 0
  %1044 = vmatpush.bf16.xpose.msra.mxu0 %v1035
  %1045 = vmatmul.bf16.gmra.mxu0 %v1032
  %v1046 = vpop.f32.mrf.mxu0
  %v1047 = vadd.f32 %v324, %v1046
  %v1048 = vpop.f32.mrf.mxu0
  %1049 = vdwg.mxu0
  %v1050 = vsel %vm347, %v1047, -inf
  %1051 = vmax.xlane.f32.xlu0 %v1050
  %v1052 = vpop.xlane.xlu0 %1051
  %v1053 = vsub.f32 %v1047, %v1052
  %v1054 = vmul.f32 %v1053, 1.442695
  %v1055 = vpow.pop %v1054
  %v1056 = vsel %vm347, %v1055, 0.0
  %1057 = vadd.xlane.f32.xlu0 %v1056
  %v1058 = vpop.xlane.xlu0 %1057
  %v1059 = vrcp.pop %v1058
  %v1060 = vmul.f32 %v1055, %v1059
  %v1061 = vpack.c.bf16 %v1060, %v1060
  %1062 = vrot.lane.b32.xlu0 %v1025, 64
  %v1063 = vpop.permute.xlu0 %1062
  %v1065 = vsel %vm347, %v1061, 0
  %v1068 = vsel %vm365, %v1063, 0
  %1070 = vmatpush.bf16.msra.mxu0 0
  %1071 = vmatpush.bf16.msra.mxu0 0
  %1072 = vmatpush.bf16.msra.mxu0 0
  %1073 = vmatpush.bf16.msra.mxu0 0
  %1074 = vmatpush.bf16.msra.mxu0 0
  %1075 = vmatpush.bf16.msra.mxu0 0
  %1076 = vmatpush.bf16.msra.mxu0 0
  %1077 = vmatpush.bf16.msra.mxu0 %v1068
  %1078 = vmatmul.bf16.gmra.mxu0 %v1065
  %v1079 = vpop.f32.mrf.mxu0
  %v1080 = vadd.f32 0.0, %v1079
  %v1081 = vpop.f32.mrf.mxu0
  %1082 = vdwg.mxu0
  %v1083 = vmul.f32 %v1080, %v139
  %v1084 = vadd.f32 %v1083, 0.0
  %v1085 = vmul.f32 %v1021, %v143
  %v1086 = vpack.c.bf16 %v1085, %v1085
  %v1088 = vsel %vm280, %v1086, 0
  %1090 = vmatpush.bf16.xpose.msra.mxu0 0
  %1091 = vmatpush.bf16.xpose.msra.mxu0 0
  %1092 = vmatpush.bf16.xpose.msra.mxu0 0
  %1093 = vmatpush.bf16.xpose.msra.mxu0 0
  %1094 = vmatpush.bf16.xpose.msra.mxu0 0
  %1095 = vmatpush.bf16.xpose.msra.mxu0 0
  %1096 = vmatpush.bf16.xpose.msra.mxu0 0
  %1097 = vmatpush.bf16.xpose.msra.mxu0 %v1035
  %1098 = vmatmul.bf16.gmra.mxu0 %v1088
  %v1099 = vpop.f32.mrf.mxu0
  %v1100 = vadd.f32 %v324, %v1099
  %v1101 = vpop.f32.mrf.mxu0
  %1102 = vdwg.mxu0
  %v1103 = vsel %vm347, %v1100, -inf
  %1104 = vmax.xlane.f32.xlu0 %v1103
  %v1105 = vpop.xlane.xlu0 %1104
  %v1106 = vsub.f32 %v1100, %v1105
  %v1107 = vmul.f32 %v1106, 1.442695
  %v1108 = vpow.pop %v1107
  %v1109 = vsel %vm347, %v1108, 0.0
  %1110 = vadd.xlane.f32.xlu0 %v1109
  %v1111 = vpop.xlane.xlu0 %1110
  %v1112 = vrcp.pop %v1111
  %v1113 = vmul.f32 %v1108, %v1112
  %v1114 = vpack.c.bf16 %v1113, %v1113
  %v1116 = vsel %vm347, %v1114, 0
  %1118 = vmatpush.bf16.msra.mxu0 0
  %1119 = vmatpush.bf16.msra.mxu0 0
  %1120 = vmatpush.bf16.msra.mxu0 0
  %1121 = vmatpush.bf16.msra.mxu0 0
  %1122 = vmatpush.bf16.msra.mxu0 0
  %1123 = vmatpush.bf16.msra.mxu0 0
  %1124 = vmatpush.bf16.msra.mxu0 0
  %1125 = vmatpush.bf16.msra.mxu0 %v1068
  %1126 = vmatmul.bf16.gmra.mxu0 %v1116
  %v1127 = vpop.f32.mrf.mxu0
  %v1128 = vadd.f32 0.0, %v1127
  %v1129 = vpop.f32.mrf.mxu0
  %1130 = vdwg.mxu0
  %v1131 = vmul.f32 %v1128, %v143
  %v1132 = vadd.f32 %v1084, %v1131
  %v1133 = vmul.f32 %v1021, %v147
  %v1134 = vpack.c.bf16 %v1133, %v1133
  %v1136 = vsel %vm280, %v1134, 0
  %1138 = vmatpush.bf16.xpose.msra.mxu0 0
  %1139 = vmatpush.bf16.xpose.msra.mxu0 0
  %1140 = vmatpush.bf16.xpose.msra.mxu0 0
  %1141 = vmatpush.bf16.xpose.msra.mxu0 0
  %1142 = vmatpush.bf16.xpose.msra.mxu0 0
  %1143 = vmatpush.bf16.xpose.msra.mxu0 0
  %1144 = vmatpush.bf16.xpose.msra.mxu0 0
  %1145 = vmatpush.bf16.xpose.msra.mxu0 %v1035
  %1146 = vmatmul.bf16.gmra.mxu0 %v1136
  %v1147 = vpop.f32.mrf.mxu0
  %v1148 = vadd.f32 %v324, %v1147
  %v1149 = vpop.f32.mrf.mxu0
  %1150 = vdwg.mxu0
  %v1151 = vsel %vm347, %v1148, -inf
  %1152 = vmax.xlane.f32.xlu0 %v1151
  %v1153 = vpop.xlane.xlu0 %1152
  %v1154 = vsub.f32 %v1148, %v1153
  %v1155 = vmul.f32 %v1154, 1.442695
  %v1156 = vpow.pop %v1155
  %v1157 = vsel %vm347, %v1156, 0.0
  %1158 = vadd.xlane.f32.xlu0 %v1157
  %v1159 = vpop.xlane.xlu0 %1158
  %v1160 = vrcp.pop %v1159
  %v1161 = vmul.f32 %v1156, %v1160
  %v1162 = vpack.c.bf16 %v1161, %v1161
  %v1164 = vsel %vm347, %v1162, 0
  %1166 = vmatpush.bf16.msra.mxu0 0
  %1167 = vmatpush.bf16.msra.mxu0 0
  %1168 = vmatpush.bf16.msra.mxu0 0
  %1169 = vmatpush.bf16.msra.mxu0 0
  %1170 = vmatpush.bf16.msra.mxu0 0
  %1171 = vmatpush.bf16.msra.mxu0 0
  %1172 = vmatpush.bf16.msra.mxu0 0
  %1173 = vmatpush.bf16.msra.mxu0 %v1068
  %1174 = vmatmul.bf16.gmra.mxu0 %v1164
  %v1175 = vpop.f32.mrf.mxu0
  %v1176 = vadd.f32 0.0, %v1175
  %v1177 = vpop.f32.mrf.mxu0
  %1178 = vdwg.mxu0
  %v1179 = vmul.f32 %v1176, %v147
  %v1180 = vadd.f32 %v1132, %v1179
  %v1181 = vmul.f32 %v1021, %v151
  %v1182 = vpack.c.bf16 %v1181, %v1181
  %v1184 = vsel %vm280, %v1182, 0
  %1186 = vmatpush.bf16.xpose.msra.mxu0 0
  %1187 = vmatpush.bf16.xpose.msra.mxu0 0
  %1188 = vmatpush.bf16.xpose.msra.mxu0 0
  %1189 = vmatpush.bf16.xpose.msra.mxu0 0
  %1190 = vmatpush.bf16.xpose.msra.mxu0 0
  %1191 = vmatpush.bf16.xpose.msra.mxu0 0
  %1192 = vmatpush.bf16.xpose.msra.mxu0 0
  %1193 = vmatpush.bf16.xpose.msra.mxu0 %v1035
  %1194 = vmatmul.bf16.gmra.mxu0 %v1184
  %v1195 = vpop.f32.mrf.mxu0
  %v1196 = vadd.f32 %v324, %v1195
  %v1197 = vpop.f32.mrf.mxu0
  %1198 = vdwg.mxu0
  %v1199 = vsel %vm347, %v1196, -inf
  %1200 = vmax.xlane.f32.xlu0 %v1199
  %v1201 = vpop.xlane.xlu0 %1200
  %v1202 = vsub.f32 %v1196, %v1201
  %v1203 = vmul.f32 %v1202, 1.442695
  %v1204 = vpow.pop %v1203
  %v1205 = vsel %vm347, %v1204, 0.0
  %1206 = vadd.xlane.f32.xlu0 %v1205
  %v1207 = vpop.xlane.xlu0 %1206
  %v1208 = vrcp.pop %v1207
  %v1209 = vmul.f32 %v1204, %v1208
  %v1210 = vpack.c.bf16 %v1209, %v1209
  %v1212 = vsel %vm347, %v1210, 0
  %1214 = vmatpush.bf16.msra.mxu0 0
  %1215 = vmatpush.bf16.msra.mxu0 0
  %1216 = vmatpush.bf16.msra.mxu0 0
  %1217 = vmatpush.bf16.msra.mxu0 0
  %1218 = vmatpush.bf16.msra.mxu0 0
  %1219 = vmatpush.bf16.msra.mxu0 0
  %1220 = vmatpush.bf16.msra.mxu0 0
  %1221 = vmatpush.bf16.msra.mxu0 %v1068
  %1222 = vmatmul.bf16.gmra.mxu0 %v1212
  %v1223 = vpop.f32.mrf.mxu0
  %v1224 = vadd.f32 0.0, %v1223
  %v1225 = vpop.f32.mrf.mxu0
  %1226 = vdwg.mxu0
  %v1227 = vmul.f32 %v1224, %v151
  %v1228 = vadd.f32 %v1180, %v1227
  %v1229 = vpack.c.bf16 %v1023, %v1023
  %v1230 = vmul.f32 %v1023, %v139
  %v1231 = vpack.c.bf16 %v1230, %v1230
  %1233 = vrot.lane.b32.xlu0 %v1229, 96
  %v1234 = vpop.permute.xlu0 %1233
  %v1236 = vsel %vm280, %v1231, 0
  %v1239 = vsel %vm280, %v1234, 0
  %1241 = vmatpush.bf16.xpose.msra.mxu0 0
  %1242 = vmatpush.bf16.xpose.msra.mxu0 0
  %1243 = vmatpush.bf16.xpose.msra.mxu0 0
  %1244 = vmatpush.bf16.xpose.msra.mxu0 0
  %1245 = vmatpush.bf16.xpose.msra.mxu0 0
  %1246 = vmatpush.bf16.xpose.msra.mxu0 0
  %1247 = vmatpush.bf16.xpose.msra.mxu0 0
  %1248 = vmatpush.bf16.xpose.msra.mxu0 %v1239
  %1249 = vmatmul.bf16.gmra.mxu0 %v1236
  %v1250 = vpop.f32.mrf.mxu0
  %v1251 = vadd.f32 %v531, %v1250
  %v1252 = vpop.f32.mrf.mxu0
  %1253 = vdwg.mxu0
  %v1254 = vsel %vm347, %v1251, -inf
  %1255 = vmax.xlane.f32.xlu0 %v1254
  %v1256 = vpop.xlane.xlu0 %1255
  %v1257 = vsub.f32 %v1251, %v1256
  %v1258 = vmul.f32 %v1257, 1.442695
  %v1259 = vpow.pop %v1258
  %v1260 = vsel %vm347, %v1259, 0.0
  %1261 = vadd.xlane.f32.xlu0 %v1260
  %v1262 = vpop.xlane.xlu0 %1261
  %v1263 = vrcp.pop %v1262
  %v1264 = vmul.f32 %v1259, %v1263
  %v1265 = vpack.c.bf16 %v1264, %v1264
  %1266 = vrot.lane.b32.xlu0 %v1229, 64
  %v1267 = vpop.permute.xlu0 %1266
  %v1269 = vsel %vm347, %v1265, 0
  %v1272 = vsel %vm365, %v1267, 0
  %1274 = vmatpush.bf16.msra.mxu0 0
  %1275 = vmatpush.bf16.msra.mxu0 0
  %1276 = vmatpush.bf16.msra.mxu0 0
  %1277 = vmatpush.bf16.msra.mxu0 0
  %1278 = vmatpush.bf16.msra.mxu0 0
  %1279 = vmatpush.bf16.msra.mxu0 0
  %1280 = vmatpush.bf16.msra.mxu0 0
  %1281 = vmatpush.bf16.msra.mxu0 %v1272
  %1282 = vmatmul.bf16.gmra.mxu0 %v1269
  %v1283 = vpop.f32.mrf.mxu0
  %v1284 = vadd.f32 0.0, %v1283
  %v1285 = vpop.f32.mrf.mxu0
  %1286 = vdwg.mxu0
  %v1287 = vmul.f32 %v1284, %v139
  %v1288 = vadd.f32 %v1287, 0.0
  %v1289 = vmul.f32 %v1023, %v143
  %v1290 = vpack.c.bf16 %v1289, %v1289
  %v1292 = vsel %vm280, %v1290, 0
  %1294 = vmatpush.bf16.xpose.msra.mxu0 0
  %1295 = vmatpush.bf16.xpose.msra.mxu0 0
  %1296 = vmatpush.bf16.xpose.msra.mxu0 0
  %1297 = vmatpush.bf16.xpose.msra.mxu0 0
  %1298 = vmatpush.bf16.xpose.msra.mxu0 0
  %1299 = vmatpush.bf16.xpose.msra.mxu0 0
  %1300 = vmatpush.bf16.xpose.msra.mxu0 0
  %1301 = vmatpush.bf16.xpose.msra.mxu0 %v1239
  %1302 = vmatmul.bf16.gmra.mxu0 %v1292
  %v1303 = vpop.f32.mrf.mxu0
  %v1304 = vadd.f32 %v531, %v1303
  %v1305 = vpop.f32.mrf.mxu0
  %1306 = vdwg.mxu0
  %v1307 = vsel %vm347, %v1304, -inf
  %1308 = vmax.xlane.f32.xlu0 %v1307
  %v1309 = vpop.xlane.xlu0 %1308
  %v1310 = vsub.f32 %v1304, %v1309
  %v1311 = vmul.f32 %v1310, 1.442695
  %v1312 = vpow.pop %v1311
  %v1313 = vsel %vm347, %v1312, 0.0
  %1314 = vadd.xlane.f32.xlu0 %v1313
  %v1315 = vpop.xlane.xlu0 %1314
  %v1316 = vrcp.pop %v1315
  %v1317 = vmul.f32 %v1312, %v1316
  %v1318 = vpack.c.bf16 %v1317, %v1317
  %v1320 = vsel %vm347, %v1318, 0
  %1322 = vmatpush.bf16.msra.mxu0 0
  %1323 = vmatpush.bf16.msra.mxu0 0
  %1324 = vmatpush.bf16.msra.mxu0 0
  %1325 = vmatpush.bf16.msra.mxu0 0
  %1326 = vmatpush.bf16.msra.mxu0 0
  %1327 = vmatpush.bf16.msra.mxu0 0
  %1328 = vmatpush.bf16.msra.mxu0 0
  %1329 = vmatpush.bf16.msra.mxu0 %v1272
  %1330 = vmatmul.bf16.gmra.mxu0 %v1320
  %v1331 = vpop.f32.mrf.mxu0
  %v1332 = vadd.f32 0.0, %v1331
  %v1333 = vpop.f32.mrf.mxu0
  %1334 = vdwg.mxu0
  %v1335 = vmul.f32 %v1332, %v143
  %v1336 = vadd.f32 %v1288, %v1335
  %v1337 = vmul.f32 %v1023, %v147
  %v1338 = vpack.c.bf16 %v1337, %v1337
  %v1340 = vsel %vm280, %v1338, 0
  %1342 = vmatpush.bf16.xpose.msra.mxu0 0
  %1343 = vmatpush.bf16.xpose.msra.mxu0 0
  %1344 = vmatpush.bf16.xpose.msra.mxu0 0
  %1345 = vmatpush.bf16.xpose.msra.mxu0 0
  %1346 = vmatpush.bf16.xpose.msra.mxu0 0
  %1347 = vmatpush.bf16.xpose.msra.mxu0 0
  %1348 = vmatpush.bf16.xpose.msra.mxu0 0
  %1349 = vmatpush.bf16.xpose.msra.mxu0 %v1239
  %1350 = vmatmul.bf16.gmra.mxu0 %v1340
  %v1351 = vpop.f32.mrf.mxu0
  %v1352 = vadd.f32 %v531, %v1351
  %v1353 = vpop.f32.mrf.mxu0
  %1354 = vdwg.mxu0
  %v1355 = vsel %vm347, %v1352, -inf
  %1356 = vmax.xlane.f32.xlu0 %v1355
  %v1357 = vpop.xlane.xlu0 %1356
  %v1358 = vsub.f32 %v1352, %v1357
  %v1359 = vmul.f32 %v1358, 1.442695
  %v1360 = vpow.pop %v1359
  %v1361 = vsel %vm347, %v1360, 0.0
  %1362 = vadd.xlane.f32.xlu0 %v1361
  %v1363 = vpop.xlane.xlu0 %1362
  %v1364 = vrcp.pop %v1363
  %v1365 = vmul.f32 %v1360, %v1364
  %v1366 = vpack.c.bf16 %v1365, %v1365
  %v1368 = vsel %vm347, %v1366, 0
  %1370 = vmatpush.bf16.msra.mxu0 0
  %1371 = vmatpush.bf16.msra.mxu0 0
  %1372 = vmatpush.bf16.msra.mxu0 0
  %1373 = vmatpush.bf16.msra.mxu0 0
  %1374 = vmatpush.bf16.msra.mxu0 0
  %1375 = vmatpush.bf16.msra.mxu0 0
  %1376 = vmatpush.bf16.msra.mxu0 0
  %1377 = vmatpush.bf16.msra.mxu0 %v1272
  %1378 = vmatmul.bf16.gmra.mxu0 %v1368
  %v1379 = vpop.f32.mrf.mxu0
  %v1380 = vadd.f32 0.0, %v1379
  %v1381 = vpop.f32.mrf.mxu0
  %1382 = vdwg.mxu0
  %v1383 = vmul.f32 %v1380, %v147
  %v1384 = vadd.f32 %v1336, %v1383
  %v1385 = vmul.f32 %v1023, %v151
  %v1386 = vpack.c.bf16 %v1385, %v1385
  %v1388 = vsel %vm280, %v1386, 0
  %1390 = vmatpush.bf16.xpose.msra.mxu0 0
  %1391 = vmatpush.bf16.xpose.msra.mxu0 0
  %1392 = vmatpush.bf16.xpose.msra.mxu0 0
  %1393 = vmatpush.bf16.xpose.msra.mxu0 0
  %1394 = vmatpush.bf16.xpose.msra.mxu0 0
  %1395 = vmatpush.bf16.xpose.msra.mxu0 0
  %1396 = vmatpush.bf16.xpose.msra.mxu0 0
  %1397 = vmatpush.bf16.xpose.msra.mxu0 %v1239
  %1398 = vmatmul.bf16.gmra.mxu0 %v1388
  %v1399 = vpop.f32.mrf.mxu0
  %v1400 = vadd.f32 %v531, %v1399
  %v1401 = vpop.f32.mrf.mxu0
  %1402 = vdwg.mxu0
  %v1403 = vsel %vm347, %v1400, -inf
  %1404 = vmax.xlane.f32.xlu0 %v1403
  %v1405 = vpop.xlane.xlu0 %1404
  %v1406 = vsub.f32 %v1400, %v1405
  %v1407 = vmul.f32 %v1406, 1.442695
  %v1408 = vpow.pop %v1407
  %v1409 = vsel %vm347, %v1408, 0.0
  %1410 = vadd.xlane.f32.xlu0 %v1409
  %v1411 = vpop.xlane.xlu0 %1410
  %v1412 = vrcp.pop %v1411
  %v1413 = vmul.f32 %v1408, %v1412
  %v1414 = vpack.c.bf16 %v1413, %v1413
  %v1416 = vsel %vm347, %v1414, 0
  %1418 = vmatpush.bf16.msra.mxu0 0
  %1419 = vmatpush.bf16.msra.mxu0 0
  %1420 = vmatpush.bf16.msra.mxu0 0
  %1421 = vmatpush.bf16.msra.mxu0 0
  %1422 = vmatpush.bf16.msra.mxu0 0
  %1423 = vmatpush.bf16.msra.mxu0 0
  %1424 = vmatpush.bf16.msra.mxu0 0
  %1425 = vmatpush.bf16.msra.mxu0 %v1272
  %1426 = vmatmul.bf16.gmra.mxu0 %v1416
  %v1427 = vpop.f32.mrf.mxu0
  %v1428 = vadd.f32 0.0, %v1427
  %v1429 = vpop.f32.mrf.mxu0
  %1430 = vdwg.mxu0
  %v1431 = vmul.f32 %v1428, %v151
  %v1432 = vadd.f32 %v1384, %v1431
  %s1433 = scalar_lea.vmem %s27, 4
  %v1434 = vld [vmem:[%s1433] sm:$0xf]
  %s1435 = scalar_lea.vmem %s15, 16
  %v1436 = vld [vmem:[%s1435] sm:$0xf]
  %v1437 = vld [vmem:[%s1435 + $0x4] sm:$0xf]
  %v1438 = vld [vmem:[%s1435 + $0x8] sm:$0xf]
  %v1439 = vld [vmem:[%s1435 + $0xc] sm:$0xf]
  %v1440 = vpack.c.bf16 %v1432, %v1228
  %v1445 = vunpack.c.l.b16 %v1436
  %v1446 = vunpack.c.l.b16 %v1437
  %v1447 = vunpack.c.l.b16 %v1438
  %v1448 = vunpack.c.l.b16 %v1439
  %v1449 = vpack.c.b16 %v1446, %v1445
  %v1450 = vpack.c.b16 %v1448, %v1447
  %v1454 = vsel %vm280, %v1440, 0
  %1456 = vmatpush.bf16.msra.mxu0 0
  %1457 = vmatpush.bf16.msra.mxu0 0
  %1458 = vmatpush.bf16.msra.mxu0 0
  %1459 = vmatpush.bf16.msra.mxu0 0
  %1460 = vmatpush.bf16.msra.mxu0 0
  %1461 = vmatpush.bf16.msra.mxu0 0
  %1462 = vmatpush.bf16.msra.mxu0 %v1450
  %1463 = vmatpush.bf16.msra.mxu0 %v1449
  %1464 = vmatmul.bf16.gmra.mxu0 %v1454
  %v1465 = vpop.f32.mrf.mxu0
  %v1466 = vadd.f32 0.0, %v1465
  %v1467 = vpop.f32.mrf.mxu0
  %v1468 = vadd.f32 0.0, %v1467
  %1469 = vdwg.mxu0
  %v1470 = vadd.f32 %v980, %v1466
  %v1471 = vadd.f32 %v981, %v1468
  %s1472 = scalar_lea.vmem %s17, 1
  %v1473 = vld [vmem:[%s1472] sm:$0x1]
  %v1475 = vperm.slane %v1473, 0
  %v1477 = vadd.f32 %v1470, %v1475
  %v1478 = vadd.f32 %v1471, %v1475
  %v1479 = vsel %vm280, %v1477, 0.0
  %1480 = vadd.xlane.f32.xlu0 %v1479
  %v1481 = vpop.xlane.xlu0 %1480
  %v1482 = vsel %vm280, %v1478, 0.0
  %1483 = vadd.xlane.f32.xlu0 %v1482
  %v1484 = vpop.xlane.xlu0 %1483
  %v1485 = vmul.f32 %v1481, %v788
  %v1486 = vmul.f32 %v1484, %v788
  %v1487 = vsub.f32 %v1477, %v1485
  %v1488 = vsub.f32 %v1478, %v1486
  %v1489 = vmul.f32 %v1487, %v1487
  %v1490 = vmul.f32 %v1488, %v1488
  %v1491 = vsel %vm280, %v1489, 0.0
  %1492 = vadd.xlane.f32.xlu0 %v1491
  %v1493 = vpop.xlane.xlu0 %1492
  %v1494 = vsel %vm280, %v1490, 0.0
  %1495 = vadd.xlane.f32.xlu0 %v1494
  %v1496 = vpop.xlane.xlu0 %1495
  %v1497 = vmul.f32 %v1493, %v788
  %v1498 = vmul.f32 %v1496, %v788
  %v1499 = vadd.f32 %v1497, 1e-05
  %v1500 = vadd.f32 %v1498, 1e-05
  %v1501 = vrsqrt.pop %v1499
  %v1502 = vmul.f32 %v1501, %v1499
  %v1503 = vmul.f32 %v1502, %v1501
  %v1504 = vmul.f32 0.5, %v1503
  %v1505 = vsub.f32 1.5, %v1504
  %v1506 = vmul.f32 %v1501, %v1505
  %vm1507 = vweird.f32 %v1499
  %vm1508 = vweird.f32 %v1501
  %vm1509 = vmor %vm1507, %vm1508
  %v1510 = vsel %vm1509, %v1501, %v1506
  %v1511 = vrsqrt.pop %v1500
  %v1512 = vmul.f32 %v1511, %v1500
  %v1513 = vmul.f32 %v1512, %v1511
  %v1514 = vmul.f32 0.5, %v1513
  %v1515 = vsub.f32 1.5, %v1514
  %v1516 = vmul.f32 %v1511, %v1515
  %vm1517 = vweird.f32 %v1500
  %vm1518 = vweird.f32 %v1511
  %vm1519 = vmor %vm1517, %vm1518
  %v1520 = vsel %vm1519, %v1511, %v1516
  %v1521 = vmul.f32 %v1487, %v1510
  %v1522 = vmul.f32 %v1488, %v1520
  %v1523 = vperm.slane %v1434, 0
  %v1524 = vmul.f32 %v1521, %v1523
  %v1525 = vmul.f32 %v1522, %v1523
  %v1526 = vperm.slane %v1434, 1
  %v1527 = vadd.f32 %v1524, %v1526
  %v1528 = vadd.f32 %v1525, %v1526
  %s1529 = scalar_lea.vmem %s19, 16
  %v1530 = vld [vmem:[%s1529] sm:$0xf]
  %v1531 = vld [vmem:[%s1529 + $0x4] sm:$0xf]
  %v1532 = vld [vmem:[%s1529 + $0x8] sm:$0xf]
  %v1533 = vld [vmem:[%s1529 + $0xc] sm:$0xf]
  %v1534 = vpack.c.bf16 %v1528, %v1527
  %s1535 = scalar_lea.vmem %s21, 1
  %v1536 = vld [vmem:[%s1535] sm:$0x1]
  %v1538 = vperm.slane %v1536, 0
  %v1544 = vunpack.c.l.b16 %v1530
  %v1545 = vunpack.c.l.b16 %v1531
  %v1546 = vunpack.c.l.b16 %v1532
  %v1547 = vunpack.c.l.b16 %v1533
  %v1548 = vpack.c.b16 %v1545, %v1544
  %v1549 = vpack.c.b16 %v1547, %v1546
  %v1553 = vsel %vm280, %v1534, 0
  %1555 = vmatpush.bf16.msra.mxu0 0
  %1556 = vmatpush.bf16.msra.mxu0 0
  %1557 = vmatpush.bf16.msra.mxu0 0
  %1558 = vmatpush.bf16.msra.mxu0 0
  %1559 = vmatpush.bf16.msra.mxu0 0
  %1560 = vmatpush.bf16.msra.mxu0 0
  %1561 = vmatpush.bf16.msra.mxu0 %v1549
  %1562 = vmatpush.bf16.msra.mxu0 %v1548
  %1563 = vmatmul.bf16.gmra.mxu0 %v1553
  %v1564 = vpop.f32.mrf.mxu0
  %v1565 = vadd.f32 %v1538, %v1564
  %v1566 = vpop.f32.mrf.mxu0
  %v1567 = vadd.f32 %v1538, %v1566
  %1568 = vdwg.mxu0
  %v1569 = vmax.f32 %v1565, 0.0
  %v1570 = vmax.f32 %v1567, 0.0
  %s1571 = scalar_lea.vmem %s23, 32
  %v1572 = vld [vmem:[%s1571] sm:$0xf]
  %v1573 = vld [vmem:[%s1571 + $0x4] sm:$0xf]
  %v1574 = vld [vmem:[%s1571 + $0x8] sm:$0xf]
  %v1575 = vld [vmem:[%s1571 + $0xc] sm:$0xf]
  %v1576 = vld [vmem:[%s1571 + $0x10] sm:$0xf]
  %v1577 = vld [vmem:[%s1571 + $0x14] sm:$0xf]
  %v1578 = vld [vmem:[%s1571 + $0x18] sm:$0xf]
  %v1579 = vld [vmem:[%s1571 + $0x1c] sm:$0xf]
  %v1580 = vpack.c.bf16 %v1570, %v1569
  %v1589 = vunpack.c.l.b16 %v1572
  %v1590 = vunpack.c.l.b16 %v1573
  %v1591 = vunpack.c.l.b16 %v1574
  %v1592 = vunpack.c.l.b16 %v1575
  %v1593 = vunpack.c.l.b16 %v1576
  %v1594 = vunpack.c.l.b16 %v1577
  %v1595 = vunpack.c.l.b16 %v1578
  %v1596 = vunpack.c.l.b16 %v1579
  %v1597 = vpack.c.b16 %v1590, %v1589
  %v1598 = vpack.c.b16 %v1592, %v1591
  %v1599 = vpack.c.b16 %v1594, %v1593
  %v1600 = vpack.c.b16 %v1596, %v1595
  %v1606 = vsel %vm906, %v1580, 0
  %1608 = vmatpush.bf16.msra.mxu0 0
  %1609 = vmatpush.bf16.msra.mxu0 0
  %1610 = vmatpush.bf16.msra.mxu0 0
  %1611 = vmatpush.bf16.msra.mxu0 0
  %1612 = vmatpush.bf16.msra.mxu0 %v1600
  %1613 = vmatpush.bf16.msra.mxu0 %v1599
  %1614 = vmatpush.bf16.msra.mxu0 %v1598
  %1615 = vmatpush.bf16.msra.mxu0 %v1597
  %1616 = vmatmul.bf16.gmra.mxu0 %v1606
  %v1617 = vpop.f32.mrf.mxu0
  %v1618 = vadd.f32 0.0, %v1617
  %v1619 = vpop.f32.mrf.mxu0
  %v1620 = vadd.f32 0.0, %v1619
  %1621 = vdwg.mxu0
  %v1622 = vadd.f32 %v1527, %v1618
  %v1623 = vadd.f32 %v1528, %v1620
  %s1624 = scalar_lea.vmem %s25, 1
  %v1625 = vld [vmem:[%s1624] sm:$0x1]
  %v1627 = vperm.slane %v1625, 0
  %v1629 = vadd.f32 %v1622, %v1627
  %v1630 = vadd.f32 %v1623, %v1627
  %v1631 = vsel %vm280, %v1629, 0.0
  %1632 = vadd.xlane.f32.xlu0 %v1631
  %v1633 = vpop.xlane.xlu0 %1632
  %v1634 = vsel %vm280, %v1630, 0.0
  %1635 = vadd.xlane.f32.xlu0 %v1634
  %v1636 = vpop.xlane.xlu0 %1635
  %v1637 = vmul.f32 %v1633, %v788
  %v1638 = vmul.f32 %v1636, %v788
  %v1639 = vsub.f32 %v1629, %v1637
  %v1640 = vsub.f32 %v1630, %v1638
  %v1641 = vmul.f32 %v1639, %v1639
  %v1642 = vmul.f32 %v1640, %v1640
  %v1643 = vsel %vm280, %v1641, 0.0
  %1644 = vadd.xlane.f32.xlu0 %v1643
  %v1645 = vpop.xlane.xlu0 %1644
  %v1646 = vsel %vm280, %v1642, 0.0
  %1647 = vadd.xlane.f32.xlu0 %v1646
  %v1648 = vpop.xlane.xlu0 %1647
  %v1649 = vmul.f32 %v1645, %v788
  %v1650 = vmul.f32 %v1648, %v788
  %v1651 = vadd.f32 %v1649, 1e-05
  %v1652 = vadd.f32 %v1650, 1e-05
  %v1653 = vrsqrt.pop %v1651
  %v1654 = vmul.f32 %v1653, %v1651
  %v1655 = vmul.f32 %v1654, %v1653
  %v1656 = vmul.f32 0.5, %v1655
  %v1657 = vsub.f32 1.5, %v1656
  %v1658 = vmul.f32 %v1653, %v1657
  %vm1659 = vweird.f32 %v1651
  %vm1660 = vweird.f32 %v1653
  %vm1661 = vmor %vm1659, %vm1660
  %v1662 = vsel %vm1661, %v1653, %v1658
  %v1663 = vrsqrt.pop %v1652
  %v1664 = vmul.f32 %v1663, %v1652
  %v1665 = vmul.f32 %v1664, %v1663
  %v1666 = vmul.f32 0.5, %v1665
  %v1667 = vsub.f32 1.5, %v1666
  %v1668 = vmul.f32 %v1663, %v1667
  %vm1669 = vweird.f32 %v1652
  %vm1670 = vweird.f32 %v1663
  %vm1671 = vmor %vm1669, %vm1670
  %v1672 = vsel %vm1671, %v1663, %v1668
  %v1673 = vmul.f32 %v1639, %v1662
  %v1674 = vmul.f32 %v1640, %v1672
  %v1675 = vperm.slane %v1434, 2
  %v1676 = vmul.f32 %v1673, %v1675
  %v1677 = vmul.f32 %v1674, %v1675
  %v1678 = vperm.slane %v1434, 3
  %v1679 = vadd.f32 %v1676, %v1678
  %v1680 = vadd.f32 %v1677, %v1678
  %v1681 = vld [vmem:[%s29] sm:$0xf]
  %v1682 = vld [vmem:[%s29 + $0x4] sm:$0xf]
  %v1683 = vld [vmem:[%s29 + $0x8] sm:$0xf]
  %v1684 = vld [vmem:[%s29 + $0xc] sm:$0xf]
  %v1685 = vld [vmem:[%s31] sm:$0x1]
  %v1686 = vpack.c.bf16 %v268, %v266
  %v1688 = vperm.slane %v1685, 0
  %v1694 = vunpack.c.l.b16 %v1681
  %v1695 = vunpack.c.l.b16 %v1682
  %v1696 = vunpack.c.l.b16 %v1683
  %v1697 = vunpack.c.l.b16 %v1684
  %v1698 = vpack.c.b16 %v1695, %v1694
  %v1699 = vpack.c.b16 %v1697, %v1696
  %v1703 = vsel %vm280, %v1686, 0
  %1705 = vmatpush.bf16.msra.mxu0 0
  %1706 = vmatpush.bf16.msra.mxu0 0
  %1707 = vmatpush.bf16.msra.mxu0 0
  %1708 = vmatpush.bf16.msra.mxu0 0
  %1709 = vmatpush.bf16.msra.mxu0 0
  %1710 = vmatpush.bf16.msra.mxu0 0
  %1711 = vmatpush.bf16.msra.mxu0 %v1699
  %1712 = vmatpush.bf16.msra.mxu0 %v1698
  %1713 = vmatmul.bf16.gmra.mxu0 %v1703
  %v1714 = vpop.f32.mrf.mxu0
  %v1715 = vadd.f32 %v1688, %v1714
  %v1716 = vpop.f32.mrf.mxu0
  %v1717 = vadd.f32 %v1688, %v1716
  %1718 = vdwg.mxu0
  %v1719 = vperm.slane %v275, 0
  %v1720 = vadd.f32 %v279, %v1719
  %v1721 = vpack.c.bf16 %v1715, %v1715
  %v1722 = vmul.f32 %v1715, %v139
  %v1723 = vpack.c.bf16 %v1722, %v1722
  %1725 = vrot.lane.b32.xlu0 %v1721, 96
  %v1726 = vpop.permute.xlu0 %1725
  %v1728 = vsel %vm280, %v1723, 0
  %v1731 = vsel %vm280, %v1726, 0
  %1733 = vmatpush.bf16.xpose.msra.mxu0 0
  %1734 = vmatpush.bf16.xpose.msra.mxu0 0
  %1735 = vmatpush.bf16.xpose.msra.mxu0 0
  %1736 = vmatpush.bf16.xpose.msra.mxu0 0
  %1737 = vmatpush.bf16.xpose.msra.mxu0 0
  %1738 = vmatpush.bf16.xpose.msra.mxu0 0
  %1739 = vmatpush.bf16.xpose.msra.mxu0 0
  %1740 = vmatpush.bf16.xpose.msra.mxu0 %v1731
  %1741 = vmatmul.bf16.gmra.mxu0 %v1728
  %v1742 = vpop.f32.mrf.mxu0
  %v1743 = vadd.f32 %v1720, %v1742
  %v1744 = vpop.f32.mrf.mxu0
  %1745 = vdwg.mxu0
  %vm1746 = vcmask 55296
  %v1747 = vsel %vm1746, %v1743, -inf
  %1748 = vmax.xlane.f32.xlu0 %v1747
  %v1749 = vpop.xlane.xlu0 %1748
  %v1750 = vsub.f32 %v1743, %v1749
  %v1751 = vmul.f32 %v1750, 1.442695
  %v1752 = vpow.pop %v1751
  %v1753 = vsel %vm1746, %v1752, 0.0
  %1754 = vadd.xlane.f32.xlu0 %v1753
  %v1755 = vpop.xlane.xlu0 %1754
  %v1756 = vrcp.pop %v1755
  %v1757 = vmul.f32 %v1752, %v1756
  %v1758 = vpack.c.bf16 %v1757, %v1757
  %1759 = vrot.lane.b32.xlu0 %v1721, 64
  %v1760 = vpop.permute.xlu0 %1759
  %vm1761 = vcmask 56320
  %v1763 = vsel %vm1761, %v1758, 0
  %vm1765 = vcmask 1042432
  %v1766 = vsel %vm1765, 4294967295, 65535
  %v1767 = vsel %vm365, %v1766, 0
  %v1769 = vand.u32 %v1760, %v1767
  %1771 = vmatpush.bf16.msra.mxu0 0
  %1772 = vmatpush.bf16.msra.mxu0 0
  %1773 = vmatpush.bf16.msra.mxu0 0
  %1774 = vmatpush.bf16.msra.mxu0 0
  %1775 = vmatpush.bf16.msra.mxu0 0
  %1776 = vmatpush.bf16.msra.mxu0 0
  %1777 = vmatpush.bf16.msra.mxu0 0
  %1778 = vmatpush.bf16.msra.mxu0 %v1769
  %1779 = vmatmul.bf16.gmra.mxu0 %v1763
  %v1780 = vpop.f32.mrf.mxu0
  %v1781 = vadd.f32 0.0, %v1780
  %v1782 = vpop.f32.mrf.mxu0
  %1783 = vdwg.mxu0
  %v1784 = vmul.f32 %v1781, %v139
  %v1785 = vadd.f32 %v1784, 0.0
  %v1786 = vmul.f32 %v1715, %v143
  %v1787 = vpack.c.bf16 %v1786, %v1786
  %v1789 = vsel %vm280, %v1787, 0
  %1791 = vmatpush.bf16.xpose.msra.mxu0 0
  %1792 = vmatpush.bf16.xpose.msra.mxu0 0
  %1793 = vmatpush.bf16.xpose.msra.mxu0 0
  %1794 = vmatpush.bf16.xpose.msra.mxu0 0
  %1795 = vmatpush.bf16.xpose.msra.mxu0 0
  %1796 = vmatpush.bf16.xpose.msra.mxu0 0
  %1797 = vmatpush.bf16.xpose.msra.mxu0 0
  %1798 = vmatpush.bf16.xpose.msra.mxu0 %v1731
  %1799 = vmatmul.bf16.gmra.mxu0 %v1789
  %v1800 = vpop.f32.mrf.mxu0
  %v1801 = vadd.f32 %v1720, %v1800
  %v1802 = vpop.f32.mrf.mxu0
  %1803 = vdwg.mxu0
  %v1804 = vsel %vm1746, %v1801, -inf
  %1805 = vmax.xlane.f32.xlu0 %v1804
  %v1806 = vpop.xlane.xlu0 %1805
  %v1807 = vsub.f32 %v1801, %v1806
  %v1808 = vmul.f32 %v1807, 1.442695
  %v1809 = vpow.pop %v1808
  %v1810 = vsel %vm1746, %v1809, 0.0
  %1811 = vadd.xlane.f32.xlu0 %v1810
  %v1812 = vpop.xlane.xlu0 %1811
  %v1813 = vrcp.pop %v1812
  %v1814 = vmul.f32 %v1809, %v1813
  %v1815 = vpack.c.bf16 %v1814, %v1814
  %v1817 = vsel %vm1761, %v1815, 0
  %1819 = vmatpush.bf16.msra.mxu0 0
  %1820 = vmatpush.bf16.msra.mxu0 0
  %1821 = vmatpush.bf16.msra.mxu0 0
  %1822 = vmatpush.bf16.msra.mxu0 0
  %1823 = vmatpush.bf16.msra.mxu0 0
  %1824 = vmatpush.bf16.msra.mxu0 0
  %1825 = vmatpush.bf16.msra.mxu0 0
  %1826 = vmatpush.bf16.msra.mxu0 %v1769
  %1827 = vmatmul.bf16.gmra.mxu0 %v1817
  %v1828 = vpop.f32.mrf.mxu0
  %v1829 = vadd.f32 0.0, %v1828
  %v1830 = vpop.f32.mrf.mxu0
  %1831 = vdwg.mxu0
  %v1832 = vmul.f32 %v1829, %v143
  %v1833 = vadd.f32 %v1785, %v1832
  %v1834 = vmul.f32 %v1715, %v147
  %v1835 = vpack.c.bf16 %v1834, %v1834
  %v1837 = vsel %vm280, %v1835, 0
  %1839 = vmatpush.bf16.xpose.msra.mxu0 0
  %1840 = vmatpush.bf16.xpose.msra.mxu0 0
  %1841 = vmatpush.bf16.xpose.msra.mxu0 0
  %1842 = vmatpush.bf16.xpose.msra.mxu0 0
  %1843 = vmatpush.bf16.xpose.msra.mxu0 0
  %1844 = vmatpush.bf16.xpose.msra.mxu0 0
  %1845 = vmatpush.bf16.xpose.msra.mxu0 0
  %1846 = vmatpush.bf16.xpose.msra.mxu0 %v1731
  %1847 = vmatmul.bf16.gmra.mxu0 %v1837
  %v1848 = vpop.f32.mrf.mxu0
  %v1849 = vadd.f32 %v1720, %v1848
  %v1850 = vpop.f32.mrf.mxu0
  %1851 = vdwg.mxu0
  %v1852 = vsel %vm1746, %v1849, -inf
  %1853 = vmax.xlane.f32.xlu0 %v1852
  %v1854 = vpop.xlane.xlu0 %1853
  %v1855 = vsub.f32 %v1849, %v1854
  %v1856 = vmul.f32 %v1855, 1.442695
  %v1857 = vpow.pop %v1856
  %v1858 = vsel %vm1746, %v1857, 0.0
  %1859 = vadd.xlane.f32.xlu0 %v1858
  %v1860 = vpop.xlane.xlu0 %1859
  %v1861 = vrcp.pop %v1860
  %v1862 = vmul.f32 %v1857, %v1861
  %v1863 = vpack.c.bf16 %v1862, %v1862
  %v1865 = vsel %vm1761, %v1863, 0
  %1867 = vmatpush.bf16.msra.mxu0 0
  %1868 = vmatpush.bf16.msra.mxu0 0
  %1869 = vmatpush.bf16.msra.mxu0 0
  %1870 = vmatpush.bf16.msra.mxu0 0
  %1871 = vmatpush.bf16.msra.mxu0 0
  %1872 = vmatpush.bf16.msra.mxu0 0
  %1873 = vmatpush.bf16.msra.mxu0 0
  %1874 = vmatpush.bf16.msra.mxu0 %v1769
  %1875 = vmatmul.bf16.gmra.mxu0 %v1865
  %v1876 = vpop.f32.mrf.mxu0
  %v1877 = vadd.f32 0.0, %v1876
  %v1878 = vpop.f32.mrf.mxu0
  %1879 = vdwg.mxu0
  %v1880 = vmul.f32 %v1877, %v147
  %v1881 = vadd.f32 %v1833, %v1880
  %v1882 = vmul.f32 %v1715, %v151
  %v1883 = vpack.c.bf16 %v1882, %v1882
  %v1885 = vsel %vm280, %v1883, 0
  %1887 = vmatpush.bf16.xpose.msra.mxu0 0
  %1888 = vmatpush.bf16.xpose.msra.mxu0 0
  %1889 = vmatpush.bf16.xpose.msra.mxu0 0
  %1890 = vmatpush.bf16.xpose.msra.mxu0 0
  %1891 = vmatpush.bf16.xpose.msra.mxu0 0
  %1892 = vmatpush.bf16.xpose.msra.mxu0 0
  %1893 = vmatpush.bf16.xpose.msra.mxu0 0
  %1894 = vmatpush.bf16.xpose.msra.mxu0 %v1731
  %1895 = vmatmul.bf16.gmra.mxu0 %v1885
  %v1896 = vpop.f32.mrf.mxu0
  %v1897 = vadd.f32 %v1720, %v1896
  %v1898 = vpop.f32.mrf.mxu0
  %1899 = vdwg.mxu0
  %v1900 = vsel %vm1746, %v1897, -inf
  %1901 = vmax.xlane.f32.xlu0 %v1900
  %v1902 = vpop.xlane.xlu0 %1901
  %v1903 = vsub.f32 %v1897, %v1902
  %v1904 = vmul.f32 %v1903, 1.442695
  %v1905 = vpow.pop %v1904
  %v1906 = vsel %vm1746, %v1905, 0.0
  %1907 = vadd.xlane.f32.xlu0 %v1906
  %v1908 = vpop.xlane.xlu0 %1907
  %v1909 = vrcp.pop %v1908
  %v1910 = vmul.f32 %v1905, %v1909
  %v1911 = vpack.c.bf16 %v1910, %v1910
  %v1913 = vsel %vm1761, %v1911, 0
  %1915 = vmatpush.bf16.msra.mxu0 0
  %1916 = vmatpush.bf16.msra.mxu0 0
  %1917 = vmatpush.bf16.msra.mxu0 0
  %1918 = vmatpush.bf16.msra.mxu0 0
  %1919 = vmatpush.bf16.msra.mxu0 0
  %1920 = vmatpush.bf16.msra.mxu0 0
  %1921 = vmatpush.bf16.msra.mxu0 0
  %1922 = vmatpush.bf16.msra.mxu0 %v1769
  %1923 = vmatmul.bf16.gmra.mxu0 %v1913
  %v1924 = vpop.f32.mrf.mxu0
  %v1925 = vadd.f32 0.0, %v1924
  %v1926 = vpop.f32.mrf.mxu0
  %1927 = vdwg.mxu0
  %v1928 = vmul.f32 %v1925, %v151
  %v1929 = vadd.f32 %v1881, %v1928
  %v1930 = vperm.slane %v275, 1
  %v1931 = vadd.f32 %v279, %v1930
  %v1932 = vpack.c.bf16 %v1717, %v1715
  %v1933 = vmul.f32 %v1717, %v139
  %v1934 = vpack.c.bf16 %v1933, %v1722
  %v1936 = vshrl.u32 %v1934, 16
  %v1938 = vrot.slane %v1936, 3
  %v1939 = vshll.u32 %v1934, 16
  %v1941 = vrot.slane %v1939, 4
  %v1942 = vor.u32 %v1938, %v1941
  %v1944 = vshrl.u32 %v1932, 16
  %v1946 = vrot.slane %v1944, 3
  %v1947 = vshll.u32 %v1932, 16
  %v1949 = vrot.slane %v1947, 4
  %v1950 = vor.u32 %v1946, %v1949
  %1951 = vrot.lane.b32.xlu0 %v1950, 96
  %v1952 = vpop.permute.xlu0 %1951
  %v1954 = vsel %vm280, %v1942, 0
  %v1957 = vsel %vm280, %v1952, 0
  %1959 = vmatpush.bf16.xpose.msra.mxu0 0
  %1960 = vmatpush.bf16.xpose.msra.mxu0 0
  %1961 = vmatpush.bf16.xpose.msra.mxu0 0
  %1962 = vmatpush.bf16.xpose.msra.mxu0 0
  %1963 = vmatpush.bf16.xpose.msra.mxu0 0
  %1964 = vmatpush.bf16.xpose.msra.mxu0 0
  %1965 = vmatpush.bf16.xpose.msra.mxu0 0
  %1966 = vmatpush.bf16.xpose.msra.mxu0 %v1957
  %1967 = vmatmul.bf16.gmra.mxu0 %v1954
  %v1968 = vpop.f32.mrf.mxu0
  %v1969 = vadd.f32 %v1931, %v1968
  %v1970 = vpop.f32.mrf.mxu0
  %1971 = vdwg.mxu0
  %v1972 = vsel %vm1746, %v1969, -inf
  %1973 = vmax.xlane.f32.xlu0 %v1972
  %v1974 = vpop.xlane.xlu0 %1973
  %v1975 = vsub.f32 %v1969, %v1974
  %v1976 = vmul.f32 %v1975, 1.442695
  %v1977 = vpow.pop %v1976
  %v1978 = vsel %vm1746, %v1977, 0.0
  %1979 = vadd.xlane.f32.xlu0 %v1978
  %v1980 = vpop.xlane.xlu0 %1979
  %v1981 = vrcp.pop %v1980
  %v1982 = vmul.f32 %v1977, %v1981
  %v1983 = vpack.c.bf16 %v1982, %v1982
  %1984 = vrot.lane.b32.xlu0 %v1950, 64
  %v1985 = vpop.permute.xlu0 %1984
  %v1987 = vsel %vm1761, %v1983, 0
  %v1990 = vand.u32 %v1985, %v1767
  %1992 = vmatpush.bf16.msra.mxu0 0
  %1993 = vmatpush.bf16.msra.mxu0 0
  %1994 = vmatpush.bf16.msra.mxu0 0
  %1995 = vmatpush.bf16.msra.mxu0 0
  %1996 = vmatpush.bf16.msra.mxu0 0
  %1997 = vmatpush.bf16.msra.mxu0 0
  %1998 = vmatpush.bf16.msra.mxu0 0
  %1999 = vmatpush.bf16.msra.mxu0 %v1990
  %2000 = vmatmul.bf16.gmra.mxu0 %v1987
  %v2001 = vpop.f32.mrf.mxu0
  %v2002 = vadd.f32 0.0, %v2001
  %v2003 = vpop.f32.mrf.mxu0
  %2004 = vdwg.mxu0
  %v2005 = vmul.f32 %v2002, %v139
  %v2006 = vadd.f32 %v2005, 0.0
  %v2007 = vmul.f32 %v1717, %v143
  %v2008 = vpack.c.bf16 %v2007, %v1786
  %v2010 = vshrl.u32 %v2008, 16
  %v2012 = vrot.slane %v2010, 3
  %v2013 = vshll.u32 %v2008, 16
  %v2015 = vrot.slane %v2013, 4
  %v2016 = vor.u32 %v2012, %v2015
  %v2018 = vsel %vm280, %v2016, 0
  %2020 = vmatpush.bf16.xpose.msra.mxu0 0
  %2021 = vmatpush.bf16.xpose.msra.mxu0 0
  %2022 = vmatpush.bf16.xpose.msra.mxu0 0
  %2023 = vmatpush.bf16.xpose.msra.mxu0 0
  %2024 = vmatpush.bf16.xpose.msra.mxu0 0
  %2025 = vmatpush.bf16.xpose.msra.mxu0 0
  %2026 = vmatpush.bf16.xpose.msra.mxu0 0
  %2027 = vmatpush.bf16.xpose.msra.mxu0 %v1957
  %2028 = vmatmul.bf16.gmra.mxu0 %v2018
  %v2029 = vpop.f32.mrf.mxu0
  %v2030 = vadd.f32 %v1931, %v2029
  %v2031 = vpop.f32.mrf.mxu0
  %2032 = vdwg.mxu0
  %v2033 = vsel %vm1746, %v2030, -inf
  %2034 = vmax.xlane.f32.xlu0 %v2033
  %v2035 = vpop.xlane.xlu0 %2034
  %v2036 = vsub.f32 %v2030, %v2035
  %v2037 = vmul.f32 %v2036, 1.442695
  %v2038 = vpow.pop %v2037
  %v2039 = vsel %vm1746, %v2038, 0.0
  %2040 = vadd.xlane.f32.xlu0 %v2039
  %v2041 = vpop.xlane.xlu0 %2040
  %v2042 = vrcp.pop %v2041
  %v2043 = vmul.f32 %v2038, %v2042
  %v2044 = vpack.c.bf16 %v2043, %v2043
  %v2046 = vsel %vm1761, %v2044, 0
  %2048 = vmatpush.bf16.msra.mxu0 0
  %2049 = vmatpush.bf16.msra.mxu0 0
  %2050 = vmatpush.bf16.msra.mxu0 0
  %2051 = vmatpush.bf16.msra.mxu0 0
  %2052 = vmatpush.bf16.msra.mxu0 0
  %2053 = vmatpush.bf16.msra.mxu0 0
  %2054 = vmatpush.bf16.msra.mxu0 0
  %2055 = vmatpush.bf16.msra.mxu0 %v1990
  %2056 = vmatmul.bf16.gmra.mxu0 %v2046
  %v2057 = vpop.f32.mrf.mxu0
  %v2058 = vadd.f32 0.0, %v2057
  %v2059 = vpop.f32.mrf.mxu0
  %2060 = vdwg.mxu0
  %v2061 = vmul.f32 %v2058, %v143
  %v2062 = vadd.f32 %v2006, %v2061
  %v2063 = vmul.f32 %v1717, %v147
  %v2064 = vpack.c.bf16 %v2063, %v1834
  %v2066 = vshrl.u32 %v2064, 16
  %v2068 = vrot.slane %v2066, 3
  %v2069 = vshll.u32 %v2064, 16
  %v2071 = vrot.slane %v2069, 4
  %v2072 = vor.u32 %v2068, %v2071
  %v2074 = vsel %vm280, %v2072, 0
  %2076 = vmatpush.bf16.xpose.msra.mxu0 0
  %2077 = vmatpush.bf16.xpose.msra.mxu0 0
  %2078 = vmatpush.bf16.xpose.msra.mxu0 0
  %2079 = vmatpush.bf16.xpose.msra.mxu0 0
  %2080 = vmatpush.bf16.xpose.msra.mxu0 0
  %2081 = vmatpush.bf16.xpose.msra.mxu0 0
  %2082 = vmatpush.bf16.xpose.msra.mxu0 0
  %2083 = vmatpush.bf16.xpose.msra.mxu0 %v1957
  %2084 = vmatmul.bf16.gmra.mxu0 %v2074
  %v2085 = vpop.f32.mrf.mxu0
  %v2086 = vadd.f32 %v1931, %v2085
  %v2087 = vpop.f32.mrf.mxu0
  %2088 = vdwg.mxu0
  %v2089 = vsel %vm1746, %v2086, -inf
  %2090 = vmax.xlane.f32.xlu0 %v2089
  %v2091 = vpop.xlane.xlu0 %2090
  %v2092 = vsub.f32 %v2086, %v2091
  %v2093 = vmul.f32 %v2092, 1.442695
  %v2094 = vpow.pop %v2093
  %v2095 = vsel %vm1746, %v2094, 0.0
  %2096 = vadd.xlane.f32.xlu0 %v2095
  %v2097 = vpop.xlane.xlu0 %2096
  %v2098 = vrcp.pop %v2097
  %v2099 = vmul.f32 %v2094, %v2098
  %v2100 = vpack.c.bf16 %v2099, %v2099
  %v2102 = vsel %vm1761, %v2100, 0
  %2104 = vmatpush.bf16.msra.mxu0 0
  %2105 = vmatpush.bf16.msra.mxu0 0
  %2106 = vmatpush.bf16.msra.mxu0 0
  %2107 = vmatpush.bf16.msra.mxu0 0
  %2108 = vmatpush.bf16.msra.mxu0 0
  %2109 = vmatpush.bf16.msra.mxu0 0
  %2110 = vmatpush.bf16.msra.mxu0 0
  %2111 = vmatpush.bf16.msra.mxu0 %v1990
  %2112 = vmatmul.bf16.gmra.mxu0 %v2102
  %v2113 = vpop.f32.mrf.mxu0
  %v2114 = vadd.f32 0.0, %v2113
  %v2115 = vpop.f32.mrf.mxu0
  %2116 = vdwg.mxu0
  %v2117 = vmul.f32 %v2114, %v147
  %v2118 = vadd.f32 %v2062, %v2117
  %v2119 = vmul.f32 %v1717, %v151
  %v2120 = vpack.c.bf16 %v2119, %v1882
  %v2122 = vshrl.u32 %v2120, 16
  %v2124 = vrot.slane %v2122, 3
  %v2125 = vshll.u32 %v2120, 16
  %v2127 = vrot.slane %v2125, 4
  %v2128 = vor.u32 %v2124, %v2127
  %v2130 = vsel %vm280, %v2128, 0
  %2132 = vmatpush.bf16.xpose.msra.mxu0 0
  %2133 = vmatpush.bf16.xpose.msra.mxu0 0
  %2134 = vmatpush.bf16.xpose.msra.mxu0 0
  %2135 = vmatpush.bf16.xpose.msra.mxu0 0
  %2136 = vmatpush.bf16.xpose.msra.mxu0 0
  %2137 = vmatpush.bf16.xpose.msra.mxu0 0
  %2138 = vmatpush.bf16.xpose.msra.mxu0 0
  %2139 = vmatpush.bf16.xpose.msra.mxu0 %v1957
  %2140 = vmatmul.bf16.gmra.mxu0 %v2130
  %v2141 = vpop.f32.mrf.mxu0
  %v2142 = vadd.f32 %v1931, %v2141
  %v2143 = vpop.f32.mrf.mxu0
  %2144 = vdwg.mxu0
  %v2145 = vsel %vm1746, %v2142, -inf
  %2146 = vmax.xlane.f32.xlu0 %v2145
  %v2147 = vpop.xlane.xlu0 %2146
  %v2148 = vsub.f32 %v2142, %v2147
  %v2149 = vmul.f32 %v2148, 1.442695
  %v2150 = vpow.pop %v2149
  %v2151 = vsel %vm1746, %v2150, 0.0
  %2152 = vadd.xlane.f32.xlu0 %v2151
  %v2153 = vpop.xlane.xlu0 %2152
  %v2154 = vrcp.pop %v2153
  %v2155 = vmul.f32 %v2150, %v2154
  %v2156 = vpack.c.bf16 %v2155, %v2155
  %v2158 = vsel %vm1761, %v2156, 0
  %2160 = vmatpush.bf16.msra.mxu0 0
  %2161 = vmatpush.bf16.msra.mxu0 0
  %2162 = vmatpush.bf16.msra.mxu0 0
  %2163 = vmatpush.bf16.msra.mxu0 0
  %2164 = vmatpush.bf16.msra.mxu0 0
  %2165 = vmatpush.bf16.msra.mxu0 0
  %2166 = vmatpush.bf16.msra.mxu0 0
  %2167 = vmatpush.bf16.msra.mxu0 %v1990
  %2168 = vmatmul.bf16.gmra.mxu0 %v2158
  %v2169 = vpop.f32.mrf.mxu0
  %v2170 = vadd.f32 0.0, %v2169
  %v2171 = vpop.f32.mrf.mxu0
  %2172 = vdwg.mxu0
  %v2173 = vmul.f32 %v2170, %v151
  %v2174 = vadd.f32 %v2118, %v2173
  %v2176 = vrot.slane %v2174, 1
  %vm2178 = vcmask 1046528
  %v2179 = vsel %vm2178, %v1929, %v2176
  %v2180 = vld [vmem:[%s57] sm:$0x3f]
  %v2181 = vld [vmem:[%s33] sm:$0xf]
  %v2182 = vld [vmem:[%s33 + $0x4] sm:$0xf]
  %v2183 = vld [vmem:[%s33 + $0x8] sm:$0xf]
  %v2184 = vld [vmem:[%s33 + $0xc] sm:$0xf]
  %v2185 = vpack.c.bf16 %v2176, %v2179
  %v2190 = vunpack.c.l.b16 %v2181
  %v2191 = vunpack.c.l.b16 %v2182
  %v2192 = vunpack.c.l.b16 %v2183
  %v2193 = vunpack.c.l.b16 %v2184
  %v2194 = vpack.c.b16 %v2191, %v2190
  %v2195 = vpack.c.b16 %v2193, %v2192
  %v2199 = vsel %vm280, %v2185, 0
  %2201 = vmatpush.bf16.msra.mxu0 0
  %2202 = vmatpush.bf16.msra.mxu0 0
  %2203 = vmatpush.bf16.msra.mxu0 0
  %2204 = vmatpush.bf16.msra.mxu0 0
  %2205 = vmatpush.bf16.msra.mxu0 0
  %2206 = vmatpush.bf16.msra.mxu0 0
  %2207 = vmatpush.bf16.msra.mxu0 %v2195
  %2208 = vmatpush.bf16.msra.mxu0 %v2194
  %2209 = vmatmul.bf16.gmra.mxu0 %v2199
  %v2210 = vpop.f32.mrf.mxu0
  %v2211 = vadd.f32 0.0, %v2210
  %v2212 = vpop.f32.mrf.mxu0
  %v2213 = vadd.f32 0.0, %v2212
  %2214 = vdwg.mxu0
  %v2215 = vadd.f32 %v266, %v2211
  %v2216 = vadd.f32 %v268, %v2213
  %v2217 = vld [vmem:[%s35] sm:$0x1]
  %v2219 = vperm.slane %v2217, 0
  %v2221 = vadd.f32 %v2215, %v2219
  %v2222 = vadd.f32 %v2216, %v2219
  %v2223 = vsel %vm280, %v2221, 0.0
  %2224 = vadd.xlane.f32.xlu0 %v2223
  %v2225 = vpop.xlane.xlu0 %2224
  %vm2226 = vcmask 259072
  %v2227 = vsel %vm2226, %v2222, 0.0
  %2228 = vadd.xlane.f32.xlu0 %v2227
  %v2229 = vpop.xlane.xlu0 %2228
  %v2230 = vmul.f32 %v2225, %v788
  %v2231 = vmul.f32 %v2229, %v788
  %v2232 = vsub.f32 %v2221, %v2230
  %v2233 = vsub.f32 %v2222, %v2231
  %v2234 = vmul.f32 %v2232, %v2232
  %v2235 = vmul.f32 %v2233, %v2233
  %v2236 = vsel %vm280, %v2234, 0.0
  %2237 = vadd.xlane.f32.xlu0 %v2236
  %v2238 = vpop.xlane.xlu0 %2237
  %v2239 = vsel %vm2226, %v2235, 0.0
  %2240 = vadd.xlane.f32.xlu0 %v2239
  %v2241 = vpop.xlane.xlu0 %2240
  %v2242 = vmul.f32 %v2238, %v788
  %v2243 = vmul.f32 %v2241, %v788
  %v2244 = vadd.f32 %v2242, 1e-05
  %v2245 = vadd.f32 %v2243, 1e-05
  %v2246 = vrsqrt.pop %v2244
  %v2247 = vmul.f32 %v2246, %v2244
  %v2248 = vmul.f32 %v2247, %v2246
  %v2249 = vmul.f32 0.5, %v2248
  %v2250 = vsub.f32 1.5, %v2249
  %v2251 = vmul.f32 %v2246, %v2250
  %vm2252 = vweird.f32 %v2244
  %vm2253 = vweird.f32 %v2246
  %vm2254 = vmor %vm2252, %vm2253
  %v2255 = vsel %vm2254, %v2246, %v2251
  %v2256 = vrsqrt.pop %v2245
  %v2257 = vmul.f32 %v2256, %v2245
  %v2258 = vmul.f32 %v2257, %v2256
  %v2259 = vmul.f32 0.5, %v2258
  %v2260 = vsub.f32 1.5, %v2259
  %v2261 = vmul.f32 %v2256, %v2260
  %vm2262 = vweird.f32 %v2245
  %vm2263 = vweird.f32 %v2256
  %vm2264 = vmor %vm2262, %vm2263
  %v2265 = vsel %vm2264, %v2256, %v2261
  %v2266 = vmul.f32 %v2232, %v2255
  %v2267 = vmul.f32 %v2233, %v2265
  %v2268 = vperm.slane %v2180, 0
  %v2269 = vmul.f32 %v2266, %v2268
  %v2270 = vmul.f32 %v2267, %v2268
  %v2271 = vperm.slane %v2180, 1
  %v2272 = vadd.f32 %v2269, %v2271
  %v2273 = vadd.f32 %v2270, %v2271
  %v2274 = vld [vmem:[%s37] sm:$0xf]
  %v2275 = vld [vmem:[%s37 + $0x4] sm:$0xf]
  %v2276 = vld [vmem:[%s37 + $0x8] sm:$0xf]
  %v2277 = vld [vmem:[%s37 + $0xc] sm:$0xf]
  %v2278 = vpack.c.bf16 %v2273, %v2272
  %v2279 = vld [vmem:[%s39] sm:$0x1]
  %v2281 = vperm.slane %v2279, 0
  %v2287 = vunpack.c.l.b16 %v2274
  %v2288 = vunpack.c.l.b16 %v2275
  %v2289 = vunpack.c.l.b16 %v2276
  %v2290 = vunpack.c.l.b16 %v2277
  %v2291 = vpack.c.b16 %v2288, %v2287
  %v2292 = vpack.c.b16 %v2290, %v2289
  %v2296 = vsel %vm280, %v2278, 0
  %2298 = vmatpush.bf16.msra.mxu0 0
  %2299 = vmatpush.bf16.msra.mxu0 0
  %2300 = vmatpush.bf16.msra.mxu0 0
  %2301 = vmatpush.bf16.msra.mxu0 0
  %2302 = vmatpush.bf16.msra.mxu0 0
  %2303 = vmatpush.bf16.msra.mxu0 0
  %2304 = vmatpush.bf16.msra.mxu0 %v2292
  %2305 = vmatpush.bf16.msra.mxu0 %v2291
  %2306 = vmatmul.bf16.gmra.mxu0 %v2296
  %v2307 = vpop.f32.mrf.mxu0
  %v2308 = vadd.f32 %v2281, %v2307
  %v2309 = vpop.f32.mrf.mxu0
  %v2310 = vadd.f32 %v2281, %v2309
  %2311 = vdwg.mxu0
  %v2312 = vld [vmem:[%s41] sm:$0xf]
  %v2313 = vld [vmem:[%s41 + $0x4] sm:$0xf]
  %v2314 = vld [vmem:[%s41 + $0x8] sm:$0xf]
  %v2315 = vld [vmem:[%s41 + $0xc] sm:$0xf]
  %v2316 = vpack.c.bf16 %v1680, %v1679
  %v2317 = vld [vmem:[%s43] sm:$0x1]
  %v2319 = vperm.slane %v2317, 0
  %v2325 = vunpack.c.l.b16 %v2312
  %v2326 = vunpack.c.l.b16 %v2313
  %v2327 = vunpack.c.l.b16 %v2314
  %v2328 = vunpack.c.l.b16 %v2315
  %v2329 = vpack.c.b16 %v2326, %v2325
  %v2330 = vpack.c.b16 %v2328, %v2327
  %v2334 = vsel %vm280, %v2316, 0
  %2336 = vmatpush.bf16.msra.mxu0 0
  %2337 = vmatpush.bf16.msra.mxu0 0
  %2338 = vmatpush.bf16.msra.mxu0 0
  %2339 = vmatpush.bf16.msra.mxu0 0
  %2340 = vmatpush.bf16.msra.mxu0 0
  %2341 = vmatpush.bf16.msra.mxu0 0
  %2342 = vmatpush.bf16.msra.mxu0 %v2330
  %2343 = vmatpush.bf16.msra.mxu0 %v2329
  %2344 = vmatmul.bf16.gmra.mxu0 %v2334
  %v2345 = vpop.f32.mrf.mxu0
  %v2346 = vadd.f32 %v2319, %v2345
  %v2347 = vpop.f32.mrf.mxu0
  %v2348 = vadd.f32 %v2319, %v2347
  %2349 = vdwg.mxu0
  %v2350 = vpack.c.bf16 %v2346, %v2346
  %v2351 = vmul.f32 %v2308, %v139
  %v2352 = vpack.c.bf16 %v2351, %v2351
  %v2354 = vsel %vm280, %v2352, 0
  %v2357 = vsel %vm280, %v2350, 0
  %2359 = vmatpush.bf16.xpose.msra.mxu0 0
  %2360 = vmatpush.bf16.xpose.msra.mxu0 0
  %2361 = vmatpush.bf16.xpose.msra.mxu0 0
  %2362 = vmatpush.bf16.xpose.msra.mxu0 0
  %2363 = vmatpush.bf16.xpose.msra.mxu0 0
  %2364 = vmatpush.bf16.xpose.msra.mxu0 0
  %2365 = vmatpush.bf16.xpose.msra.mxu0 0
  %2366 = vmatpush.bf16.xpose.msra.mxu0 %v2357
  %2367 = vmatmul.bf16.gmra.mxu0 %v2354
  %v2368 = vpop.f32.mrf.mxu0
  %v2369 = vadd.f32 %v324, %v2368
  %v2370 = vpop.f32.mrf.mxu0
  %2371 = vdwg.mxu0
  %vm2372 = vcmask 63488
  %v2373 = vsel %vm2372, %v2369, -inf
  %2374 = vmax.xlane.f32.xlu0 %v2373
  %v2375 = vpop.xlane.xlu0 %2374
  %v2376 = vsub.f32 %v2369, %v2375
  %v2377 = vmul.f32 %v2376, 1.442695
  %v2378 = vpow.pop %v2377
  %v2379 = vsel %vm2372, %v2378, 0.0
  %2380 = vadd.xlane.f32.xlu0 %v2379
  %v2381 = vpop.xlane.xlu0 %2380
  %v2382 = vrcp.pop %v2381
  %v2383 = vmul.f32 %v2378, %v2382
  %v2384 = vpack.c.bf16 %v2383, %v2383
  %2386 = vrot.lane.b32.xlu0 %v2350, 96
  %v2387 = vpop.permute.xlu0 %2386
  %v2389 = vsel %vm347, %v2384, 0
  %v2392 = vsel %vm365, %v2387, 0
  %2394 = vmatpush.bf16.msra.mxu0 0
  %2395 = vmatpush.bf16.msra.mxu0 0
  %2396 = vmatpush.bf16.msra.mxu0 0
  %2397 = vmatpush.bf16.msra.mxu0 0
  %2398 = vmatpush.bf16.msra.mxu0 0
  %2399 = vmatpush.bf16.msra.mxu0 0
  %2400 = vmatpush.bf16.msra.mxu0 0
  %2401 = vmatpush.bf16.msra.mxu0 %v2392
  %2402 = vmatmul.bf16.gmra.mxu0 %v2389
  %v2403 = vpop.f32.mrf.mxu0
  %v2404 = vadd.f32 0.0, %v2403
  %v2405 = vpop.f32.mrf.mxu0
  %2406 = vdwg.mxu0
  %v2407 = vmul.f32 %v2404, %v139
  %v2408 = vadd.f32 %v2407, 0.0
  %v2409 = vmul.f32 %v2308, %v143
  %v2410 = vpack.c.bf16 %v2409, %v2409
  %v2412 = vsel %vm280, %v2410, 0
  %2414 = vmatpush.bf16.xpose.msra.mxu0 0
  %2415 = vmatpush.bf16.xpose.msra.mxu0 0
  %2416 = vmatpush.bf16.xpose.msra.mxu0 0
  %2417 = vmatpush.bf16.xpose.msra.mxu0 0
  %2418 = vmatpush.bf16.xpose.msra.mxu0 0
  %2419 = vmatpush.bf16.xpose.msra.mxu0 0
  %2420 = vmatpush.bf16.xpose.msra.mxu0 0
  %2421 = vmatpush.bf16.xpose.msra.mxu0 %v2357
  %2422 = vmatmul.bf16.gmra.mxu0 %v2412
  %v2423 = vpop.f32.mrf.mxu0
  %v2424 = vadd.f32 %v324, %v2423
  %v2425 = vpop.f32.mrf.mxu0
  %2426 = vdwg.mxu0
  %v2427 = vsel %vm2372, %v2424, -inf
  %2428 = vmax.xlane.f32.xlu0 %v2427
  %v2429 = vpop.xlane.xlu0 %2428
  %v2430 = vsub.f32 %v2424, %v2429
  %v2431 = vmul.f32 %v2430, 1.442695
  %v2432 = vpow.pop %v2431
  %v2433 = vsel %vm2372, %v2432, 0.0
  %2434 = vadd.xlane.f32.xlu0 %v2433
  %v2435 = vpop.xlane.xlu0 %2434
  %v2436 = vrcp.pop %v2435
  %v2437 = vmul.f32 %v2432, %v2436
  %v2438 = vpack.c.bf16 %v2437, %v2437
  %v2440 = vsel %vm347, %v2438, 0
  %2442 = vmatpush.bf16.msra.mxu0 0
  %2443 = vmatpush.bf16.msra.mxu0 0
  %2444 = vmatpush.bf16.msra.mxu0 0
  %2445 = vmatpush.bf16.msra.mxu0 0
  %2446 = vmatpush.bf16.msra.mxu0 0
  %2447 = vmatpush.bf16.msra.mxu0 0
  %2448 = vmatpush.bf16.msra.mxu0 0
  %2449 = vmatpush.bf16.msra.mxu0 %v2392
  %2450 = vmatmul.bf16.gmra.mxu0 %v2440
  %v2451 = vpop.f32.mrf.mxu0
  %v2452 = vadd.f32 0.0, %v2451
  %v2453 = vpop.f32.mrf.mxu0
  %2454 = vdwg.mxu0
  %v2455 = vmul.f32 %v2452, %v143
  %v2456 = vadd.f32 %v2408, %v2455
  %v2457 = vmul.f32 %v2308, %v147
  %v2458 = vpack.c.bf16 %v2457, %v2457
  %v2460 = vsel %vm280, %v2458, 0
  %2462 = vmatpush.bf16.xpose.msra.mxu0 0
  %2463 = vmatpush.bf16.xpose.msra.mxu0 0
  %2464 = vmatpush.bf16.xpose.msra.mxu0 0
  %2465 = vmatpush.bf16.xpose.msra.mxu0 0
  %2466 = vmatpush.bf16.xpose.msra.mxu0 0
  %2467 = vmatpush.bf16.xpose.msra.mxu0 0
  %2468 = vmatpush.bf16.xpose.msra.mxu0 0
  %2469 = vmatpush.bf16.xpose.msra.mxu0 %v2357
  %2470 = vmatmul.bf16.gmra.mxu0 %v2460
  %v2471 = vpop.f32.mrf.mxu0
  %v2472 = vadd.f32 %v324, %v2471
  %v2473 = vpop.f32.mrf.mxu0
  %2474 = vdwg.mxu0
  %v2475 = vsel %vm2372, %v2472, -inf
  %2476 = vmax.xlane.f32.xlu0 %v2475
  %v2477 = vpop.xlane.xlu0 %2476
  %v2478 = vsub.f32 %v2472, %v2477
  %v2479 = vmul.f32 %v2478, 1.442695
  %v2480 = vpow.pop %v2479
  %v2481 = vsel %vm2372, %v2480, 0.0
  %2482 = vadd.xlane.f32.xlu0 %v2481
  %v2483 = vpop.xlane.xlu0 %2482
  %v2484 = vrcp.pop %v2483
  %v2485 = vmul.f32 %v2480, %v2484
  %v2486 = vpack.c.bf16 %v2485, %v2485
  %v2488 = vsel %vm347, %v2486, 0
  %2490 = vmatpush.bf16.msra.mxu0 0
  %2491 = vmatpush.bf16.msra.mxu0 0
  %2492 = vmatpush.bf16.msra.mxu0 0
  %2493 = vmatpush.bf16.msra.mxu0 0
  %2494 = vmatpush.bf16.msra.mxu0 0
  %2495 = vmatpush.bf16.msra.mxu0 0
  %2496 = vmatpush.bf16.msra.mxu0 0
  %2497 = vmatpush.bf16.msra.mxu0 %v2392
  %2498 = vmatmul.bf16.gmra.mxu0 %v2488
  %v2499 = vpop.f32.mrf.mxu0
  %v2500 = vadd.f32 0.0, %v2499
  %v2501 = vpop.f32.mrf.mxu0
  %2502 = vdwg.mxu0
  %v2503 = vmul.f32 %v2500, %v147
  %v2504 = vadd.f32 %v2456, %v2503
  %v2505 = vmul.f32 %v2308, %v151
  %v2506 = vpack.c.bf16 %v2505, %v2505
  %v2508 = vsel %vm280, %v2506, 0
  %2510 = vmatpush.bf16.xpose.msra.mxu0 0
  %2511 = vmatpush.bf16.xpose.msra.mxu0 0
  %2512 = vmatpush.bf16.xpose.msra.mxu0 0
  %2513 = vmatpush.bf16.xpose.msra.mxu0 0
  %2514 = vmatpush.bf16.xpose.msra.mxu0 0
  %2515 = vmatpush.bf16.xpose.msra.mxu0 0
  %2516 = vmatpush.bf16.xpose.msra.mxu0 0
  %2517 = vmatpush.bf16.xpose.msra.mxu0 %v2357
  %2518 = vmatmul.bf16.gmra.mxu0 %v2508
  %v2519 = vpop.f32.mrf.mxu0
  %v2520 = vadd.f32 %v324, %v2519
  %v2521 = vpop.f32.mrf.mxu0
  %2522 = vdwg.mxu0
  %v2523 = vsel %vm2372, %v2520, -inf
  %2524 = vmax.xlane.f32.xlu0 %v2523
  %v2525 = vpop.xlane.xlu0 %2524
  %v2526 = vsub.f32 %v2520, %v2525
  %v2527 = vmul.f32 %v2526, 1.442695
  %v2528 = vpow.pop %v2527
  %v2529 = vsel %vm2372, %v2528, 0.0
  %2530 = vadd.xlane.f32.xlu0 %v2529
  %v2531 = vpop.xlane.xlu0 %2530
  %v2532 = vrcp.pop %v2531
  %v2533 = vmul.f32 %v2528, %v2532
  %v2534 = vpack.c.bf16 %v2533, %v2533
  %v2536 = vsel %vm347, %v2534, 0
  %2538 = vmatpush.bf16.msra.mxu0 0
  %2539 = vmatpush.bf16.msra.mxu0 0
  %2540 = vmatpush.bf16.msra.mxu0 0
  %2541 = vmatpush.bf16.msra.mxu0 0
  %2542 = vmatpush.bf16.msra.mxu0 0
  %2543 = vmatpush.bf16.msra.mxu0 0
  %2544 = vmatpush.bf16.msra.mxu0 0
  %2545 = vmatpush.bf16.msra.mxu0 %v2392
  %2546 = vmatmul.bf16.gmra.mxu0 %v2536
  %v2547 = vpop.f32.mrf.mxu0
  %v2548 = vadd.f32 0.0, %v2547
  %v2549 = vpop.f32.mrf.mxu0
  %2550 = vdwg.mxu0
  %v2551 = vmul.f32 %v2548, %v151
  %v2552 = vadd.f32 %v2504, %v2551
  %v2553 = vpack.c.bf16 %v2348, %v2348
  %v2554 = vmul.f32 %v2310, %v139
  %v2555 = vpack.c.bf16 %v2554, %v2351
  %v2557 = vshrl.u32 %v2555, 16
  %v2559 = vrot.slane %v2557, 3
  %v2560 = vshll.u32 %v2555, 16
  %v2562 = vrot.slane %v2560, 4
  %v2563 = vor.u32 %v2559, %v2562
  %v2565 = vsel %vm280, %v2563, 0
  %v2568 = vsel %vm280, %v2553, 0
  %2570 = vmatpush.bf16.xpose.msra.mxu0 0
  %2571 = vmatpush.bf16.xpose.msra.mxu0 0
  %2572 = vmatpush.bf16.xpose.msra.mxu0 0
  %2573 = vmatpush.bf16.xpose.msra.mxu0 0
  %2574 = vmatpush.bf16.xpose.msra.mxu0 0
  %2575 = vmatpush.bf16.xpose.msra.mxu0 0
  %2576 = vmatpush.bf16.xpose.msra.mxu0 0
  %2577 = vmatpush.bf16.xpose.msra.mxu0 %v2568
  %2578 = vmatmul.bf16.gmra.mxu0 %v2565
  %v2579 = vpop.f32.mrf.mxu0
  %v2580 = vadd.f32 %v531, %v2579
  %v2581 = vpop.f32.mrf.mxu0
  %2582 = vdwg.mxu0
  %v2583 = vsel %vm2372, %v2580, -inf
  %2584 = vmax.xlane.f32.xlu0 %v2583
  %v2585 = vpop.xlane.xlu0 %2584
  %v2586 = vsub.f32 %v2580, %v2585
  %v2587 = vmul.f32 %v2586, 1.442695
  %v2588 = vpow.pop %v2587
  %v2589 = vsel %vm2372, %v2588, 0.0
  %2590 = vadd.xlane.f32.xlu0 %v2589
  %v2591 = vpop.xlane.xlu0 %2590
  %v2592 = vrcp.pop %v2591
  %v2593 = vmul.f32 %v2588, %v2592
  %v2594 = vpack.c.bf16 %v2593, %v2593
  %2596 = vrot.lane.b32.xlu0 %v2553, 96
  %v2597 = vpop.permute.xlu0 %2596
  %v2599 = vsel %vm347, %v2594, 0
  %v2602 = vsel %vm365, %v2597, 0
  %2604 = vmatpush.bf16.msra.mxu0 0
  %2605 = vmatpush.bf16.msra.mxu0 0
  %2606 = vmatpush.bf16.msra.mxu0 0
  %2607 = vmatpush.bf16.msra.mxu0 0
  %2608 = vmatpush.bf16.msra.mxu0 0
  %2609 = vmatpush.bf16.msra.mxu0 0
  %2610 = vmatpush.bf16.msra.mxu0 0
  %2611 = vmatpush.bf16.msra.mxu0 %v2602
  %2612 = vmatmul.bf16.gmra.mxu0 %v2599
  %v2613 = vpop.f32.mrf.mxu0
  %v2614 = vadd.f32 0.0, %v2613
  %v2615 = vpop.f32.mrf.mxu0
  %2616 = vdwg.mxu0
  %v2617 = vmul.f32 %v2614, %v139
  %v2618 = vadd.f32 %v2617, 0.0
  %v2619 = vmul.f32 %v2310, %v143
  %v2620 = vpack.c.bf16 %v2619, %v2409
  %v2622 = vshrl.u32 %v2620, 16
  %v2624 = vrot.slane %v2622, 3
  %v2625 = vshll.u32 %v2620, 16
  %v2627 = vrot.slane %v2625, 4
  %v2628 = vor.u32 %v2624, %v2627
  %v2630 = vsel %vm280, %v2628, 0
  %2632 = vmatpush.bf16.xpose.msra.mxu0 0
  %2633 = vmatpush.bf16.xpose.msra.mxu0 0
  %2634 = vmatpush.bf16.xpose.msra.mxu0 0
  %2635 = vmatpush.bf16.xpose.msra.mxu0 0
  %2636 = vmatpush.bf16.xpose.msra.mxu0 0
  %2637 = vmatpush.bf16.xpose.msra.mxu0 0
  %2638 = vmatpush.bf16.xpose.msra.mxu0 0
  %2639 = vmatpush.bf16.xpose.msra.mxu0 %v2568
  %2640 = vmatmul.bf16.gmra.mxu0 %v2630
  %v2641 = vpop.f32.mrf.mxu0
  %v2642 = vadd.f32 %v531, %v2641
  %v2643 = vpop.f32.mrf.mxu0
  %2644 = vdwg.mxu0
  %v2645 = vsel %vm2372, %v2642, -inf
  %2646 = vmax.xlane.f32.xlu0 %v2645
  %v2647 = vpop.xlane.xlu0 %2646
  %v2648 = vsub.f32 %v2642, %v2647
  %v2649 = vmul.f32 %v2648, 1.442695
  %v2650 = vpow.pop %v2649
  %v2651 = vsel %vm2372, %v2650, 0.0
  %2652 = vadd.xlane.f32.xlu0 %v2651
  %v2653 = vpop.xlane.xlu0 %2652
  %v2654 = vrcp.pop %v2653
  %v2655 = vmul.f32 %v2650, %v2654
  %v2656 = vpack.c.bf16 %v2655, %v2655
  %v2658 = vsel %vm347, %v2656, 0
  %2660 = vmatpush.bf16.msra.mxu0 0
  %2661 = vmatpush.bf16.msra.mxu0 0
  %2662 = vmatpush.bf16.msra.mxu0 0
  %2663 = vmatpush.bf16.msra.mxu0 0
  %2664 = vmatpush.bf16.msra.mxu0 0
  %2665 = vmatpush.bf16.msra.mxu0 0
  %2666 = vmatpush.bf16.msra.mxu0 0
  %2667 = vmatpush.bf16.msra.mxu0 %v2602
  %2668 = vmatmul.bf16.gmra.mxu0 %v2658
  %v2669 = vpop.f32.mrf.mxu0
  %v2670 = vadd.f32 0.0, %v2669
  %v2671 = vpop.f32.mrf.mxu0
  %2672 = vdwg.mxu0
  %v2673 = vmul.f32 %v2670, %v143
  %v2674 = vadd.f32 %v2618, %v2673
  %v2675 = vmul.f32 %v2310, %v147
  %v2676 = vpack.c.bf16 %v2675, %v2457
  %v2678 = vshrl.u32 %v2676, 16
  %v2680 = vrot.slane %v2678, 3
  %v2681 = vshll.u32 %v2676, 16
  %v2683 = vrot.slane %v2681, 4
  %v2684 = vor.u32 %v2680, %v2683
  %v2686 = vsel %vm280, %v2684, 0
  %2688 = vmatpush.bf16.xpose.msra.mxu0 0
  %2689 = vmatpush.bf16.xpose.msra.mxu0 0
  %2690 = vmatpush.bf16.xpose.msra.mxu0 0
  %2691 = vmatpush.bf16.xpose.msra.mxu0 0
  %2692 = vmatpush.bf16.xpose.msra.mxu0 0
  %2693 = vmatpush.bf16.xpose.msra.mxu0 0
  %2694 = vmatpush.bf16.xpose.msra.mxu0 0
  %2695 = vmatpush.bf16.xpose.msra.mxu0 %v2568
  %2696 = vmatmul.bf16.gmra.mxu0 %v2686
  %v2697 = vpop.f32.mrf.mxu0
  %v2698 = vadd.f32 %v531, %v2697
  %v2699 = vpop.f32.mrf.mxu0
  %2700 = vdwg.mxu0
  %v2701 = vsel %vm2372, %v2698, -inf
  %2702 = vmax.xlane.f32.xlu0 %v2701
  %v2703 = vpop.xlane.xlu0 %2702
  %v2704 = vsub.f32 %v2698, %v2703
  %v2705 = vmul.f32 %v2704, 1.442695
  %v2706 = vpow.pop %v2705
  %v2707 = vsel %vm2372, %v2706, 0.0
  %2708 = vadd.xlane.f32.xlu0 %v2707
  %v2709 = vpop.xlane.xlu0 %2708
  %v2710 = vrcp.pop %v2709
  %v2711 = vmul.f32 %v2706, %v2710
  %v2712 = vpack.c.bf16 %v2711, %v2711
  %v2714 = vsel %vm347, %v2712, 0
  %2716 = vmatpush.bf16.msra.mxu0 0
  %2717 = vmatpush.bf16.msra.mxu0 0
  %2718 = vmatpush.bf16.msra.mxu0 0
  %2719 = vmatpush.bf16.msra.mxu0 0
  %2720 = vmatpush.bf16.msra.mxu0 0
  %2721 = vmatpush.bf16.msra.mxu0 0
  %2722 = vmatpush.bf16.msra.mxu0 0
  %2723 = vmatpush.bf16.msra.mxu0 %v2602
  %2724 = vmatmul.bf16.gmra.mxu0 %v2714
  %v2725 = vpop.f32.mrf.mxu0
  %v2726 = vadd.f32 0.0, %v2725
  %v2727 = vpop.f32.mrf.mxu0
  %2728 = vdwg.mxu0
  %v2729 = vmul.f32 %v2726, %v147
  %v2730 = vadd.f32 %v2674, %v2729
  %v2731 = vmul.f32 %v2310, %v151
  %v2732 = vpack.c.bf16 %v2731, %v2505
  %v2734 = vshrl.u32 %v2732, 16
  %v2736 = vrot.slane %v2734, 3
  %v2737 = vshll.u32 %v2732, 16
  %v2739 = vrot.slane %v2737, 4
  %v2740 = vor.u32 %v2736, %v2739
  %v2742 = vsel %vm280, %v2740, 0
  %2744 = vmatpush.bf16.xpose.msra.mxu0 0
  %2745 = vmatpush.bf16.xpose.msra.mxu0 0
  %2746 = vmatpush.bf16.xpose.msra.mxu0 0
  %2747 = vmatpush.bf16.xpose.msra.mxu0 0
  %2748 = vmatpush.bf16.xpose.msra.mxu0 0
  %2749 = vmatpush.bf16.xpose.msra.mxu0 0
  %2750 = vmatpush.bf16.xpose.msra.mxu0 0
  %2751 = vmatpush.bf16.xpose.msra.mxu0 %v2568
  %2752 = vmatmul.bf16.gmra.mxu0 %v2742
  %v2753 = vpop.f32.mrf.mxu0
  %v2754 = vadd.f32 %v531, %v2753
  %v2755 = vpop.f32.mrf.mxu0
  %2756 = vdwg.mxu0
  %v2757 = vsel %vm2372, %v2754, -inf
  %2758 = vmax.xlane.f32.xlu0 %v2757
  %v2759 = vpop.xlane.xlu0 %2758
  %v2760 = vsub.f32 %v2754, %v2759
  %v2761 = vmul.f32 %v2760, 1.442695
  %v2762 = vpow.pop %v2761
  %v2763 = vsel %vm2372, %v2762, 0.0
  %2764 = vadd.xlane.f32.xlu0 %v2763
  %v2765 = vpop.xlane.xlu0 %2764
  %v2766 = vrcp.pop %v2765
  %v2767 = vmul.f32 %v2762, %v2766
  %v2768 = vpack.c.bf16 %v2767, %v2767
  %v2770 = vsel %vm347, %v2768, 0
  %2772 = vmatpush.bf16.msra.mxu0 0
  %2773 = vmatpush.bf16.msra.mxu0 0
  %2774 = vmatpush.bf16.msra.mxu0 0
  %2775 = vmatpush.bf16.msra.mxu0 0
  %2776 = vmatpush.bf16.msra.mxu0 0
  %2777 = vmatpush.bf16.msra.mxu0 0
  %2778 = vmatpush.bf16.msra.mxu0 0
  %2779 = vmatpush.bf16.msra.mxu0 %v2602
  %2780 = vmatmul.bf16.gmra.mxu0 %v2770
  %v2781 = vpop.f32.mrf.mxu0
  %v2782 = vadd.f32 0.0, %v2781
  %v2783 = vpop.f32.mrf.mxu0
  %2784 = vdwg.mxu0
  %v2785 = vmul.f32 %v2782, %v151
  %v2786 = vadd.f32 %v2730, %v2785
  %v2788 = vrot.slane %v2786, 1
  %v2790 = vsel %vm2178, %v2552, %v2788
  %v2791 = vld [vmem:[%s45] sm:$0xf]
  %v2792 = vld [vmem:[%s45 + $0x4] sm:$0xf]
  %v2793 = vld [vmem:[%s45 + $0x8] sm:$0xf]
  %v2794 = vld [vmem:[%s45 + $0xc] sm:$0xf]
  %v2795 = vpack.c.bf16 %v2788, %v2790
  %v2800 = vunpack.c.l.b16 %v2791
  %v2801 = vunpack.c.l.b16 %v2792
  %v2802 = vunpack.c.l.b16 %v2793
  %v2803 = vunpack.c.l.b16 %v2794
  %v2804 = vpack.c.b16 %v2801, %v2800
  %v2805 = vpack.c.b16 %v2803, %v2802
  %v2809 = vsel %vm280, %v2795, 0
  %2811 = vmatpush.bf16.msra.mxu0 0
  %2812 = vmatpush.bf16.msra.mxu0 0
  %2813 = vmatpush.bf16.msra.mxu0 0
  %2814 = vmatpush.bf16.msra.mxu0 0
  %2815 = vmatpush.bf16.msra.mxu0 0
  %2816 = vmatpush.bf16.msra.mxu0 0
  %2817 = vmatpush.bf16.msra.mxu0 %v2805
  %2818 = vmatpush.bf16.msra.mxu0 %v2804
  %2819 = vmatmul.bf16.gmra.mxu0 %v2809
  %v2820 = vpop.f32.mrf.mxu0
  %v2821 = vadd.f32 0.0, %v2820
  %v2822 = vpop.f32.mrf.mxu0
  %v2823 = vadd.f32 0.0, %v2822
  %2824 = vdwg.mxu0
  %v2825 = vadd.f32 %v2272, %v2821
  %v2826 = vadd.f32 %v2273, %v2823
  %v2827 = vld [vmem:[%s47] sm:$0x1]
  %v2829 = vperm.slane %v2827, 0
  %v2831 = vadd.f32 %v2825, %v2829
  %v2832 = vadd.f32 %v2826, %v2829
  %v2833 = vsel %vm280, %v2831, 0.0
  %2834 = vadd.xlane.f32.xlu0 %v2833
  %v2835 = vpop.xlane.xlu0 %2834
  %v2836 = vsel %vm2226, %v2832, 0.0
  %2837 = vadd.xlane.f32.xlu0 %v2836
  %v2838 = vpop.xlane.xlu0 %2837
  %v2839 = vmul.f32 %v2835, %v788
  %v2840 = vmul.f32 %v2838, %v788
  %v2841 = vsub.f32 %v2831, %v2839
  %v2842 = vsub.f32 %v2832, %v2840
  %v2843 = vmul.f32 %v2841, %v2841
  %v2844 = vmul.f32 %v2842, %v2842
  %v2845 = vsel %vm280, %v2843, 0.0
  %2846 = vadd.xlane.f32.xlu0 %v2845
  %v2847 = vpop.xlane.xlu0 %2846
  %v2848 = vsel %vm2226, %v2844, 0.0
  %2849 = vadd.xlane.f32.xlu0 %v2848
  %v2850 = vpop.xlane.xlu0 %2849
  %v2851 = vmul.f32 %v2847, %v788
  %v2852 = vmul.f32 %v2850, %v788
  %v2853 = vadd.f32 %v2851, 1e-05
  %v2854 = vadd.f32 %v2852, 1e-05
  %v2855 = vrsqrt.pop %v2853
  %v2856 = vmul.f32 %v2855, %v2853
  %v2857 = vmul.f32 %v2856, %v2855
  %v2858 = vmul.f32 0.5, %v2857
  %v2859 = vsub.f32 1.5, %v2858
  %v2860 = vmul.f32 %v2855, %v2859
  %vm2861 = vweird.f32 %v2853
  %vm2862 = vweird.f32 %v2855
  %vm2863 = vmor %vm2861, %vm2862
  %v2864 = vsel %vm2863, %v2855, %v2860
  %v2865 = vrsqrt.pop %v2854
  %v2866 = vmul.f32 %v2865, %v2854
  %v2867 = vmul.f32 %v2866, %v2865
  %v2868 = vmul.f32 0.5, %v2867
  %v2869 = vsub.f32 1.5, %v2868
  %v2870 = vmul.f32 %v2865, %v2869
  %vm2871 = vweird.f32 %v2854
  %vm2872 = vweird.f32 %v2865
  %vm2873 = vmor %vm2871, %vm2872
  %v2874 = vsel %vm2873, %v2865, %v2870
  %v2875 = vmul.f32 %v2841, %v2864
  %v2876 = vmul.f32 %v2842, %v2874
  %v2877 = vperm.slane %v2180, 2
  %v2878 = vmul.f32 %v2875, %v2877
  %v2879 = vmul.f32 %v2876, %v2877
  %v2880 = vperm.slane %v2180, 3
  %v2881 = vadd.f32 %v2878, %v2880
  %v2882 = vadd.f32 %v2879, %v2880
  %v2883 = vld [vmem:[%s49] sm:$0xf]
  %v2884 = vld [vmem:[%s49 + $0x4] sm:$0xf]
  %v2885 = vld [vmem:[%s49 + $0x8] sm:$0xf]
  %v2886 = vld [vmem:[%s49 + $0xc] sm:$0xf]
  %v2887 = vpack.c.bf16 %v2882, %v2881
  %v2888 = vld [vmem:[%s51] sm:$0x1]
  %v2890 = vperm.slane %v2888, 0
  %v2896 = vunpack.c.l.b16 %v2883
  %v2897 = vunpack.c.l.b16 %v2884
  %v2898 = vunpack.c.l.b16 %v2885
  %v2899 = vunpack.c.l.b16 %v2886
  %v2900 = vpack.c.b16 %v2897, %v2896
  %v2901 = vpack.c.b16 %v2899, %v2898
  %v2905 = vsel %vm280, %v2887, 0
  %2907 = vmatpush.bf16.msra.mxu0 0
  %2908 = vmatpush.bf16.msra.mxu0 0
  %2909 = vmatpush.bf16.msra.mxu0 0
  %2910 = vmatpush.bf16.msra.mxu0 0
  %2911 = vmatpush.bf16.msra.mxu0 0
  %2912 = vmatpush.bf16.msra.mxu0 0
  %2913 = vmatpush.bf16.msra.mxu0 %v2901
  %2914 = vmatpush.bf16.msra.mxu0 %v2900
  %2915 = vmatmul.bf16.gmra.mxu0 %v2905
  %v2916 = vpop.f32.mrf.mxu0
  %v2917 = vadd.f32 %v2890, %v2916
  %v2918 = vpop.f32.mrf.mxu0
  %v2919 = vadd.f32 %v2890, %v2918
  %2920 = vdwg.mxu0
  %v2921 = vmax.f32 %v2917, 0.0
  %v2922 = vmax.f32 %v2919, 0.0
  %v2923 = vld [vmem:[%s53] sm:$0xf]
  %v2924 = vld [vmem:[%s53 + $0x4] sm:$0xf]
  %v2925 = vld [vmem:[%s53 + $0x8] sm:$0xf]
  %v2926 = vld [vmem:[%s53 + $0xc] sm:$0xf]
  %v2927 = vld [vmem:[%s53 + $0x10] sm:$0xf]
  %v2928 = vld [vmem:[%s53 + $0x14] sm:$0xf]
  %v2929 = vld [vmem:[%s53 + $0x18] sm:$0xf]
  %v2930 = vld [vmem:[%s53 + $0x1c] sm:$0xf]
  %v2931 = vpack.c.bf16 %v2922, %v2921
  %v2940 = vunpack.c.l.b16 %v2923
  %v2941 = vunpack.c.l.b16 %v2924
  %v2942 = vunpack.c.l.b16 %v2925
  %v2943 = vunpack.c.l.b16 %v2926
  %v2944 = vunpack.c.l.b16 %v2927
  %v2945 = vunpack.c.l.b16 %v2928
  %v2946 = vunpack.c.l.b16 %v2929
  %v2947 = vunpack.c.l.b16 %v2930
  %v2948 = vpack.c.b16 %v2941, %v2940
  %v2949 = vpack.c.b16 %v2943, %v2942
  %v2950 = vpack.c.b16 %v2945, %v2944
  %v2951 = vpack.c.b16 %v2947, %v2946
  %v2957 = vsel %vm906, %v2931, 0
  %2959 = vmatpush.bf16.msra.mxu0 0
  %2960 = vmatpush.bf16.msra.mxu0 0
  %2961 = vmatpush.bf16.msra.mxu0 0
  %2962 = vmatpush.bf16.msra.mxu0 0
  %2963 = vmatpush.bf16.msra.mxu0 %v2951
  %2964 = vmatpush.bf16.msra.mxu0 %v2950
  %2965 = vmatpush.bf16.msra.mxu0 %v2949
  %2966 = vmatpush.bf16.msra.mxu0 %v2948
  %2967 = vmatmul.bf16.gmra.mxu0 %v2957
  %v2968 = vpop.f32.mrf.mxu0
  %v2969 = vadd.f32 0.0, %v2968
  %v2970 = vpop.f32.mrf.mxu0
  %v2971 = vadd.f32 0.0, %v2970
  %2972 = vdwg.mxu0
  %v2973 = vadd.f32 %v2881, %v2969
  %v2974 = vadd.f32 %v2882, %v2971
  %v2975 = vld [vmem:[%s55] sm:$0x1]
  %v2977 = vperm.slane %v2975, 0
  %v2979 = vadd.f32 %v2973, %v2977
  %v2980 = vadd.f32 %v2974, %v2977
  %v2981 = vsel %vm280, %v2979, 0.0
  %2982 = vadd.xlane.f32.xlu0 %v2981
  %v2983 = vpop.xlane.xlu0 %2982
  %v2984 = vsel %vm2226, %v2980, 0.0
  %2985 = vadd.xlane.f32.xlu0 %v2984
  %v2986 = vpop.xlane.xlu0 %2985
  %v2987 = vmul.f32 %v2983, %v788
  %v2988 = vmul.f32 %v2986, %v788
  %v2989 = vsub.f32 %v2979, %v2987
  %v2990 = vsub.f32 %v2980, %v2988
  %v2991 = vmul.f32 %v2989, %v2989
  %v2992 = vmul.f32 %v2990, %v2990
  %v2993 = vsel %vm280, %v2991, 0.0
  %2994 = vadd.xlane.f32.xlu0 %v2993
  %v2995 = vpop.xlane.xlu0 %2994
  %v2996 = vsel %vm2226, %v2992, 0.0
  %2997 = vadd.xlane.f32.xlu0 %v2996
  %v2998 = vpop.xlane.xlu0 %2997
  %v2999 = vmul.f32 %v2995, %v788
  %v3000 = vmul.f32 %v2998, %v788
  %v3001 = vadd.f32 %v2999, 1e-05
  %v3002 = vadd.f32 %v3000, 1e-05
  %v3003 = vrsqrt.pop %v3001
  %v3004 = vmul.f32 %v3003, %v3001
  %v3005 = vmul.f32 %v3004, %v3003
  %v3006 = vmul.f32 0.5, %v3005
  %v3007 = vsub.f32 1.5, %v3006
  %v3008 = vmul.f32 %v3003, %v3007
  %vm3009 = vweird.f32 %v3001
  %vm3010 = vweird.f32 %v3003
  %vm3011 = vmor %vm3009, %vm3010
  %v3012 = vsel %vm3011, %v3003, %v3008
  %v3013 = vrsqrt.pop %v3002
  %v3014 = vmul.f32 %v3013, %v3002
  %v3015 = vmul.f32 %v3014, %v3013
  %v3016 = vmul.f32 0.5, %v3015
  %v3017 = vsub.f32 1.5, %v3016
  %v3018 = vmul.f32 %v3013, %v3017
  %vm3019 = vweird.f32 %v3002
  %vm3020 = vweird.f32 %v3013
  %vm3021 = vmor %vm3019, %vm3020
  %v3022 = vsel %vm3021, %v3013, %v3018
  %v3023 = vmul.f32 %v2989, %v3012
  %v3024 = vmul.f32 %v2990, %v3022
  %v3025 = vperm.slane %v2180, 4
  %v3026 = vmul.f32 %v3023, %v3025
  %v3027 = vmul.f32 %v3024, %v3025
  %v3028 = vperm.slane %v2180, 5
  %v3029 = vadd.f32 %v3026, %v3028
  %v3030 = vadd.f32 %v3027, %v3028
  %s3031 = scalar_lea.vmem %s29, 16
  %v3032 = vld [vmem:[%s3031] sm:$0xf]
  %v3033 = vld [vmem:[%s3031 + $0x4] sm:$0xf]
  %v3034 = vld [vmem:[%s3031 + $0x8] sm:$0xf]
  %v3035 = vld [vmem:[%s3031 + $0xc] sm:$0xf]
  %s3036 = scalar_lea.vmem %s31, 1
  %v3037 = vld [vmem:[%s3036] sm:$0x1]
  %v3038 = vpack.c.bf16 %v3030, %v3029
  %v3040 = vperm.slane %v3037, 0
  %v3046 = vunpack.c.l.b16 %v3032
  %v3047 = vunpack.c.l.b16 %v3033
  %v3048 = vunpack.c.l.b16 %v3034
  %v3049 = vunpack.c.l.b16 %v3035
  %v3050 = vpack.c.b16 %v3047, %v3046
  %v3051 = vpack.c.b16 %v3049, %v3048
  %v3055 = vsel %vm280, %v3038, 0
  %3057 = vmatpush.bf16.msra.mxu0 0
  %3058 = vmatpush.bf16.msra.mxu0 0
  %3059 = vmatpush.bf16.msra.mxu0 0
  %3060 = vmatpush.bf16.msra.mxu0 0
  %3061 = vmatpush.bf16.msra.mxu0 0
  %3062 = vmatpush.bf16.msra.mxu0 0
  %3063 = vmatpush.bf16.msra.mxu0 %v3051
  %3064 = vmatpush.bf16.msra.mxu0 %v3050
  %3065 = vmatmul.bf16.gmra.mxu0 %v3055
  %v3066 = vpop.f32.mrf.mxu0
  %v3067 = vadd.f32 %v3040, %v3066
  %v3068 = vpop.f32.mrf.mxu0
  %v3069 = vadd.f32 %v3040, %v3068
  %3070 = vdwg.mxu0
  %v3071 = vpack.c.bf16 %v3067, %v3067
  %v3072 = vmul.f32 %v3067, %v139
  %v3073 = vpack.c.bf16 %v3072, %v3072
  %3075 = vrot.lane.b32.xlu0 %v3071, 96
  %v3076 = vpop.permute.xlu0 %3075
  %v3078 = vsel %vm280, %v3073, 0
  %v3081 = vsel %vm280, %v3076, 0
  %3083 = vmatpush.bf16.xpose.msra.mxu0 0
  %3084 = vmatpush.bf16.xpose.msra.mxu0 0
  %3085 = vmatpush.bf16.xpose.msra.mxu0 0
  %3086 = vmatpush.bf16.xpose.msra.mxu0 0
  %3087 = vmatpush.bf16.xpose.msra.mxu0 0
  %3088 = vmatpush.bf16.xpose.msra.mxu0 0
  %3089 = vmatpush.bf16.xpose.msra.mxu0 0
  %3090 = vmatpush.bf16.xpose.msra.mxu0 %v3081
  %3091 = vmatmul.bf16.gmra.mxu0 %v3078
  %v3092 = vpop.f32.mrf.mxu0
  %v3093 = vadd.f32 %v1720, %v3092
  %v3094 = vpop.f32.mrf.mxu0
  %3095 = vdwg.mxu0
  %v3096 = vsel %vm1746, %v3093, -inf
  %3097 = vmax.xlane.f32.xlu0 %v3096
  %v3098 = vpop.xlane.xlu0 %3097
  %v3099 = vsub.f32 %v3093, %v3098
  %v3100 = vmul.f32 %v3099, 1.442695
  %v3101 = vpow.pop %v3100
  %v3102 = vsel %vm1746, %v3101, 0.0
  %3103 = vadd.xlane.f32.xlu0 %v3102
  %v3104 = vpop.xlane.xlu0 %3103
  %v3105 = vrcp.pop %v3104
  %v3106 = vmul.f32 %v3101, %v3105
  %v3107 = vpack.c.bf16 %v3106, %v3106
  %3108 = vrot.lane.b32.xlu0 %v3071, 64
  %v3109 = vpop.permute.xlu0 %3108
  %v3111 = vsel %vm1761, %v3107, 0
  %v3114 = vand.u32 %v3109, %v1767
  %3116 = vmatpush.bf16.msra.mxu0 0
  %3117 = vmatpush.bf16.msra.mxu0 0
  %3118 = vmatpush.bf16.msra.mxu0 0
  %3119 = vmatpush.bf16.msra.mxu0 0
  %3120 = vmatpush.bf16.msra.mxu0 0
  %3121 = vmatpush.bf16.msra.mxu0 0
  %3122 = vmatpush.bf16.msra.mxu0 0
  %3123 = vmatpush.bf16.msra.mxu0 %v3114
  %3124 = vmatmul.bf16.gmra.mxu0 %v3111
  %v3125 = vpop.f32.mrf.mxu0
  %v3126 = vadd.f32 0.0, %v3125
  %v3127 = vpop.f32.mrf.mxu0
  %3128 = vdwg.mxu0
  %v3129 = vmul.f32 %v3126, %v139
  %v3130 = vadd.f32 %v3129, 0.0
  %v3131 = vmul.f32 %v3067, %v143
  %v3132 = vpack.c.bf16 %v3131, %v3131
  %v3134 = vsel %vm280, %v3132, 0
  %3136 = vmatpush.bf16.xpose.msra.mxu0 0
  %3137 = vmatpush.bf16.xpose.msra.mxu0 0
  %3138 = vmatpush.bf16.xpose.msra.mxu0 0
  %3139 = vmatpush.bf16.xpose.msra.mxu0 0
  %3140 = vmatpush.bf16.xpose.msra.mxu0 0
  %3141 = vmatpush.bf16.xpose.msra.mxu0 0
  %3142 = vmatpush.bf16.xpose.msra.mxu0 0
  %3143 = vmatpush.bf16.xpose.msra.mxu0 %v3081
  %3144 = vmatmul.bf16.gmra.mxu0 %v3134
  %v3145 = vpop.f32.mrf.mxu0
  %v3146 = vadd.f32 %v1720, %v3145
  %v3147 = vpop.f32.mrf.mxu0
  %3148 = vdwg.mxu0
  %v3149 = vsel %vm1746, %v3146, -inf
  %3150 = vmax.xlane.f32.xlu0 %v3149
  %v3151 = vpop.xlane.xlu0 %3150
  %v3152 = vsub.f32 %v3146, %v3151
  %v3153 = vmul.f32 %v3152, 1.442695
  %v3154 = vpow.pop %v3153
  %v3155 = vsel %vm1746, %v3154, 0.0
  %3156 = vadd.xlane.f32.xlu0 %v3155
  %v3157 = vpop.xlane.xlu0 %3156
  %v3158 = vrcp.pop %v3157
  %v3159 = vmul.f32 %v3154, %v3158
  %v3160 = vpack.c.bf16 %v3159, %v3159
  %v3162 = vsel %vm1761, %v3160, 0
  %3164 = vmatpush.bf16.msra.mxu0 0
  %3165 = vmatpush.bf16.msra.mxu0 0
  %3166 = vmatpush.bf16.msra.mxu0 0
  %3167 = vmatpush.bf16.msra.mxu0 0
  %3168 = vmatpush.bf16.msra.mxu0 0
  %3169 = vmatpush.bf16.msra.mxu0 0
  %3170 = vmatpush.bf16.msra.mxu0 0
  %3171 = vmatpush.bf16.msra.mxu0 %v3114
  %3172 = vmatmul.bf16.gmra.mxu0 %v3162
  %v3173 = vpop.f32.mrf.mxu0
  %v3174 = vadd.f32 0.0, %v3173
  %v3175 = vpop.f32.mrf.mxu0
  %3176 = vdwg.mxu0
  %v3177 = vmul.f32 %v3174, %v143
  %v3178 = vadd.f32 %v3130, %v3177
  %v3179 = vmul.f32 %v3067, %v147
  %v3180 = vpack.c.bf16 %v3179, %v3179
  %v3182 = vsel %vm280, %v3180, 0
  %3184 = vmatpush.bf16.xpose.msra.mxu0 0
  %3185 = vmatpush.bf16.xpose.msra.mxu0 0
  %3186 = vmatpush.bf16.xpose.msra.mxu0 0
  %3187 = vmatpush.bf16.xpose.msra.mxu0 0
  %3188 = vmatpush.bf16.xpose.msra.mxu0 0
  %3189 = vmatpush.bf16.xpose.msra.mxu0 0
  %3190 = vmatpush.bf16.xpose.msra.mxu0 0
  %3191 = vmatpush.bf16.xpose.msra.mxu0 %v3081
  %3192 = vmatmul.bf16.gmra.mxu0 %v3182
  %v3193 = vpop.f32.mrf.mxu0
  %v3194 = vadd.f32 %v1720, %v3193
  %v3195 = vpop.f32.mrf.mxu0
  %3196 = vdwg.mxu0
  %v3197 = vsel %vm1746, %v3194, -inf
  %3198 = vmax.xlane.f32.xlu0 %v3197
  %v3199 = vpop.xlane.xlu0 %3198
  %v3200 = vsub.f32 %v3194, %v3199
  %v3201 = vmul.f32 %v3200, 1.442695
  %v3202 = vpow.pop %v3201
  %v3203 = vsel %vm1746, %v3202, 0.0
  %3204 = vadd.xlane.f32.xlu0 %v3203
  %v3205 = vpop.xlane.xlu0 %3204
  %v3206 = vrcp.pop %v3205
  %v3207 = vmul.f32 %v3202, %v3206
  %v3208 = vpack.c.bf16 %v3207, %v3207
  %v3210 = vsel %vm1761, %v3208, 0
  %3212 = vmatpush.bf16.msra.mxu0 0
  %3213 = vmatpush.bf16.msra.mxu0 0
  %3214 = vmatpush.bf16.msra.mxu0 0
  %3215 = vmatpush.bf16.msra.mxu0 0
  %3216 = vmatpush.bf16.msra.mxu0 0
  %3217 = vmatpush.bf16.msra.mxu0 0
  %3218 = vmatpush.bf16.msra.mxu0 0
  %3219 = vmatpush.bf16.msra.mxu0 %v3114
  %3220 = vmatmul.bf16.gmra.mxu0 %v3210
  %v3221 = vpop.f32.mrf.mxu0
  %v3222 = vadd.f32 0.0, %v3221
  %v3223 = vpop.f32.mrf.mxu0
  %3224 = vdwg.mxu0
  %v3225 = vmul.f32 %v3222, %v147
  %v3226 = vadd.f32 %v3178, %v3225
  %v3227 = vmul.f32 %v3067, %v151
  %v3228 = vpack.c.bf16 %v3227, %v3227
  %v3230 = vsel %vm280, %v3228, 0
  %3232 = vmatpush.bf16.xpose.msra.mxu0 0
  %3233 = vmatpush.bf16.xpose.msra.mxu0 0
  %3234 = vmatpush.bf16.xpose.msra.mxu0 0
  %3235 = vmatpush.bf16.xpose.msra.mxu0 0
  %3236 = vmatpush.bf16.xpose.msra.mxu0 0
  %3237 = vmatpush.bf16.xpose.msra.mxu0 0
  %3238 = vmatpush.bf16.xpose.msra.mxu0 0
  %3239 = vmatpush.bf16.xpose.msra.mxu0 %v3081
  %3240 = vmatmul.bf16.gmra.mxu0 %v3230
  %v3241 = vpop.f32.mrf.mxu0
  %v3242 = vadd.f32 %v1720, %v3241
  %v3243 = vpop.f32.mrf.mxu0
  %3244 = vdwg.mxu0
  %v3245 = vsel %vm1746, %v3242, -inf
  %3246 = vmax.xlane.f32.xlu0 %v3245
  %v3247 = vpop.xlane.xlu0 %3246
  %v3248 = vsub.f32 %v3242, %v3247
  %v3249 = vmul.f32 %v3248, 1.442695
  %v3250 = vpow.pop %v3249
  %v3251 = vsel %vm1746, %v3250, 0.0
  %3252 = vadd.xlane.f32.xlu0 %v3251
  %v3253 = vpop.xlane.xlu0 %3252
  %v3254 = vrcp.pop %v3253
  %v3255 = vmul.f32 %v3250, %v3254
  %v3256 = vpack.c.bf16 %v3255, %v3255
  %v3258 = vsel %vm1761, %v3256, 0
  %3260 = vmatpush.bf16.msra.mxu0 0
  %3261 = vmatpush.bf16.msra.mxu0 0
  %3262 = vmatpush.bf16.msra.mxu0 0
  %3263 = vmatpush.bf16.msra.mxu0 0
  %3264 = vmatpush.bf16.msra.mxu0 0
  %3265 = vmatpush.bf16.msra.mxu0 0
  %3266 = vmatpush.bf16.msra.mxu0 0
  %3267 = vmatpush.bf16.msra.mxu0 %v3114
  %3268 = vmatmul.bf16.gmra.mxu0 %v3258
  %v3269 = vpop.f32.mrf.mxu0
  %v3270 = vadd.f32 0.0, %v3269
  %v3271 = vpop.f32.mrf.mxu0
  %3272 = vdwg.mxu0
  %v3273 = vmul.f32 %v3270, %v151
  %v3274 = vadd.f32 %v3226, %v3273
  %v3275 = vpack.c.bf16 %v3069, %v3067
  %v3276 = vmul.f32 %v3069, %v139
  %v3277 = vpack.c.bf16 %v3276, %v3072
  %v3279 = vshrl.u32 %v3277, 16
  %v3281 = vrot.slane %v3279, 3
  %v3282 = vshll.u32 %v3277, 16
  %v3284 = vrot.slane %v3282, 4
  %v3285 = vor.u32 %v3281, %v3284
  %v3287 = vshrl.u32 %v3275, 16
  %v3289 = vrot.slane %v3287, 3
  %v3290 = vshll.u32 %v3275, 16
  %v3292 = vrot.slane %v3290, 4
  %v3293 = vor.u32 %v3289, %v3292
  %3294 = vrot.lane.b32.xlu0 %v3293, 96
  %v3295 = vpop.permute.xlu0 %3294
  %v3297 = vsel %vm280, %v3285, 0
  %v3300 = vsel %vm280, %v3295, 0
  %3302 = vmatpush.bf16.xpose.msra.mxu0 0
  %3303 = vmatpush.bf16.xpose.msra.mxu0 0
  %3304 = vmatpush.bf16.xpose.msra.mxu0 0
  %3305 = vmatpush.bf16.xpose.msra.mxu0 0
  %3306 = vmatpush.bf16.xpose.msra.mxu0 0
  %3307 = vmatpush.bf16.xpose.msra.mxu0 0
  %3308 = vmatpush.bf16.xpose.msra.mxu0 0
  %3309 = vmatpush.bf16.xpose.msra.mxu0 %v3300
  %3310 = vmatmul.bf16.gmra.mxu0 %v3297
  %v3311 = vpop.f32.mrf.mxu0
  %v3312 = vadd.f32 %v1931, %v3311
  %v3313 = vpop.f32.mrf.mxu0
  %3314 = vdwg.mxu0
  %v3315 = vsel %vm1746, %v3312, -inf
  %3316 = vmax.xlane.f32.xlu0 %v3315
  %v3317 = vpop.xlane.xlu0 %3316
  %v3318 = vsub.f32 %v3312, %v3317
  %v3319 = vmul.f32 %v3318, 1.442695
  %v3320 = vpow.pop %v3319
  %v3321 = vsel %vm1746, %v3320, 0.0
  %3322 = vadd.xlane.f32.xlu0 %v3321
  %v3323 = vpop.xlane.xlu0 %3322
  %v3324 = vrcp.pop %v3323
  %v3325 = vmul.f32 %v3320, %v3324
  %v3326 = vpack.c.bf16 %v3325, %v3325
  %3327 = vrot.lane.b32.xlu0 %v3293, 64
  %v3328 = vpop.permute.xlu0 %3327
  %v3330 = vsel %vm1761, %v3326, 0
  %v3333 = vand.u32 %v3328, %v1767
  %3335 = vmatpush.bf16.msra.mxu0 0
  %3336 = vmatpush.bf16.msra.mxu0 0
  %3337 = vmatpush.bf16.msra.mxu0 0
  %3338 = vmatpush.bf16.msra.mxu0 0
  %3339 = vmatpush.bf16.msra.mxu0 0
  %3340 = vmatpush.bf16.msra.mxu0 0
  %3341 = vmatpush.bf16.msra.mxu0 0
  %3342 = vmatpush.bf16.msra.mxu0 %v3333
  %3343 = vmatmul.bf16.gmra.mxu0 %v3330
  %v3344 = vpop.f32.mrf.mxu0
  %v3345 = vadd.f32 0.0, %v3344
  %v3346 = vpop.f32.mrf.mxu0
  %3347 = vdwg.mxu0
  %v3348 = vmul.f32 %v3345, %v139
  %v3349 = vadd.f32 %v3348, 0.0
  %v3350 = vmul.f32 %v3069, %v143
  %v3351 = vpack.c.bf16 %v3350, %v3131
  %v3353 = vshrl.u32 %v3351, 16
  %v3355 = vrot.slane %v3353, 3
  %v3356 = vshll.u32 %v3351, 16
  %v3358 = vrot.slane %v3356, 4
  %v3359 = vor.u32 %v3355, %v3358
  %v3361 = vsel %vm280, %v3359, 0
  %3363 = vmatpush.bf16.xpose.msra.mxu0 0
  %3364 = vmatpush.bf16.xpose.msra.mxu0 0
  %3365 = vmatpush.bf16.xpose.msra.mxu0 0
  %3366 = vmatpush.bf16.xpose.msra.mxu0 0
  %3367 = vmatpush.bf16.xpose.msra.mxu0 0
  %3368 = vmatpush.bf16.xpose.msra.mxu0 0
  %3369 = vmatpush.bf16.xpose.msra.mxu0 0
  %3370 = vmatpush.bf16.xpose.msra.mxu0 %v3300
  %3371 = vmatmul.bf16.gmra.mxu0 %v3361
  %v3372 = vpop.f32.mrf.mxu0
  %v3373 = vadd.f32 %v1931, %v3372
  %v3374 = vpop.f32.mrf.mxu0
  %3375 = vdwg.mxu0
  %v3376 = vsel %vm1746, %v3373, -inf
  %3377 = vmax.xlane.f32.xlu0 %v3376
  %v3378 = vpop.xlane.xlu0 %3377
  %v3379 = vsub.f32 %v3373, %v3378
  %v3380 = vmul.f32 %v3379, 1.442695
  %v3381 = vpow.pop %v3380
  %v3382 = vsel %vm1746, %v3381, 0.0
  %3383 = vadd.xlane.f32.xlu0 %v3382
  %v3384 = vpop.xlane.xlu0 %3383
  %v3385 = vrcp.pop %v3384
  %v3386 = vmul.f32 %v3381, %v3385
  %v3387 = vpack.c.bf16 %v3386, %v3386
  %v3389 = vsel %vm1761, %v3387, 0
  %3391 = vmatpush.bf16.msra.mxu0 0
  %3392 = vmatpush.bf16.msra.mxu0 0
  %3393 = vmatpush.bf16.msra.mxu0 0
  %3394 = vmatpush.bf16.msra.mxu0 0
  %3395 = vmatpush.bf16.msra.mxu0 0
  %3396 = vmatpush.bf16.msra.mxu0 0
  %3397 = vmatpush.bf16.msra.mxu0 0
  %3398 = vmatpush.bf16.msra.mxu0 %v3333
  %3399 = vmatmul.bf16.gmra.mxu0 %v3389
  %v3400 = vpop.f32.mrf.mxu0
  %v3401 = vadd.f32 0.0, %v3400
  %v3402 = vpop.f32.mrf.mxu0
  %3403 = vdwg.mxu0
  %v3404 = vmul.f32 %v3401, %v143
  %v3405 = vadd.f32 %v3349, %v3404
  %v3406 = vmul.f32 %v3069, %v147
  %v3407 = vpack.c.bf16 %v3406, %v3179
  %v3409 = vshrl.u32 %v3407, 16
  %v3411 = vrot.slane %v3409, 3
  %v3412 = vshll.u32 %v3407, 16
  %v3414 = vrot.slane %v3412, 4
  %v3415 = vor.u32 %v3411, %v3414
  %v3417 = vsel %vm280, %v3415, 0
  %3419 = vmatpush.bf16.xpose.msra.mxu0 0
  %3420 = vmatpush.bf16.xpose.msra.mxu0 0
  %3421 = vmatpush.bf16.xpose.msra.mxu0 0
  %3422 = vmatpush.bf16.xpose.msra.mxu0 0
  %3423 = vmatpush.bf16.xpose.msra.mxu0 0
  %3424 = vmatpush.bf16.xpose.msra.mxu0 0
  %3425 = vmatpush.bf16.xpose.msra.mxu0 0
  %3426 = vmatpush.bf16.xpose.msra.mxu0 %v3300
  %3427 = vmatmul.bf16.gmra.mxu0 %v3417
  %v3428 = vpop.f32.mrf.mxu0
  %v3429 = vadd.f32 %v1931, %v3428
  %v3430 = vpop.f32.mrf.mxu0
  %3431 = vdwg.mxu0
  %v3432 = vsel %vm1746, %v3429, -inf
  %3433 = vmax.xlane.f32.xlu0 %v3432
  %v3434 = vpop.xlane.xlu0 %3433
  %v3435 = vsub.f32 %v3429, %v3434
  %v3436 = vmul.f32 %v3435, 1.442695
  %v3437 = vpow.pop %v3436
  %v3438 = vsel %vm1746, %v3437, 0.0
  %3439 = vadd.xlane.f32.xlu0 %v3438
  %v3440 = vpop.xlane.xlu0 %3439
  %v3441 = vrcp.pop %v3440
  %v3442 = vmul.f32 %v3437, %v3441
  %v3443 = vpack.c.bf16 %v3442, %v3442
  %v3445 = vsel %vm1761, %v3443, 0
  %3447 = vmatpush.bf16.msra.mxu0 0
  %3448 = vmatpush.bf16.msra.mxu0 0
  %3449 = vmatpush.bf16.msra.mxu0 0
  %3450 = vmatpush.bf16.msra.mxu0 0
  %3451 = vmatpush.bf16.msra.mxu0 0
  %3452 = vmatpush.bf16.msra.mxu0 0
  %3453 = vmatpush.bf16.msra.mxu0 0
  %3454 = vmatpush.bf16.msra.mxu0 %v3333
  %3455 = vmatmul.bf16.gmra.mxu0 %v3445
  %v3456 = vpop.f32.mrf.mxu0
  %v3457 = vadd.f32 0.0, %v3456
  %v3458 = vpop.f32.mrf.mxu0
  %3459 = vdwg.mxu0
  %v3460 = vmul.f32 %v3457, %v147
  %v3461 = vadd.f32 %v3405, %v3460
  %v3462 = vmul.f32 %v3069, %v151
  %v3463 = vpack.c.bf16 %v3462, %v3227
  %v3465 = vshrl.u32 %v3463, 16
  %v3467 = vrot.slane %v3465, 3
  %v3468 = vshll.u32 %v3463, 16
  %v3470 = vrot.slane %v3468, 4
  %v3471 = vor.u32 %v3467, %v3470
  %v3473 = vsel %vm280, %v3471, 0
  %3475 = vmatpush.bf16.xpose.msra.mxu0 0
  %3476 = vmatpush.bf16.xpose.msra.mxu0 0
  %3477 = vmatpush.bf16.xpose.msra.mxu0 0
  %3478 = vmatpush.bf16.xpose.msra.mxu0 0
  %3479 = vmatpush.bf16.xpose.msra.mxu0 0
  %3480 = vmatpush.bf16.xpose.msra.mxu0 0
  %3481 = vmatpush.bf16.xpose.msra.mxu0 0
  %3482 = vmatpush.bf16.xpose.msra.mxu0 %v3300
  %3483 = vmatmul.bf16.gmra.mxu0 %v3473
  %v3484 = vpop.f32.mrf.mxu0
  %v3485 = vadd.f32 %v1931, %v3484
  %v3486 = vpop.f32.mrf.mxu0
  %3487 = vdwg.mxu0
  %v3488 = vsel %vm1746, %v3485, -inf
  %3489 = vmax.xlane.f32.xlu0 %v3488
  %v3490 = vpop.xlane.xlu0 %3489
  %v3491 = vsub.f32 %v3485, %v3490
  %v3492 = vmul.f32 %v3491, 1.442695
  %v3493 = vpow.pop %v3492
  %v3494 = vsel %vm1746, %v3493, 0.0
  %3495 = vadd.xlane.f32.xlu0 %v3494
  %v3496 = vpop.xlane.xlu0 %3495
  %v3497 = vrcp.pop %v3496
  %v3498 = vmul.f32 %v3493, %v3497
  %v3499 = vpack.c.bf16 %v3498, %v3498
  %v3501 = vsel %vm1761, %v3499, 0
  %3503 = vmatpush.bf16.msra.mxu0 0
  %3504 = vmatpush.bf16.msra.mxu0 0
  %3505 = vmatpush.bf16.msra.mxu0 0
  %3506 = vmatpush.bf16.msra.mxu0 0
  %3507 = vmatpush.bf16.msra.mxu0 0
  %3508 = vmatpush.bf16.msra.mxu0 0
  %3509 = vmatpush.bf16.msra.mxu0 0
  %3510 = vmatpush.bf16.msra.mxu0 %v3333
  %3511 = vmatmul.bf16.gmra.mxu0 %v3501
  %v3512 = vpop.f32.mrf.mxu0
  %v3513 = vadd.f32 0.0, %v3512
  %v3514 = vpop.f32.mrf.mxu0
  %3515 = vdwg.mxu0
  %v3516 = vmul.f32 %v3513, %v151
  %v3517 = vadd.f32 %v3461, %v3516
  %v3519 = vrot.slane %v3517, 1
  %v3521 = vsel %vm2178, %v3274, %v3519
  %s3522 = scalar_lea.vmem %s57, 8
  %v3523 = vld [vmem:[%s3522] sm:$0x3f]
  %s3524 = scalar_lea.vmem %s33, 16
  %v3525 = vld [vmem:[%s3524] sm:$0xf]
  %v3526 = vld [vmem:[%s3524 + $0x4] sm:$0xf]
  %v3527 = vld [vmem:[%s3524 + $0x8] sm:$0xf]
  %v3528 = vld [vmem:[%s3524 + $0xc] sm:$0xf]
  %v3529 = vpack.c.bf16 %v3519, %v3521
  %v3534 = vunpack.c.l.b16 %v3525
  %v3535 = vunpack.c.l.b16 %v3526
  %v3536 = vunpack.c.l.b16 %v3527
  %v3537 = vunpack.c.l.b16 %v3528
  %v3538 = vpack.c.b16 %v3535, %v3534
  %v3539 = vpack.c.b16 %v3537, %v3536
  %v3543 = vsel %vm280, %v3529, 0
  %3545 = vmatpush.bf16.msra.mxu0 0
  %3546 = vmatpush.bf16.msra.mxu0 0
  %3547 = vmatpush.bf16.msra.mxu0 0
  %3548 = vmatpush.bf16.msra.mxu0 0
  %3549 = vmatpush.bf16.msra.mxu0 0
  %3550 = vmatpush.bf16.msra.mxu0 0
  %3551 = vmatpush.bf16.msra.mxu0 %v3539
  %3552 = vmatpush.bf16.msra.mxu0 %v3538
  %3553 = vmatmul.bf16.gmra.mxu0 %v3543
  %v3554 = vpop.f32.mrf.mxu0
  %v3555 = vadd.f32 0.0, %v3554
  %v3556 = vpop.f32.mrf.mxu0
  %v3557 = vadd.f32 0.0, %v3556
  %3558 = vdwg.mxu0
  %v3559 = vadd.f32 %v3029, %v3555
  %v3560 = vadd.f32 %v3030, %v3557
  %s3561 = scalar_lea.vmem %s35, 1
  %v3562 = vld [vmem:[%s3561] sm:$0x1]
  %v3564 = vperm.slane %v3562, 0
  %v3566 = vadd.f32 %v3559, %v3564
  %v3567 = vadd.f32 %v3560, %v3564
  %v3568 = vsel %vm280, %v3566, 0.0
  %3569 = vadd.xlane.f32.xlu0 %v3568
  %v3570 = vpop.xlane.xlu0 %3569
  %v3571 = vsel %vm2226, %v3567, 0.0
  %3572 = vadd.xlane.f32.xlu0 %v3571
  %v3573 = vpop.xlane.xlu0 %3572
  %v3574 = vmul.f32 %v3570, %v788
  %v3575 = vmul.f32 %v3573, %v788
  %v3576 = vsub.f32 %v3566, %v3574
  %v3577 = vsub.f32 %v3567, %v3575
  %v3578 = vmul.f32 %v3576, %v3576
  %v3579 = vmul.f32 %v3577, %v3577
  %v3580 = vsel %vm280, %v3578, 0.0
  %3581 = vadd.xlane.f32.xlu0 %v3580
  %v3582 = vpop.xlane.xlu0 %3581
  %v3583 = vsel %vm2226, %v3579, 0.0
  %3584 = vadd.xlane.f32.xlu0 %v3583
  %v3585 = vpop.xlane.xlu0 %3584
  %v3586 = vmul.f32 %v3582, %v788
  %v3587 = vmul.f32 %v3585, %v788
  %v3588 = vadd.f32 %v3586, 1e-05
  %v3589 = vadd.f32 %v3587, 1e-05
  %v3590 = vrsqrt.pop %v3588
  %v3591 = vmul.f32 %v3590, %v3588
  %v3592 = vmul.f32 %v3591, %v3590
  %v3593 = vmul.f32 0.5, %v3592
  %v3594 = vsub.f32 1.5, %v3593
  %v3595 = vmul.f32 %v3590, %v3594
  %vm3596 = vweird.f32 %v3588
  %vm3597 = vweird.f32 %v3590
  %vm3598 = vmor %vm3596, %vm3597
  %v3599 = vsel %vm3598, %v3590, %v3595
  %v3600 = vrsqrt.pop %v3589
  %v3601 = vmul.f32 %v3600, %v3589
  %v3602 = vmul.f32 %v3601, %v3600
  %v3603 = vmul.f32 0.5, %v3602
  %v3604 = vsub.f32 1.5, %v3603
  %v3605 = vmul.f32 %v3600, %v3604
  %vm3606 = vweird.f32 %v3589
  %vm3607 = vweird.f32 %v3600
  %vm3608 = vmor %vm3606, %vm3607
  %v3609 = vsel %vm3608, %v3600, %v3605
  %v3610 = vmul.f32 %v3576, %v3599
  %v3611 = vmul.f32 %v3577, %v3609
  %v3612 = vperm.slane %v3523, 0
  %v3613 = vmul.f32 %v3610, %v3612
  %v3614 = vmul.f32 %v3611, %v3612
  %v3615 = vperm.slane %v3523, 1
  %v3616 = vadd.f32 %v3613, %v3615
  %v3617 = vadd.f32 %v3614, %v3615
  %s3618 = scalar_lea.vmem %s37, 16
  %v3619 = vld [vmem:[%s3618] sm:$0xf]
  %v3620 = vld [vmem:[%s3618 + $0x4] sm:$0xf]
  %v3621 = vld [vmem:[%s3618 + $0x8] sm:$0xf]
  %v3622 = vld [vmem:[%s3618 + $0xc] sm:$0xf]
  %v3623 = vpack.c.bf16 %v3617, %v3616
  %s3624 = scalar_lea.vmem %s39, 1
  %v3625 = vld [vmem:[%s3624] sm:$0x1]
  %v3627 = vperm.slane %v3625, 0
  %v3633 = vunpack.c.l.b16 %v3619
  %v3634 = vunpack.c.l.b16 %v3620
  %v3635 = vunpack.c.l.b16 %v3621
  %v3636 = vunpack.c.l.b16 %v3622
  %v3637 = vpack.c.b16 %v3634, %v3633
  %v3638 = vpack.c.b16 %v3636, %v3635
  %v3642 = vsel %vm280, %v3623, 0
  %3644 = vmatpush.bf16.msra.mxu0 0
  %3645 = vmatpush.bf16.msra.mxu0 0
  %3646 = vmatpush.bf16.msra.mxu0 0
  %3647 = vmatpush.bf16.msra.mxu0 0
  %3648 = vmatpush.bf16.msra.mxu0 0
  %3649 = vmatpush.bf16.msra.mxu0 0
  %3650 = vmatpush.bf16.msra.mxu0 %v3638
  %3651 = vmatpush.bf16.msra.mxu0 %v3637
  %3652 = vmatmul.bf16.gmra.mxu0 %v3642
  %v3653 = vpop.f32.mrf.mxu0
  %v3654 = vadd.f32 %v3627, %v3653
  %v3655 = vpop.f32.mrf.mxu0
  %v3656 = vadd.f32 %v3627, %v3655
  %3657 = vdwg.mxu0
  %s3658 = scalar_lea.vmem %s41, 16
  %v3659 = vld [vmem:[%s3658] sm:$0xf]
  %v3660 = vld [vmem:[%s3658 + $0x4] sm:$0xf]
  %v3661 = vld [vmem:[%s3658 + $0x8] sm:$0xf]
  %v3662 = vld [vmem:[%s3658 + $0xc] sm:$0xf]
  %s3663 = scalar_lea.vmem %s43, 1
  %v3664 = vld [vmem:[%s3663] sm:$0x1]
  %v3666 = vperm.slane %v3664, 0
  %v3672 = vunpack.c.l.b16 %v3659
  %v3673 = vunpack.c.l.b16 %v3660
  %v3674 = vunpack.c.l.b16 %v3661
  %v3675 = vunpack.c.l.b16 %v3662
  %v3676 = vpack.c.b16 %v3673, %v3672
  %v3677 = vpack.c.b16 %v3675, %v3674
  %3680 = vmatpush.bf16.msra.mxu0 0
  %3681 = vmatpush.bf16.msra.mxu0 0
  %3682 = vmatpush.bf16.msra.mxu0 0
  %3683 = vmatpush.bf16.msra.mxu0 0
  %3684 = vmatpush.bf16.msra.mxu0 0
  %3685 = vmatpush.bf16.msra.mxu0 0
  %3686 = vmatpush.bf16.msra.mxu0 %v3677
  %3687 = vmatpush.bf16.msra.mxu0 %v3676
  %3688 = vmatmul.bf16.gmra.mxu0 %v2334
  %v3689 = vpop.f32.mrf.mxu0
  %v3690 = vadd.f32 %v3666, %v3689
  %v3691 = vpop.f32.mrf.mxu0
  %v3692 = vadd.f32 %v3666, %v3691
  %3693 = vdwg.mxu0
  %v3694 = vpack.c.bf16 %v3690, %v3690
  %v3695 = vmul.f32 %v3654, %v139
  %v3696 = vpack.c.bf16 %v3695, %v3695
  %v3698 = vsel %vm280, %v3696, 0
  %v3701 = vsel %vm280, %v3694, 0
  %3703 = vmatpush.bf16.xpose.msra.mxu0 0
  %3704 = vmatpush.bf16.xpose.msra.mxu0 0
  %3705 = vmatpush.bf16.xpose.msra.mxu0 0
  %3706 = vmatpush.bf16.xpose.msra.mxu0 0
  %3707 = vmatpush.bf16.xpose.msra.mxu0 0
  %3708 = vmatpush.bf16.xpose.msra.mxu0 0
  %3709 = vmatpush.bf16.xpose.msra.mxu0 0
  %3710 = vmatpush.bf16.xpose.msra.mxu0 %v3701
  %3711 = vmatmul.bf16.gmra.mxu0 %v3698
  %v3712 = vpop.f32.mrf.mxu0
  %v3713 = vadd.f32 %v324, %v3712
  %v3714 = vpop.f32.mrf.mxu0
  %3715 = vdwg.mxu0
  %v3716 = vsel %vm2372, %v3713, -inf
  %3717 = vmax.xlane.f32.xlu0 %v3716
  %v3718 = vpop.xlane.xlu0 %3717
  %v3719 = vsub.f32 %v3713, %v3718
  %v3720 = vmul.f32 %v3719, 1.442695
  %v3721 = vpow.pop %v3720
  %v3722 = vsel %vm2372, %v3721, 0.0
  %3723 = vadd.xlane.f32.xlu0 %v3722
  %v3724 = vpop.xlane.xlu0 %3723
  %v3725 = vrcp.pop %v3724
  %v3726 = vmul.f32 %v3721, %v3725
  %v3727 = vpack.c.bf16 %v3726, %v3726
  %3729 = vrot.lane.b32.xlu0 %v3694, 96
  %v3730 = vpop.permute.xlu0 %3729
  %v3732 = vsel %vm347, %v3727, 0
  %v3735 = vsel %vm365, %v3730, 0
  %3737 = vmatpush.bf16.msra.mxu0 0
  %3738 = vmatpush.bf16.msra.mxu0 0
  %3739 = vmatpush.bf16.msra.mxu0 0
  %3740 = vmatpush.bf16.msra.mxu0 0
  %3741 = vmatpush.bf16.msra.mxu0 0
  %3742 = vmatpush.bf16.msra.mxu0 0
  %3743 = vmatpush.bf16.msra.mxu0 0
  %3744 = vmatpush.bf16.msra.mxu0 %v3735
  %3745 = vmatmul.bf16.gmra.mxu0 %v3732
  %v3746 = vpop.f32.mrf.mxu0
  %v3747 = vadd.f32 0.0, %v3746
  %v3748 = vpop.f32.mrf.mxu0
  %3749 = vdwg.mxu0
  %v3750 = vmul.f32 %v3747, %v139
  %v3751 = vadd.f32 %v3750, 0.0
  %v3752 = vmul.f32 %v3654, %v143
  %v3753 = vpack.c.bf16 %v3752, %v3752
  %v3755 = vsel %vm280, %v3753, 0
  %3757 = vmatpush.bf16.xpose.msra.mxu0 0
  %3758 = vmatpush.bf16.xpose.msra.mxu0 0
  %3759 = vmatpush.bf16.xpose.msra.mxu0 0
  %3760 = vmatpush.bf16.xpose.msra.mxu0 0
  %3761 = vmatpush.bf16.xpose.msra.mxu0 0
  %3762 = vmatpush.bf16.xpose.msra.mxu0 0
  %3763 = vmatpush.bf16.xpose.msra.mxu0 0
  %3764 = vmatpush.bf16.xpose.msra.mxu0 %v3701
  %3765 = vmatmul.bf16.gmra.mxu0 %v3755
  %v3766 = vpop.f32.mrf.mxu0
  %v3767 = vadd.f32 %v324, %v3766
  %v3768 = vpop.f32.mrf.mxu0
  %3769 = vdwg.mxu0
  %v3770 = vsel %vm2372, %v3767, -inf
  %3771 = vmax.xlane.f32.xlu0 %v3770
  %v3772 = vpop.xlane.xlu0 %3771
  %v3773 = vsub.f32 %v3767, %v3772
  %v3774 = vmul.f32 %v3773, 1.442695
  %v3775 = vpow.pop %v3774
  %v3776 = vsel %vm2372, %v3775, 0.0
  %3777 = vadd.xlane.f32.xlu0 %v3776
  %v3778 = vpop.xlane.xlu0 %3777
  %v3779 = vrcp.pop %v3778
  %v3780 = vmul.f32 %v3775, %v3779
  %v3781 = vpack.c.bf16 %v3780, %v3780
  %v3783 = vsel %vm347, %v3781, 0
  %3785 = vmatpush.bf16.msra.mxu0 0
  %3786 = vmatpush.bf16.msra.mxu0 0
  %3787 = vmatpush.bf16.msra.mxu0 0
  %3788 = vmatpush.bf16.msra.mxu0 0
  %3789 = vmatpush.bf16.msra.mxu0 0
  %3790 = vmatpush.bf16.msra.mxu0 0
  %3791 = vmatpush.bf16.msra.mxu0 0
  %3792 = vmatpush.bf16.msra.mxu0 %v3735
  %3793 = vmatmul.bf16.gmra.mxu0 %v3783
  %v3794 = vpop.f32.mrf.mxu0
  %v3795 = vadd.f32 0.0, %v3794
  %v3796 = vpop.f32.mrf.mxu0
  %3797 = vdwg.mxu0
  %v3798 = vmul.f32 %v3795, %v143
  %v3799 = vadd.f32 %v3751, %v3798
  %v3800 = vmul.f32 %v3654, %v147
  %v3801 = vpack.c.bf16 %v3800, %v3800
  %v3803 = vsel %vm280, %v3801, 0
  %3805 = vmatpush.bf16.xpose.msra.mxu0 0
  %3806 = vmatpush.bf16.xpose.msra.mxu0 0
  %3807 = vmatpush.bf16.xpose.msra.mxu0 0
  %3808 = vmatpush.bf16.xpose.msra.mxu0 0
  %3809 = vmatpush.bf16.xpose.msra.mxu0 0
  %3810 = vmatpush.bf16.xpose.msra.mxu0 0
  %3811 = vmatpush.bf16.xpose.msra.mxu0 0
  %3812 = vmatpush.bf16.xpose.msra.mxu0 %v3701
  %3813 = vmatmul.bf16.gmra.mxu0 %v3803
  %v3814 = vpop.f32.mrf.mxu0
  %v3815 = vadd.f32 %v324, %v3814
  %v3816 = vpop.f32.mrf.mxu0
  %3817 = vdwg.mxu0
  %v3818 = vsel %vm2372, %v3815, -inf
  %3819 = vmax.xlane.f32.xlu0 %v3818
  %v3820 = vpop.xlane.xlu0 %3819
  %v3821 = vsub.f32 %v3815, %v3820
  %v3822 = vmul.f32 %v3821, 1.442695
  %v3823 = vpow.pop %v3822
  %v3824 = vsel %vm2372, %v3823, 0.0
  %3825 = vadd.xlane.f32.xlu0 %v3824
  %v3826 = vpop.xlane.xlu0 %3825
  %v3827 = vrcp.pop %v3826
  %v3828 = vmul.f32 %v3823, %v3827
  %v3829 = vpack.c.bf16 %v3828, %v3828
  %v3831 = vsel %vm347, %v3829, 0
  %3833 = vmatpush.bf16.msra.mxu0 0
  %3834 = vmatpush.bf16.msra.mxu0 0
  %3835 = vmatpush.bf16.msra.mxu0 0
  %3836 = vmatpush.bf16.msra.mxu0 0
  %3837 = vmatpush.bf16.msra.mxu0 0
  %3838 = vmatpush.bf16.msra.mxu0 0
  %3839 = vmatpush.bf16.msra.mxu0 0
  %3840 = vmatpush.bf16.msra.mxu0 %v3735
  %3841 = vmatmul.bf16.gmra.mxu0 %v3831
  %v3842 = vpop.f32.mrf.mxu0
  %v3843 = vadd.f32 0.0, %v3842
  %v3844 = vpop.f32.mrf.mxu0
  %3845 = vdwg.mxu0
  %v3846 = vmul.f32 %v3843, %v147
  %v3847 = vadd.f32 %v3799, %v3846
  %v3848 = vmul.f32 %v3654, %v151
  %v3849 = vpack.c.bf16 %v3848, %v3848
  %v3851 = vsel %vm280, %v3849, 0
  %3853 = vmatpush.bf16.xpose.msra.mxu0 0
  %3854 = vmatpush.bf16.xpose.msra.mxu0 0
  %3855 = vmatpush.bf16.xpose.msra.mxu0 0
  %3856 = vmatpush.bf16.xpose.msra.mxu0 0
  %3857 = vmatpush.bf16.xpose.msra.mxu0 0
  %3858 = vmatpush.bf16.xpose.msra.mxu0 0
  %3859 = vmatpush.bf16.xpose.msra.mxu0 0
  %3860 = vmatpush.bf16.xpose.msra.mxu0 %v3701
  %3861 = vmatmul.bf16.gmra.mxu0 %v3851
  %v3862 = vpop.f32.mrf.mxu0
  %v3863 = vadd.f32 %v324, %v3862
  %v3864 = vpop.f32.mrf.mxu0
  %3865 = vdwg.mxu0
  %v3866 = vsel %vm2372, %v3863, -inf
  %3867 = vmax.xlane.f32.xlu0 %v3866
  %v3868 = vpop.xlane.xlu0 %3867
  %v3869 = vsub.f32 %v3863, %v3868
  %v3870 = vmul.f32 %v3869, 1.442695
  %v3871 = vpow.pop %v3870
  %v3872 = vsel %vm2372, %v3871, 0.0
  %3873 = vadd.xlane.f32.xlu0 %v3872
  %v3874 = vpop.xlane.xlu0 %3873
  %v3875 = vrcp.pop %v3874
  %v3876 = vmul.f32 %v3871, %v3875
  %v3877 = vpack.c.bf16 %v3876, %v3876
  %v3879 = vsel %vm347, %v3877, 0
  %3881 = vmatpush.bf16.msra.mxu0 0
  %3882 = vmatpush.bf16.msra.mxu0 0
  %3883 = vmatpush.bf16.msra.mxu0 0
  %3884 = vmatpush.bf16.msra.mxu0 0
  %3885 = vmatpush.bf16.msra.mxu0 0
  %3886 = vmatpush.bf16.msra.mxu0 0
  %3887 = vmatpush.bf16.msra.mxu0 0
  %3888 = vmatpush.bf16.msra.mxu0 %v3735
  %3889 = vmatmul.bf16.gmra.mxu0 %v3879
  %v3890 = vpop.f32.mrf.mxu0
  %v3891 = vadd.f32 0.0, %v3890
  %v3892 = vpop.f32.mrf.mxu0
  %3893 = vdwg.mxu0
  %v3894 = vmul.f32 %v3891, %v151
  %v3895 = vadd.f32 %v3847, %v3894
  %v3896 = vpack.c.bf16 %v3692, %v3692
  %v3897 = vmul.f32 %v3656, %v139
  %v3898 = vpack.c.bf16 %v3897, %v3695
  %v3900 = vshrl.u32 %v3898, 16
  %v3902 = vrot.slane %v3900, 3
  %v3903 = vshll.u32 %v3898, 16
  %v3905 = vrot.slane %v3903, 4
  %v3906 = vor.u32 %v3902, %v3905
  %v3908 = vsel %vm280, %v3906, 0
  %v3911 = vsel %vm280, %v3896, 0
  %3913 = vmatpush.bf16.xpose.msra.mxu0 0
  %3914 = vmatpush.bf16.xpose.msra.mxu0 0
  %3915 = vmatpush.bf16.xpose.msra.mxu0 0
  %3916 = vmatpush.bf16.xpose.msra.mxu0 0
  %3917 = vmatpush.bf16.xpose.msra.mxu0 0
  %3918 = vmatpush.bf16.xpose.msra.mxu0 0
  %3919 = vmatpush.bf16.xpose.msra.mxu0 0
  %3920 = vmatpush.bf16.xpose.msra.mxu0 %v3911
  %3921 = vmatmul.bf16.gmra.mxu0 %v3908
  %v3922 = vpop.f32.mrf.mxu0
  %v3923 = vadd.f32 %v531, %v3922
  %v3924 = vpop.f32.mrf.mxu0
  %3925 = vdwg.mxu0
  %v3926 = vsel %vm2372, %v3923, -inf
  %3927 = vmax.xlane.f32.xlu0 %v3926
  %v3928 = vpop.xlane.xlu0 %3927
  %v3929 = vsub.f32 %v3923, %v3928
  %v3930 = vmul.f32 %v3929, 1.442695
  %v3931 = vpow.pop %v3930
  %v3932 = vsel %vm2372, %v3931, 0.0
  %3933 = vadd.xlane.f32.xlu0 %v3932
  %v3934 = vpop.xlane.xlu0 %3933
  %v3935 = vrcp.pop %v3934
  %v3936 = vmul.f32 %v3931, %v3935
  %v3937 = vpack.c.bf16 %v3936, %v3936
  %3939 = vrot.lane.b32.xlu0 %v3896, 96
  %v3940 = vpop.permute.xlu0 %3939
  %v3942 = vsel %vm347, %v3937, 0
  %v3945 = vsel %vm365, %v3940, 0
  %3947 = vmatpush.bf16.msra.mxu0 0
  %3948 = vmatpush.bf16.msra.mxu0 0
  %3949 = vmatpush.bf16.msra.mxu0 0
  %3950 = vmatpush.bf16.msra.mxu0 0
  %3951 = vmatpush.bf16.msra.mxu0 0
  %3952 = vmatpush.bf16.msra.mxu0 0
  %3953 = vmatpush.bf16.msra.mxu0 0
  %3954 = vmatpush.bf16.msra.mxu0 %v3945
  %3955 = vmatmul.bf16.gmra.mxu0 %v3942
  %v3956 = vpop.f32.mrf.mxu0
  %v3957 = vadd.f32 0.0, %v3956
  %v3958 = vpop.f32.mrf.mxu0
  %3959 = vdwg.mxu0
  %v3960 = vmul.f32 %v3957, %v139
  %v3961 = vadd.f32 %v3960, 0.0
  %v3962 = vmul.f32 %v3656, %v143
  %v3963 = vpack.c.bf16 %v3962, %v3752
  %v3965 = vshrl.u32 %v3963, 16
  %v3967 = vrot.slane %v3965, 3
  %v3968 = vshll.u32 %v3963, 16
  %v3970 = vrot.slane %v3968, 4
  %v3971 = vor.u32 %v3967, %v3970
  %v3973 = vsel %vm280, %v3971, 0
  %3975 = vmatpush.bf16.xpose.msra.mxu0 0
  %3976 = vmatpush.bf16.xpose.msra.mxu0 0
  %3977 = vmatpush.bf16.xpose.msra.mxu0 0
  %3978 = vmatpush.bf16.xpose.msra.mxu0 0
  %3979 = vmatpush.bf16.xpose.msra.mxu0 0
  %3980 = vmatpush.bf16.xpose.msra.mxu0 0
  %3981 = vmatpush.bf16.xpose.msra.mxu0 0
  %3982 = vmatpush.bf16.xpose.msra.mxu0 %v3911
  %3983 = vmatmul.bf16.gmra.mxu0 %v3973
  %v3984 = vpop.f32.mrf.mxu0
  %v3985 = vadd.f32 %v531, %v3984
  %v3986 = vpop.f32.mrf.mxu0
  %3987 = vdwg.mxu0
  %v3988 = vsel %vm2372, %v3985, -inf
  %3989 = vmax.xlane.f32.xlu0 %v3988
  %v3990 = vpop.xlane.xlu0 %3989
  %v3991 = vsub.f32 %v3985, %v3990
  %v3992 = vmul.f32 %v3991, 1.442695
  %v3993 = vpow.pop %v3992
  %v3994 = vsel %vm2372, %v3993, 0.0
  %3995 = vadd.xlane.f32.xlu0 %v3994
  %v3996 = vpop.xlane.xlu0 %3995
  %v3997 = vrcp.pop %v3996
  %v3998 = vmul.f32 %v3993, %v3997
  %v3999 = vpack.c.bf16 %v3998, %v3998
  %v4001 = vsel %vm347, %v3999, 0
  %4003 = vmatpush.bf16.msra.mxu0 0
  %4004 = vmatpush.bf16.msra.mxu0 0
  %4005 = vmatpush.bf16.msra.mxu0 0
  %4006 = vmatpush.bf16.msra.mxu0 0
  %4007 = vmatpush.bf16.msra.mxu0 0
  %4008 = vmatpush.bf16.msra.mxu0 0
  %4009 = vmatpush.bf16.msra.mxu0 0
  %4010 = vmatpush.bf16.msra.mxu0 %v3945
  %4011 = vmatmul.bf16.gmra.mxu0 %v4001
  %v4012 = vpop.f32.mrf.mxu0
  %v4013 = vadd.f32 0.0, %v4012
  %v4014 = vpop.f32.mrf.mxu0
  %4015 = vdwg.mxu0
  %v4016 = vmul.f32 %v4013, %v143
  %v4017 = vadd.f32 %v3961, %v4016
  %v4018 = vmul.f32 %v3656, %v147
  %v4019 = vpack.c.bf16 %v4018, %v3800
  %v4021 = vshrl.u32 %v4019, 16
  %v4023 = vrot.slane %v4021, 3
  %v4024 = vshll.u32 %v4019, 16
  %v4026 = vrot.slane %v4024, 4
  %v4027 = vor.u32 %v4023, %v4026
  %v4029 = vsel %vm280, %v4027, 0
  %4031 = vmatpush.bf16.xpose.msra.mxu0 0
  %4032 = vmatpush.bf16.xpose.msra.mxu0 0
  %4033 = vmatpush.bf16.xpose.msra.mxu0 0
  %4034 = vmatpush.bf16.xpose.msra.mxu0 0
  %4035 = vmatpush.bf16.xpose.msra.mxu0 0
  %4036 = vmatpush.bf16.xpose.msra.mxu0 0
  %4037 = vmatpush.bf16.xpose.msra.mxu0 0
  %4038 = vmatpush.bf16.xpose.msra.mxu0 %v3911
  %4039 = vmatmul.bf16.gmra.mxu0 %v4029
  %v4040 = vpop.f32.mrf.mxu0
  %v4041 = vadd.f32 %v531, %v4040
  %v4042 = vpop.f32.mrf.mxu0
  %4043 = vdwg.mxu0
  %v4044 = vsel %vm2372, %v4041, -inf
  %4045 = vmax.xlane.f32.xlu0 %v4044
  %v4046 = vpop.xlane.xlu0 %4045
  %v4047 = vsub.f32 %v4041, %v4046
  %v4048 = vmul.f32 %v4047, 1.442695
  %v4049 = vpow.pop %v4048
  %v4050 = vsel %vm2372, %v4049, 0.0
  %4051 = vadd.xlane.f32.xlu0 %v4050
  %v4052 = vpop.xlane.xlu0 %4051
  %v4053 = vrcp.pop %v4052
  %v4054 = vmul.f32 %v4049, %v4053
  %v4055 = vpack.c.bf16 %v4054, %v4054
  %v4057 = vsel %vm347, %v4055, 0
  %4059 = vmatpush.bf16.msra.mxu0 0
  %4060 = vmatpush.bf16.msra.mxu0 0
  %4061 = vmatpush.bf16.msra.mxu0 0
  %4062 = vmatpush.bf16.msra.mxu0 0
  %4063 = vmatpush.bf16.msra.mxu0 0
  %4064 = vmatpush.bf16.msra.mxu0 0
  %4065 = vmatpush.bf16.msra.mxu0 0
  %4066 = vmatpush.bf16.msra.mxu0 %v3945
  %4067 = vmatmul.bf16.gmra.mxu0 %v4057
  %v4068 = vpop.f32.mrf.mxu0
  %v4069 = vadd.f32 0.0, %v4068
  %v4070 = vpop.f32.mrf.mxu0
  %4071 = vdwg.mxu0
  %v4072 = vmul.f32 %v4069, %v147
  %v4073 = vadd.f32 %v4017, %v4072
  %v4074 = vmul.f32 %v3656, %v151
  %v4075 = vpack.c.bf16 %v4074, %v3848
  %v4077 = vshrl.u32 %v4075, 16
  %v4079 = vrot.slane %v4077, 3
  %v4080 = vshll.u32 %v4075, 16
  %v4082 = vrot.slane %v4080, 4
  %v4083 = vor.u32 %v4079, %v4082
  %v4085 = vsel %vm280, %v4083, 0
  %4087 = vmatpush.bf16.xpose.msra.mxu0 0
  %4088 = vmatpush.bf16.xpose.msra.mxu0 0
  %4089 = vmatpush.bf16.xpose.msra.mxu0 0
  %4090 = vmatpush.bf16.xpose.msra.mxu0 0
  %4091 = vmatpush.bf16.xpose.msra.mxu0 0
  %4092 = vmatpush.bf16.xpose.msra.mxu0 0
  %4093 = vmatpush.bf16.xpose.msra.mxu0 0
  %4094 = vmatpush.bf16.xpose.msra.mxu0 %v3911
  %4095 = vmatmul.bf16.gmra.mxu0 %v4085
  %v4096 = vpop.f32.mrf.mxu0
  %v4097 = vadd.f32 %v531, %v4096
  %v4098 = vpop.f32.mrf.mxu0
  %4099 = vdwg.mxu0
  %v4100 = vsel %vm2372, %v4097, -inf
  %4101 = vmax.xlane.f32.xlu0 %v4100
  %v4102 = vpop.xlane.xlu0 %4101
  %v4103 = vsub.f32 %v4097, %v4102
  %v4104 = vmul.f32 %v4103, 1.442695
  %v4105 = vpow.pop %v4104
  %v4106 = vsel %vm2372, %v4105, 0.0
  %4107 = vadd.xlane.f32.xlu0 %v4106
  %v4108 = vpop.xlane.xlu0 %4107
  %v4109 = vrcp.pop %v4108
  %v4110 = vmul.f32 %v4105, %v4109
  %v4111 = vpack.c.bf16 %v4110, %v4110
  %v4113 = vsel %vm347, %v4111, 0
  %4115 = vmatpush.bf16.msra.mxu0 0
  %4116 = vmatpush.bf16.msra.mxu0 0
  %4117 = vmatpush.bf16.msra.mxu0 0
  %4118 = vmatpush.bf16.msra.mxu0 0
  %4119 = vmatpush.bf16.msra.mxu0 0
  %4120 = vmatpush.bf16.msra.mxu0 0
  %4121 = vmatpush.bf16.msra.mxu0 0
  %4122 = vmatpush.bf16.msra.mxu0 %v3945
  %4123 = vmatmul.bf16.gmra.mxu0 %v4113
  %v4124 = vpop.f32.mrf.mxu0
  %v4125 = vadd.f32 0.0, %v4124
  %v4126 = vpop.f32.mrf.mxu0
  %4127 = vdwg.mxu0
  %v4128 = vmul.f32 %v4125, %v151
  %v4129 = vadd.f32 %v4073, %v4128
  %v4131 = vrot.slane %v4129, 1
  %v4133 = vsel %vm2178, %v3895, %v4131
  %s4134 = scalar_lea.vmem %s45, 16
  %v4135 = vld [vmem:[%s4134] sm:$0xf]
  %v4136 = vld [vmem:[%s4134 + $0x4] sm:$0xf]
  %v4137 = vld [vmem:[%s4134 + $0x8] sm:$0xf]
  %v4138 = vld [vmem:[%s4134 + $0xc] sm:$0xf]
  %v4139 = vpack.c.bf16 %v4131, %v4133
  %v4144 = vunpack.c.l.b16 %v4135
  %v4145 = vunpack.c.l.b16 %v4136
  %v4146 = vunpack.c.l.b16 %v4137
  %v4147 = vunpack.c.l.b16 %v4138
  %v4148 = vpack.c.b16 %v4145, %v4144
  %v4149 = vpack.c.b16 %v4147, %v4146
  %v4153 = vsel %vm280, %v4139, 0
  %4155 = vmatpush.bf16.msra.mxu0 0
  %4156 = vmatpush.bf16.msra.mxu0 0
  %4157 = vmatpush.bf16.msra.mxu0 0
  %4158 = vmatpush.bf16.msra.mxu0 0
  %4159 = vmatpush.bf16.msra.mxu0 0
  %4160 = vmatpush.bf16.msra.mxu0 0
  %4161 = vmatpush.bf16.msra.mxu0 %v4149
  %4162 = vmatpush.bf16.msra.mxu0 %v4148
  %4163 = vmatmul.bf16.gmra.mxu0 %v4153
  %v4164 = vpop.f32.mrf.mxu0
  %v4165 = vadd.f32 0.0, %v4164
  %v4166 = vpop.f32.mrf.mxu0
  %v4167 = vadd.f32 0.0, %v4166
  %4168 = vdwg.mxu0
  %v4169 = vadd.f32 %v3616, %v4165
  %v4170 = vadd.f32 %v3617, %v4167
  %s4171 = scalar_lea.vmem %s47, 1
  %v4172 = vld [vmem:[%s4171] sm:$0x1]
  %v4174 = vperm.slane %v4172, 0
  %v4176 = vadd.f32 %v4169, %v4174
  %v4177 = vadd.f32 %v4170, %v4174
  %v4178 = vsel %vm280, %v4176, 0.0
  %4179 = vadd.xlane.f32.xlu0 %v4178
  %v4180 = vpop.xlane.xlu0 %4179
  %v4181 = vsel %vm2226, %v4177, 0.0
  %4182 = vadd.xlane.f32.xlu0 %v4181
  %v4183 = vpop.xlane.xlu0 %4182
  %v4184 = vmul.f32 %v4180, %v788
  %v4185 = vmul.f32 %v4183, %v788
  %v4186 = vsub.f32 %v4176, %v4184
  %v4187 = vsub.f32 %v4177, %v4185
  %v4188 = vmul.f32 %v4186, %v4186
  %v4189 = vmul.f32 %v4187, %v4187
  %v4190 = vsel %vm280, %v4188, 0.0
  %4191 = vadd.xlane.f32.xlu0 %v4190
  %v4192 = vpop.xlane.xlu0 %4191
  %v4193 = vsel %vm2226, %v4189, 0.0
  %4194 = vadd.xlane.f32.xlu0 %v4193
  %v4195 = vpop.xlane.xlu0 %4194
  %v4196 = vmul.f32 %v4192, %v788
  %v4197 = vmul.f32 %v4195, %v788
  %v4198 = vadd.f32 %v4196, 1e-05
  %v4199 = vadd.f32 %v4197, 1e-05
  %v4200 = vrsqrt.pop %v4198
  %v4201 = vmul.f32 %v4200, %v4198
  %v4202 = vmul.f32 %v4201, %v4200
  %v4203 = vmul.f32 0.5, %v4202
  %v4204 = vsub.f32 1.5, %v4203
  %v4205 = vmul.f32 %v4200, %v4204
  %vm4206 = vweird.f32 %v4198
  %vm4207 = vweird.f32 %v4200
  %vm4208 = vmor %vm4206, %vm4207
  %v4209 = vsel %vm4208, %v4200, %v4205
  %v4210 = vrsqrt.pop %v4199
  %v4211 = vmul.f32 %v4210, %v4199
  %v4212 = vmul.f32 %v4211, %v4210
  %v4213 = vmul.f32 0.5, %v4212
  %v4214 = vsub.f32 1.5, %v4213
  %v4215 = vmul.f32 %v4210, %v4214
  %vm4216 = vweird.f32 %v4199
  %vm4217 = vweird.f32 %v4210
  %vm4218 = vmor %vm4216, %vm4217
  %v4219 = vsel %vm4218, %v4210, %v4215
  %v4220 = vmul.f32 %v4186, %v4209
  %v4221 = vmul.f32 %v4187, %v4219
  %v4222 = vperm.slane %v3523, 2
  %v4223 = vmul.f32 %v4220, %v4222
  %v4224 = vmul.f32 %v4221, %v4222
  %v4225 = vperm.slane %v3523, 3
  %v4226 = vadd.f32 %v4223, %v4225
  %v4227 = vadd.f32 %v4224, %v4225
  %s4228 = scalar_lea.vmem %s49, 16
  %v4229 = vld [vmem:[%s4228] sm:$0xf]
  %v4230 = vld [vmem:[%s4228 + $0x4] sm:$0xf]
  %v4231 = vld [vmem:[%s4228 + $0x8] sm:$0xf]
  %v4232 = vld [vmem:[%s4228 + $0xc] sm:$0xf]
  %v4233 = vpack.c.bf16 %v4227, %v4226
  %s4234 = scalar_lea.vmem %s51, 1
  %v4235 = vld [vmem:[%s4234] sm:$0x1]
  %v4237 = vperm.slane %v4235, 0
  %v4243 = vunpack.c.l.b16 %v4229
  %v4244 = vunpack.c.l.b16 %v4230
  %v4245 = vunpack.c.l.b16 %v4231
  %v4246 = vunpack.c.l.b16 %v4232
  %v4247 = vpack.c.b16 %v4244, %v4243
  %v4248 = vpack.c.b16 %v4246, %v4245
  %v4252 = vsel %vm280, %v4233, 0
  %4254 = vmatpush.bf16.msra.mxu0 0
  %4255 = vmatpush.bf16.msra.mxu0 0
  %4256 = vmatpush.bf16.msra.mxu0 0
  %4257 = vmatpush.bf16.msra.mxu0 0
  %4258 = vmatpush.bf16.msra.mxu0 0
  %4259 = vmatpush.bf16.msra.mxu0 0
  %4260 = vmatpush.bf16.msra.mxu0 %v4248
  %4261 = vmatpush.bf16.msra.mxu0 %v4247
  %4262 = vmatmul.bf16.gmra.mxu0 %v4252
  %v4263 = vpop.f32.mrf.mxu0
  %v4264 = vadd.f32 %v4237, %v4263
  %v4265 = vpop.f32.mrf.mxu0
  %v4266 = vadd.f32 %v4237, %v4265
  %4267 = vdwg.mxu0
  %v4268 = vmax.f32 %v4264, 0.0
  %v4269 = vmax.f32 %v4266, 0.0
  %s4270 = scalar_lea.vmem %s53, 32
  %v4271 = vld [vmem:[%s4270] sm:$0xf]
  %v4272 = vld [vmem:[%s4270 + $0x4] sm:$0xf]
  %v4273 = vld [vmem:[%s4270 + $0x8] sm:$0xf]
  %v4274 = vld [vmem:[%s4270 + $0xc] sm:$0xf]
  %v4275 = vld [vmem:[%s4270 + $0x10] sm:$0xf]
  %v4276 = vld [vmem:[%s4270 + $0x14] sm:$0xf]
  %v4277 = vld [vmem:[%s4270 + $0x18] sm:$0xf]
  %v4278 = vld [vmem:[%s4270 + $0x1c] sm:$0xf]
  %v4279 = vpack.c.bf16 %v4269, %v4268
  %v4288 = vunpack.c.l.b16 %v4271
  %v4289 = vunpack.c.l.b16 %v4272
  %v4290 = vunpack.c.l.b16 %v4273
  %v4291 = vunpack.c.l.b16 %v4274
  %v4292 = vunpack.c.l.b16 %v4275
  %v4293 = vunpack.c.l.b16 %v4276
  %v4294 = vunpack.c.l.b16 %v4277
  %v4295 = vunpack.c.l.b16 %v4278
  %v4296 = vpack.c.b16 %v4289, %v4288
  %v4297 = vpack.c.b16 %v4291, %v4290
  %v4298 = vpack.c.b16 %v4293, %v4292
  %v4299 = vpack.c.b16 %v4295, %v4294
  %v4305 = vsel %vm906, %v4279, 0
  %4307 = vmatpush.bf16.msra.mxu0 0
  %4308 = vmatpush.bf16.msra.mxu0 0
  %4309 = vmatpush.bf16.msra.mxu0 0
  %4310 = vmatpush.bf16.msra.mxu0 0
  %4311 = vmatpush.bf16.msra.mxu0 %v4299
  %4312 = vmatpush.bf16.msra.mxu0 %v4298
  %4313 = vmatpush.bf16.msra.mxu0 %v4297
  %4314 = vmatpush.bf16.msra.mxu0 %v4296
  %4315 = vmatmul.bf16.gmra.mxu0 %v4305
  %v4316 = vpop.f32.mrf.mxu0
  %v4317 = vadd.f32 0.0, %v4316
  %v4318 = vpop.f32.mrf.mxu0
  %v4319 = vadd.f32 0.0, %v4318
  %4320 = vdwg.mxu0
  %v4321 = vadd.f32 %v4226, %v4317
  %v4322 = vadd.f32 %v4227, %v4319
  %s4323 = scalar_lea.vmem %s55, 1
  %v4324 = vld [vmem:[%s4323] sm:$0x1]
  %v4326 = vperm.slane %v4324, 0
  %v4328 = vadd.f32 %v4321, %v4326
  %v4329 = vadd.f32 %v4322, %v4326
  %v4330 = vsel %vm280, %v4328, 0.0
  %4331 = vadd.xlane.f32.xlu0 %v4330
  %v4332 = vpop.xlane.xlu0 %4331
  %v4333 = vsel %vm2226, %v4329, 0.0
  %4334 = vadd.xlane.f32.xlu0 %v4333
  %v4335 = vpop.xlane.xlu0 %4334
  %v4336 = vmul.f32 %v4332, %v788
  %v4337 = vmul.f32 %v4335, %v788
  %v4338 = vsub.f32 %v4328, %v4336
  %v4339 = vsub.f32 %v4329, %v4337
  %v4340 = vmul.f32 %v4338, %v4338
  %v4341 = vmul.f32 %v4339, %v4339
  %v4342 = vsel %vm280, %v4340, 0.0
  %4343 = vadd.xlane.f32.xlu0 %v4342
  %v4344 = vpop.xlane.xlu0 %4343
  %v4345 = vsel %vm2226, %v4341, 0.0
  %4346 = vadd.xlane.f32.xlu0 %v4345
  %v4347 = vpop.xlane.xlu0 %4346
  %v4348 = vmul.f32 %v4344, %v788
  %v4349 = vmul.f32 %v4347, %v788
  %v4350 = vadd.f32 %v4348, 1e-05
  %v4351 = vadd.f32 %v4349, 1e-05
  %v4352 = vrsqrt.pop %v4350
  %v4353 = vmul.f32 %v4352, %v4350
  %v4354 = vmul.f32 %v4353, %v4352
  %v4355 = vmul.f32 0.5, %v4354
  %v4356 = vsub.f32 1.5, %v4355
  %v4357 = vmul.f32 %v4352, %v4356
  %vm4358 = vweird.f32 %v4350
  %vm4359 = vweird.f32 %v4352
  %vm4360 = vmor %vm4358, %vm4359
  %v4361 = vsel %vm4360, %v4352, %v4357
  %v4362 = vrsqrt.pop %v4351
  %v4363 = vmul.f32 %v4362, %v4351
  %v4364 = vmul.f32 %v4363, %v4362
  %v4365 = vmul.f32 0.5, %v4364
  %v4366 = vsub.f32 1.5, %v4365
  %v4367 = vmul.f32 %v4362, %v4366
  %vm4368 = vweird.f32 %v4351
  %vm4369 = vweird.f32 %v4362
  %vm4370 = vmor %vm4368, %vm4369
  %v4371 = vsel %vm4370, %v4362, %v4367
  %v4372 = vmul.f32 %v4338, %v4361
  %v4373 = vmul.f32 %v4339, %v4371
  %v4374 = vperm.slane %v3523, 4
  %v4375 = vmul.f32 %v4372, %v4374
  %v4376 = vmul.f32 %v4373, %v4374
  %v4377 = vperm.slane %v3523, 5
  %v4378 = vadd.f32 %v4375, %v4377
  %v4379 = vadd.f32 %v4376, %v4377
  %v4380 = vld [vmem:[%s59] sm:$0xf]
  %v4381 = vld [vmem:[%s59 + $0x4] sm:$0xf]
  %v4382 = vld [vmem:[%s59 + $0x8] sm:$0xf]
  %v4383 = vld [vmem:[%s59 + $0xc] sm:$0xf]
  %v4384 = vpack.c.bf16 %v4379, %v4378
  %v4385 = vld [vmem:[%s61] sm:$0x1]
  %v4387 = vperm.slane %v4385, 0
  %v4393 = vunpack.c.l.b16 %v4380
  %v4394 = vunpack.c.l.b16 %v4381
  %v4395 = vunpack.c.l.b16 %v4382
  %v4396 = vunpack.c.l.b16 %v4383
  %v4397 = vpack.c.b16 %v4394, %v4393
  %v4398 = vpack.c.b16 %v4396, %v4395
  %v4402 = vsel %vm280, %v4384, 0
  %4404 = vmatpush.bf16.msra.mxu0 0
  %4405 = vmatpush.bf16.msra.mxu0 0
  %4406 = vmatpush.bf16.msra.mxu0 0
  %4407 = vmatpush.bf16.msra.mxu0 0
  %4408 = vmatpush.bf16.msra.mxu0 0
  %4409 = vmatpush.bf16.msra.mxu0 0
  %4410 = vmatpush.bf16.msra.mxu0 %v4398
  %4411 = vmatpush.bf16.msra.mxu0 %v4397
  %4412 = vmatmul.bf16.gmra.mxu0 %v4402
  %v4413 = vpop.f32.mrf.mxu0
  %v4414 = vadd.f32 %v4387, %v4413
  %v4415 = vpop.f32.mrf.mxu0
  %v4416 = vadd.f32 %v4387, %v4415
  %4417 = vdwg.mxu0
  %4418 = vst [vmem:[%s63] sm:$0xff] %v4414
  %4419 = vst [vmem:[%s63 + $0x8] sm:$0x3f] %v4416
  // Predicated region
  $region126: #{seq2seq_forward.1} parent=0 // pred_check
    _
  $region127: #{seq2seq_forward.1} parent=0 // pred_check_branch
    %4421 = sbr.rel (0) target = $region129
  $region128: #{seq2seq_forward.1} parent=0 // pred_region
    _
  $region129: #{seq2seq_forward.1} parent=0 // pred_fallthru
    _
  // Predicated region
  $region130: #{seq2seq_forward.1} parent=0 // pred_check
    _
  $region131: #{seq2seq_forward.1} parent=0 // pred_check_branch
    %4423 = sbr.rel (0) target = $region133
  $region132: #{seq2seq_forward.1} parent=0 // pred_region
    _
  $region133: #{seq2seq_forward.1} parent=0 // pred_fallthru
    _
  // Predicated region
  $region134: #{seq2seq_forward.1} parent=0 // pred_check
    _
  $region135: #{seq2seq_forward.1} parent=0 // pred_check_branch
    %4425 = sbr.rel (0) target = $region137
  $region136: #{seq2seq_forward.1} parent=0 // pred_region
    _
  $region137: #{seq2seq_forward.1} parent=0 // pred_fallthru
    _
  // Predicated region
  $region138: #{seq2seq_forward.1} parent=0 // pred_check
    _
  $region139: #{seq2seq_forward.1} parent=0 // pred_check_branch
    %4427 = sbr.rel (0) target = $region141
  $region140: #{seq2seq_forward.1} parent=0 // pred_region
    _
  $region141: #{seq2seq_forward.1} parent=0 // pred_fallthru
    _

</llo_original>
